<compile_context>
chip_gen: v7x
topology: tpu7x:2x2x1
jax: 0.10.0
libtpu: 0.0.40
codegen_flags: <defaults>
</compile_context>

<pallas_src>
import numpy as np
import jax
import jax.numpy as jnp
from jax.experimental import pallas as pl
from jax.experimental.pallas import tpu as pltpu

# ---------------- model hyper-parameters (small, TPU-tile friendly) ----------------
HIDDEN = 128            # config.hidden_size (== emb_size, required since rs feeds the MHA)
EMB = 128               # emb_size
BLOCK = 32              # block_size
NB = EMB // BLOCK
NUM_LABELS = 8          # config.num_labels
LPAD = 128              # label axis padded to a full lane width (lane-dense stores)
KBIL = NB * NUM_LABELS * BLOCK   # 1024, width of the merged bilinear intermediates
ENC_HEADS = 4           # encoder attention heads (the `attention` tensor)
SEQ = 128               # sequence length c
OFFSET = 1              # bert-style offset
PAIR_TILE = 256         # pairs per grid step


def _round_up(x, m):
    return ((x + m - 1) // m) * m


def _bucket_tiles(t):
    # power-of-two tile buckets: bounded compile shapes + even counts for 2-TC sharding
    return max(1, 1 << (t - 1).bit_length())


# ---------------------------------------------------------------------------------
# Fused kernel: per 256-pair tile
#   gather h/t entity attention rows + embeddings (one-hot MXU gather from the
#   resident per-doc tables), pair context, extractors, grouped bilinear classifier.
# ---------------------------------------------------------------------------------
def _docre_kernel(doc_ref, hoh_ref, toh_ref, ew_ref, ee_ref, seq_ref,
                  wvo_ref, bvo_ref, wh_ref, bh_ref, wt_ref, bt_ref,
                  wa_ref, rt_ref, seg_ref, bb_ref, out_ref):
    del doc_ref  # consumed only by the BlockSpec index_maps
    f32 = jnp.float32
    bf16 = jnp.bfloat16

    hoh = hoh_ref[...]                       # (TP, NEp) bf16 one-hot head-entity rows
    toh = toh_ref[...]                       # (TP, NEp) bf16 one-hot tail-entity rows
    ew = ew_ref[0]                           # (NEp, A*C) bf16 per-entity attention (heads lane-flattened)
    ee = ee_ref[0]                           # (NEp, D)   bf16 per-entity pooled embeddings
    seq = seq_ref[0]                         # (C, D)     bf16 sequence_output of this doc
    c = seq.shape[0]
    n_heads = ew.shape[1] // c

    # one-hot MXU gather: exact row copies (single nonzero term, f32 accumulation)
    hw = jnp.dot(hoh, ew, preferred_element_type=f32)      # (TP, A*C)
    tw = jnp.dot(toh, ew, preferred_element_type=f32)
    hs = jnp.dot(hoh, ee, preferred_element_type=f32)      # (TP, D)
    ts = jnp.dot(toh, ee, preferred_element_type=f32)

    # ht_att = sum over heads of (hw*tw): 128-lane-aligned slices, pure VPU
    ht = hw * tw
    ht_att = ht[:, 0:c]
    for h in range(1, n_heads):                            # static unrolled, 3 adds
        ht_att = ht_att + ht[:, h * c:(h + 1) * c]
    denom = jnp.sum(ht_att, axis=-1, keepdims=True) + 1e-5
    ht_att = ht_att * pl.reciprocal(denom, approx=True)    # EUP reciprocal

    # pair context: ctx = ht_att @ seq ; rs = ctx @ (Wv^T Wo^T) + bvo
    # (nn.MultiheadAttention on a length-1 sequence == out_proj(v_proj(.)); folded at init)
    ctx = jnp.dot(ht_att.astype(bf16), seq, preferred_element_type=f32)
    rs = jnp.dot(ctx.astype(bf16), wvo_ref[...], preferred_element_type=f32) + bvo_ref[...]
    rs_b = rs.astype(bf16)

    # extractors: single K=256 MXU dots on concat([·, rs]) (lane-aligned concat)
    hp = jnp.tanh(jnp.dot(jnp.concatenate([hs.astype(bf16), rs_b], axis=1),
                          wh_ref[...], preferred_element_type=f32) + bh_ref[...])
    tp = jnp.tanh(jnp.dot(jnp.concatenate([ts.astype(bf16), rs_b], axis=1),
                          wt_ref[...], preferred_element_type=f32) + bt_ref[...])

    # grouped bilinear, fully on the MXU (no per-block loop / lane slicing / concat-repeat)
    #   A[p, kLB+lB+j] = sum_i hp[p, kB+i] * Wbil[l, kBB+iB+j]     (hp @ WA)
    #   T[p, kLB+lB+j] = tp[p, kB+j]                               (tp @ RT, 0/1 replicate)
    #   logits[p, l]   = sum_{k,j} (A*T)[p, kLB+lB+j] + b          ((A*T) @ SEG + b)
    a_full = jnp.dot(hp.astype(bf16), wa_ref[...], preferred_element_type=f32)   # (TP, KBIL)
    t_full = jnp.dot(tp.astype(bf16), rt_ref[...], preferred_element_type=f32)
    prod = (a_full * t_full).astype(bf16)
    out_ref[...] = (jnp.dot(prod, seg_ref[...], preferred_element_type=f32)
                    + bb_ref[...])                                  # (TP, LPAD) lane-dense


def docre_pairs(tile_doc, hoh, toh, ew, ee, seq, params):
    ppad, nep = hoh.shape
    n_tiles = ppad // PAIR_TILE
    ac = ew.shape[2]
    d = seq.shape[2]
    c = seq.shape[1]

    def wspec(x):
        return pl.BlockSpec(x.shape, lambda t, doc: (0, 0))

    grid_spec = pltpu.PrefetchScalarGridSpec(
        num_scalar_prefetch=1,
        grid=(n_tiles,),
        in_specs=[
            pl.BlockSpec((PAIR_TILE, nep), lambda t, doc: (t, 0)),       # head one-hots
            pl.BlockSpec((PAIR_TILE, nep), lambda t, doc: (t, 0)),       # tail one-hots
            pl.BlockSpec((1, nep, ac), lambda t, doc: (doc[t], 0, 0)),   # entity attention table
            pl.BlockSpec((1, nep, d), lambda t, doc: (doc[t], 0, 0)),    # entity embedding table
            pl.BlockSpec((1, c, d), lambda t, doc: (doc[t], 0, 0)),      # sequence_output
            wspec(params["wvo_t"]), wspec(params["bvo"]),
            wspec(params["wh_t"]), wspec(params["bh"]),
            wspec(params["wt_t"]), wspec(params["bt"]),
            wspec(params["wa"]), wspec(params["rt"]),
            wspec(params["seg"]), wspec(params["bb"]),
        ],
        out_specs=pl.BlockSpec((PAIR_TILE, LPAD), lambda t, doc: (t, 0)),
    )
    return pl.pallas_call(
        _docre_kernel,
        out_shape=jax.ShapeDtypeStruct((ppad, LPAD), jnp.float32),
        grid_spec=grid_spec,
        compiler_params=pltpu.CompilerParams(
            dimension_semantics=("parallel",),
            vmem_limit_bytes=32 * 1024 * 1024),
    )(tile_doc, hoh, toh, ew, ee, seq,
      params["wvo_t"], params["bvo"], params["wh_t"], params["bh"],
      params["wt_t"], params["bt"], params["wa"], params["rt"],
      params["seg"], params["bb"])


# ---------------------------------------------------------------------------------
# Input preparation: ragged entity pooling (logsumexp / mean over mentions) is
# trace-time glue over the static entity_pos / hts structure; all pair-level compute
# runs inside the fused tiled kernel.
# ---------------------------------------------------------------------------------
def prepare_inputs(sequence_output, attention, entity_pos, hts):
    n, c, d = sequence_output.shape
    a = attention.shape[1]
    ne_max = max(len(ep) for ep in entity_pos)
    nep = max(16, _round_up(ne_max, 16))            # bf16 sublane packing

    ew_l, ee_l, hoh_l, toh_l = [], [], [], []
    tile_doc, valid_rows = [], []
    row = 0
    for i in range(n):
        embs, wgts = [], []
        for e in entity_pos[i]:
            e_emb, e_w = [], []
            for (start, end) in e:
                if start + OFFSET < c:
                    e_emb.append(sequence_output[i, start + OFFSET])
                    e_w.append(attention[i, :, start + OFFSET])
            if e_emb:
                embs.append(jax.nn.logsumexp(jnp.stack(e_emb, 0), axis=0))
                wgts.append(jnp.mean(jnp.stack(e_w, 0), axis=0))
            else:
                embs.append(jnp.zeros((d,), jnp.float32))
                wgts.append(jnp.zeros((a, c), jnp.float32))
        ee = jnp.stack(embs, 0)                             # (NE, D)
        ew = jnp.stack(wgts, 0).reshape(-1, a * c)          # (NE, A*C) lane-flattened heads
        ne = ee.shape[0]
        ee_l.append(jnp.pad(ee, ((0, nep - ne), (0, 0))))
        ew_l.append(jnp.pad(ew, ((0, nep - ne), (0, 0))))

        ht_i = np.asarray(hts[i], dtype=np.int64).reshape(-1, 2)
        p = ht_i.shape[0]
        ppad = _round_up(p, PAIR_TILE)
        hoh = np.zeros((ppad, nep), np.float32)
        toh = np.zeros((ppad, nep), np.float32)
        hoh[np.arange(p), ht_i[:, 0]] = 1.0
        toh[np.arange(p), ht_i[:, 1]] = 1.0
        hoh_l.append(hoh)
        toh_l.append(toh)
        tile_doc += [i] * (ppad // PAIR_TILE)
        valid_rows.append(row + np.arange(p, dtype=np.int32))
        row += ppad

    n_tiles = row // PAIR_TILE
    n_tiles_b = _bucket_tiles(n_tiles)
    extra = (n_tiles_b - n_tiles) * PAIR_TILE
    if extra:
        hoh_l.append(np.zeros((extra, nep), np.float32))
        toh_l.append(np.zeros((extra, nep), np.float32))
        tile_doc += [0] * (n_tiles_b - n_tiles)

    hoh_all = jnp.asarray(np.concatenate(hoh_l, 0), jnp.bfloat16)
    toh_all = jnp.asarray(np.concatenate(toh_l, 0), jnp.bfloat16)
    ew_all = jnp.stack(ew_l, 0).astype(jnp.bfloat16)        # (N_DOCS, NEp, A*C)
    ee_all = jnp.stack(ee_l, 0).astype(jnp.bfloat16)        # (N_DOCS, NEp, D)
    seq_all = sequence_output.astype(jnp.bfloat16)          # (N_DOCS, C, D)
    tile_doc = jnp.asarray(tile_doc, jnp.int32)
    valid_rows = np.concatenate(valid_rows, 0)
    return tile_doc, hoh_all, toh_all, ew_all, ee_all, seq_all, valid_rows


def docre_forward(params, sequence_output, attention, entity_pos, hts):
    (tile_doc, hoh, toh, ew, ee, seq, valid_rows) = prepare_inputs(
        sequence_output, attention, entity_pos, hts)
    logits_pad = docre_pairs(tile_doc, hoh, toh, ew, ee, seq, params)   # (ppad, LPAD)
    return logits_pad[valid_rows, :NUM_LABELS]


# ---------------------------------------------------------------------------------
# Parameters: raw f32 weights mirror the nn.Module layout; kernel params are the
# algebraically-folded / MXU-friendly forms.
# ---------------------------------------------------------------------------------
def init_raw_params(key):
    ks = jax.random.split(key, 10)

    def init(k, shape):
        return 0.02 * jax.random.normal(k, shape, dtype=jnp.float32)

    return dict(
        wh=init(ks[0], (EMB, 2 * HIDDEN)), bh=init(ks[1], (EMB,)),        # head_extractor
        wt=init(ks[2], (EMB, 2 * HIDDEN)), bt=init(ks[3], (EMB,)),        # tail_extractor
        wbil=init(ks[4], (NUM_LABELS, EMB * BLOCK)), bbil=init(ks[5], (NUM_LABELS,)),
        in_proj_w=init(ks[6], (3 * EMB, EMB)), in_proj_b=init(ks[7], (3 * EMB,)),
        wo=init(ks[8], (EMB, EMB)), bo=init(ks[9], (EMB,)),               # MHA out_proj
    )


def prepare_kernel_params(raw):
    bf = jnp.bfloat16
    wv = raw["in_proj_w"][2 * EMB:]          # only the V projection matters (seq len 1)
    bv = raw["in_proj_b"][2 * EMB:]
    wo, bo = raw["wo"], raw["bo"]

    # fold out_proj into v_proj (exact: softmax over a length-1 key is identity)
    wvo_t = jnp.transpose(wv) @ jnp.transpose(wo)            # (EMB, EMB)
    bvo = bv @ jnp.transpose(wo) + bo                        # (EMB,)

    # merged bilinear operands:
    #   WA[k*B+i, k*L*B + l*B + j] = Wbil[l, k*B*B + i*B + j]
    #   RT[k*B+j, k*L*B + l*B + j] = 1
    #   SEG[k*L*B + l*B + j, l]    = 1   (padded to LPAD lanes)
    wb = np.asarray(raw["wbil"], np.float32).reshape(NUM_LABELS, NB, BLOCK, BLOCK)
    sub = np.transpose(wb, (1, 2, 0, 3)).reshape(NB, BLOCK, NUM_LABELS * BLOCK)
    wa = np.zeros((EMB, KBIL), np.float32)
    rt = np.zeros((EMB, KBIL), np.float32)
    rep = np.tile(np.eye(BLOCK, dtype=np.float32), (1, NUM_LABELS))
    for k in range(NB):
        wa[k * BLOCK:(k + 1) * BLOCK,
           k * NUM_LABELS * BLOCK:(k + 1) * NUM_LABELS * BLOCK] = sub[k]
        rt[k * BLOCK:(k + 1) * BLOCK,
           k * NUM_LABELS * BLOCK:(k + 1) * NUM_LABELS * BLOCK] = rep
    r = np.arange(KBIL)
    seg = np.zeros((KBIL, LPAD), np.float32)
    seg[r, (r // BLOCK) % NUM_LABELS] = 1.0
    bb = np.zeros((1, LPAD), np.float32)
    bb[0, :NUM_LABELS] = np.asarray(raw["bbil"], np.float32)

    return dict(
        wvo_t=wvo_t.astype(bf), bvo=jnp.asarray(bvo, jnp.float32)[None, :],
        wh_t=jnp.transpose(raw["wh"]).astype(bf), bh=raw["bh"][None, :],
        wt_t=jnp.transpose(raw["wt"]).astype(bf), bt=raw["bt"][None, :],
        wa=jnp.asarray(wa, bf), rt=jnp.asarray(rt, bf),
        seg=jnp.asarray(seg, bf), bb=jnp.asarray(bb, jnp.float32),
    )


# ---------------------------------------------------------------------------------
# Pure-JAX f32 reference mirroring the PyTorch forward (default path), for validation.
# ---------------------------------------------------------------------------------
def reference_forward(raw, sequence_output, attention, entity_pos, hts):
    n, c, d = sequence_output.shape
    a = attention.shape[1]
    wv = raw["in_proj_w"][2 * EMB:]
    bv = raw["in_proj_b"][2 * EMB:]
    hss, tss, rss = [], [], []
    for i in range(n):
        embs, wgts = [], []
        for e in entity_pos[i]:
            e_emb, e_w = [], []
            for (start, end) in e:
                if start + OFFSET < c:
                    e_emb.append(sequence_output[i, start + OFFSET])
                    e_w.append(attention[i, :, start + OFFSET])
            if e_emb:
                embs.append(jax.nn.logsumexp(jnp.stack(e_emb, 0), axis=0))
                wgts.append(jnp.mean(jnp.stack(e_w, 0), axis=0))
            else:
                embs.append(jnp.zeros((d,), jnp.float32))
                wgts.append(jnp.zeros((a, c), jnp.float32))
        ee = jnp.stack(embs, 0)
        ew = jnp.stack(wgts, 0)
        ht_i = jnp.asarray(hts[i], jnp.int32).reshape(-1, 2)
        hs = ee[ht_i[:, 0]]
        ts = ee[ht_i[:, 1]]
        hw = ew[ht_i[:, 0]]
        tw = ew[ht_i[:, 1]]
        ht_att = (hw * tw).sum(1)
        ht_att = ht_att / (ht_att.sum(1, keepdims=True) + 1e-5)
        rs = ht_att @ sequence_output[i]
        # MultiheadAttention over a length-1 sequence == out_proj(v_proj(rs))
        rs = (rs @ wv.T + bv) @ raw["wo"].T + raw["bo"]
        hss.append(hs)
        tss.append(ts)
        rss.append(rs)
    hs = jnp.concatenate(hss, 0)
    ts = jnp.concatenate(tss, 0)
    rs = jnp.concatenate(rss, 0)
    hp = jnp.tanh(jnp.concatenate([hs, rs], 1) @ raw["wh"].T + raw["bh"])
    tp = jnp.tanh(jnp.concatenate([ts, rs], 1) @ raw["wt"].T + raw["bt"])
    b1 = hp.reshape(-1, NB, BLOCK)
    b2 = tp.reshape(-1, NB, BLOCK)
    bl = (b1[:, :, :, None] * b2[:, :, None, :]).reshape(-1, EMB * BLOCK)
    return bl @ raw["wbil"].T + raw["bbil"]


if __name__ == "__main__":
    key = jax.random.PRNGKey(0)
    kp, kseq, katt = jax.random.split(key, 3)
    raw = init_raw_params(kp)
    params = prepare_kernel_params(raw)

    n_docs = 2
    sequence_output = jax.random.normal(kseq, (n_docs, SEQ, HIDDEN), dtype=jnp.float32)
    attention = jax.nn.softmax(
        jax.random.normal(katt, (n_docs, ENC_HEADS, SEQ, SEQ), dtype=jnp.float32), axis=-1)

    # static entity mention spans and head/tail pairs (mirrors entity_pos / hts lists)
    entity_pos = [
        [[(0, 2), (10, 12)], [(5, 7)], [(20, 23), (40, 41), (60, 62)]],
        [[(3, 4)], [(15, 18), (30, 31)], [(50, 52), (300, 301)], [(200, 201)]],
    ]
    hts = [
        [(h, t) for h in range(3) for t in range(3) if h != t],   # 6 pairs
        [(h, t) for h in range(4) for t in range(4) if h != t],   # 12 pairs
    ]

    logits = docre_forward(params, sequence_output, attention, entity_pos, hts)
    logits = jax.block_until_ready(logits)

    n_pairs = len(hts[0]) + len(hts[1])
    assert logits.shape == (n_pairs, NUM_LABELS)
    assert bool(jnp.all(jnp.isfinite(logits)))

    ref = reference_forward(raw, sequence_output, attention, entity_pos, hts)
    max_err = float(jnp.max(jnp.abs(logits - ref)))
    assert max_err < 5e-2, f"max abs error vs f32 reference: {max_err}"
    print("KERNEL_OK")
</pallas_src>

<mosaic_0001>
module attributes {stable_mosaic.version = 11 : i64} {
  func.func @_docre_kernel(%arg0: i32, %arg1: memref<2xi32, #tpu.memory_space<smem>>, %arg2: memref<256x16xbf16, #tpu.memory_space<vmem>>, %arg3: memref<256x16xbf16, #tpu.memory_space<vmem>>, %arg4: memref<1x16x512xbf16, #tpu.memory_space<vmem>>, %arg5: memref<1x16x128xbf16, #tpu.memory_space<vmem>>, %arg6: memref<1x128x128xbf16, #tpu.memory_space<vmem>>, %arg7: memref<128x128xbf16, #tpu.memory_space<vmem>>, %arg8: memref<1x128xf32, #tpu.memory_space<vmem>>, %arg9: memref<256x128xbf16, #tpu.memory_space<vmem>>, %arg10: memref<1x128xf32, #tpu.memory_space<vmem>>, %arg11: memref<256x128xbf16, #tpu.memory_space<vmem>>, %arg12: memref<1x128xf32, #tpu.memory_space<vmem>>, %arg13: memref<128x1024xbf16, #tpu.memory_space<vmem>>, %arg14: memref<128x1024xbf16, #tpu.memory_space<vmem>>, %arg15: memref<1024x128xbf16, #tpu.memory_space<vmem>>, %arg16: memref<1x128xf32, #tpu.memory_space<vmem>>, %arg17: memref<256x128xf32, #tpu.memory_space<vmem>>) attributes {dimension_semantics = [#tpu.dimension_semantics<parallel>], iteration_bounds = array<i64: 2>, scalar_prefetch = 1 : i64, scratch_operands = 0 : i64, tpu.core_type = #tpu.core_type<tc>, window_params = [{transform_indices = @transform_0, window_bounds = array<i64: 256, 16>}, {transform_indices = @transform_1, window_bounds = array<i64: 256, 16>}, {transform_indices = @transform_2, window_bounds = array<i64: 1, 16, 512>}, {transform_indices = @transform_3, window_bounds = array<i64: 1, 16, 128>}, {transform_indices = @transform_4, window_bounds = array<i64: 1, 128, 128>}, {pipeline_mode = #tpu.pipeline_mode<synchronous>, transform_indices = @transform_5, window_bounds = array<i64: 128, 128>}, {pipeline_mode = #tpu.pipeline_mode<synchronous>, transform_indices = @transform_6, window_bounds = array<i64: 1, 128>}, {pipeline_mode = #tpu.pipeline_mode<synchronous>, transform_indices = @transform_7, window_bounds = array<i64: 256, 128>}, {pipeline_mode = #tpu.pipeline_mode<synchronous>, transform_indices = @transform_8, window_bounds = array<i64: 1, 128>}, {pipeline_mode = #tpu.pipeline_mode<synchronous>, transform_indices = @transform_9, window_bounds = array<i64: 256, 128>}, {pipeline_mode = #tpu.pipeline_mode<synchronous>, transform_indices = @transform_10, window_bounds = array<i64: 1, 128>}, {pipeline_mode = #tpu.pipeline_mode<synchronous>, transform_indices = @transform_11, window_bounds = array<i64: 128, 1024>}, {pipeline_mode = #tpu.pipeline_mode<synchronous>, transform_indices = @transform_12, window_bounds = array<i64: 128, 1024>}, {pipeline_mode = #tpu.pipeline_mode<synchronous>, transform_indices = @transform_13, window_bounds = array<i64: 1024, 128>}, {pipeline_mode = #tpu.pipeline_mode<synchronous>, transform_indices = @transform_14, window_bounds = array<i64: 1, 128>}, {transform_indices = @transform_15, window_bounds = array<i64: 256, 128>}]} {
    %c0 = arith.constant 0 : index
    %c0_0 = arith.constant 0 : index
    %0 = vector.load %arg2[%c0, %c0_0] : memref<256x16xbf16, #tpu.memory_space<vmem>>, vector<256x16xbf16>
    %c0_1 = arith.constant 0 : index
    %c0_2 = arith.constant 0 : index
    %1 = vector.load %arg3[%c0_1, %c0_2] : memref<256x16xbf16, #tpu.memory_space<vmem>>, vector<256x16xbf16>
    %c0_3 = arith.constant 0 : index
    %c0_4 = arith.constant 0 : index
    %c0_5 = arith.constant 0 : index
    %2 = vector.load %arg4[%c0_3, %c0_4, %c0_5] : memref<1x16x512xbf16, #tpu.memory_space<vmem>>, vector<1x16x512xbf16>
    %3 = vector.shape_cast %2 : vector<1x16x512xbf16> to vector<16x512xbf16>
    %c0_6 = arith.constant 0 : index
    %c0_7 = arith.constant 0 : index
    %c0_8 = arith.constant 0 : index
    %4 = vector.load %arg5[%c0_6, %c0_7, %c0_8] : memref<1x16x128xbf16, #tpu.memory_space<vmem>>, vector<1x16x128xbf16>
    %5 = vector.shape_cast %4 : vector<1x16x128xbf16> to vector<16x128xbf16>
    %c0_9 = arith.constant 0 : index
    %c0_10 = arith.constant 0 : index
    %c0_11 = arith.constant 0 : index
    %6 = vector.load %arg6[%c0_9, %c0_10, %c0_11] : memref<1x128x128xbf16, #tpu.memory_space<vmem>>, vector<1x128x128xbf16>
    %7 = vector.shape_cast %6 : vector<1x128x128xbf16> to vector<128x128xbf16>
    %cst = arith.constant dense<0.000000e+00> : vector<256x512xf32>
    %8 = tpu.matmul %0, %3, %cst {dimension_numbers = #tpu.dot_dimension_numbers<[1], [0], [0], [1], [0, 0, 1, 1], [], []>} : vector<256x16xbf16>, vector<16x512xbf16>, vector<256x512xf32> -> vector<256x512xf32>
    %cst_12 = arith.constant dense<0.000000e+00> : vector<256x512xf32>
    %9 = tpu.matmul %1, %3, %cst_12 {dimension_numbers = #tpu.dot_dimension_numbers<[1], [0], [0], [1], [0, 0, 1, 1], [], []>} : vector<256x16xbf16>, vector<16x512xbf16>, vector<256x512xf32> -> vector<256x512xf32>
    %cst_13 = arith.constant dense<0.000000e+00> : vector<256x128xf32>
    %10 = tpu.matmul %0, %5, %cst_13 {dimension_numbers = #tpu.dot_dimension_numbers<[1], [0], [0], [1], [0, 0, 1, 1], [], []>} : vector<256x16xbf16>, vector<16x128xbf16>, vector<256x128xf32> -> vector<256x128xf32>
    %cst_14 = arith.constant dense<0.000000e+00> : vector<256x128xf32>
    %11 = tpu.matmul %1, %5, %cst_14 {dimension_numbers = #tpu.dot_dimension_numbers<[1], [0], [0], [1], [0, 0, 1, 1], [], []>} : vector<256x16xbf16>, vector<16x128xbf16>, vector<256x128xf32> -> vector<256x128xf32>
    %12 = arith.mulf %8, %9 : vector<256x512xf32>
    %13 = vector.extract_strided_slice %12 {offsets = [0, 0], sizes = [256, 128], strides = [1, 1]} : vector<256x512xf32> to vector<256x128xf32>
    %14 = vector.extract_strided_slice %12 {offsets = [0, 128], sizes = [256, 128], strides = [1, 1]} : vector<256x512xf32> to vector<256x128xf32>
    %15 = arith.addf %13, %14 : vector<256x128xf32>
    %16 = vector.extract_strided_slice %12 {offsets = [0, 256], sizes = [256, 128], strides = [1, 1]} : vector<256x512xf32> to vector<256x128xf32>
    %17 = arith.addf %15, %16 : vector<256x128xf32>
    %18 = vector.extract_strided_slice %12 {offsets = [0, 384], sizes = [256, 128], strides = [1, 1]} : vector<256x512xf32> to vector<256x128xf32>
    %19 = arith.addf %17, %18 : vector<256x128xf32>
    %cst_15 = arith.constant dense<0.000000e+00> : vector<256xf32>
    %20 = vector.multi_reduction <add>, %19, %cst_15 [1] : vector<256x128xf32> to vector<256xf32>
    %21 = vector.shape_cast %20 : vector<256xf32> to vector<256x1xf32>
    %cst_16 = arith.constant 9.99999974E-6 : f32
    %22 = vector.broadcast %cst_16 : f32 to vector<256x1xf32>
    %23 = arith.addf %21, %22 : vector<256x1xf32>
    %24 = tpu.reciprocal %23 {approx = true} : vector<256x1xf32> -> vector<256x1xf32>
    %25 = vector.broadcast %24 : vector<256x1xf32> to vector<256x128xf32>
    %26 = arith.mulf %19, %25 : vector<256x128xf32>
    %27 = arith.truncf %26 : vector<256x128xf32> to vector<256x128xbf16>
    %cst_17 = arith.constant dense<0.000000e+00> : vector<256x128xf32>
    %28 = tpu.matmul %27, %7, %cst_17 {dimension_numbers = #tpu.dot_dimension_numbers<[1], [0], [0], [1], [0, 0, 1, 1], [], []>} : vector<256x128xbf16>, vector<128x128xbf16>, vector<256x128xf32> -> vector<256x128xf32>
    %29 = arith.truncf %28 : vector<256x128xf32> to vector<256x128xbf16>
    %c0_18 = arith.constant 0 : index
    %c0_19 = arith.constant 0 : index
    %30 = vector.load %arg7[%c0_18, %c0_19] : memref<128x128xbf16, #tpu.memory_space<vmem>>, vector<128x128xbf16>
    %cst_20 = arith.constant dense<0.000000e+00> : vector<256x128xf32>
    %31 = tpu.matmul %29, %30, %cst_20 {dimension_numbers = #tpu.dot_dimension_numbers<[1], [0], [0], [1], [0, 0, 1, 1], [], []>} : vector<256x128xbf16>, vector<128x128xbf16>, vector<256x128xf32> -> vector<256x128xf32>
    %c0_21 = arith.constant 0 : index
    %c0_22 = arith.constant 0 : index
    %32 = vector.load %arg8[%c0_21, %c0_22] : memref<1x128xf32, #tpu.memory_space<vmem>>, vector<1x128xf32>
    %33 = vector.broadcast %32 : vector<1x128xf32> to vector<256x128xf32>
    %34 = arith.addf %31, %33 : vector<256x128xf32>
    %35 = arith.truncf %34 : vector<256x128xf32> to vector<256x128xbf16>
    %36 = arith.truncf %10 : vector<256x128xf32> to vector<256x128xbf16>
    %37 = tpu.concatenate %36, %35 in 1 : vector<256x128xbf16>, vector<256x128xbf16> -> vector<256x256xbf16>
    %c0_23 = arith.constant 0 : index
    %c0_24 = arith.constant 0 : index
    %38 = vector.load %arg9[%c0_23, %c0_24] : memref<256x128xbf16, #tpu.memory_space<vmem>>, vector<256x128xbf16>
    %cst_25 = arith.constant dense<0.000000e+00> : vector<256x128xf32>
    %39 = tpu.matmul %37, %38, %cst_25 {dimension_numbers = #tpu.dot_dimension_numbers<[1], [0], [0], [1], [0, 0, 1, 1], [], []>} : vector<256x256xbf16>, vector<256x128xbf16>, vector<256x128xf32> -> vector<256x128xf32>
    %c0_26 = arith.constant 0 : index
    %c0_27 = arith.constant 0 : index
    %40 = vector.load %arg10[%c0_26, %c0_27] : memref<1x128xf32, #tpu.memory_space<vmem>>, vector<1x128xf32>
    %41 = vector.broadcast %40 : vector<1x128xf32> to vector<256x128xf32>
    %42 = arith.addf %39, %41 : vector<256x128xf32>
    %43 = math.tanh %42 : vector<256x128xf32>
    %44 = arith.truncf %11 : vector<256x128xf32> to vector<256x128xbf16>
    %45 = tpu.concatenate %44, %35 in 1 : vector<256x128xbf16>, vector<256x128xbf16> -> vector<256x256xbf16>
    %c0_28 = arith.constant 0 : index
    %c0_29 = arith.constant 0 : index
    %46 = vector.load %arg11[%c0_28, %c0_29] : memref<256x128xbf16, #tpu.memory_space<vmem>>, vector<256x128xbf16>
    %cst_30 = arith.constant dense<0.000000e+00> : vector<256x128xf32>
    %47 = tpu.matmul %45, %46, %cst_30 {dimension_numbers = #tpu.dot_dimension_numbers<[1], [0], [0], [1], [0, 0, 1, 1], [], []>} : vector<256x256xbf16>, vector<256x128xbf16>, vector<256x128xf32> -> vector<256x128xf32>
    %c0_31 = arith.constant 0 : index
    %c0_32 = arith.constant 0 : index
    %48 = vector.load %arg12[%c0_31, %c0_32] : memref<1x128xf32, #tpu.memory_space<vmem>>, vector<1x128xf32>
    %49 = vector.broadcast %48 : vector<1x128xf32> to vector<256x128xf32>
    %50 = arith.addf %47, %49 : vector<256x128xf32>
    %51 = math.tanh %50 : vector<256x128xf32>
    %52 = arith.truncf %43 : vector<256x128xf32> to vector<256x128xbf16>
    %c0_33 = arith.constant 0 : index
    %c0_34 = arith.constant 0 : index
    %53 = vector.load %arg13[%c0_33, %c0_34] : memref<128x1024xbf16, #tpu.memory_space<vmem>>, vector<128x1024xbf16>
    %cst_35 = arith.constant dense<0.000000e+00> : vector<256x1024xf32>
    %54 = tpu.matmul %52, %53, %cst_35 {dimension_numbers = #tpu.dot_dimension_numbers<[1], [0], [0], [1], [0, 0, 1, 1], [], []>} : vector<256x128xbf16>, vector<128x1024xbf16>, vector<256x1024xf32> -> vector<256x1024xf32>
    %55 = arith.truncf %51 : vector<256x128xf32> to vector<256x128xbf16>
    %c0_36 = arith.constant 0 : index
    %c0_37 = arith.constant 0 : index
    %56 = vector.load %arg14[%c0_36, %c0_37] : memref<128x1024xbf16, #tpu.memory_space<vmem>>, vector<128x1024xbf16>
    %cst_38 = arith.constant dense<0.000000e+00> : vector<256x1024xf32>
    %57 = tpu.matmul %55, %56, %cst_38 {dimension_numbers = #tpu.dot_dimension_numbers<[1], [0], [0], [1], [0, 0, 1, 1], [], []>} : vector<256x128xbf16>, vector<128x1024xbf16>, vector<256x1024xf32> -> vector<256x1024xf32>
    %58 = arith.mulf %54, %57 : vector<256x1024xf32>
    %59 = arith.truncf %58 : vector<256x1024xf32> to vector<256x1024xbf16>
    %c0_39 = arith.constant 0 : index
    %c0_40 = arith.constant 0 : index
    %60 = vector.load %arg15[%c0_39, %c0_40] : memref<1024x128xbf16, #tpu.memory_space<vmem>>, vector<1024x128xbf16>
    %cst_41 = arith.constant dense<0.000000e+00> : vector<256x128xf32>
    %61 = tpu.matmul %59, %60, %cst_41 {dimension_numbers = #tpu.dot_dimension_numbers<[1], [0], [0], [1], [0, 0, 1, 1], [], []>} : vector<256x1024xbf16>, vector<1024x128xbf16>, vector<256x128xf32> -> vector<256x128xf32>
    %c0_42 = arith.constant 0 : index
    %c0_43 = arith.constant 0 : index
    %62 = vector.load %arg16[%c0_42, %c0_43] : memref<1x128xf32, #tpu.memory_space<vmem>>, vector<1x128xf32>
    %63 = vector.broadcast %62 : vector<1x128xf32> to vector<256x128xf32>
    %64 = arith.addf %61, %63 : vector<256x128xf32>
    %c0_44 = arith.constant 0 : index
    %c0_45 = arith.constant 0 : index
    %65 = vector.load %arg17[%c0_44, %c0_45] : memref<256x128xf32, #tpu.memory_space<vmem>>, vector<256x128xf32>
    tpu.vector_store %arg17[%c0_44, %c0_45], %64 {strides = array<i32>} : memref<256x128xf32, #tpu.memory_space<vmem>>, vector<256x128xf32>,
    return
  }
  func.func @transform_0(%arg0: i32, %arg1: memref<2xi32, #tpu.memory_space<smem>>) -> (i32, i32) {
    %c0_i32 = arith.constant 0 : i32
    %c0_i32_0 = arith.constant 0 : i32
    return %arg0, %c0_i32 : i32, i32
  }
  func.func @transform_1(%arg0: i32, %arg1: memref<2xi32, #tpu.memory_space<smem>>) -> (i32, i32) {
    %c0_i32 = arith.constant 0 : i32
    %c0_i32_0 = arith.constant 0 : i32
    return %arg0, %c0_i32 : i32, i32
  }
  func.func @transform_2(%arg0: i32, %arg1: memref<2xi32, #tpu.memory_space<smem>>) -> (i32, i32, i32) {
    %0 = arith.index_cast %arg0 : i32 to index
    %1 = memref.load %arg1[%0] : memref<2xi32, #tpu.memory_space<smem>>
    %c0_i32 = arith.constant 0 : i32
    %c0_i32_0 = arith.constant 0 : i32
    %c0_i32_1 = arith.constant 0 : i32
    return %1, %c0_i32, %c0_i32_0 : i32, i32, i32
  }
  func.func @transform_3(%arg0: i32, %arg1: memref<2xi32, #tpu.memory_space<smem>>) -> (i32, i32, i32) {
    %0 = arith.index_cast %arg0 : i32 to index
    %1 = memref.load %arg1[%0] : memref<2xi32, #tpu.memory_space<smem>>
    %c0_i32 = arith.constant 0 : i32
    %c0_i32_0 = arith.constant 0 : i32
    %c0_i32_1 = arith.constant 0 : i32
    return %1, %c0_i32, %c0_i32_0 : i32, i32, i32
  }
  func.func @transform_4(%arg0: i32, %arg1: memref<2xi32, #tpu.memory_space<smem>>) -> (i32, i32, i32) {
    %0 = arith.index_cast %arg0 : i32 to index
    %1 = memref.load %arg1[%0] : memref<2xi32, #tpu.memory_space<smem>>
    %c0_i32 = arith.constant 0 : i32
    %c0_i32_0 = arith.constant 0 : i32
    %c0_i32_1 = arith.constant 0 : i32
    return %1, %c0_i32, %c0_i32_0 : i32, i32, i32
  }
  func.func @transform_5(%arg0: i32, %arg1: memref<2xi32, #tpu.memory_space<smem>>) -> (i32, i32) {
    %c0_i32 = arith.constant 0 : i32
    %c0_i32_0 = arith.constant 0 : i32
    %c0_i32_1 = arith.constant 0 : i32
    return %c0_i32, %c0_i32_0 : i32, i32
  }
  func.func @transform_6(%arg0: i32, %arg1: memref<2xi32, #tpu.memory_space<smem>>) -> (i32, i32) {
    %c0_i32 = arith.constant 0 : i32
    %c0_i32_0 = arith.constant 0 : i32
    %c0_i32_1 = arith.constant 0 : i32
    return %c0_i32, %c0_i32_0 : i32, i32
  }
  func.func @transform_7(%arg0: i32, %arg1: memref<2xi32, #tpu.memory_space<smem>>) -> (i32, i32) {
    %c0_i32 = arith.constant 0 : i32
    %c0_i32_0 = arith.constant 0 : i32
    %c0_i32_1 = arith.constant 0 : i32
    return %c0_i32, %c0_i32_0 : i32, i32
  }
  func.func @transform_8(%arg0: i32, %arg1: memref<2xi32, #tpu.memory_space<smem>>) -> (i32, i32) {
    %c0_i32 = arith.constant 0 : i32
    %c0_i32_0 = arith.constant 0 : i32
    %c0_i32_1 = arith.constant 0 : i32
    return %c0_i32, %c0_i32_0 : i32, i32
  }
  func.func @transform_9(%arg0: i32, %arg1: memref<2xi32, #tpu.memory_space<smem>>) -> (i32, i32) {
    %c0_i32 = arith.constant 0 : i32
    %c0_i32_0 = arith.constant 0 : i32
    %c0_i32_1 = arith.constant 0 : i32
    return %c0_i32, %c0_i32_0 : i32, i32
  }
  func.func @transform_10(%arg0: i32, %arg1: memref<2xi32, #tpu.memory_space<smem>>) -> (i32, i32) {
    %c0_i32 = arith.constant 0 : i32
    %c0_i32_0 = arith.constant 0 : i32
    %c0_i32_1 = arith.constant 0 : i32
    return %c0_i32, %c0_i32_0 : i32, i32
  }
  func.func @transform_11(%arg0: i32, %arg1: memref<2xi32, #tpu.memory_space<smem>>) -> (i32, i32) {
    %c0_i32 = arith.constant 0 : i32
    %c0_i32_0 = arith.constant 0 : i32
    %c0_i32_1 = arith.constant 0 : i32
    return %c0_i32, %c0_i32_0 : i32, i32
  }
  func.func @transform_12(%arg0: i32, %arg1: memref<2xi32, #tpu.memory_space<smem>>) -> (i32, i32) {
    %c0_i32 = arith.constant 0 : i32
    %c0_i32_0 = arith.constant 0 : i32
    %c0_i32_1 = arith.constant 0 : i32
    return %c0_i32, %c0_i32_0 : i32, i32
  }
  func.func @transform_13(%arg0: i32, %arg1: memref<2xi32, #tpu.memory_space<smem>>) -> (i32, i32) {
    %c0_i32 = arith.constant 0 : i32
    %c0_i32_0 = arith.constant 0 : i32
    %c0_i32_1 = arith.constant 0 : i32
    return %c0_i32, %c0_i32_0 : i32, i32
  }
  func.func @transform_14(%arg0: i32, %arg1: memref<2xi32, #tpu.memory_space<smem>>) -> (i32, i32) {
    %c0_i32 = arith.constant 0 : i32
    %c0_i32_0 = arith.constant 0 : i32
    %c0_i32_1 = arith.constant 0 : i32
    return %c0_i32, %c0_i32_0 : i32, i32
  }
  func.func @transform_15(%arg0: i32, %arg1: memref<2xi32, #tpu.memory_space<smem>>) -> (i32, i32) {
    %c0_i32 = arith.constant 0 : i32
    %c0_i32_0 = arith.constant 0 : i32
    return %arg0, %c0_i32 : i32, i32
  }
}

</mosaic_0001>

<llo_original>
// kernel: tpu_custom_call.1
$region0: #{tpu_custom_call.1}
  #allocation0 [shape = 'u32[]', space=smem, size = 0x4, offset = 0x4, fixed_abs, tag = 'smem constant byte address 0x4 - core index']
  #allocation1 [shape = 'u32[144,128]{1,0:T(1,128)}', space=vmem, size = 0x12000, scoped, tag = 'internal scratch']
  #allocation2 [shape = 's32[1]{0}', space=sflag, size = 0x4, scoped, tag = 'scoped memory for tpu_custom_call.1']
  #allocation3 [shape = 'u8[512]{0}', space=smem, size = 0x200, scoped, tag = 'prefetched SMEM operand 0']
  %s0 = inlined_call_operand.vmem [shape: s32[2], index: 0, kind: input, shape index: {}]
  %s1 = inlined_call_operand.vmem [shape: bf16[512,16], index: 1, kind: input, shape index: {}]
  %s2 = inlined_call_operand.vmem [shape: bf16[512,16], index: 2, kind: input, shape index: {}]
  %s3 = inlined_call_operand.vmem [shape: bf16[2,16,512], index: 3, kind: input, shape index: {}]
  %s4 = inlined_call_operand.vmem [shape: bf16[2,16,128], index: 4, kind: input, shape index: {}]
  %s5 = inlined_call_operand.hbm [shape: bf16[2,128,128], index: 5, kind: input, shape index: {}]
  %s6 = inlined_call_operand.hbm [shape: bf16[128,128], index: 6, kind: input, shape index: {}]
  %s7 = inlined_call_operand.vmem [shape: f32[1,128], index: 7, kind: input, shape index: {}]
  %s8 = inlined_call_operand.hbm [shape: bf16[256,128], index: 8, kind: input, shape index: {}]
  %s9 = inlined_call_operand.vmem [shape: f32[1,128], index: 9, kind: input, shape index: {}]
  %s10 = inlined_call_operand.hbm [shape: bf16[256,128], index: 10, kind: input, shape index: {}]
  %s11 = inlined_call_operand.vmem [shape: f32[1,128], index: 11, kind: input, shape index: {}]
  %s12 = inlined_call_operand.vmem [shape: bf16[128,1024], index: 12, kind: input, shape index: {}]
  %s13 = inlined_call_operand.hbm [shape: bf16[128,1024], index: 13, kind: input, shape index: {}]
  %s14 = inlined_call_operand.hbm [shape: bf16[1024,128], index: 14, kind: input, shape index: {}]
  %s15 = inlined_call_operand.vmem [shape: f32[1,128], index: 15, kind: input, shape index: {}]
  %s16 = inlined_call_operand.hbm [shape: f32[512,128], index: 16, kind: output, shape index: {}]
  %s17 = sld [smem:[#allocation0]]
  $region117: #{tpu_custom_call.1} parent=0
    _
  %s19 = ssub.s32 1, %s17
  %s20 = scalar_select 0, %s19, %s17
  %s21 = sshll.u32 %s0, 4
  %s22 = int_to_ptr.vmem [resolvable:$true] %s21
  %24 = dma.vmem_to_smem %s22, 16, [#allocation3], [#allocation2]
  %25 = dma.done [#allocation2], 16
  %26 = sfence
  $region1: #{tpu_custom_call.1} parent=0
    #allocation4 [shape = 'u8[65536]{0}', space=vmem, size = 0x10000, scoped, tag = 'input window, operand 5']
    #allocation5 [shape = 's32[2]{0}', space=sflag, size = 0x8, scoped, tag = 'scoped memory for tpu_custom_call.1']
    #allocation6 [shape = 's32[2]{0}', space=sflag, size = 0x8, scoped, tag = 'scoped memory for tpu_custom_call.1']
    #allocation7 [shape = 'u8[32768]{0}', space=vmem, size = 0x8000, scoped, tag = 'input window, operand 6, single buffered']
    #allocation8 [shape = 's32[1]{0}', space=sflag, size = 0x4, scoped, tag = 'scoped memory for tpu_custom_call.1']
    #allocation9 [shape = 'u8[65536]{0}', space=vmem, size = 0x10000, scoped, tag = 'input window, operand 8, single buffered']
    #allocation10 [shape = 'u8[65536]{0}', space=vmem, size = 0x10000, scoped, tag = 'input window, operand 10, single buffered']
    #allocation11 [shape = 's32[1]{0}', space=sflag, size = 0x4, scoped, tag = 'scoped memory for tpu_custom_call.1']
    #allocation12 [shape = 'u8[262144]{0}', space=vmem, size = 0x40000, scoped, tag = 'input window, operand 13, single buffered']
    #allocation13 [shape = 'u8[262144]{0}', space=vmem, size = 0x40000, scoped, tag = 'input window, operand 14, single buffered']
    #allocation14 [shape = 's32[1]{0}', space=sflag, size = 0x4, scoped, tag = 'scoped memory for tpu_custom_call.1']
    #allocation15 [shape = 'u8[262144]{0}', space=vmem, size = 0x40000, scoped, tag = 'output window, operand 0']
    %27 = vsyncpa [#allocation5], 0
    %s28 = scalar_lea.sflag [#allocation5], 1
    %29 = vsyncpa %s28, 0
    %30 = vsyncpa [#allocation8], 0
    %31 = vsyncpa [#allocation11], 0
    %32 = vsyncpa [#allocation14], 0
    %33 = vsyncpa [#allocation6], 0
    %s34 = scalar_lea.sflag [#allocation6], 1
    %35 = vsyncpa %s34, 0
    loop: start=0, step=1, limit=4
    $region2: #{tpu_custom_call.1} parent=1 // loop_pre_header
      _
    $region3: #{tpu_custom_call.1} parent=1 // loop_header
      %s37 = sphi 0, %s41
      %p38 = scmp.ge.s32.totalorder %s37, 4
      %s47 = sphi 0, %s49
      %s50 = sphi 0, %s47
      %s51 = sphi 0, %s50
      %s67 = sphi 0, %s51
      %s73 = sphi 0, %s75
      %s76 = sphi 0, %s73
      %s77 = sphi 0, %s76
      %s93 = sphi 0, %s77
      %s101 = sphi 0, %s103
      %s104 = sphi 0, %s101
      %s105 = sphi 0, %s104
      %s121 = sphi 0, %s105
      %s129 = sphi 0, %s131
      %s132 = sphi 0, %s129
      %s133 = sphi 0, %s132
      %s149 = sphi 0, %s133
      %s157 = sphi 0, %s159
      %s160 = sphi 0, %s157
      %s161 = sphi 0, %s160
      %s177 = sphi 0, %s161
      %s181 = sphi 0, %s181
      %s183 = sphi 0, %s181
      %s184 = sphi 0, %s183
      %s198 = sphi 0, %s184
      %s202 = sphi 0, %s202
      %s204 = sphi 0, %s202
      %s205 = sphi 0, %s204
      %s219 = sphi 0, %s205
      %s223 = sphi 0, %s223
      %s225 = sphi 0, %s223
      %s226 = sphi 0, %s225
      %s240 = sphi 0, %s226
      %s244 = sphi 0, %s244
      %s246 = sphi 0, %s244
      %s247 = sphi 0, %s246
      %s261 = sphi 0, %s247
      %s265 = sphi 0, %s265
      %s267 = sphi 0, %s265
      %s268 = sphi 0, %s267
      %s282 = sphi 0, %s268
      %s286 = sphi 0, %s286
      %s288 = sphi 0, %s286
      %s289 = sphi 0, %s288
      %s303 = sphi 0, %s289
      %s307 = sphi 0, %s307
      %s309 = sphi 0, %s307
      %s310 = sphi 0, %s309
      %s324 = sphi 0, %s310
      %s328 = sphi 0, %s328
      %s330 = sphi 0, %s328
      %s331 = sphi 0, %s330
      %s345 = sphi 0, %s331
      %s349 = sphi 0, %s349
      %s351 = sphi 0, %s349
      %s352 = sphi 0, %s351
      %s366 = sphi 0, %s352
      %s370 = sphi 0, %s370
      %s372 = sphi 0, %s370
      %s373 = sphi 0, %s372
      %s387 = sphi 0, %s373
      %s393 = sphi 0, %s395
      %s396 = sphi 0, %s393
      %s397 = sphi 0, %s396
      %s413 = sphi 0, %s397
    $region4: #{tpu_custom_call.1} parent=1 // loop_header_branch
      %40 = sbr.rel (%p38) target = $region8
    $region5: #{tpu_custom_call.1} parent=1 // loop_body
      %s42 = ssub.s32 %s37, 1
      %s43 = ssub.s32 %s37, 2
      %s44 = sadd.s32 %s37, 1
      %s45 = ssub.s32 %s37, %s44
      %p46 = scmp.eq.s32.totalorder %s45, 0
      %s48 = sadd.s32 %s47, 1
      %s49 = scalar_select %p46, %s47, %s48
      %p52 = pneg %p46
      %p53 = scmp.eq.s32.totalorder %s37, 1
      %p54 = por %p52, %p53
      %p55 = scmp.ne.s32.totalorder %s47, %s50
      %p56 = scmp.eq.s32.totalorder %s37, 0
      %p57 = por %p55, %p56
      %p58 = scmp.ne.s32.totalorder %s47, %s50
      %p59 = scmp.eq.s32.totalorder %s42, 1
      %p60 = por %p58, %p59
      %p61 = scmp.ne.s32.totalorder %s50, %s51
      %p62 = scmp.eq.s32.totalorder %s42, 0
      %p63 = por %p61, %p62
      %p64 = scmp.ne.s32.totalorder %s50, %s51
      %p65 = scmp.eq.s32.totalorder %s43, 1
      %p66 = por %p64, %p65
      %p68 = scmp.ne.s32.totalorder %s51, %s67
      %p69 = scmp.eq.s32.totalorder %s43, 0
      %p70 = por %p68, %p69
      %s71 = ssub.s32 %s37, %s44
      %p72 = scmp.eq.s32.totalorder %s71, 0
      %s74 = sadd.s32 %s73, 1
      %s75 = scalar_select %p72, %s73, %s74
      %p78 = pneg %p72
      %p79 = scmp.eq.s32.totalorder %s37, 1
      %p80 = por %p78, %p79
      %p81 = scmp.ne.s32.totalorder %s73, %s76
      %p82 = scmp.eq.s32.totalorder %s37, 0
      %p83 = por %p81, %p82
      %p84 = scmp.ne.s32.totalorder %s73, %s76
      %p85 = scmp.eq.s32.totalorder %s42, 1
      %p86 = por %p84, %p85
      %p87 = scmp.ne.s32.totalorder %s76, %s77
      %p88 = scmp.eq.s32.totalorder %s42, 0
      %p89 = por %p87, %p88
      %p90 = scmp.ne.s32.totalorder %s76, %s77
      %p91 = scmp.eq.s32.totalorder %s43, 1
      %p92 = por %p90, %p91
      %p94 = scmp.ne.s32.totalorder %s77, %s93
      %p95 = scmp.eq.s32.totalorder %s43, 0
      %p96 = por %p94, %p95
      %s97 = sld [smem:[#allocation3 + %s37]]
      %s98 = sld [smem:[#allocation3 + %s44]]
      %s99 = ssub.s32 %s97, %s98
      %p100 = scmp.eq.s32.totalorder %s99, 0
      %s102 = sadd.s32 %s101, 1
      %s103 = scalar_select %p100, %s101, %s102
      %p106 = pneg %p100
      %p107 = scmp.eq.s32.totalorder %s37, 1
      %p108 = por %p106, %p107
      %p109 = scmp.ne.s32.totalorder %s101, %s104
      %p110 = scmp.eq.s32.totalorder %s37, 0
      %p111 = por %p109, %p110
      %p112 = scmp.ne.s32.totalorder %s101, %s104
      %p113 = scmp.eq.s32.totalorder %s42, 1
      %p114 = por %p112, %p113
      %p115 = scmp.ne.s32.totalorder %s104, %s105
      %p116 = scmp.eq.s32.totalorder %s42, 0
      %p117 = por %p115, %p116
      %p118 = scmp.ne.s32.totalorder %s104, %s105
      %p119 = scmp.eq.s32.totalorder %s43, 1
      %p120 = por %p118, %p119
      %p122 = scmp.ne.s32.totalorder %s105, %s121
      %p123 = scmp.eq.s32.totalorder %s43, 0
      %p124 = por %p122, %p123
      %s125 = sld [smem:[#allocation3 + %s37]]
      %s126 = sld [smem:[#allocation3 + %s44]]
      %s127 = ssub.s32 %s125, %s126
      %p128 = scmp.eq.s32.totalorder %s127, 0
      %s130 = sadd.s32 %s129, 1
      %s131 = scalar_select %p128, %s129, %s130
      %p134 = pneg %p128
      %p135 = scmp.eq.s32.totalorder %s37, 1
      %p136 = por %p134, %p135
      %p137 = scmp.ne.s32.totalorder %s129, %s132
      %p138 = scmp.eq.s32.totalorder %s37, 0
      %p139 = por %p137, %p138
      %p140 = scmp.ne.s32.totalorder %s129, %s132
      %p141 = scmp.eq.s32.totalorder %s42, 1
      %p142 = por %p140, %p141
      %p143 = scmp.ne.s32.totalorder %s132, %s133
      %p144 = scmp.eq.s32.totalorder %s42, 0
      %p145 = por %p143, %p144
      %p146 = scmp.ne.s32.totalorder %s132, %s133
      %p147 = scmp.eq.s32.totalorder %s43, 1
      %p148 = por %p146, %p147
      %p150 = scmp.ne.s32.totalorder %s133, %s149
      %p151 = scmp.eq.s32.totalorder %s43, 0
      %p152 = por %p150, %p151
      %s153 = sld [smem:[#allocation3 + %s37]]
      %s154 = sld [smem:[#allocation3 + %s44]]
      %s155 = ssub.s32 %s153, %s154
      %p156 = scmp.eq.s32.totalorder %s155, 0
      %s158 = sadd.s32 %s157, 1
      %s159 = scalar_select %p156, %s157, %s158
      %p162 = pneg %p156
      %p163 = scmp.eq.s32.totalorder %s37, 1
      %p164 = por %p162, %p163
      %p165 = scmp.ne.s32.totalorder %s157, %s160
      %p166 = scmp.eq.s32.totalorder %s37, 0
      %p167 = por %p165, %p166
      %p168 = scmp.ne.s32.totalorder %s157, %s160
      %p169 = scmp.eq.s32.totalorder %s42, 1
      %p170 = por %p168, %p169
      %p171 = scmp.ne.s32.totalorder %s160, %s161
      %p172 = scmp.eq.s32.totalorder %s42, 0
      %p173 = por %p171, %p172
      %p174 = scmp.ne.s32.totalorder %s160, %s161
      %p175 = scmp.eq.s32.totalorder %s43, 1
      %p176 = por %p174, %p175
      %p178 = scmp.ne.s32.totalorder %s161, %s177
      %p179 = scmp.eq.s32.totalorder %s43, 0
      %p180 = por %p178, %p179
      %s182 = sadd.s32 %s181, 1
      %p185 = scmp.eq.s32.totalorder %s37, 1
      %p186 = scmp.ne.s32.totalorder %s181, %s183
      %p187 = scmp.eq.s32.totalorder %s37, 0
      %p188 = por %p186, %p187
      %p189 = scmp.ne.s32.totalorder %s181, %s183
      %p190 = scmp.eq.s32.totalorder %s42, 1
      %p191 = por %p189, %p190
      %p192 = scmp.ne.s32.totalorder %s183, %s184
      %p193 = scmp.eq.s32.totalorder %s42, 0
      %p194 = por %p192, %p193
      %p195 = scmp.ne.s32.totalorder %s183, %s184
      %p196 = scmp.eq.s32.totalorder %s43, 1
      %p197 = por %p195, %p196
      %p199 = scmp.ne.s32.totalorder %s184, %s198
      %p200 = scmp.eq.s32.totalorder %s43, 0
      %p201 = por %p199, %p200
      %s203 = sadd.s32 %s202, 1
      %p206 = scmp.eq.s32.totalorder %s37, 1
      %p207 = scmp.ne.s32.totalorder %s202, %s204
      %p208 = scmp.eq.s32.totalorder %s37, 0
      %p209 = por %p207, %p208
      %p210 = scmp.ne.s32.totalorder %s202, %s204
      %p211 = scmp.eq.s32.totalorder %s42, 1
      %p212 = por %p210, %p211
      %p213 = scmp.ne.s32.totalorder %s204, %s205
      %p214 = scmp.eq.s32.totalorder %s42, 0
      %p215 = por %p213, %p214
      %p216 = scmp.ne.s32.totalorder %s204, %s205
      %p217 = scmp.eq.s32.totalorder %s43, 1
      %p218 = por %p216, %p217
      %p220 = scmp.ne.s32.totalorder %s205, %s219
      %p221 = scmp.eq.s32.totalorder %s43, 0
      %p222 = por %p220, %p221
      %s224 = sadd.s32 %s223, 1
      %p227 = scmp.eq.s32.totalorder %s37, 1
      %p228 = scmp.ne.s32.totalorder %s223, %s225
      %p229 = scmp.eq.s32.totalorder %s37, 0
      %p230 = por %p228, %p229
      %p231 = scmp.ne.s32.totalorder %s223, %s225
      %p232 = scmp.eq.s32.totalorder %s42, 1
      %p233 = por %p231, %p232
      %p234 = scmp.ne.s32.totalorder %s225, %s226
      %p235 = scmp.eq.s32.totalorder %s42, 0
      %p236 = por %p234, %p235
      %p237 = scmp.ne.s32.totalorder %s225, %s226
      %p238 = scmp.eq.s32.totalorder %s43, 1
      %p239 = por %p237, %p238
      %p241 = scmp.ne.s32.totalorder %s226, %s240
      %p242 = scmp.eq.s32.totalorder %s43, 0
      %p243 = por %p241, %p242
      %s245 = sadd.s32 %s244, 1
      %p248 = scmp.eq.s32.totalorder %s37, 1
      %p249 = scmp.ne.s32.totalorder %s244, %s246
      %p250 = scmp.eq.s32.totalorder %s37, 0
      %p251 = por %p249, %p250
      %p252 = scmp.ne.s32.totalorder %s244, %s246
      %p253 = scmp.eq.s32.totalorder %s42, 1
      %p254 = por %p252, %p253
      %p255 = scmp.ne.s32.totalorder %s246, %s247
      %p256 = scmp.eq.s32.totalorder %s42, 0
      %p257 = por %p255, %p256
      %p258 = scmp.ne.s32.totalorder %s246, %s247
      %p259 = scmp.eq.s32.totalorder %s43, 1
      %p260 = por %p258, %p259
      %p262 = scmp.ne.s32.totalorder %s247, %s261
      %p263 = scmp.eq.s32.totalorder %s43, 0
      %p264 = por %p262, %p263
      %s266 = sadd.s32 %s265, 1
      %p269 = scmp.eq.s32.totalorder %s37, 1
      %p270 = scmp.ne.s32.totalorder %s265, %s267
      %p271 = scmp.eq.s32.totalorder %s37, 0
      %p272 = por %p270, %p271
      %p273 = scmp.ne.s32.totalorder %s265, %s267
      %p274 = scmp.eq.s32.totalorder %s42, 1
      %p275 = por %p273, %p274
      %p276 = scmp.ne.s32.totalorder %s267, %s268
      %p277 = scmp.eq.s32.totalorder %s42, 0
      %p278 = por %p276, %p277
      %p279 = scmp.ne.s32.totalorder %s267, %s268
      %p280 = scmp.eq.s32.totalorder %s43, 1
      %p281 = por %p279, %p280
      %p283 = scmp.ne.s32.totalorder %s268, %s282
      %p284 = scmp.eq.s32.totalorder %s43, 0
      %p285 = por %p283, %p284
      %s287 = sadd.s32 %s286, 1
      %p290 = scmp.eq.s32.totalorder %s37, 1
      %p291 = scmp.ne.s32.totalorder %s286, %s288
      %p292 = scmp.eq.s32.totalorder %s37, 0
      %p293 = por %p291, %p292
      %p294 = scmp.ne.s32.totalorder %s286, %s288
      %p295 = scmp.eq.s32.totalorder %s42, 1
      %p296 = por %p294, %p295
      %p297 = scmp.ne.s32.totalorder %s288, %s289
      %p298 = scmp.eq.s32.totalorder %s42, 0
      %p299 = por %p297, %p298
      %p300 = scmp.ne.s32.totalorder %s288, %s289
      %p301 = scmp.eq.s32.totalorder %s43, 1
      %p302 = por %p300, %p301
      %p304 = scmp.ne.s32.totalorder %s289, %s303
      %p305 = scmp.eq.s32.totalorder %s43, 0
      %p306 = por %p304, %p305
      %s308 = sadd.s32 %s307, 1
      %p311 = scmp.eq.s32.totalorder %s37, 1
      %p312 = scmp.ne.s32.totalorder %s307, %s309
      %p313 = scmp.eq.s32.totalorder %s37, 0
      %p314 = por %p312, %p313
      %p315 = scmp.ne.s32.totalorder %s307, %s309
      %p316 = scmp.eq.s32.totalorder %s42, 1
      %p317 = por %p315, %p316
      %p318 = scmp.ne.s32.totalorder %s309, %s310
      %p319 = scmp.eq.s32.totalorder %s42, 0
      %p320 = por %p318, %p319
      %p321 = scmp.ne.s32.totalorder %s309, %s310
      %p322 = scmp.eq.s32.totalorder %s43, 1
      %p323 = por %p321, %p322
      %p325 = scmp.ne.s32.totalorder %s310, %s324
      %p326 = scmp.eq.s32.totalorder %s43, 0
      %p327 = por %p325, %p326
      %s329 = sadd.s32 %s328, 1
      %p332 = scmp.eq.s32.totalorder %s37, 1
      %p333 = scmp.ne.s32.totalorder %s328, %s330
      %p334 = scmp.eq.s32.totalorder %s37, 0
      %p335 = por %p333, %p334
      %p336 = scmp.ne.s32.totalorder %s328, %s330
      %p337 = scmp.eq.s32.totalorder %s42, 1
      %p338 = por %p336, %p337
      %p339 = scmp.ne.s32.totalorder %s330, %s331
      %p340 = scmp.eq.s32.totalorder %s42, 0
      %p341 = por %p339, %p340
      %p342 = scmp.ne.s32.totalorder %s330, %s331
      %p343 = scmp.eq.s32.totalorder %s43, 1
      %p344 = por %p342, %p343
      %p346 = scmp.ne.s32.totalorder %s331, %s345
      %p347 = scmp.eq.s32.totalorder %s43, 0
      %p348 = por %p346, %p347
      %s350 = sadd.s32 %s349, 1
      %p353 = scmp.eq.s32.totalorder %s37, 1
      %p354 = scmp.ne.s32.totalorder %s349, %s351
      %p355 = scmp.eq.s32.totalorder %s37, 0
      %p356 = por %p354, %p355
      %p357 = scmp.ne.s32.totalorder %s349, %s351
      %p358 = scmp.eq.s32.totalorder %s42, 1
      %p359 = por %p357, %p358
      %p360 = scmp.ne.s32.totalorder %s351, %s352
      %p361 = scmp.eq.s32.totalorder %s42, 0
      %p362 = por %p360, %p361
      %p363 = scmp.ne.s32.totalorder %s351, %s352
      %p364 = scmp.eq.s32.totalorder %s43, 1
      %p365 = por %p363, %p364
      %p367 = scmp.ne.s32.totalorder %s352, %s366
      %p368 = scmp.eq.s32.totalorder %s43, 0
      %p369 = por %p367, %p368
      %s371 = sadd.s32 %s370, 1
      %p374 = scmp.eq.s32.totalorder %s37, 1
      %p375 = scmp.ne.s32.totalorder %s370, %s372
      %p376 = scmp.eq.s32.totalorder %s37, 0
      %p377 = por %p375, %p376
      %p378 = scmp.ne.s32.totalorder %s370, %s372
      %p379 = scmp.eq.s32.totalorder %s42, 1
      %p380 = por %p378, %p379
      %p381 = scmp.ne.s32.totalorder %s372, %s373
      %p382 = scmp.eq.s32.totalorder %s42, 0
      %p383 = por %p381, %p382
      %p384 = scmp.ne.s32.totalorder %s372, %s373
      %p385 = scmp.eq.s32.totalorder %s43, 1
      %p386 = por %p384, %p385
      %p388 = scmp.ne.s32.totalorder %s373, %s387
      %p389 = scmp.eq.s32.totalorder %s43, 0
      %p390 = por %p388, %p389
      %s391 = ssub.s32 %s37, %s44
      %p392 = scmp.eq.s32.totalorder %s391, 0
      %s394 = sadd.s32 %s393, 1
      %s395 = scalar_select %p392, %s393, %s394
      %p398 = pneg %p392
      %p399 = scmp.eq.s32.totalorder %s37, 1
      %p400 = por %p398, %p399
      %p401 = scmp.ne.s32.totalorder %s393, %s396
      %p402 = scmp.eq.s32.totalorder %s37, 0
      %p403 = por %p401, %p402
      %p404 = scmp.ne.s32.totalorder %s393, %s396
      %p405 = scmp.eq.s32.totalorder %s42, 1
      %p406 = por %p404, %p405
      %p407 = scmp.ne.s32.totalorder %s396, %s397
      %p408 = scmp.eq.s32.totalorder %s42, 0
      %p409 = por %p407, %p408
      %p410 = scmp.ne.s32.totalorder %s396, %s397
      %p411 = scmp.eq.s32.totalorder %s43, 1
      %p412 = por %p410, %p411
      %p414 = scmp.ne.s32.totalorder %s397, %s413
      %p415 = scmp.eq.s32.totalorder %s43, 0
      %p416 = por %p414, %p415
      %p417 = scmp.le.s32.totalorder 1, %s37
      %p418 = scmp.lt.s32.totalorder %s37, 3
      %p419 = pnand %p417, %p418
      %p420 = pneg %p419
      // Predicated region
      $region9: #{tpu_custom_call.1} parent=5 // pred_check
        _
      $region10: #{tpu_custom_call.1} parent=5 // pred_check_branch
        %422 = sbr.rel (%p419) target = $region12
      $region11: #{tpu_custom_call.1} parent=5 // pred_region
        %s423 = ssub.s32 %s37, 1
        // Predicated region
        $region13: #{tpu_custom_call.1} parent=11 // pred_check
          %p424 = pneg %p194
        $region14: #{tpu_custom_call.1} parent=11 // pred_check_branch
          %426 = sbr.rel (%p424) target = $region16
        $region15: #{tpu_custom_call.1} parent=11 // pred_region
          %s428 = ssub.s32 1024, 1024
          %429 = vsyncadd [#allocation8], %s428
          %s430 = sshll.u32 [#allocation7], 4
          %s431 = int_to_ptr.vmem [resolvable:$true] %s430
          %436 = dma.hbm_to_vmem [thread:$0]  %s6, 1024, %s431, [#allocation8], 64, 64, 4
        $region16: #{tpu_custom_call.1} parent=11 // pred_fallthru
          _
        // Predicated region
        $region17: #{tpu_custom_call.1} parent=11 // pred_check
          %p437 = pneg %p215
        $region18: #{tpu_custom_call.1} parent=11 // pred_check_branch
          %439 = sbr.rel (%p437) target = $region20
        $region19: #{tpu_custom_call.1} parent=11 // pred_region
          _
        $region20: #{tpu_custom_call.1} parent=11 // pred_fallthru
          _
        // Predicated region
        $region21: #{tpu_custom_call.1} parent=11 // pred_check
          %p440 = pneg %p236
        $region22: #{tpu_custom_call.1} parent=11 // pred_check_branch
          %442 = sbr.rel (%p440) target = $region24
        $region23: #{tpu_custom_call.1} parent=11 // pred_region
          %s444 = ssub.s32 2048, 2048
          %445 = vsyncadd [#allocation8], %s444
          %s446 = sshll.u32 [#allocation9], 4
          %s447 = int_to_ptr.vmem [resolvable:$true] %s446
          %452 = dma.hbm_to_vmem [thread:$0]  %s8, 2048, %s447, [#allocation8], 64, 64, 4
        $region24: #{tpu_custom_call.1} parent=11 // pred_fallthru
          _
        // Predicated region
        $region25: #{tpu_custom_call.1} parent=11 // pred_check
          %p453 = pneg %p257
        $region26: #{tpu_custom_call.1} parent=11 // pred_check_branch
          %455 = sbr.rel (%p453) target = $region28
        $region27: #{tpu_custom_call.1} parent=11 // pred_region
          _
        $region28: #{tpu_custom_call.1} parent=11 // pred_fallthru
          _
        // Predicated region
        $region29: #{tpu_custom_call.1} parent=11 // pred_check
          %p456 = pneg %p278
        $region30: #{tpu_custom_call.1} parent=11 // pred_check_branch
          %458 = sbr.rel (%p456) target = $region32
        $region31: #{tpu_custom_call.1} parent=11 // pred_region
          %s460 = ssub.s32 2048, 2048
          %461 = vsyncadd [#allocation11], %s460
          %s462 = sshll.u32 [#allocation10], 4
          %s463 = int_to_ptr.vmem [resolvable:$true] %s462
          %468 = dma.hbm_to_vmem [thread:$0]  %s10, 2048, %s463, [#allocation11], 64, 64, 4
        $region32: #{tpu_custom_call.1} parent=11 // pred_fallthru
          _
        // Predicated region
        $region33: #{tpu_custom_call.1} parent=11 // pred_check
          %p469 = pneg %p299
        $region34: #{tpu_custom_call.1} parent=11 // pred_check_branch
          %471 = sbr.rel (%p469) target = $region36
        $region35: #{tpu_custom_call.1} parent=11 // pred_region
          _
        $region36: #{tpu_custom_call.1} parent=11 // pred_fallthru
          _
        // Predicated region
        $region37: #{tpu_custom_call.1} parent=11 // pred_check
          %p472 = pneg %p320
        $region38: #{tpu_custom_call.1} parent=11 // pred_check_branch
          %474 = sbr.rel (%p472) target = $region40
        $region39: #{tpu_custom_call.1} parent=11 // pred_region
          _
        $region40: #{tpu_custom_call.1} parent=11 // pred_fallthru
          _
        // Predicated region
        $region41: #{tpu_custom_call.1} parent=11 // pred_check
          %p475 = pneg %p341
        $region42: #{tpu_custom_call.1} parent=11 // pred_check_branch
          %477 = sbr.rel (%p475) target = $region44
        $region43: #{tpu_custom_call.1} parent=11 // pred_region
          %s479 = ssub.s32 8192, 8192
          %480 = vsyncadd [#allocation11], %s479
          %s481 = sshll.u32 [#allocation12], 4
          %s482 = int_to_ptr.vmem [resolvable:$true] %s481
          %487 = dma.hbm_to_vmem [thread:$0]  %s13, 8192, %s482, [#allocation11], 512, 512, 32
        $region44: #{tpu_custom_call.1} parent=11 // pred_fallthru
          _
        // Predicated region
        $region45: #{tpu_custom_call.1} parent=11 // pred_check
          %p488 = pneg %p362
        $region46: #{tpu_custom_call.1} parent=11 // pred_check_branch
          %490 = sbr.rel (%p488) target = $region48
        $region47: #{tpu_custom_call.1} parent=11 // pred_region
          %s492 = ssub.s32 8192, 8192
          %493 = vsyncadd [#allocation14], %s492
          %s494 = sshll.u32 [#allocation13], 4
          %s495 = int_to_ptr.vmem [resolvable:$true] %s494
          %500 = dma.hbm_to_vmem [thread:$0]  %s14, 8192, %s495, [#allocation14], 64, 64, 4
        $region48: #{tpu_custom_call.1} parent=11 // pred_fallthru
          _
        // Predicated region
        $region49: #{tpu_custom_call.1} parent=11 // pred_check
          %p501 = pneg %p383
        $region50: #{tpu_custom_call.1} parent=11 // pred_check_branch
          %503 = sbr.rel (%p501) target = $region52
        $region51: #{tpu_custom_call.1} parent=11 // pred_region
          _
        $region52: #{tpu_custom_call.1} parent=11 // pred_fallthru
          _
      $region12: #{tpu_custom_call.1} parent=5 // pred_fallthru
        _
      %p504 = scmp.lt.s32.totalorder %s37, 2
      // Predicated region
      $region53: #{tpu_custom_call.1} parent=5 // pred_check
        %p505 = pneg %p504
      $region54: #{tpu_custom_call.1} parent=5 // pred_check_branch
        %507 = sbr.rel (%p505) target = $region56
      $region55: #{tpu_custom_call.1} parent=5 // pred_region
        // Predicated region
        $region57: #{tpu_custom_call.1} parent=55 // pred_check
          %p508 = pneg %p57
        $region58: #{tpu_custom_call.1} parent=55 // pred_check_branch
          %510 = sbr.rel (%p508) target = $region60
        $region59: #{tpu_custom_call.1} parent=55 // pred_region
          %s511 = smul.u32 32, %s37
          %p512 = scmp.lt.s32.totalorder %s511, 63
          %s513 = scalar_select %p512, %s511, 63
          %s514 = smul.addr %s513, 4
          %s515 = scalar_lea.vmem %s1, %s514
          %s516 = smul.u32 32, %s37
        $region60: #{tpu_custom_call.1} parent=55 // pred_fallthru
          _
        // Predicated region
        $region61: #{tpu_custom_call.1} parent=55 // pred_check
          %p517 = pneg %p83
        $region62: #{tpu_custom_call.1} parent=55 // pred_check_branch
          %519 = sbr.rel (%p517) target = $region64
        $region63: #{tpu_custom_call.1} parent=55 // pred_region
          %s520 = smul.u32 32, %s37
          %p521 = scmp.lt.s32.totalorder %s520, 63
          %s522 = scalar_select %p521, %s520, 63
          %s523 = smul.addr %s522, 4
          %s524 = scalar_lea.vmem %s2, %s523
          %s525 = smul.u32 32, %s37
        $region64: #{tpu_custom_call.1} parent=55 // pred_fallthru
          _
        // Predicated region
        $region65: #{tpu_custom_call.1} parent=55 // pred_check
          %p526 = pneg %p111
        $region66: #{tpu_custom_call.1} parent=55 // pred_check_branch
          %528 = sbr.rel (%p526) target = $region68
        $region67: #{tpu_custom_call.1} parent=55 // pred_region
          %s529 = sld [smem:[#allocation3 + %s37]]
          %p530 = scmp.lt.s32.totalorder %s529, 1
          %s531 = scalar_select %p530, %s529, 1
          %s532 = smul.addr %s531, 8
          %s533 = smul.addr %s532, 4
          %s534 = scalar_lea.vmem %s3, %s533
          %s535 = sld [smem:[#allocation3 + %s37]]
        $region68: #{tpu_custom_call.1} parent=55 // pred_fallthru
          _
        // Predicated region
        $region69: #{tpu_custom_call.1} parent=55 // pred_check
          %p536 = pneg %p139
        $region70: #{tpu_custom_call.1} parent=55 // pred_check_branch
          %538 = sbr.rel (%p536) target = $region72
        $region71: #{tpu_custom_call.1} parent=55 // pred_region
          %s539 = sld [smem:[#allocation3 + %s37]]
          %p540 = scmp.lt.s32.totalorder %s539, 1
          %s541 = scalar_select %p540, %s539, 1
          %s542 = smul.addr %s541, 2
          %s543 = smul.addr %s542, 4
          %s544 = scalar_lea.vmem %s4, %s543
          %s545 = sld [smem:[#allocation3 + %s37]]
        $region72: #{tpu_custom_call.1} parent=55 // pred_fallthru
          _
        // Predicated region
        $region73: #{tpu_custom_call.1} parent=55 // pred_check
          %p546 = pneg %p167
        $region74: #{tpu_custom_call.1} parent=55 // pred_check_branch
          %548 = sbr.rel (%p546) target = $region76
        $region75: #{tpu_custom_call.1} parent=55 // pred_region
          %s549 = sand.u32 %s157, 1
          %s550 = scalar_lea.sflag [#allocation5], %s549
          %s551 = sand.u32 %s157, 1
          %s552 = smul.addr %s551, 64
          %s553 = scalar_lea.vmem [#allocation4], %s552
          %s554 = sld [smem:[#allocation3 + %s37]]
          %s556 = ssub.s32 1024, 1024
          %557 = vsyncadd %s550, %s556
          %s558 = smul.addr %s554, 16
          %s559 = smul.addr %s558, 64
          %s560 = scalar_lea.hbm %s5, %s559
          %s561 = sshll.u32 %s553, 4
          %s562 = int_to_ptr.vmem [resolvable:$true] %s561
          %567 = dma.hbm_to_vmem [thread:$0]  %s560, 1024, %s562, %s550, 64, 64, 4
        $region76: #{tpu_custom_call.1} parent=55 // pred_fallthru
          _
      $region56: #{tpu_custom_call.1} parent=5 // pred_fallthru
        _
      %p568 = scmp.le.s32.totalorder 1, %s37
      %p569 = scmp.lt.s32.totalorder %s37, 3
      %p570 = pnand %p568, %p569
      %p571 = pneg %p570
      // Predicated region
      $region77: #{tpu_custom_call.1} parent=5 // pred_check
        _
      $region78: #{tpu_custom_call.1} parent=5 // pred_check_branch
        %573 = sbr.rel (%p570) target = $region80
      $region79: #{tpu_custom_call.1} parent=5 // pred_region
        %s574 = ssub.s32 %s37, 1
        %s575 = sand.u32 %s160, 1
        %s576 = scalar_lea.sflag [#allocation5], %s575
        %s577 = sand.u32 %s160, 1
        %s578 = smul.addr %s577, 64
        %s579 = scalar_lea.vmem [#allocation4], %s578
        // Predicated region
        $region81: #{tpu_custom_call.1} parent=79 // pred_check
          %p580 = pneg %p173
        $region82: #{tpu_custom_call.1} parent=79 // pred_check_branch
          %582 = sbr.rel (%p580) target = $region84
        $region83: #{tpu_custom_call.1} parent=79 // pred_region
          %583 = dma.done %s576, 1024
        $region84: #{tpu_custom_call.1} parent=79 // pred_fallthru
          _
        // Predicated region
        $region85: #{tpu_custom_call.1} parent=79 // pred_check
          %p584 = pneg %p194
        $region86: #{tpu_custom_call.1} parent=79 // pred_check_branch
          %586 = sbr.rel (%p584) target = $region88
        $region87: #{tpu_custom_call.1} parent=79 // pred_region
          %587 = dma.done [#allocation8], 1024
        $region88: #{tpu_custom_call.1} parent=79 // pred_fallthru
          _
        // Predicated region
        $region89: #{tpu_custom_call.1} parent=79 // pred_check
          %p588 = pneg %p236
        $region90: #{tpu_custom_call.1} parent=79 // pred_check_branch
          %590 = sbr.rel (%p588) target = $region92
        $region91: #{tpu_custom_call.1} parent=79 // pred_region
          %591 = dma.done [#allocation8], 2048
        $region92: #{tpu_custom_call.1} parent=79 // pred_fallthru
          _
        // Predicated region
        $region93: #{tpu_custom_call.1} parent=79 // pred_check
          %p592 = pneg %p278
        $region94: #{tpu_custom_call.1} parent=79 // pred_check_branch
          %594 = sbr.rel (%p592) target = $region96
        $region95: #{tpu_custom_call.1} parent=79 // pred_region
          %595 = dma.done [#allocation11], 2048
        $region96: #{tpu_custom_call.1} parent=79 // pred_fallthru
          _
        // Predicated region
        $region97: #{tpu_custom_call.1} parent=79 // pred_check
          %p596 = pneg %p341
        $region98: #{tpu_custom_call.1} parent=79 // pred_check_branch
          %598 = sbr.rel (%p596) target = $region100
        $region99: #{tpu_custom_call.1} parent=79 // pred_region
          %599 = dma.done [#allocation11], 8192
        $region100: #{tpu_custom_call.1} parent=79 // pred_fallthru
          _
        // Predicated region
        $region101: #{tpu_custom_call.1} parent=79 // pred_check
          %p600 = pneg %p362
        $region102: #{tpu_custom_call.1} parent=79 // pred_check_branch
          %602 = sbr.rel (%p600) target = $region104
        $region103: #{tpu_custom_call.1} parent=79 // pred_region
          %603 = dma.done [#allocation14], 8192
        $region104: #{tpu_custom_call.1} parent=79 // pred_fallthru
          _
        %s604 = smul.u32 32, %s42
        %p605 = scmp.lt.s32.totalorder %s604, 63
        %s606 = scalar_select %p605, %s604, 63
        %s607 = smul.addr %s606, 4
        %s608 = scalar_lea.vmem %s1, %s607
        %p609 = pneg %p63
        %p610 = pneg %p60
        %s611 = smul.u32 32, %s42
        %p612 = scmp.lt.s32.totalorder %s611, 63
        %s613 = scalar_select %p612, %s611, 63
        %s614 = smul.addr %s613, 4
        %s615 = scalar_lea.vmem %s2, %s614
        %p616 = pneg %p89
        %p617 = pneg %p86
        %s618 = sld [smem:[#allocation3 + %s42]]
        %p619 = scmp.lt.s32.totalorder %s618, 1
        %s620 = scalar_select %p619, %s618, 1
        %s621 = smul.addr %s620, 8
        %s622 = smul.addr %s621, 4
        %s623 = scalar_lea.vmem %s3, %s622
        %p624 = pneg %p117
        %p625 = pneg %p114
        %s626 = sld [smem:[#allocation3 + %s42]]
        %p627 = scmp.lt.s32.totalorder %s626, 1
        %s628 = scalar_select %p627, %s626, 1
        %s629 = smul.addr %s628, 2
        %s630 = smul.addr %s629, 4
        %s631 = scalar_lea.vmem %s4, %s630
        %p632 = pneg %p145
        %p633 = pneg %p142
        %s634 = sand.u32 %s160, 1
        %s635 = scalar_lea.sflag [#allocation5], %s634
        %s636 = sand.u32 %s160, 1
        %s637 = smul.addr %s636, 64
        %s638 = scalar_lea.vmem [#allocation4], %s637
        %p639 = pneg %p173
        %p640 = pneg %p170
        %p641 = pneg %p194
        %p642 = pneg %p191
        %p643 = pneg %p215
        %p644 = pneg %p212
        %p645 = pneg %p236
        %p646 = pneg %p233
        %p647 = pneg %p257
        %p648 = pneg %p254
        %p649 = pneg %p278
        %p650 = pneg %p275
        %p651 = pneg %p299
        %p652 = pneg %p296
        %p653 = pneg %p320
        %p654 = pneg %p317
        %p655 = pneg %p341
        %p656 = pneg %p338
        %p657 = pneg %p362
        %p658 = pneg %p359
        %p659 = pneg %p383
        %p660 = pneg %p380
        %p661 = pneg %p409
        %p662 = pneg %p406
        %s663 = sand.u32 %s396, 1
        %s664 = scalar_lea.sflag [#allocation6], %s663
        %s665 = sand.u32 %s396, 1
        %s666 = smul.addr %s665, 256
        %s667 = scalar_lea.vmem [#allocation15], %s666
        %s668 = smul.u32 32, %s42
        %p669 = scmp.lt.s32.totalorder %s668, 63
        %s670 = scalar_select %p669, %s668, 63
        %s671 = smul.addr %s670, 4
        %s672 = scalar_lea.vmem %s1, %s671
        %s673 = smul.u32 32, %s42
        %s674 = smul.u32 32, %s42
        %p675 = scmp.lt.s32.totalorder %s674, 63
        %s676 = scalar_select %p675, %s674, 63
        %s677 = smul.addr %s676, 4
        %s678 = scalar_lea.vmem %s2, %s677
        %s679 = smul.u32 32, %s42
        %s680 = sld [smem:[#allocation3 + %s42]]
        %p681 = scmp.lt.s32.totalorder %s680, 1
        %s682 = scalar_select %p681, %s680, 1
        %s683 = smul.addr %s682, 8
        %s684 = smul.addr %s683, 4
        %s685 = scalar_lea.vmem %s3, %s684
        %s686 = sld [smem:[#allocation3 + %s42]]
        %s687 = sld [smem:[#allocation3 + %s42]]
        %p688 = scmp.lt.s32.totalorder %s687, 1
        %s689 = scalar_select %p688, %s687, 1
        %s690 = smul.addr %s689, 2
        %s691 = smul.addr %s690, 4
        %s692 = scalar_lea.vmem %s4, %s691
        %s693 = sld [smem:[#allocation3 + %s42]]
        %s694 = sld [smem:[#allocation3 + %s42]]
        %s695 = smul.u32 32, %s42
        %v697 = vld [vmem:[%s672] sm:$0xf]
        %v698 = vld [vmem:[%s672 + $0x4] sm:$0xf]
        %v699 = vld [vmem:[%s672 + $0x8] sm:$0xf]
        %v700 = vld [vmem:[%s672 + $0xc] sm:$0xf]
        %v701 = vld [vmem:[%s672 + $0x10] sm:$0xf]
        %v702 = vld [vmem:[%s672 + $0x14] sm:$0xf]
        %v703 = vld [vmem:[%s672 + $0x18] sm:$0xf]
        %v704 = vld [vmem:[%s672 + $0x1c] sm:$0xf]
        %v705 = vld [vmem:[%s672 + $0x20] sm:$0xf]
        %v706 = vld [vmem:[%s672 + $0x24] sm:$0xf]
        %v707 = vld [vmem:[%s672 + $0x28] sm:$0xf]
        %v708 = vld [vmem:[%s672 + $0x2c] sm:$0xf]
        %v709 = vld [vmem:[%s672 + $0x30] sm:$0xf]
        %v710 = vld [vmem:[%s672 + $0x34] sm:$0xf]
        %v711 = vld [vmem:[%s672 + $0x38] sm:$0xf]
        %v712 = vld [vmem:[%s672 + $0x3c] sm:$0xf]
        %v713 = vld [vmem:[%s672 + $0x40] sm:$0xf]
        %v714 = vld [vmem:[%s672 + $0x44] sm:$0xf]
        %v715 = vld [vmem:[%s672 + $0x48] sm:$0xf]
        %v716 = vld [vmem:[%s672 + $0x4c] sm:$0xf]
        %v717 = vld [vmem:[%s672 + $0x50] sm:$0xf]
        %v718 = vld [vmem:[%s672 + $0x54] sm:$0xf]
        %v719 = vld [vmem:[%s672 + $0x58] sm:$0xf]
        %v720 = vld [vmem:[%s672 + $0x5c] sm:$0xf]
        %v721 = vld [vmem:[%s672 + $0x60] sm:$0xf]
        %v722 = vld [vmem:[%s672 + $0x64] sm:$0xf]
        %v723 = vld [vmem:[%s672 + $0x68] sm:$0xf]
        %v724 = vld [vmem:[%s672 + $0x6c] sm:$0xf]
        %v725 = vld [vmem:[%s672 + $0x70] sm:$0xf]
        %v726 = vld [vmem:[%s672 + $0x74] sm:$0xf]
        %v727 = vld [vmem:[%s672 + $0x78] sm:$0xf]
        %v728 = vld [vmem:[%s672 + $0x7c] sm:$0xf]
        %v729 = vld [vmem:[%s678] sm:$0xf]
        %v730 = vld [vmem:[%s678 + $0x4] sm:$0xf]
        %v731 = vld [vmem:[%s678 + $0x8] sm:$0xf]
        %v732 = vld [vmem:[%s678 + $0xc] sm:$0xf]
        %v733 = vld [vmem:[%s678 + $0x10] sm:$0xf]
        %v734 = vld [vmem:[%s678 + $0x14] sm:$0xf]
        %v735 = vld [vmem:[%s678 + $0x18] sm:$0xf]
        %v736 = vld [vmem:[%s678 + $0x1c] sm:$0xf]
        %v737 = vld [vmem:[%s678 + $0x20] sm:$0xf]
        %v738 = vld [vmem:[%s678 + $0x24] sm:$0xf]
        %v739 = vld [vmem:[%s678 + $0x28] sm:$0xf]
        %v740 = vld [vmem:[%s678 + $0x2c] sm:$0xf]
        %v741 = vld [vmem:[%s678 + $0x30] sm:$0xf]
        %v742 = vld [vmem:[%s678 + $0x34] sm:$0xf]
        %v743 = vld [vmem:[%s678 + $0x38] sm:$0xf]
        %v744 = vld [vmem:[%s678 + $0x3c] sm:$0xf]
        %v745 = vld [vmem:[%s678 + $0x40] sm:$0xf]
        %v746 = vld [vmem:[%s678 + $0x44] sm:$0xf]
        %v747 = vld [vmem:[%s678 + $0x48] sm:$0xf]
        %v748 = vld [vmem:[%s678 + $0x4c] sm:$0xf]
        %v749 = vld [vmem:[%s678 + $0x50] sm:$0xf]
        %v750 = vld [vmem:[%s678 + $0x54] sm:$0xf]
        %v751 = vld [vmem:[%s678 + $0x58] sm:$0xf]
        %v752 = vld [vmem:[%s678 + $0x5c] sm:$0xf]
        %v753 = vld [vmem:[%s678 + $0x60] sm:$0xf]
        %v754 = vld [vmem:[%s678 + $0x64] sm:$0xf]
        %v755 = vld [vmem:[%s678 + $0x68] sm:$0xf]
        %v756 = vld [vmem:[%s678 + $0x6c] sm:$0xf]
        %v757 = vld [vmem:[%s678 + $0x70] sm:$0xf]
        %v758 = vld [vmem:[%s678 + $0x74] sm:$0xf]
        %v759 = vld [vmem:[%s678 + $0x78] sm:$0xf]
        %v760 = vld [vmem:[%s678 + $0x7c] sm:$0xf]
        %v761 = vld [vmem:[%s685] sm:$0xff]
        %v762 = vld [vmem:[%s685 + $0x8] sm:$0xff]
        %v763 = vld [vmem:[%s685 + $0x10] sm:$0xff]
        %v764 = vld [vmem:[%s685 + $0x18] sm:$0xff]
        %v765 = vld [vmem:[%s692] sm:$0xf]
        %v766 = vld [vmem:[%s692 + $0x4] sm:$0xf]
        %v767 = vld [vmem:[%s579] sm:$0xf]
        %v768 = vld [vmem:[%s579 + $0x4] sm:$0xf]
        %v769 = vld [vmem:[%s579 + $0x8] sm:$0xf]
        %v770 = vld [vmem:[%s579 + $0xc] sm:$0xf]
        %v771 = vld [vmem:[%s579 + $0x10] sm:$0xf]
        %v772 = vld [vmem:[%s579 + $0x14] sm:$0xf]
        %v773 = vld [vmem:[%s579 + $0x18] sm:$0xf]
        %v774 = vld [vmem:[%s579 + $0x1c] sm:$0xf]
        %v775 = vld [vmem:[%s579 + $0x20] sm:$0xf]
        %v776 = vld [vmem:[%s579 + $0x24] sm:$0xf]
        %v777 = vld [vmem:[%s579 + $0x28] sm:$0xf]
        %v778 = vld [vmem:[%s579 + $0x2c] sm:$0xf]
        %v779 = vld [vmem:[%s579 + $0x30] sm:$0xf]
        %v780 = vld [vmem:[%s579 + $0x34] sm:$0xf]
        %v781 = vld [vmem:[%s579 + $0x38] sm:$0xf]
        %v782 = vld [vmem:[%s579 + $0x3c] sm:$0xf]
        %v815 = vunpack.c.l.b16 %v697
        %v816 = vunpack.c.l.b16 %v698
        %v817 = vunpack.c.l.b16 %v699
        %v818 = vunpack.c.l.b16 %v700
        %v819 = vunpack.c.l.b16 %v701
        %v820 = vunpack.c.l.b16 %v702
        %v821 = vunpack.c.l.b16 %v703
        %v822 = vunpack.c.l.b16 %v704
        %v823 = vunpack.c.l.b16 %v705
        %v824 = vunpack.c.l.b16 %v706
        %v825 = vunpack.c.l.b16 %v707
        %v826 = vunpack.c.l.b16 %v708
        %v827 = vunpack.c.l.b16 %v709
        %v828 = vunpack.c.l.b16 %v710
        %v829 = vunpack.c.l.b16 %v711
        %v830 = vunpack.c.l.b16 %v712
        %v831 = vunpack.c.l.b16 %v713
        %v832 = vunpack.c.l.b16 %v714
        %v833 = vunpack.c.l.b16 %v715
        %v834 = vunpack.c.l.b16 %v716
        %v835 = vunpack.c.l.b16 %v717
        %v836 = vunpack.c.l.b16 %v718
        %v837 = vunpack.c.l.b16 %v719
        %v838 = vunpack.c.l.b16 %v720
        %v839 = vunpack.c.l.b16 %v721
        %v840 = vunpack.c.l.b16 %v722
        %v841 = vunpack.c.l.b16 %v723
        %v842 = vunpack.c.l.b16 %v724
        %v843 = vunpack.c.l.b16 %v725
        %v844 = vunpack.c.l.b16 %v726
        %v845 = vunpack.c.l.b16 %v727
        %v846 = vunpack.c.l.b16 %v728
        %v847 = vpack.c.b16 %v816, %v815
        %v848 = vpack.c.b16 %v818, %v817
        %v849 = vpack.c.b16 %v820, %v819
        %v850 = vpack.c.b16 %v822, %v821
        %v851 = vpack.c.b16 %v824, %v823
        %v852 = vpack.c.b16 %v826, %v825
        %v853 = vpack.c.b16 %v828, %v827
        %v854 = vpack.c.b16 %v830, %v829
        %v855 = vpack.c.b16 %v832, %v831
        %v856 = vpack.c.b16 %v834, %v833
        %v857 = vpack.c.b16 %v836, %v835
        %v858 = vpack.c.b16 %v838, %v837
        %v859 = vpack.c.b16 %v840, %v839
        %v860 = vpack.c.b16 %v842, %v841
        %v861 = vpack.c.b16 %v844, %v843
        %v862 = vpack.c.b16 %v846, %v845
        %v867 = vunpack.c.l.b16 %v761
        %v868 = vunpack.c.h.b16 %v761
        %v869 = vunpack.c.l.b16 %v762
        %v870 = vunpack.c.h.b16 %v762
        %v871 = vunpack.c.l.b16 %v763
        %v872 = vunpack.c.h.b16 %v763
        %v873 = vunpack.c.l.b16 %v764
        %v874 = vunpack.c.h.b16 %v764
        %v875 = vpack.c.b16 %v871, %v867
        %v876 = vpack.c.b16 %v872, %v868
        %v877 = vpack.c.b16 %v873, %v869
        %v878 = vpack.c.b16 %v874, %v870
        %vm883 = vcmask 130048
        %v885 = vsel %vm883, %v847, 0
        %v888 = vsel %vm883, %v848, 0
        %v891 = vsel %vm883, %v849, 0
        %v894 = vsel %vm883, %v850, 0
        %v897 = vsel %vm883, %v851, 0
        %v900 = vsel %vm883, %v852, 0
        %v903 = vsel %vm883, %v853, 0
        %v906 = vsel %vm883, %v854, 0
        %v909 = vsel %vm883, %v855, 0
        %v912 = vsel %vm883, %v856, 0
        %v915 = vsel %vm883, %v857, 0
        %v918 = vsel %vm883, %v858, 0
        %v921 = vsel %vm883, %v859, 0
        %v924 = vsel %vm883, %v860, 0
        %v927 = vsel %vm883, %v861, 0
        %v930 = vsel %vm883, %v862, 0
        %932 = vmatprep.subr.bf16.mxu0 %v876
        %933 = vmatpush1.bf16.msra.mxu0 %v875
        %934 = vmatprep.subr.bf16.mxu0 0
        %935 = vmatpush1.bf16.msra.mxu0 0
        %936 = vmatprep.subr.bf16.mxu0 0
        %937 = vmatpush1.bf16.msra.mxu0 0
        %938 = vmatprep.subr.bf16.mxu0 0
        %939 = vmatpush1.bf16.msra.mxu0 0
        %940 = vmatprep.subr.bf16.mxu0 0
        %941 = vmatpush1.bf16.msra.mxu0 0
        %942 = vmatprep.subr.bf16.mxu0 0
        %943 = vmatpush1.bf16.msra.mxu0 0
        %944 = vmatprep.subr.bf16.mxu0 0
        %945 = vmatpush1.bf16.msra.mxu0 0
        %946 = vmatprep.subr.bf16.mxu0 0
        %947 = vmatpush1.bf16.msra.mxu0 0
        %948 = vmatprep.subr.bf16.mxu0 0
        %949 = vmatpush1.bf16.msra.mxu0 0
        %950 = vmatprep.subr.bf16.mxu0 0
        %951 = vmatpush1.bf16.msra.mxu0 0
        %952 = vmatprep.subr.bf16.mxu0 0
        %953 = vmatpush1.bf16.msra.mxu0 0
        %954 = vmatprep.subr.bf16.mxu0 0
        %955 = vmatpush1.bf16.msra.mxu0 0
        %956 = vmatprep.subr.bf16.mxu0 0
        %957 = vmatpush1.bf16.msra.mxu0 0
        %958 = vmatprep.subr.bf16.mxu0 0
        %959 = vmatpush1.bf16.msra.mxu0 0
        %960 = vmatprep.subr.bf16.mxu0 0
        %961 = vmatpush1.bf16.msra.mxu0 0
        %962 = vmatprep.subr.bf16.mxu0 0
        %963 = vmatpush1.bf16.msra.mxu0 0
        %964 = vmatprep.mubr.bf16.mxu0 0
        %965 = vmatmul.mubr.bf16.gmra.mrb[0].mxu0 %v885
        %v966 = vpop.f32.mrb[0].mxu0
        %v967 = vadd.f32 0.0, %v966
        %v968 = vpop.f32.mrb[0].mxu0
        %v969 = vadd.f32 0.0, %v968
        %v970 = vpop.f32.mrb[0].mxu0
        %v971 = vadd.f32 0.0, %v970
        %v972 = vpop.f32.mrb[0].mxu0
        %v973 = vadd.f32 0.0, %v972
        %974 = vmatprep.mubr.bf16.mxu0 0
        %975 = vmatmul.mubr.bf16.gmra.mrb[0].mxu0 %v888
        %v976 = vpop.f32.mrb[0].mxu0
        %v977 = vadd.f32 0.0, %v976
        %v978 = vpop.f32.mrb[0].mxu0
        %v979 = vadd.f32 0.0, %v978
        %v980 = vpop.f32.mrb[0].mxu0
        %v981 = vadd.f32 0.0, %v980
        %v982 = vpop.f32.mrb[0].mxu0
        %v983 = vadd.f32 0.0, %v982
        %984 = vmatprep.mubr.bf16.mxu0 0
        %985 = vmatmul.mubr.bf16.gmra.mrb[0].mxu0 %v891
        %v986 = vpop.f32.mrb[0].mxu0
        %v987 = vadd.f32 0.0, %v986
        %v988 = vpop.f32.mrb[0].mxu0
        %v989 = vadd.f32 0.0, %v988
        %v990 = vpop.f32.mrb[0].mxu0
        %v991 = vadd.f32 0.0, %v990
        %v992 = vpop.f32.mrb[0].mxu0
        %v993 = vadd.f32 0.0, %v992
        %994 = vmatprep.mubr.bf16.mxu0 0
        %995 = vmatmul.mubr.bf16.gmra.mrb[0].mxu0 %v894
        %v996 = vpop.f32.mrb[0].mxu0
        %v997 = vadd.f32 0.0, %v996
        %v998 = vpop.f32.mrb[0].mxu0
        %v999 = vadd.f32 0.0, %v998
        %v1000 = vpop.f32.mrb[0].mxu0
        %v1001 = vadd.f32 0.0, %v1000
        %v1002 = vpop.f32.mrb[0].mxu0
        %v1003 = vadd.f32 0.0, %v1002
        %1004 = vmatprep.mubr.bf16.mxu0 0
        %1005 = vmatmul.mubr.bf16.gmra.mrb[0].mxu0 %v897
        %v1006 = vpop.f32.mrb[0].mxu0
        %v1007 = vadd.f32 0.0, %v1006
        %v1008 = vpop.f32.mrb[0].mxu0
        %v1009 = vadd.f32 0.0, %v1008
        %v1010 = vpop.f32.mrb[0].mxu0
        %v1011 = vadd.f32 0.0, %v1010
        %v1012 = vpop.f32.mrb[0].mxu0
        %v1013 = vadd.f32 0.0, %v1012
        %1014 = vmatprep.mubr.bf16.mxu0 0
        %1015 = vmatmul.mubr.bf16.gmra.mrb[0].mxu0 %v900
        %v1016 = vpop.f32.mrb[0].mxu0
        %v1017 = vadd.f32 0.0, %v1016
        %v1018 = vpop.f32.mrb[0].mxu0
        %v1019 = vadd.f32 0.0, %v1018
        %v1020 = vpop.f32.mrb[0].mxu0
        %v1021 = vadd.f32 0.0, %v1020
        %v1022 = vpop.f32.mrb[0].mxu0
        %v1023 = vadd.f32 0.0, %v1022
        %1024 = vmatprep.mubr.bf16.mxu0 0
        %1025 = vmatmul.mubr.bf16.gmra.mrb[0].mxu0 %v903
        %v1026 = vpop.f32.mrb[0].mxu0
        %v1027 = vadd.f32 0.0, %v1026
        %v1028 = vpop.f32.mrb[0].mxu0
        %v1029 = vadd.f32 0.0, %v1028
        %v1030 = vpop.f32.mrb[0].mxu0
        %v1031 = vadd.f32 0.0, %v1030
        %v1032 = vpop.f32.mrb[0].mxu0
        %v1033 = vadd.f32 0.0, %v1032
        %1034 = vmatprep.mubr.bf16.mxu0 0
        %1035 = vmatmul.mubr.bf16.gmra.mrb[0].mxu0 %v906
        %v1036 = vpop.f32.mrb[0].mxu0
        %v1037 = vadd.f32 0.0, %v1036
        %v1038 = vpop.f32.mrb[0].mxu0
        %v1039 = vadd.f32 0.0, %v1038
        %v1040 = vpop.f32.mrb[0].mxu0
        %v1041 = vadd.f32 0.0, %v1040
        %v1042 = vpop.f32.mrb[0].mxu0
        %v1043 = vadd.f32 0.0, %v1042
        %1044 = vmatprep.mubr.bf16.mxu0 0
        %1045 = vmatmul.mubr.bf16.gmra.mrb[0].mxu0 %v909
        %v1046 = vpop.f32.mrb[0].mxu0
        %v1047 = vadd.f32 0.0, %v1046
        %v1048 = vpop.f32.mrb[0].mxu0
        %v1049 = vadd.f32 0.0, %v1048
        %v1050 = vpop.f32.mrb[0].mxu0
        %v1051 = vadd.f32 0.0, %v1050
        %v1052 = vpop.f32.mrb[0].mxu0
        %v1053 = vadd.f32 0.0, %v1052
        %1054 = vmatprep.mubr.bf16.mxu0 0
        %1055 = vmatmul.mubr.bf16.gmra.mrb[0].mxu0 %v912
        %v1056 = vpop.f32.mrb[0].mxu0
        %v1057 = vadd.f32 0.0, %v1056
        %v1058 = vpop.f32.mrb[0].mxu0
        %v1059 = vadd.f32 0.0, %v1058
        %v1060 = vpop.f32.mrb[0].mxu0
        %v1061 = vadd.f32 0.0, %v1060
        %v1062 = vpop.f32.mrb[0].mxu0
        %v1063 = vadd.f32 0.0, %v1062
        %1064 = vmatprep.mubr.bf16.mxu0 0
        %1065 = vmatmul.mubr.bf16.gmra.mrb[0].mxu0 %v915
        %v1066 = vpop.f32.mrb[0].mxu0
        %v1067 = vadd.f32 0.0, %v1066
        %v1068 = vpop.f32.mrb[0].mxu0
        %v1069 = vadd.f32 0.0, %v1068
        %v1070 = vpop.f32.mrb[0].mxu0
        %v1071 = vadd.f32 0.0, %v1070
        %v1072 = vpop.f32.mrb[0].mxu0
        %v1073 = vadd.f32 0.0, %v1072
        %1074 = vmatprep.mubr.bf16.mxu0 0
        %1075 = vmatmul.mubr.bf16.gmra.mrb[0].mxu0 %v918
        %v1076 = vpop.f32.mrb[0].mxu0
        %v1077 = vadd.f32 0.0, %v1076
        %v1078 = vpop.f32.mrb[0].mxu0
        %v1079 = vadd.f32 0.0, %v1078
        %v1080 = vpop.f32.mrb[0].mxu0
        %v1081 = vadd.f32 0.0, %v1080
        %v1082 = vpop.f32.mrb[0].mxu0
        %v1083 = vadd.f32 0.0, %v1082
        %1084 = vmatprep.mubr.bf16.mxu0 0
        %1085 = vmatmul.mubr.bf16.gmra.mrb[0].mxu0 %v921
        %v1086 = vpop.f32.mrb[0].mxu0
        %v1087 = vadd.f32 0.0, %v1086
        %v1088 = vpop.f32.mrb[0].mxu0
        %v1089 = vadd.f32 0.0, %v1088
        %v1090 = vpop.f32.mrb[0].mxu0
        %v1091 = vadd.f32 0.0, %v1090
        %v1092 = vpop.f32.mrb[0].mxu0
        %v1093 = vadd.f32 0.0, %v1092
        %1094 = vmatprep.mubr.bf16.mxu0 0
        %1095 = vmatmul.mubr.bf16.gmra.mrb[0].mxu0 %v924
        %v1096 = vpop.f32.mrb[0].mxu0
        %v1097 = vadd.f32 0.0, %v1096
        %v1098 = vpop.f32.mrb[0].mxu0
        %v1099 = vadd.f32 0.0, %v1098
        %v1100 = vpop.f32.mrb[0].mxu0
        %v1101 = vadd.f32 0.0, %v1100
        %v1102 = vpop.f32.mrb[0].mxu0
        %v1103 = vadd.f32 0.0, %v1102
        %1104 = vmatprep.mubr.bf16.mxu0 0
        %1105 = vmatmul.mubr.bf16.gmra.mrb[0].mxu0 %v927
        %v1106 = vpop.f32.mrb[0].mxu0
        %v1107 = vadd.f32 0.0, %v1106
        %v1108 = vpop.f32.mrb[0].mxu0
        %v1109 = vadd.f32 0.0, %v1108
        %v1110 = vpop.f32.mrb[0].mxu0
        %v1111 = vadd.f32 0.0, %v1110
        %v1112 = vpop.f32.mrb[0].mxu0
        %v1113 = vadd.f32 0.0, %v1112
        %1114 = vmatprep.mubr.bf16.mxu0 0
        %1115 = vmatmul.mubr.bf16.gmra.mrb[0].mxu0 %v930
        %v1116 = vpop.f32.mrb[0].mxu0
        %v1117 = vadd.f32 0.0, %v1116
        %v1118 = vpop.f32.mrb[0].mxu0
        %v1119 = vadd.f32 0.0, %v1118
        %v1120 = vpop.f32.mrb[0].mxu0
        %v1121 = vadd.f32 0.0, %v1120
        %v1122 = vpop.f32.mrb[0].mxu0
        %v1123 = vadd.f32 0.0, %v1122
        %1124 = vdwg.mxu0
        %1125 = vmatprep.subr.bf16.mxu0 %v878
        %1126 = vmatpush1.bf16.msra.mxu0 %v877
        %1127 = vmatprep.subr.bf16.mxu0 0
        %1128 = vmatpush1.bf16.msra.mxu0 0
        %1129 = vmatprep.subr.bf16.mxu0 0
        %1130 = vmatpush1.bf16.msra.mxu0 0
        %1131 = vmatprep.subr.bf16.mxu0 0
        %1132 = vmatpush1.bf16.msra.mxu0 0
        %1133 = vmatprep.subr.bf16.mxu0 0
        %1134 = vmatpush1.bf16.msra.mxu0 0
        %1135 = vmatprep.subr.bf16.mxu0 0
        %1136 = vmatpush1.bf16.msra.mxu0 0
        %1137 = vmatprep.subr.bf16.mxu0 0
        %1138 = vmatpush1.bf16.msra.mxu0 0
        %1139 = vmatprep.subr.bf16.mxu0 0
        %1140 = vmatpush1.bf16.msra.mxu0 0
        %1141 = vmatprep.subr.bf16.mxu0 0
        %1142 = vmatpush1.bf16.msra.mxu0 0
        %1143 = vmatprep.subr.bf16.mxu0 0
        %1144 = vmatpush1.bf16.msra.mxu0 0
        %1145 = vmatprep.subr.bf16.mxu0 0
        %1146 = vmatpush1.bf16.msra.mxu0 0
        %1147 = vmatprep.subr.bf16.mxu0 0
        %1148 = vmatpush1.bf16.msra.mxu0 0
        %1149 = vmatprep.subr.bf16.mxu0 0
        %1150 = vmatpush1.bf16.msra.mxu0 0
        %1151 = vmatprep.subr.bf16.mxu0 0
        %1152 = vmatpush1.bf16.msra.mxu0 0
        %1153 = vmatprep.subr.bf16.mxu0 0
        %1154 = vmatpush1.bf16.msra.mxu0 0
        %1155 = vmatprep.subr.bf16.mxu0 0
        %1156 = vmatpush1.bf16.msra.mxu0 0
        %1157 = vmatprep.mubr.bf16.mxu0 0
        %1158 = vmatmul.mubr.bf16.gmra.mrb[0].mxu0 %v885
        %v1159 = vpop.f32.mrb[0].mxu0
        %v1160 = vadd.f32 0.0, %v1159
        %v1161 = vpop.f32.mrb[0].mxu0
        %v1162 = vadd.f32 0.0, %v1161
        %v1163 = vpop.f32.mrb[0].mxu0
        %v1164 = vadd.f32 0.0, %v1163
        %v1165 = vpop.f32.mrb[0].mxu0
        %v1166 = vadd.f32 0.0, %v1165
        %1167 = vmatprep.mubr.bf16.mxu0 0
        %1168 = vmatmul.mubr.bf16.gmra.mrb[0].mxu0 %v888
        %v1169 = vpop.f32.mrb[0].mxu0
        %v1170 = vadd.f32 0.0, %v1169
        %v1171 = vpop.f32.mrb[0].mxu0
        %v1172 = vadd.f32 0.0, %v1171
        %v1173 = vpop.f32.mrb[0].mxu0
        %v1174 = vadd.f32 0.0, %v1173
        %v1175 = vpop.f32.mrb[0].mxu0
        %v1176 = vadd.f32 0.0, %v1175
        %1177 = vmatprep.mubr.bf16.mxu0 0
        %1178 = vmatmul.mubr.bf16.gmra.mrb[0].mxu0 %v891
        %v1179 = vpop.f32.mrb[0].mxu0
        %v1180 = vadd.f32 0.0, %v1179
        %v1181 = vpop.f32.mrb[0].mxu0
        %v1182 = vadd.f32 0.0, %v1181
        %v1183 = vpop.f32.mrb[0].mxu0
        %v1184 = vadd.f32 0.0, %v1183
        %v1185 = vpop.f32.mrb[0].mxu0
        %v1186 = vadd.f32 0.0, %v1185
        %1187 = vmatprep.mubr.bf16.mxu0 0
        %1188 = vmatmul.mubr.bf16.gmra.mrb[0].mxu0 %v894
        %v1189 = vpop.f32.mrb[0].mxu0
        %v1190 = vadd.f32 0.0, %v1189
        %v1191 = vpop.f32.mrb[0].mxu0
        %v1192 = vadd.f32 0.0, %v1191
        %v1193 = vpop.f32.mrb[0].mxu0
        %v1194 = vadd.f32 0.0, %v1193
        %v1195 = vpop.f32.mrb[0].mxu0
        %v1196 = vadd.f32 0.0, %v1195
        %1197 = vmatprep.mubr.bf16.mxu0 0
        %1198 = vmatmul.mubr.bf16.gmra.mrb[0].mxu0 %v897
        %v1199 = vpop.f32.mrb[0].mxu0
        %v1200 = vadd.f32 0.0, %v1199
        %v1201 = vpop.f32.mrb[0].mxu0
        %v1202 = vadd.f32 0.0, %v1201
        %v1203 = vpop.f32.mrb[0].mxu0
        %v1204 = vadd.f32 0.0, %v1203
        %v1205 = vpop.f32.mrb[0].mxu0
        %v1206 = vadd.f32 0.0, %v1205
        %1207 = vmatprep.mubr.bf16.mxu0 0
        %1208 = vmatmul.mubr.bf16.gmra.mrb[0].mxu0 %v900
        %v1209 = vpop.f32.mrb[0].mxu0
        %v1210 = vadd.f32 0.0, %v1209
        %v1211 = vpop.f32.mrb[0].mxu0
        %v1212 = vadd.f32 0.0, %v1211
        %v1213 = vpop.f32.mrb[0].mxu0
        %v1214 = vadd.f32 0.0, %v1213
        %v1215 = vpop.f32.mrb[0].mxu0
        %v1216 = vadd.f32 0.0, %v1215
        %1217 = vmatprep.mubr.bf16.mxu0 0
        %1218 = vmatmul.mubr.bf16.gmra.mrb[0].mxu0 %v903
        %v1219 = vpop.f32.mrb[0].mxu0
        %v1220 = vadd.f32 0.0, %v1219
        %v1221 = vpop.f32.mrb[0].mxu0
        %v1222 = vadd.f32 0.0, %v1221
        %v1223 = vpop.f32.mrb[0].mxu0
        %v1224 = vadd.f32 0.0, %v1223
        %v1225 = vpop.f32.mrb[0].mxu0
        %v1226 = vadd.f32 0.0, %v1225
        %1227 = vmatprep.mubr.bf16.mxu0 0
        %1228 = vmatmul.mubr.bf16.gmra.mrb[0].mxu0 %v906
        %v1229 = vpop.f32.mrb[0].mxu0
        %v1230 = vadd.f32 0.0, %v1229
        %v1231 = vpop.f32.mrb[0].mxu0
        %v1232 = vadd.f32 0.0, %v1231
        %v1233 = vpop.f32.mrb[0].mxu0
        %v1234 = vadd.f32 0.0, %v1233
        %v1235 = vpop.f32.mrb[0].mxu0
        %v1236 = vadd.f32 0.0, %v1235
        %1237 = vmatprep.mubr.bf16.mxu0 0
        %1238 = vmatmul.mubr.bf16.gmra.mrb[0].mxu0 %v909
        %v1239 = vpop.f32.mrb[0].mxu0
        %v1240 = vadd.f32 0.0, %v1239
        %v1241 = vpop.f32.mrb[0].mxu0
        %v1242 = vadd.f32 0.0, %v1241
        %v1243 = vpop.f32.mrb[0].mxu0
        %v1244 = vadd.f32 0.0, %v1243
        %v1245 = vpop.f32.mrb[0].mxu0
        %v1246 = vadd.f32 0.0, %v1245
        %1247 = vmatprep.mubr.bf16.mxu0 0
        %1248 = vmatmul.mubr.bf16.gmra.mrb[0].mxu0 %v912
        %v1249 = vpop.f32.mrb[0].mxu0
        %v1250 = vadd.f32 0.0, %v1249
        %v1251 = vpop.f32.mrb[0].mxu0
        %v1252 = vadd.f32 0.0, %v1251
        %v1253 = vpop.f32.mrb[0].mxu0
        %v1254 = vadd.f32 0.0, %v1253
        %v1255 = vpop.f32.mrb[0].mxu0
        %v1256 = vadd.f32 0.0, %v1255
        %1257 = vmatprep.mubr.bf16.mxu0 0
        %1258 = vmatmul.mubr.bf16.gmra.mrb[0].mxu0 %v915
        %v1259 = vpop.f32.mrb[0].mxu0
        %v1260 = vadd.f32 0.0, %v1259
        %v1261 = vpop.f32.mrb[0].mxu0
        %v1262 = vadd.f32 0.0, %v1261
        %v1263 = vpop.f32.mrb[0].mxu0
        %v1264 = vadd.f32 0.0, %v1263
        %v1265 = vpop.f32.mrb[0].mxu0
        %v1266 = vadd.f32 0.0, %v1265
        %1267 = vmatprep.mubr.bf16.mxu0 0
        %1268 = vmatmul.mubr.bf16.gmra.mrb[0].mxu0 %v918
        %v1269 = vpop.f32.mrb[0].mxu0
        %v1270 = vadd.f32 0.0, %v1269
        %v1271 = vpop.f32.mrb[0].mxu0
        %v1272 = vadd.f32 0.0, %v1271
        %v1273 = vpop.f32.mrb[0].mxu0
        %v1274 = vadd.f32 0.0, %v1273
        %v1275 = vpop.f32.mrb[0].mxu0
        %v1276 = vadd.f32 0.0, %v1275
        %1277 = vmatprep.mubr.bf16.mxu0 0
        %1278 = vmatmul.mubr.bf16.gmra.mrb[0].mxu0 %v921
        %v1279 = vpop.f32.mrb[0].mxu0
        %v1280 = vadd.f32 0.0, %v1279
        %v1281 = vpop.f32.mrb[0].mxu0
        %v1282 = vadd.f32 0.0, %v1281
        %v1283 = vpop.f32.mrb[0].mxu0
        %v1284 = vadd.f32 0.0, %v1283
        %v1285 = vpop.f32.mrb[0].mxu0
        %v1286 = vadd.f32 0.0, %v1285
        %1287 = vmatprep.mubr.bf16.mxu0 0
        %1288 = vmatmul.mubr.bf16.gmra.mrb[0].mxu0 %v924
        %v1289 = vpop.f32.mrb[0].mxu0
        %v1290 = vadd.f32 0.0, %v1289
        %v1291 = vpop.f32.mrb[0].mxu0
        %v1292 = vadd.f32 0.0, %v1291
        %v1293 = vpop.f32.mrb[0].mxu0
        %v1294 = vadd.f32 0.0, %v1293
        %v1295 = vpop.f32.mrb[0].mxu0
        %v1296 = vadd.f32 0.0, %v1295
        %1297 = vmatprep.mubr.bf16.mxu0 0
        %1298 = vmatmul.mubr.bf16.gmra.mrb[0].mxu0 %v927
        %v1299 = vpop.f32.mrb[0].mxu0
        %v1300 = vadd.f32 0.0, %v1299
        %v1301 = vpop.f32.mrb[0].mxu0
        %v1302 = vadd.f32 0.0, %v1301
        %v1303 = vpop.f32.mrb[0].mxu0
        %v1304 = vadd.f32 0.0, %v1303
        %v1305 = vpop.f32.mrb[0].mxu0
        %v1306 = vadd.f32 0.0, %v1305
        %1307 = vmatprep.mubr.bf16.mxu0 0
        %1308 = vmatmul.mubr.bf16.gmra.mrb[0].mxu0 %v930
        %v1309 = vpop.f32.mrb[0].mxu0
        %v1310 = vadd.f32 0.0, %v1309
        %v1311 = vpop.f32.mrb[0].mxu0
        %v1312 = vadd.f32 0.0, %v1311
        %v1313 = vpop.f32.mrb[0].mxu0
        %v1314 = vadd.f32 0.0, %v1313
        %v1315 = vpop.f32.mrb[0].mxu0
        %v1316 = vadd.f32 0.0, %v1315
        %1317 = vdwg.mxu0
        %v1350 = vunpack.c.l.b16 %v729
        %v1351 = vunpack.c.l.b16 %v730
        %v1352 = vunpack.c.l.b16 %v731
        %v1353 = vunpack.c.l.b16 %v732
        %v1354 = vunpack.c.l.b16 %v733
        %v1355 = vunpack.c.l.b16 %v734
        %v1356 = vunpack.c.l.b16 %v735
        %v1357 = vunpack.c.l.b16 %v736
        %v1358 = vunpack.c.l.b16 %v737
        %v1359 = vunpack.c.l.b16 %v738
        %v1360 = vunpack.c.l.b16 %v739
        %v1361 = vunpack.c.l.b16 %v740
        %v1362 = vunpack.c.l.b16 %v741
        %v1363 = vunpack.c.l.b16 %v742
        %v1364 = vunpack.c.l.b16 %v743
        %v1365 = vunpack.c.l.b16 %v744
        %v1366 = vunpack.c.l.b16 %v745
        %v1367 = vunpack.c.l.b16 %v746
        %v1368 = vunpack.c.l.b16 %v747
        %v1369 = vunpack.c.l.b16 %v748
        %v1370 = vunpack.c.l.b16 %v749
        %v1371 = vunpack.c.l.b16 %v750
        %v1372 = vunpack.c.l.b16 %v751
        %v1373 = vunpack.c.l.b16 %v752
        %v1374 = vunpack.c.l.b16 %v753
        %v1375 = vunpack.c.l.b16 %v754
        %v1376 = vunpack.c.l.b16 %v755
        %v1377 = vunpack.c.l.b16 %v756
        %v1378 = vunpack.c.l.b16 %v757
        %v1379 = vunpack.c.l.b16 %v758
        %v1380 = vunpack.c.l.b16 %v759
        %v1381 = vunpack.c.l.b16 %v760
        %v1382 = vpack.c.b16 %v1351, %v1350
        %v1383 = vpack.c.b16 %v1353, %v1352
        %v1384 = vpack.c.b16 %v1355, %v1354
        %v1385 = vpack.c.b16 %v1357, %v1356
        %v1386 = vpack.c.b16 %v1359, %v1358
        %v1387 = vpack.c.b16 %v1361, %v1360
        %v1388 = vpack.c.b16 %v1363, %v1362
        %v1389 = vpack.c.b16 %v1365, %v1364
        %v1390 = vpack.c.b16 %v1367, %v1366
        %v1391 = vpack.c.b16 %v1369, %v1368
        %v1392 = vpack.c.b16 %v1371, %v1370
        %v1393 = vpack.c.b16 %v1373, %v1372
        %v1394 = vpack.c.b16 %v1375, %v1374
        %v1395 = vpack.c.b16 %v1377, %v1376
        %v1396 = vpack.c.b16 %v1379, %v1378
        %v1397 = vpack.c.b16 %v1381, %v1380
        %v1399 = vsel %vm883, %v1382, 0
        %v1402 = vsel %vm883, %v1383, 0
        %v1405 = vsel %vm883, %v1384, 0
        %v1408 = vsel %vm883, %v1385, 0
        %v1411 = vsel %vm883, %v1386, 0
        %v1414 = vsel %vm883, %v1387, 0
        %v1417 = vsel %vm883, %v1388, 0
        %v1420 = vsel %vm883, %v1389, 0
        %v1423 = vsel %vm883, %v1390, 0
        %v1426 = vsel %vm883, %v1391, 0
        %v1429 = vsel %vm883, %v1392, 0
        %v1432 = vsel %vm883, %v1393, 0
        %v1435 = vsel %vm883, %v1394, 0
        %v1438 = vsel %vm883, %v1395, 0
        %v1441 = vsel %vm883, %v1396, 0
        %v1444 = vsel %vm883, %v1397, 0
        %1446 = vmatprep.subr.bf16.mxu0 %v876
        %1447 = vmatpush1.bf16.msra.mxu0 %v875
        %1448 = vmatprep.subr.bf16.mxu0 0
        %1449 = vmatpush1.bf16.msra.mxu0 0
        %1450 = vmatprep.subr.bf16.mxu0 0
        %1451 = vmatpush1.bf16.msra.mxu0 0
        %1452 = vmatprep.subr.bf16.mxu0 0
        %1453 = vmatpush1.bf16.msra.mxu0 0
        %1454 = vmatprep.subr.bf16.mxu0 0
        %1455 = vmatpush1.bf16.msra.mxu0 0
        %1456 = vmatprep.subr.bf16.mxu0 0
        %1457 = vmatpush1.bf16.msra.mxu0 0
        %1458 = vmatprep.subr.bf16.mxu0 0
        %1459 = vmatpush1.bf16.msra.mxu0 0
        %1460 = vmatprep.subr.bf16.mxu0 0
        %1461 = vmatpush1.bf16.msra.mxu0 0
        %1462 = vmatprep.subr.bf16.mxu0 0
        %1463 = vmatpush1.bf16.msra.mxu0 0
        %1464 = vmatprep.subr.bf16.mxu0 0
        %1465 = vmatpush1.bf16.msra.mxu0 0
        %1466 = vmatprep.subr.bf16.mxu0 0
        %1467 = vmatpush1.bf16.msra.mxu0 0
        %1468 = vmatprep.subr.bf16.mxu0 0
        %1469 = vmatpush1.bf16.msra.mxu0 0
        %1470 = vmatprep.subr.bf16.mxu0 0
        %1471 = vmatpush1.bf16.msra.mxu0 0
        %1472 = vmatprep.subr.bf16.mxu0 0
        %1473 = vmatpush1.bf16.msra.mxu0 0
        %1474 = vmatprep.subr.bf16.mxu0 0
        %1475 = vmatpush1.bf16.msra.mxu0 0
        %1476 = vmatprep.subr.bf16.mxu0 0
        %1477 = vmatpush1.bf16.msra.mxu0 0
        %1478 = vmatprep.mubr.bf16.mxu0 0
        %1479 = vmatmul.mubr.bf16.gmra.mrb[0].mxu0 %v1399
        %v1480 = vpop.f32.mrb[0].mxu0
        %v1481 = vadd.f32 0.0, %v1480
        %v1482 = vpop.f32.mrb[0].mxu0
        %v1483 = vadd.f32 0.0, %v1482
        %v1484 = vpop.f32.mrb[0].mxu0
        %v1485 = vadd.f32 0.0, %v1484
        %v1486 = vpop.f32.mrb[0].mxu0
        %v1487 = vadd.f32 0.0, %v1486
        %1488 = vmatprep.mubr.bf16.mxu0 0
        %1489 = vmatmul.mubr.bf16.gmra.mrb[0].mxu0 %v1402
        %v1490 = vpop.f32.mrb[0].mxu0
        %v1491 = vadd.f32 0.0, %v1490
        %v1492 = vpop.f32.mrb[0].mxu0
        %v1493 = vadd.f32 0.0, %v1492
        %v1494 = vpop.f32.mrb[0].mxu0
        %v1495 = vadd.f32 0.0, %v1494
        %v1496 = vpop.f32.mrb[0].mxu0
        %v1497 = vadd.f32 0.0, %v1496
        %1498 = vmatprep.mubr.bf16.mxu0 0
        %1499 = vmatmul.mubr.bf16.gmra.mrb[0].mxu0 %v1405
        %v1500 = vpop.f32.mrb[0].mxu0
        %v1501 = vadd.f32 0.0, %v1500
        %v1502 = vpop.f32.mrb[0].mxu0
        %v1503 = vadd.f32 0.0, %v1502
        %v1504 = vpop.f32.mrb[0].mxu0
        %v1505 = vadd.f32 0.0, %v1504
        %v1506 = vpop.f32.mrb[0].mxu0
        %v1507 = vadd.f32 0.0, %v1506
        %1508 = vmatprep.mubr.bf16.mxu0 0
        %1509 = vmatmul.mubr.bf16.gmra.mrb[0].mxu0 %v1408
        %v1510 = vpop.f32.mrb[0].mxu0
        %v1511 = vadd.f32 0.0, %v1510
        %v1512 = vpop.f32.mrb[0].mxu0
        %v1513 = vadd.f32 0.0, %v1512
        %v1514 = vpop.f32.mrb[0].mxu0
        %v1515 = vadd.f32 0.0, %v1514
        %v1516 = vpop.f32.mrb[0].mxu0
        %v1517 = vadd.f32 0.0, %v1516
        %1518 = vmatprep.mubr.bf16.mxu0 0
        %1519 = vmatmul.mubr.bf16.gmra.mrb[0].mxu0 %v1411
        %v1520 = vpop.f32.mrb[0].mxu0
        %v1521 = vadd.f32 0.0, %v1520
        %v1522 = vpop.f32.mrb[0].mxu0
        %v1523 = vadd.f32 0.0, %v1522
        %v1524 = vpop.f32.mrb[0].mxu0
        %v1525 = vadd.f32 0.0, %v1524
        %v1526 = vpop.f32.mrb[0].mxu0
        %v1527 = vadd.f32 0.0, %v1526
        %1528 = vmatprep.mubr.bf16.mxu0 0
        %1529 = vmatmul.mubr.bf16.gmra.mrb[0].mxu0 %v1414
        %v1530 = vpop.f32.mrb[0].mxu0
        %v1531 = vadd.f32 0.0, %v1530
        %v1532 = vpop.f32.mrb[0].mxu0
        %v1533 = vadd.f32 0.0, %v1532
        %v1534 = vpop.f32.mrb[0].mxu0
        %v1535 = vadd.f32 0.0, %v1534
        %v1536 = vpop.f32.mrb[0].mxu0
        %v1537 = vadd.f32 0.0, %v1536
        %1538 = vmatprep.mubr.bf16.mxu0 0
        %1539 = vmatmul.mubr.bf16.gmra.mrb[0].mxu0 %v1417
        %v1540 = vpop.f32.mrb[0].mxu0
        %v1541 = vadd.f32 0.0, %v1540
        %v1542 = vpop.f32.mrb[0].mxu0
        %v1543 = vadd.f32 0.0, %v1542
        %v1544 = vpop.f32.mrb[0].mxu0
        %v1545 = vadd.f32 0.0, %v1544
        %v1546 = vpop.f32.mrb[0].mxu0
        %v1547 = vadd.f32 0.0, %v1546
        %1548 = vmatprep.mubr.bf16.mxu0 0
        %1549 = vmatmul.mubr.bf16.gmra.mrb[0].mxu0 %v1420
        %v1550 = vpop.f32.mrb[0].mxu0
        %v1551 = vadd.f32 0.0, %v1550
        %v1552 = vpop.f32.mrb[0].mxu0
        %v1553 = vadd.f32 0.0, %v1552
        %v1554 = vpop.f32.mrb[0].mxu0
        %v1555 = vadd.f32 0.0, %v1554
        %v1556 = vpop.f32.mrb[0].mxu0
        %v1557 = vadd.f32 0.0, %v1556
        %1558 = vmatprep.mubr.bf16.mxu0 0
        %1559 = vmatmul.mubr.bf16.gmra.mrb[0].mxu0 %v1423
        %v1560 = vpop.f32.mrb[0].mxu0
        %v1561 = vadd.f32 0.0, %v1560
        %v1562 = vpop.f32.mrb[0].mxu0
        %v1563 = vadd.f32 0.0, %v1562
        %v1564 = vpop.f32.mrb[0].mxu0
        %v1565 = vadd.f32 0.0, %v1564
        %v1566 = vpop.f32.mrb[0].mxu0
        %v1567 = vadd.f32 0.0, %v1566
        %1568 = vmatprep.mubr.bf16.mxu0 0
        %1569 = vmatmul.mubr.bf16.gmra.mrb[0].mxu0 %v1426
        %v1570 = vpop.f32.mrb[0].mxu0
        %v1571 = vadd.f32 0.0, %v1570
        %v1572 = vpop.f32.mrb[0].mxu0
        %v1573 = vadd.f32 0.0, %v1572
        %v1574 = vpop.f32.mrb[0].mxu0
        %v1575 = vadd.f32 0.0, %v1574
        %v1576 = vpop.f32.mrb[0].mxu0
        %v1577 = vadd.f32 0.0, %v1576
        %1578 = vmatprep.mubr.bf16.mxu0 0
        %1579 = vmatmul.mubr.bf16.gmra.mrb[0].mxu0 %v1429
        %v1580 = vpop.f32.mrb[0].mxu0
        %v1581 = vadd.f32 0.0, %v1580
        %v1582 = vpop.f32.mrb[0].mxu0
        %v1583 = vadd.f32 0.0, %v1582
        %v1584 = vpop.f32.mrb[0].mxu0
        %v1585 = vadd.f32 0.0, %v1584
        %v1586 = vpop.f32.mrb[0].mxu0
        %v1587 = vadd.f32 0.0, %v1586
        %1588 = vmatprep.mubr.bf16.mxu0 0
        %1589 = vmatmul.mubr.bf16.gmra.mrb[0].mxu0 %v1432
        %v1590 = vpop.f32.mrb[0].mxu0
        %v1591 = vadd.f32 0.0, %v1590
        %v1592 = vpop.f32.mrb[0].mxu0
        %v1593 = vadd.f32 0.0, %v1592
        %v1594 = vpop.f32.mrb[0].mxu0
        %v1595 = vadd.f32 0.0, %v1594
        %v1596 = vpop.f32.mrb[0].mxu0
        %v1597 = vadd.f32 0.0, %v1596
        %1598 = vmatprep.mubr.bf16.mxu0 0
        %1599 = vmatmul.mubr.bf16.gmra.mrb[0].mxu0 %v1435
        %v1600 = vpop.f32.mrb[0].mxu0
        %v1601 = vadd.f32 0.0, %v1600
        %v1602 = vpop.f32.mrb[0].mxu0
        %v1603 = vadd.f32 0.0, %v1602
        %v1604 = vpop.f32.mrb[0].mxu0
        %v1605 = vadd.f32 0.0, %v1604
        %v1606 = vpop.f32.mrb[0].mxu0
        %v1607 = vadd.f32 0.0, %v1606
        %1608 = vmatprep.mubr.bf16.mxu0 0
        %1609 = vmatmul.mubr.bf16.gmra.mrb[0].mxu0 %v1438
        %v1610 = vpop.f32.mrb[0].mxu0
        %v1611 = vadd.f32 0.0, %v1610
        %v1612 = vpop.f32.mrb[0].mxu0
        %v1613 = vadd.f32 0.0, %v1612
        %v1614 = vpop.f32.mrb[0].mxu0
        %v1615 = vadd.f32 0.0, %v1614
        %v1616 = vpop.f32.mrb[0].mxu0
        %v1617 = vadd.f32 0.0, %v1616
        %1618 = vmatprep.mubr.bf16.mxu0 0
        %1619 = vmatmul.mubr.bf16.gmra.mrb[0].mxu0 %v1441
        %v1620 = vpop.f32.mrb[0].mxu0
        %v1621 = vadd.f32 0.0, %v1620
        %v1622 = vpop.f32.mrb[0].mxu0
        %v1623 = vadd.f32 0.0, %v1622
        %v1624 = vpop.f32.mrb[0].mxu0
        %v1625 = vadd.f32 0.0, %v1624
        %v1626 = vpop.f32.mrb[0].mxu0
        %v1627 = vadd.f32 0.0, %v1626
        %1628 = vmatprep.mubr.bf16.mxu0 0
        %1629 = vmatmul.mubr.bf16.gmra.mrb[0].mxu0 %v1444
        %v1630 = vpop.f32.mrb[0].mxu0
        %v1631 = vadd.f32 0.0, %v1630
        %v1632 = vpop.f32.mrb[0].mxu0
        %v1633 = vadd.f32 0.0, %v1632
        %v1634 = vpop.f32.mrb[0].mxu0
        %v1635 = vadd.f32 0.0, %v1634
        %v1636 = vpop.f32.mrb[0].mxu0
        %v1637 = vadd.f32 0.0, %v1636
        %1638 = vdwg.mxu0
        %1639 = vmatprep.subr.bf16.mxu0 %v878
        %1640 = vmatpush1.bf16.msra.mxu0 %v877
        %1641 = vmatprep.subr.bf16.mxu0 0
        %1642 = vmatpush1.bf16.msra.mxu0 0
        %1643 = vmatprep.subr.bf16.mxu0 0
        %1644 = vmatpush1.bf16.msra.mxu0 0
        %1645 = vmatprep.subr.bf16.mxu0 0
        %1646 = vmatpush1.bf16.msra.mxu0 0
        %1647 = vmatprep.subr.bf16.mxu0 0
        %1648 = vmatpush1.bf16.msra.mxu0 0
        %1649 = vmatprep.subr.bf16.mxu0 0
        %1650 = vmatpush1.bf16.msra.mxu0 0
        %1651 = vmatprep.subr.bf16.mxu0 0
        %1652 = vmatpush1.bf16.msra.mxu0 0
        %1653 = vmatprep.subr.bf16.mxu0 0
        %1654 = vmatpush1.bf16.msra.mxu0 0
        %1655 = vmatprep.subr.bf16.mxu0 0
        %1656 = vmatpush1.bf16.msra.mxu0 0
        %1657 = vmatprep.subr.bf16.mxu0 0
        %1658 = vmatpush1.bf16.msra.mxu0 0
        %1659 = vmatprep.subr.bf16.mxu0 0
        %1660 = vmatpush1.bf16.msra.mxu0 0
        %1661 = vmatprep.subr.bf16.mxu0 0
        %1662 = vmatpush1.bf16.msra.mxu0 0
        %1663 = vmatprep.subr.bf16.mxu0 0
        %1664 = vmatpush1.bf16.msra.mxu0 0
        %1665 = vmatprep.subr.bf16.mxu0 0
        %1666 = vmatpush1.bf16.msra.mxu0 0
        %1667 = vmatprep.subr.bf16.mxu0 0
        %1668 = vmatpush1.bf16.msra.mxu0 0
        %1669 = vmatprep.subr.bf16.mxu0 0
        %1670 = vmatpush1.bf16.msra.mxu0 0
        %1671 = vmatprep.mubr.bf16.mxu0 0
        %1672 = vmatmul.mubr.bf16.gmra.mrb[0].mxu0 %v1399
        %v1673 = vpop.f32.mrb[0].mxu0
        %v1674 = vadd.f32 0.0, %v1673
        %v1675 = vpop.f32.mrb[0].mxu0
        %v1676 = vadd.f32 0.0, %v1675
        %v1677 = vpop.f32.mrb[0].mxu0
        %v1678 = vadd.f32 0.0, %v1677
        %v1679 = vpop.f32.mrb[0].mxu0
        %v1680 = vadd.f32 0.0, %v1679
        %1681 = vmatprep.mubr.bf16.mxu0 0
        %1682 = vmatmul.mubr.bf16.gmra.mrb[0].mxu0 %v1402
        %v1683 = vpop.f32.mrb[0].mxu0
        %v1684 = vadd.f32 0.0, %v1683
        %v1685 = vpop.f32.mrb[0].mxu0
        %v1686 = vadd.f32 0.0, %v1685
        %v1687 = vpop.f32.mrb[0].mxu0
        %v1688 = vadd.f32 0.0, %v1687
        %v1689 = vpop.f32.mrb[0].mxu0
        %v1690 = vadd.f32 0.0, %v1689
        %1691 = vmatprep.mubr.bf16.mxu0 0
        %1692 = vmatmul.mubr.bf16.gmra.mrb[0].mxu0 %v1405
        %v1693 = vpop.f32.mrb[0].mxu0
        %v1694 = vadd.f32 0.0, %v1693
        %v1695 = vpop.f32.mrb[0].mxu0
        %v1696 = vadd.f32 0.0, %v1695
        %v1697 = vpop.f32.mrb[0].mxu0
        %v1698 = vadd.f32 0.0, %v1697
        %v1699 = vpop.f32.mrb[0].mxu0
        %v1700 = vadd.f32 0.0, %v1699
        %1701 = vmatprep.mubr.bf16.mxu0 0
        %1702 = vmatmul.mubr.bf16.gmra.mrb[0].mxu0 %v1408
        %v1703 = vpop.f32.mrb[0].mxu0
        %v1704 = vadd.f32 0.0, %v1703
        %v1705 = vpop.f32.mrb[0].mxu0
        %v1706 = vadd.f32 0.0, %v1705
        %v1707 = vpop.f32.mrb[0].mxu0
        %v1708 = vadd.f32 0.0, %v1707
        %v1709 = vpop.f32.mrb[0].mxu0
        %v1710 = vadd.f32 0.0, %v1709
        %1711 = vmatprep.mubr.bf16.mxu0 0
        %1712 = vmatmul.mubr.bf16.gmra.mrb[0].mxu0 %v1411
        %v1713 = vpop.f32.mrb[0].mxu0
        %v1714 = vadd.f32 0.0, %v1713
        %v1715 = vpop.f32.mrb[0].mxu0
        %v1716 = vadd.f32 0.0, %v1715
        %v1717 = vpop.f32.mrb[0].mxu0
        %v1718 = vadd.f32 0.0, %v1717
        %v1719 = vpop.f32.mrb[0].mxu0
        %v1720 = vadd.f32 0.0, %v1719
        %1721 = vmatprep.mubr.bf16.mxu0 0
        %1722 = vmatmul.mubr.bf16.gmra.mrb[0].mxu0 %v1414
        %v1723 = vpop.f32.mrb[0].mxu0
        %v1724 = vadd.f32 0.0, %v1723
        %v1725 = vpop.f32.mrb[0].mxu0
        %v1726 = vadd.f32 0.0, %v1725
        %v1727 = vpop.f32.mrb[0].mxu0
        %v1728 = vadd.f32 0.0, %v1727
        %v1729 = vpop.f32.mrb[0].mxu0
        %v1730 = vadd.f32 0.0, %v1729
        %1731 = vmatprep.mubr.bf16.mxu0 0
        %1732 = vmatmul.mubr.bf16.gmra.mrb[0].mxu0 %v1417
        %v1733 = vpop.f32.mrb[0].mxu0
        %v1734 = vadd.f32 0.0, %v1733
        %v1735 = vpop.f32.mrb[0].mxu0
        %v1736 = vadd.f32 0.0, %v1735
        %v1737 = vpop.f32.mrb[0].mxu0
        %v1738 = vadd.f32 0.0, %v1737
        %v1739 = vpop.f32.mrb[0].mxu0
        %v1740 = vadd.f32 0.0, %v1739
        %1741 = vmatprep.mubr.bf16.mxu0 0
        %1742 = vmatmul.mubr.bf16.gmra.mrb[0].mxu0 %v1420
        %v1743 = vpop.f32.mrb[0].mxu0
        %v1744 = vadd.f32 0.0, %v1743
        %v1745 = vpop.f32.mrb[0].mxu0
        %v1746 = vadd.f32 0.0, %v1745
        %v1747 = vpop.f32.mrb[0].mxu0
        %v1748 = vadd.f32 0.0, %v1747
        %v1749 = vpop.f32.mrb[0].mxu0
        %v1750 = vadd.f32 0.0, %v1749
        %1751 = vmatprep.mubr.bf16.mxu0 0
        %1752 = vmatmul.mubr.bf16.gmra.mrb[0].mxu0 %v1423
        %v1753 = vpop.f32.mrb[0].mxu0
        %v1754 = vadd.f32 0.0, %v1753
        %v1755 = vpop.f32.mrb[0].mxu0
        %v1756 = vadd.f32 0.0, %v1755
        %v1757 = vpop.f32.mrb[0].mxu0
        %v1758 = vadd.f32 0.0, %v1757
        %v1759 = vpop.f32.mrb[0].mxu0
        %v1760 = vadd.f32 0.0, %v1759
        %1761 = vmatprep.mubr.bf16.mxu0 0
        %1762 = vmatmul.mubr.bf16.gmra.mrb[0].mxu0 %v1426
        %v1763 = vpop.f32.mrb[0].mxu0
        %v1764 = vadd.f32 0.0, %v1763
        %v1765 = vpop.f32.mrb[0].mxu0
        %v1766 = vadd.f32 0.0, %v1765
        %v1767 = vpop.f32.mrb[0].mxu0
        %v1768 = vadd.f32 0.0, %v1767
        %v1769 = vpop.f32.mrb[0].mxu0
        %v1770 = vadd.f32 0.0, %v1769
        %1771 = vmatprep.mubr.bf16.mxu0 0
        %1772 = vmatmul.mubr.bf16.gmra.mrb[0].mxu0 %v1429
        %v1773 = vpop.f32.mrb[0].mxu0
        %v1774 = vadd.f32 0.0, %v1773
        %v1775 = vpop.f32.mrb[0].mxu0
        %v1776 = vadd.f32 0.0, %v1775
        %v1777 = vpop.f32.mrb[0].mxu0
        %v1778 = vadd.f32 0.0, %v1777
        %v1779 = vpop.f32.mrb[0].mxu0
        %v1780 = vadd.f32 0.0, %v1779
        %1781 = vmatprep.mubr.bf16.mxu0 0
        %1782 = vmatmul.mubr.bf16.gmra.mrb[0].mxu0 %v1432
        %v1783 = vpop.f32.mrb[0].mxu0
        %v1784 = vadd.f32 0.0, %v1783
        %v1785 = vpop.f32.mrb[0].mxu0
        %v1786 = vadd.f32 0.0, %v1785
        %v1787 = vpop.f32.mrb[0].mxu0
        %v1788 = vadd.f32 0.0, %v1787
        %v1789 = vpop.f32.mrb[0].mxu0
        %v1790 = vadd.f32 0.0, %v1789
        %1791 = vmatprep.mubr.bf16.mxu0 0
        %1792 = vmatmul.mubr.bf16.gmra.mrb[0].mxu0 %v1435
        %v1793 = vpop.f32.mrb[0].mxu0
        %v1794 = vadd.f32 0.0, %v1793
        %v1795 = vpop.f32.mrb[0].mxu0
        %v1796 = vadd.f32 0.0, %v1795
        %v1797 = vpop.f32.mrb[0].mxu0
        %v1798 = vadd.f32 0.0, %v1797
        %v1799 = vpop.f32.mrb[0].mxu0
        %v1800 = vadd.f32 0.0, %v1799
        %1801 = vmatprep.mubr.bf16.mxu0 0
        %1802 = vmatmul.mubr.bf16.gmra.mrb[0].mxu0 %v1438
        %v1803 = vpop.f32.mrb[0].mxu0
        %v1804 = vadd.f32 0.0, %v1803
        %v1805 = vpop.f32.mrb[0].mxu0
        %v1806 = vadd.f32 0.0, %v1805
        %v1807 = vpop.f32.mrb[0].mxu0
        %v1808 = vadd.f32 0.0, %v1807
        %v1809 = vpop.f32.mrb[0].mxu0
        %v1810 = vadd.f32 0.0, %v1809
        %1811 = vmatprep.mubr.bf16.mxu0 0
        %1812 = vmatmul.mubr.bf16.gmra.mrb[0].mxu0 %v1441
        %v1813 = vpop.f32.mrb[0].mxu0
        %v1814 = vadd.f32 0.0, %v1813
        %v1815 = vpop.f32.mrb[0].mxu0
        %v1816 = vadd.f32 0.0, %v1815
        %v1817 = vpop.f32.mrb[0].mxu0
        %v1818 = vadd.f32 0.0, %v1817
        %v1819 = vpop.f32.mrb[0].mxu0
        %v1820 = vadd.f32 0.0, %v1819
        %1821 = vmatprep.mubr.bf16.mxu0 0
        %1822 = vmatmul.mubr.bf16.gmra.mrb[0].mxu0 %v1444
        %v1823 = vpop.f32.mrb[0].mxu0
        %v1824 = vadd.f32 0.0, %v1823
        %v1825 = vpop.f32.mrb[0].mxu0
        %v1826 = vadd.f32 0.0, %v1825
        %v1827 = vpop.f32.mrb[0].mxu0
        %v1828 = vadd.f32 0.0, %v1827
        %v1829 = vpop.f32.mrb[0].mxu0
        %v1830 = vadd.f32 0.0, %v1829
        %1831 = vdwg.mxu0
        %v1834 = vunpack.c.l.b16 %v765
        %v1835 = vunpack.c.l.b16 %v766
        %v1836 = vpack.c.b16 %v1835, %v1834
        %1838 = vmatprep.subr.bf16.mxu0 0
        %1839 = vmatpush1.bf16.msra.mxu0 %v1836
        %1840 = vmatprep.subr.bf16.mxu0 0
        %1841 = vmatpush1.bf16.msra.mxu0 0
        %1842 = vmatprep.subr.bf16.mxu0 0
        %1843 = vmatpush1.bf16.msra.mxu0 0
        %1844 = vmatprep.subr.bf16.mxu0 0
        %1845 = vmatpush1.bf16.msra.mxu0 0
        %1846 = vmatprep.subr.bf16.mxu0 0
        %1847 = vmatpush1.bf16.msra.mxu0 0
        %1848 = vmatprep.subr.bf16.mxu0 0
        %1849 = vmatpush1.bf16.msra.mxu0 0
        %1850 = vmatprep.subr.bf16.mxu0 0
        %1851 = vmatpush1.bf16.msra.mxu0 0
        %1852 = vmatprep.subr.bf16.mxu0 0
        %1853 = vmatpush1.bf16.msra.mxu0 0
        %1854 = vmatprep.subr.bf16.mxu0 0
        %1855 = vmatpush1.bf16.msra.mxu0 0
        %1856 = vmatprep.subr.bf16.mxu0 0
        %1857 = vmatpush1.bf16.msra.mxu0 0
        %1858 = vmatprep.subr.bf16.mxu0 0
        %1859 = vmatpush1.bf16.msra.mxu0 0
        %1860 = vmatprep.subr.bf16.mxu0 0
        %1861 = vmatpush1.bf16.msra.mxu0 0
        %1862 = vmatprep.subr.bf16.mxu0 0
        %1863 = vmatpush1.bf16.msra.mxu0 0
        %1864 = vmatprep.subr.bf16.mxu0 0
        %1865 = vmatpush1.bf16.msra.mxu0 0
        %1866 = vmatprep.subr.bf16.mxu0 0
        %1867 = vmatpush1.bf16.msra.mxu0 0
        %1868 = vmatprep.subr.bf16.mxu0 0
        %1869 = vmatpush1.bf16.msra.mxu0 0
        %1870 = vmatprep.mubr.bf16.mxu0 0
        %1871 = vmatmul.mubr.bf16.gmra.mrb[0].mxu0 %v885
        %v1872 = vpop.f32.mrb[0].mxu0
        %v1873 = vadd.f32 0.0, %v1872
        %v1874 = vpop.f32.mrb[0].mxu0
        %v1875 = vpop.f32.mrb[0].mxu0
        %v1876 = vadd.f32 0.0, %v1875
        %v1877 = vpop.f32.mrb[0].mxu0
        %1878 = vmatprep.mubr.bf16.mxu0 0
        %1879 = vmatmul.mubr.bf16.gmra.mrb[0].mxu0 %v888
        %v1880 = vpop.f32.mrb[0].mxu0
        %v1881 = vadd.f32 0.0, %v1880
        %v1882 = vpop.f32.mrb[0].mxu0
        %v1883 = vpop.f32.mrb[0].mxu0
        %v1884 = vadd.f32 0.0, %v1883
        %v1885 = vpop.f32.mrb[0].mxu0
        %1886 = vmatprep.mubr.bf16.mxu0 0
        %1887 = vmatmul.mubr.bf16.gmra.mrb[0].mxu0 %v891
        %v1888 = vpop.f32.mrb[0].mxu0
        %v1889 = vadd.f32 0.0, %v1888
        %v1890 = vpop.f32.mrb[0].mxu0
        %v1891 = vpop.f32.mrb[0].mxu0
        %v1892 = vadd.f32 0.0, %v1891
        %v1893 = vpop.f32.mrb[0].mxu0
        %1894 = vmatprep.mubr.bf16.mxu0 0
        %1895 = vmatmul.mubr.bf16.gmra.mrb[0].mxu0 %v894
        %v1896 = vpop.f32.mrb[0].mxu0
        %v1897 = vadd.f32 0.0, %v1896
        %v1898 = vpop.f32.mrb[0].mxu0
        %v1899 = vpop.f32.mrb[0].mxu0
        %v1900 = vadd.f32 0.0, %v1899
        %v1901 = vpop.f32.mrb[0].mxu0
        %1902 = vmatprep.mubr.bf16.mxu0 0
        %1903 = vmatmul.mubr.bf16.gmra.mrb[0].mxu0 %v897
        %v1904 = vpop.f32.mrb[0].mxu0
        %v1905 = vadd.f32 0.0, %v1904
        %v1906 = vpop.f32.mrb[0].mxu0
        %v1907 = vpop.f32.mrb[0].mxu0
        %v1908 = vadd.f32 0.0, %v1907
        %v1909 = vpop.f32.mrb[0].mxu0
        %1910 = vmatprep.mubr.bf16.mxu0 0
        %1911 = vmatmul.mubr.bf16.gmra.mrb[0].mxu0 %v900
        %v1912 = vpop.f32.mrb[0].mxu0
        %v1913 = vadd.f32 0.0, %v1912
        %v1914 = vpop.f32.mrb[0].mxu0
        %v1915 = vpop.f32.mrb[0].mxu0
        %v1916 = vadd.f32 0.0, %v1915
        %v1917 = vpop.f32.mrb[0].mxu0
        %1918 = vmatprep.mubr.bf16.mxu0 0
        %1919 = vmatmul.mubr.bf16.gmra.mrb[0].mxu0 %v903
        %v1920 = vpop.f32.mrb[0].mxu0
        %v1921 = vadd.f32 0.0, %v1920
        %v1922 = vpop.f32.mrb[0].mxu0
        %v1923 = vpop.f32.mrb[0].mxu0
        %v1924 = vadd.f32 0.0, %v1923
        %v1925 = vpop.f32.mrb[0].mxu0
        %1926 = vmatprep.mubr.bf16.mxu0 0
        %1927 = vmatmul.mubr.bf16.gmra.mrb[0].mxu0 %v906
        %v1928 = vpop.f32.mrb[0].mxu0
        %v1929 = vadd.f32 0.0, %v1928
        %v1930 = vpop.f32.mrb[0].mxu0
        %v1931 = vpop.f32.mrb[0].mxu0
        %v1932 = vadd.f32 0.0, %v1931
        %v1933 = vpop.f32.mrb[0].mxu0
        %1934 = vmatprep.mubr.bf16.mxu0 0
        %1935 = vmatmul.mubr.bf16.gmra.mrb[0].mxu0 %v909
        %v1936 = vpop.f32.mrb[0].mxu0
        %v1937 = vadd.f32 0.0, %v1936
        %v1938 = vpop.f32.mrb[0].mxu0
        %v1939 = vpop.f32.mrb[0].mxu0
        %v1940 = vadd.f32 0.0, %v1939
        %v1941 = vpop.f32.mrb[0].mxu0
        %1942 = vmatprep.mubr.bf16.mxu0 0
        %1943 = vmatmul.mubr.bf16.gmra.mrb[0].mxu0 %v912
        %v1944 = vpop.f32.mrb[0].mxu0
        %v1945 = vadd.f32 0.0, %v1944
        %v1946 = vpop.f32.mrb[0].mxu0
        %v1947 = vpop.f32.mrb[0].mxu0
        %v1948 = vadd.f32 0.0, %v1947
        %v1949 = vpop.f32.mrb[0].mxu0
        %1950 = vmatprep.mubr.bf16.mxu0 0
        %1951 = vmatmul.mubr.bf16.gmra.mrb[0].mxu0 %v915
        %v1952 = vpop.f32.mrb[0].mxu0
        %v1953 = vadd.f32 0.0, %v1952
        %v1954 = vpop.f32.mrb[0].mxu0
        %v1955 = vpop.f32.mrb[0].mxu0
        %v1956 = vadd.f32 0.0, %v1955
        %v1957 = vpop.f32.mrb[0].mxu0
        %1958 = vmatprep.mubr.bf16.mxu0 0
        %1959 = vmatmul.mubr.bf16.gmra.mrb[0].mxu0 %v918
        %v1960 = vpop.f32.mrb[0].mxu0
        %v1961 = vadd.f32 0.0, %v1960
        %v1962 = vpop.f32.mrb[0].mxu0
        %v1963 = vpop.f32.mrb[0].mxu0
        %v1964 = vadd.f32 0.0, %v1963
        %v1965 = vpop.f32.mrb[0].mxu0
        %1966 = vmatprep.mubr.bf16.mxu0 0
        %1967 = vmatmul.mubr.bf16.gmra.mrb[0].mxu0 %v921
        %v1968 = vpop.f32.mrb[0].mxu0
        %v1969 = vadd.f32 0.0, %v1968
        %v1970 = vpop.f32.mrb[0].mxu0
        %v1971 = vpop.f32.mrb[0].mxu0
        %v1972 = vadd.f32 0.0, %v1971
        %v1973 = vpop.f32.mrb[0].mxu0
        %1974 = vmatprep.mubr.bf16.mxu0 0
        %1975 = vmatmul.mubr.bf16.gmra.mrb[0].mxu0 %v924
        %v1976 = vpop.f32.mrb[0].mxu0
        %v1977 = vadd.f32 0.0, %v1976
        %v1978 = vpop.f32.mrb[0].mxu0
        %v1979 = vpop.f32.mrb[0].mxu0
        %v1980 = vadd.f32 0.0, %v1979
        %v1981 = vpop.f32.mrb[0].mxu0
        %1982 = vmatprep.mubr.bf16.mxu0 0
        %1983 = vmatmul.mubr.bf16.gmra.mrb[0].mxu0 %v927
        %v1984 = vpop.f32.mrb[0].mxu0
        %v1985 = vadd.f32 0.0, %v1984
        %v1986 = vpop.f32.mrb[0].mxu0
        %v1987 = vpop.f32.mrb[0].mxu0
        %v1988 = vadd.f32 0.0, %v1987
        %v1989 = vpop.f32.mrb[0].mxu0
        %1990 = vmatprep.mubr.bf16.mxu0 0
        %1991 = vmatmul.mubr.bf16.gmra.mrb[0].mxu0 %v930
        %v1992 = vpop.f32.mrb[0].mxu0
        %v1993 = vadd.f32 0.0, %v1992
        %v1994 = vpop.f32.mrb[0].mxu0
        %v1995 = vpop.f32.mrb[0].mxu0
        %v1996 = vadd.f32 0.0, %v1995
        %v1997 = vpop.f32.mrb[0].mxu0
        %1998 = vdwg.mxu0
        %1999 = vmatprep.subr.bf16.mxu0 0
        %2000 = vmatpush1.bf16.msra.mxu0 %v1836
        %2001 = vmatprep.subr.bf16.mxu0 0
        %2002 = vmatpush1.bf16.msra.mxu0 0
        %2003 = vmatprep.subr.bf16.mxu0 0
        %2004 = vmatpush1.bf16.msra.mxu0 0
        %2005 = vmatprep.subr.bf16.mxu0 0
        %2006 = vmatpush1.bf16.msra.mxu0 0
        %2007 = vmatprep.subr.bf16.mxu0 0
        %2008 = vmatpush1.bf16.msra.mxu0 0
        %2009 = vmatprep.subr.bf16.mxu0 0
        %2010 = vmatpush1.bf16.msra.mxu0 0
        %2011 = vmatprep.subr.bf16.mxu0 0
        %2012 = vmatpush1.bf16.msra.mxu0 0
        %2013 = vmatprep.subr.bf16.mxu0 0
        %2014 = vmatpush1.bf16.msra.mxu0 0
        %2015 = vmatprep.subr.bf16.mxu0 0
        %2016 = vmatpush1.bf16.msra.mxu0 0
        %2017 = vmatprep.subr.bf16.mxu0 0
        %2018 = vmatpush1.bf16.msra.mxu0 0
        %2019 = vmatprep.subr.bf16.mxu0 0
        %2020 = vmatpush1.bf16.msra.mxu0 0
        %2021 = vmatprep.subr.bf16.mxu0 0
        %2022 = vmatpush1.bf16.msra.mxu0 0
        %2023 = vmatprep.subr.bf16.mxu0 0
        %2024 = vmatpush1.bf16.msra.mxu0 0
        %2025 = vmatprep.subr.bf16.mxu0 0
        %2026 = vmatpush1.bf16.msra.mxu0 0
        %2027 = vmatprep.subr.bf16.mxu0 0
        %2028 = vmatpush1.bf16.msra.mxu0 0
        %2029 = vmatprep.subr.bf16.mxu0 0
        %2030 = vmatpush1.bf16.msra.mxu0 0
        %2031 = vmatprep.mubr.bf16.mxu0 0
        %2032 = vmatmul.mubr.bf16.gmra.mrb[0].mxu0 %v1399
        %v2033 = vpop.f32.mrb[0].mxu0
        %v2034 = vadd.f32 0.0, %v2033
        %v2035 = vpop.f32.mrb[0].mxu0
        %v2036 = vpop.f32.mrb[0].mxu0
        %v2037 = vadd.f32 0.0, %v2036
        %v2038 = vpop.f32.mrb[0].mxu0
        %2039 = vmatprep.mubr.bf16.mxu0 0
        %2040 = vmatmul.mubr.bf16.gmra.mrb[0].mxu0 %v1402
        %v2041 = vpop.f32.mrb[0].mxu0
        %v2042 = vadd.f32 0.0, %v2041
        %v2043 = vpop.f32.mrb[0].mxu0
        %v2044 = vpop.f32.mrb[0].mxu0
        %v2045 = vadd.f32 0.0, %v2044
        %v2046 = vpop.f32.mrb[0].mxu0
        %2047 = vmatprep.mubr.bf16.mxu0 0
        %2048 = vmatmul.mubr.bf16.gmra.mrb[0].mxu0 %v1405
        %v2049 = vpop.f32.mrb[0].mxu0
        %v2050 = vadd.f32 0.0, %v2049
        %v2051 = vpop.f32.mrb[0].mxu0
        %v2052 = vpop.f32.mrb[0].mxu0
        %v2053 = vadd.f32 0.0, %v2052
        %v2054 = vpop.f32.mrb[0].mxu0
        %2055 = vmatprep.mubr.bf16.mxu0 0
        %2056 = vmatmul.mubr.bf16.gmra.mrb[0].mxu0 %v1408
        %v2057 = vpop.f32.mrb[0].mxu0
        %v2058 = vadd.f32 0.0, %v2057
        %v2059 = vpop.f32.mrb[0].mxu0
        %v2060 = vpop.f32.mrb[0].mxu0
        %v2061 = vadd.f32 0.0, %v2060
        %v2062 = vpop.f32.mrb[0].mxu0
        %2063 = vmatprep.mubr.bf16.mxu0 0
        %2064 = vmatmul.mubr.bf16.gmra.mrb[0].mxu0 %v1411
        %v2065 = vpop.f32.mrb[0].mxu0
        %v2066 = vadd.f32 0.0, %v2065
        %v2067 = vpop.f32.mrb[0].mxu0
        %v2068 = vpop.f32.mrb[0].mxu0
        %v2069 = vadd.f32 0.0, %v2068
        %v2070 = vpop.f32.mrb[0].mxu0
        %2071 = vmatprep.mubr.bf16.mxu0 0
        %2072 = vmatmul.mubr.bf16.gmra.mrb[0].mxu0 %v1414
        %v2073 = vpop.f32.mrb[0].mxu0
        %v2074 = vadd.f32 0.0, %v2073
        %v2075 = vpop.f32.mrb[0].mxu0
        %v2076 = vpop.f32.mrb[0].mxu0
        %v2077 = vadd.f32 0.0, %v2076
        %v2078 = vpop.f32.mrb[0].mxu0
        %2079 = vmatprep.mubr.bf16.mxu0 0
        %2080 = vmatmul.mubr.bf16.gmra.mrb[0].mxu0 %v1417
        %v2081 = vpop.f32.mrb[0].mxu0
        %v2082 = vadd.f32 0.0, %v2081
        %v2083 = vpop.f32.mrb[0].mxu0
        %v2084 = vpop.f32.mrb[0].mxu0
        %v2085 = vadd.f32 0.0, %v2084
        %v2086 = vpop.f32.mrb[0].mxu0
        %2087 = vmatprep.mubr.bf16.mxu0 0
        %2088 = vmatmul.mubr.bf16.gmra.mrb[0].mxu0 %v1420
        %v2089 = vpop.f32.mrb[0].mxu0
        %v2090 = vadd.f32 0.0, %v2089
        %v2091 = vpop.f32.mrb[0].mxu0
        %v2092 = vpop.f32.mrb[0].mxu0
        %v2093 = vadd.f32 0.0, %v2092
        %v2094 = vpop.f32.mrb[0].mxu0
        %2095 = vmatprep.mubr.bf16.mxu0 0
        %2096 = vmatmul.mubr.bf16.gmra.mrb[0].mxu0 %v1423
        %v2097 = vpop.f32.mrb[0].mxu0
        %v2098 = vadd.f32 0.0, %v2097
        %v2099 = vpop.f32.mrb[0].mxu0
        %v2100 = vpop.f32.mrb[0].mxu0
        %v2101 = vadd.f32 0.0, %v2100
        %v2102 = vpop.f32.mrb[0].mxu0
        %2103 = vmatprep.mubr.bf16.mxu0 0
        %2104 = vmatmul.mubr.bf16.gmra.mrb[0].mxu0 %v1426
        %v2105 = vpop.f32.mrb[0].mxu0
        %v2106 = vadd.f32 0.0, %v2105
        %v2107 = vpop.f32.mrb[0].mxu0
        %v2108 = vpop.f32.mrb[0].mxu0
        %v2109 = vadd.f32 0.0, %v2108
        %v2110 = vpop.f32.mrb[0].mxu0
        %2111 = vmatprep.mubr.bf16.mxu0 0
        %2112 = vmatmul.mubr.bf16.gmra.mrb[0].mxu0 %v1429
        %v2113 = vpop.f32.mrb[0].mxu0
        %v2114 = vadd.f32 0.0, %v2113
        %v2115 = vpop.f32.mrb[0].mxu0
        %v2116 = vpop.f32.mrb[0].mxu0
        %v2117 = vadd.f32 0.0, %v2116
        %v2118 = vpop.f32.mrb[0].mxu0
        %2119 = vmatprep.mubr.bf16.mxu0 0
        %2120 = vmatmul.mubr.bf16.gmra.mrb[0].mxu0 %v1432
        %v2121 = vpop.f32.mrb[0].mxu0
        %v2122 = vadd.f32 0.0, %v2121
        %v2123 = vpop.f32.mrb[0].mxu0
        %v2124 = vpop.f32.mrb[0].mxu0
        %v2125 = vadd.f32 0.0, %v2124
        %v2126 = vpop.f32.mrb[0].mxu0
        %2127 = vmatprep.mubr.bf16.mxu0 0
        %2128 = vmatmul.mubr.bf16.gmra.mrb[0].mxu0 %v1435
        %v2129 = vpop.f32.mrb[0].mxu0
        %v2130 = vadd.f32 0.0, %v2129
        %v2131 = vpop.f32.mrb[0].mxu0
        %v2132 = vpop.f32.mrb[0].mxu0
        %v2133 = vadd.f32 0.0, %v2132
        %v2134 = vpop.f32.mrb[0].mxu0
        %2135 = vmatprep.mubr.bf16.mxu0 0
        %2136 = vmatmul.mubr.bf16.gmra.mrb[0].mxu0 %v1438
        %v2137 = vpop.f32.mrb[0].mxu0
        %v2138 = vadd.f32 0.0, %v2137
        %v2139 = vpop.f32.mrb[0].mxu0
        %v2140 = vpop.f32.mrb[0].mxu0
        %v2141 = vadd.f32 0.0, %v2140
        %v2142 = vpop.f32.mrb[0].mxu0
        %2143 = vmatprep.mubr.bf16.mxu0 0
        %2144 = vmatmul.mubr.bf16.gmra.mrb[0].mxu0 %v1441
        %v2145 = vpop.f32.mrb[0].mxu0
        %v2146 = vadd.f32 0.0, %v2145
        %v2147 = vpop.f32.mrb[0].mxu0
        %v2148 = vpop.f32.mrb[0].mxu0
        %v2149 = vadd.f32 0.0, %v2148
        %v2150 = vpop.f32.mrb[0].mxu0
        %2151 = vmatprep.mubr.bf16.mxu0 0
        %2152 = vmatmul.mubr.bf16.gmra.mrb[0].mxu0 %v1444
        %v2153 = vpop.f32.mrb[0].mxu0
        %v2154 = vadd.f32 0.0, %v2153
        %v2155 = vpop.f32.mrb[0].mxu0
        %v2156 = vpop.f32.mrb[0].mxu0
        %v2157 = vadd.f32 0.0, %v2156
        %v2158 = vpop.f32.mrb[0].mxu0
        %2159 = vdwg.mxu0
        %v2160 = vmul.f32 %v967, %v1481
        %v2161 = vmul.f32 %v969, %v1483
        %v2162 = vmul.f32 %v1160, %v1674
        %v2163 = vmul.f32 %v1162, %v1676
        %v2164 = vmul.f32 %v971, %v1485
        %v2165 = vmul.f32 %v973, %v1487
        %v2166 = vmul.f32 %v1164, %v1678
        %v2167 = vmul.f32 %v1166, %v1680
        %v2168 = vmul.f32 %v977, %v1491
        %v2169 = vmul.f32 %v979, %v1493
        %v2170 = vmul.f32 %v1170, %v1684
        %v2171 = vmul.f32 %v1172, %v1686
        %v2172 = vmul.f32 %v981, %v1495
        %v2173 = vmul.f32 %v983, %v1497
        %v2174 = vmul.f32 %v1174, %v1688
        %v2175 = vmul.f32 %v1176, %v1690
        %v2176 = vmul.f32 %v987, %v1501
        %v2177 = vmul.f32 %v989, %v1503
        %v2178 = vmul.f32 %v1180, %v1694
        %v2179 = vmul.f32 %v1182, %v1696
        %v2180 = vmul.f32 %v991, %v1505
        %v2181 = vmul.f32 %v993, %v1507
        %v2182 = vmul.f32 %v1184, %v1698
        %v2183 = vmul.f32 %v1186, %v1700
        %v2184 = vmul.f32 %v997, %v1511
        %v2185 = vmul.f32 %v999, %v1513
        %v2186 = vmul.f32 %v1190, %v1704
        %v2187 = vmul.f32 %v1192, %v1706
        %v2188 = vmul.f32 %v1001, %v1515
        %v2189 = vmul.f32 %v1003, %v1517
        %v2190 = vmul.f32 %v1194, %v1708
        %v2191 = vmul.f32 %v1196, %v1710
        %v2192 = vmul.f32 %v1007, %v1521
        %v2193 = vmul.f32 %v1009, %v1523
        %v2194 = vmul.f32 %v1200, %v1714
        %v2195 = vmul.f32 %v1202, %v1716
        %v2196 = vmul.f32 %v1011, %v1525
        %v2197 = vmul.f32 %v1013, %v1527
        %v2198 = vmul.f32 %v1204, %v1718
        %v2199 = vmul.f32 %v1206, %v1720
        %v2200 = vmul.f32 %v1017, %v1531
        %v2201 = vmul.f32 %v1019, %v1533
        %v2202 = vmul.f32 %v1210, %v1724
        %v2203 = vmul.f32 %v1212, %v1726
        %v2204 = vmul.f32 %v1021, %v1535
        %v2205 = vmul.f32 %v1023, %v1537
        %v2206 = vmul.f32 %v1214, %v1728
        %v2207 = vmul.f32 %v1216, %v1730
        %v2208 = vmul.f32 %v1027, %v1541
        %v2209 = vmul.f32 %v1029, %v1543
        %v2210 = vmul.f32 %v1220, %v1734
        %v2211 = vmul.f32 %v1222, %v1736
        %v2212 = vmul.f32 %v1031, %v1545
        %v2213 = vmul.f32 %v1033, %v1547
        %v2214 = vmul.f32 %v1224, %v1738
        %v2215 = vmul.f32 %v1226, %v1740
        %v2216 = vmul.f32 %v1037, %v1551
        %v2217 = vmul.f32 %v1039, %v1553
        %v2218 = vmul.f32 %v1230, %v1744
        %v2219 = vmul.f32 %v1232, %v1746
        %v2220 = vmul.f32 %v1041, %v1555
        %v2221 = vmul.f32 %v1043, %v1557
        %v2222 = vmul.f32 %v1234, %v1748
        %v2223 = vmul.f32 %v1236, %v1750
        %v2224 = vmul.f32 %v1047, %v1561
        %v2225 = vmul.f32 %v1049, %v1563
        %v2226 = vmul.f32 %v1240, %v1754
        %v2227 = vmul.f32 %v1242, %v1756
        %v2228 = vmul.f32 %v1051, %v1565
        %v2229 = vmul.f32 %v1053, %v1567
        %v2230 = vmul.f32 %v1244, %v1758
        %v2231 = vmul.f32 %v1246, %v1760
        %v2232 = vmul.f32 %v1057, %v1571
        %v2233 = vmul.f32 %v1059, %v1573
        %v2234 = vmul.f32 %v1250, %v1764
        %v2235 = vmul.f32 %v1252, %v1766
        %v2236 = vmul.f32 %v1061, %v1575
        %v2237 = vmul.f32 %v1063, %v1577
        %v2238 = vmul.f32 %v1254, %v1768
        %v2239 = vmul.f32 %v1256, %v1770
        %v2240 = vmul.f32 %v1067, %v1581
        %v2241 = vmul.f32 %v1069, %v1583
        %v2242 = vmul.f32 %v1260, %v1774
        %v2243 = vmul.f32 %v1262, %v1776
        %v2244 = vmul.f32 %v1071, %v1585
        %v2245 = vmul.f32 %v1073, %v1587
        %v2246 = vmul.f32 %v1264, %v1778
        %v2247 = vmul.f32 %v1266, %v1780
        %v2248 = vmul.f32 %v1077, %v1591
        %v2249 = vmul.f32 %v1079, %v1593
        %v2250 = vmul.f32 %v1270, %v1784
        %v2251 = vmul.f32 %v1272, %v1786
        %v2252 = vmul.f32 %v1081, %v1595
        %v2253 = vmul.f32 %v1083, %v1597
        %v2254 = vmul.f32 %v1274, %v1788
        %v2255 = vmul.f32 %v1276, %v1790
        %v2256 = vmul.f32 %v1087, %v1601
        %v2257 = vmul.f32 %v1089, %v1603
        %v2258 = vmul.f32 %v1280, %v1794
        %v2259 = vmul.f32 %v1282, %v1796
        %v2260 = vmul.f32 %v1091, %v1605
        %v2261 = vmul.f32 %v1093, %v1607
        %v2262 = vmul.f32 %v1284, %v1798
        %v2263 = vmul.f32 %v1286, %v1800
        %v2264 = vmul.f32 %v1097, %v1611
        %v2265 = vmul.f32 %v1099, %v1613
        %v2266 = vmul.f32 %v1290, %v1804
        %v2267 = vmul.f32 %v1292, %v1806
        %v2268 = vmul.f32 %v1101, %v1615
        %v2269 = vmul.f32 %v1103, %v1617
        %v2270 = vmul.f32 %v1294, %v1808
        %v2271 = vmul.f32 %v1296, %v1810
        %v2272 = vmul.f32 %v1107, %v1621
        %v2273 = vmul.f32 %v1109, %v1623
        %v2274 = vmul.f32 %v1300, %v1814
        %v2275 = vmul.f32 %v1302, %v1816
        %v2276 = vmul.f32 %v1111, %v1625
        %v2277 = vmul.f32 %v1113, %v1627
        %v2278 = vmul.f32 %v1304, %v1818
        %v2279 = vmul.f32 %v1306, %v1820
        %v2280 = vmul.f32 %v1117, %v1631
        %v2281 = vmul.f32 %v1119, %v1633
        %v2282 = vmul.f32 %v1310, %v1824
        %v2283 = vmul.f32 %v1312, %v1826
        %v2284 = vmul.f32 %v1121, %v1635
        %v2285 = vmul.f32 %v1123, %v1637
        %v2286 = vmul.f32 %v1314, %v1828
        %v2287 = vmul.f32 %v1316, %v1830
        %v2288 = vadd.f32 %v2160, %v2161
        %v2289 = vadd.f32 %v2164, %v2165
        %v2290 = vadd.f32 %v2168, %v2169
        %v2291 = vadd.f32 %v2172, %v2173
        %v2292 = vadd.f32 %v2176, %v2177
        %v2293 = vadd.f32 %v2180, %v2181
        %v2294 = vadd.f32 %v2184, %v2185
        %v2295 = vadd.f32 %v2188, %v2189
        %v2296 = vadd.f32 %v2192, %v2193
        %v2297 = vadd.f32 %v2196, %v2197
        %v2298 = vadd.f32 %v2200, %v2201
        %v2299 = vadd.f32 %v2204, %v2205
        %v2300 = vadd.f32 %v2208, %v2209
        %v2301 = vadd.f32 %v2212, %v2213
        %v2302 = vadd.f32 %v2216, %v2217
        %v2303 = vadd.f32 %v2220, %v2221
        %v2304 = vadd.f32 %v2224, %v2225
        %v2305 = vadd.f32 %v2228, %v2229
        %v2306 = vadd.f32 %v2232, %v2233
        %v2307 = vadd.f32 %v2236, %v2237
        %v2308 = vadd.f32 %v2240, %v2241
        %v2309 = vadd.f32 %v2244, %v2245
        %v2310 = vadd.f32 %v2248, %v2249
        %v2311 = vadd.f32 %v2252, %v2253
        %v2312 = vadd.f32 %v2256, %v2257
        %v2313 = vadd.f32 %v2260, %v2261
        %v2314 = vadd.f32 %v2264, %v2265
        %v2315 = vadd.f32 %v2268, %v2269
        %v2316 = vadd.f32 %v2272, %v2273
        %v2317 = vadd.f32 %v2276, %v2277
        %v2318 = vadd.f32 %v2280, %v2281
        %v2319 = vadd.f32 %v2284, %v2285
        %v2320 = vadd.f32 %v2288, %v2162
        %v2321 = vadd.f32 %v2289, %v2166
        %v2322 = vadd.f32 %v2290, %v2170
        %v2323 = vadd.f32 %v2291, %v2174
        %v2324 = vadd.f32 %v2292, %v2178
        %v2325 = vadd.f32 %v2293, %v2182
        %v2326 = vadd.f32 %v2294, %v2186
        %v2327 = vadd.f32 %v2295, %v2190
        %v2328 = vadd.f32 %v2296, %v2194
        %v2329 = vadd.f32 %v2297, %v2198
        %v2330 = vadd.f32 %v2298, %v2202
        %v2331 = vadd.f32 %v2299, %v2206
        %v2332 = vadd.f32 %v2300, %v2210
        %v2333 = vadd.f32 %v2301, %v2214
        %v2334 = vadd.f32 %v2302, %v2218
        %v2335 = vadd.f32 %v2303, %v2222
        %v2336 = vadd.f32 %v2304, %v2226
        %v2337 = vadd.f32 %v2305, %v2230
        %v2338 = vadd.f32 %v2306, %v2234
        %v2339 = vadd.f32 %v2307, %v2238
        %v2340 = vadd.f32 %v2308, %v2242
        %v2341 = vadd.f32 %v2309, %v2246
        %v2342 = vadd.f32 %v2310, %v2250
        %v2343 = vadd.f32 %v2311, %v2254
        %v2344 = vadd.f32 %v2312, %v2258
        %v2345 = vadd.f32 %v2313, %v2262
        %v2346 = vadd.f32 %v2314, %v2266
        %v2347 = vadd.f32 %v2315, %v2270
        %v2348 = vadd.f32 %v2316, %v2274
        %v2349 = vadd.f32 %v2317, %v2278
        %v2350 = vadd.f32 %v2318, %v2282
        %v2351 = vadd.f32 %v2319, %v2286
        %v2352 = vadd.f32 %v2320, %v2163
        %v2353 = vadd.f32 %v2321, %v2167
        %v2354 = vadd.f32 %v2322, %v2171
        %v2355 = vadd.f32 %v2323, %v2175
        %v2356 = vadd.f32 %v2324, %v2179
        %v2357 = vadd.f32 %v2325, %v2183
        %v2358 = vadd.f32 %v2326, %v2187
        %v2359 = vadd.f32 %v2327, %v2191
        %v2360 = vadd.f32 %v2328, %v2195
        %v2361 = vadd.f32 %v2329, %v2199
        %v2362 = vadd.f32 %v2330, %v2203
        %v2363 = vadd.f32 %v2331, %v2207
        %v2364 = vadd.f32 %v2332, %v2211
        %v2365 = vadd.f32 %v2333, %v2215
        %v2366 = vadd.f32 %v2334, %v2219
        %v2367 = vadd.f32 %v2335, %v2223
        %v2368 = vadd.f32 %v2336, %v2227
        %v2369 = vadd.f32 %v2337, %v2231
        %v2370 = vadd.f32 %v2338, %v2235
        %v2371 = vadd.f32 %v2339, %v2239
        %v2372 = vadd.f32 %v2340, %v2243
        %v2373 = vadd.f32 %v2341, %v2247
        %v2374 = vadd.f32 %v2342, %v2251
        %v2375 = vadd.f32 %v2343, %v2255
        %v2376 = vadd.f32 %v2344, %v2259
        %v2377 = vadd.f32 %v2345, %v2263
        %v2378 = vadd.f32 %v2346, %v2267
        %v2379 = vadd.f32 %v2347, %v2271
        %v2380 = vadd.f32 %v2348, %v2275
        %v2381 = vadd.f32 %v2349, %v2279
        %v2382 = vadd.f32 %v2350, %v2283
        %v2383 = vadd.f32 %v2351, %v2287
        %2384 = vadd.xlane.f32.xlu0 %v2352
        %v2385 = vpop.xlane.xlu0 %2384
        %2386 = vadd.xlane.f32.xlu0 %v2353
        %v2387 = vpop.xlane.xlu0 %2386
        %2388 = vadd.xlane.f32.xlu0 %v2354
        %v2389 = vpop.xlane.xlu0 %2388
        %2390 = vadd.xlane.f32.xlu0 %v2355
        %v2391 = vpop.xlane.xlu0 %2390
        %2392 = vadd.xlane.f32.xlu0 %v2356
        %v2393 = vpop.xlane.xlu0 %2392
        %2394 = vadd.xlane.f32.xlu0 %v2357
        %v2395 = vpop.xlane.xlu0 %2394
        %2396 = vadd.xlane.f32.xlu0 %v2358
        %v2397 = vpop.xlane.xlu0 %2396
        %2398 = vadd.xlane.f32.xlu0 %v2359
        %v2399 = vpop.xlane.xlu0 %2398
        %2400 = vadd.xlane.f32.xlu0 %v2360
        %v2401 = vpop.xlane.xlu0 %2400
        %2402 = vadd.xlane.f32.xlu0 %v2361
        %v2403 = vpop.xlane.xlu0 %2402
        %2404 = vadd.xlane.f32.xlu0 %v2362
        %v2405 = vpop.xlane.xlu0 %2404
        %2406 = vadd.xlane.f32.xlu0 %v2363
        %v2407 = vpop.xlane.xlu0 %2406
        %2408 = vadd.xlane.f32.xlu0 %v2364
        %v2409 = vpop.xlane.xlu0 %2408
        %2410 = vadd.xlane.f32.xlu0 %v2365
        %v2411 = vpop.xlane.xlu0 %2410
        %2412 = vadd.xlane.f32.xlu0 %v2366
        %v2413 = vpop.xlane.xlu0 %2412
        %2414 = vadd.xlane.f32.xlu0 %v2367
        %v2415 = vpop.xlane.xlu0 %2414
        %2416 = vadd.xlane.f32.xlu0 %v2368
        %v2417 = vpop.xlane.xlu0 %2416
        %2418 = vadd.xlane.f32.xlu0 %v2369
        %v2419 = vpop.xlane.xlu0 %2418
        %2420 = vadd.xlane.f32.xlu0 %v2370
        %v2421 = vpop.xlane.xlu0 %2420
        %2422 = vadd.xlane.f32.xlu0 %v2371
        %v2423 = vpop.xlane.xlu0 %2422
        %2424 = vadd.xlane.f32.xlu0 %v2372
        %v2425 = vpop.xlane.xlu0 %2424
        %2426 = vadd.xlane.f32.xlu0 %v2373
        %v2427 = vpop.xlane.xlu0 %2426
        %2428 = vadd.xlane.f32.xlu0 %v2374
        %v2429 = vpop.xlane.xlu0 %2428
        %2430 = vadd.xlane.f32.xlu0 %v2375
        %v2431 = vpop.xlane.xlu0 %2430
        %2432 = vadd.xlane.f32.xlu0 %v2376
        %v2433 = vpop.xlane.xlu0 %2432
        %2434 = vadd.xlane.f32.xlu0 %v2377
        %v2435 = vpop.xlane.xlu0 %2434
        %2436 = vadd.xlane.f32.xlu0 %v2378
        %v2437 = vpop.xlane.xlu0 %2436
        %2438 = vadd.xlane.f32.xlu0 %v2379
        %v2439 = vpop.xlane.xlu0 %2438
        %2440 = vadd.xlane.f32.xlu0 %v2380
        %v2441 = vpop.xlane.xlu0 %2440
        %2442 = vadd.xlane.f32.xlu0 %v2381
        %v2443 = vpop.xlane.xlu0 %2442
        %2444 = vadd.xlane.f32.xlu0 %v2382
        %v2445 = vpop.xlane.xlu0 %2444
        %2446 = vadd.xlane.f32.xlu0 %v2383
        %v2447 = vpop.xlane.xlu0 %2446
        %v2448 = vadd.f32 %v2385, 1e-05
        %v2449 = vadd.f32 %v2387, 1e-05
        %v2450 = vadd.f32 %v2389, 1e-05
        %v2451 = vadd.f32 %v2391, 1e-05
        %v2452 = vadd.f32 %v2393, 1e-05
        %v2453 = vadd.f32 %v2395, 1e-05
        %v2454 = vadd.f32 %v2397, 1e-05
        %v2455 = vadd.f32 %v2399, 1e-05
        %v2456 = vadd.f32 %v2401, 1e-05
        %v2457 = vadd.f32 %v2403, 1e-05
        %v2458 = vadd.f32 %v2405, 1e-05
        %v2459 = vadd.f32 %v2407, 1e-05
        %v2460 = vadd.f32 %v2409, 1e-05
        %v2461 = vadd.f32 %v2411, 1e-05
        %v2462 = vadd.f32 %v2413, 1e-05
        %v2463 = vadd.f32 %v2415, 1e-05
        %v2464 = vadd.f32 %v2417, 1e-05
        %v2465 = vadd.f32 %v2419, 1e-05
        %v2466 = vadd.f32 %v2421, 1e-05
        %v2467 = vadd.f32 %v2423, 1e-05
        %v2468 = vadd.f32 %v2425, 1e-05
        %v2469 = vadd.f32 %v2427, 1e-05
        %v2470 = vadd.f32 %v2429, 1e-05
        %v2471 = vadd.f32 %v2431, 1e-05
        %v2472 = vadd.f32 %v2433, 1e-05
        %v2473 = vadd.f32 %v2435, 1e-05
        %v2474 = vadd.f32 %v2437, 1e-05
        %v2475 = vadd.f32 %v2439, 1e-05
        %v2476 = vadd.f32 %v2441, 1e-05
        %v2477 = vadd.f32 %v2443, 1e-05
        %v2478 = vadd.f32 %v2445, 1e-05
        %v2479 = vadd.f32 %v2447, 1e-05
        %v2480 = vrcp.pop %v2448
        %v2481 = vrcp.pop %v2449
        %v2482 = vrcp.pop %v2450
        %v2483 = vrcp.pop %v2451
        %v2484 = vrcp.pop %v2452
        %v2485 = vrcp.pop %v2453
        %v2486 = vrcp.pop %v2454
        %v2487 = vrcp.pop %v2455
        %v2488 = vrcp.pop %v2456
        %v2489 = vrcp.pop %v2457
        %v2490 = vrcp.pop %v2458
        %v2491 = vrcp.pop %v2459
        %v2492 = vrcp.pop %v2460
        %v2493 = vrcp.pop %v2461
        %v2494 = vrcp.pop %v2462
        %v2495 = vrcp.pop %v2463
        %v2496 = vrcp.pop %v2464
        %v2497 = vrcp.pop %v2465
        %v2498 = vrcp.pop %v2466
        %v2499 = vrcp.pop %v2467
        %v2500 = vrcp.pop %v2468
        %v2501 = vrcp.pop %v2469
        %v2502 = vrcp.pop %v2470
        %v2503 = vrcp.pop %v2471
        %v2504 = vrcp.pop %v2472
        %v2505 = vrcp.pop %v2473
        %v2506 = vrcp.pop %v2474
        %v2507 = vrcp.pop %v2475
        %v2508 = vrcp.pop %v2476
        %v2509 = vrcp.pop %v2477
        %v2510 = vrcp.pop %v2478
        %v2511 = vrcp.pop %v2479
        %v2512 = vmul.f32 %v2352, %v2480
        %v2513 = vmul.f32 %v2353, %v2481
        %v2514 = vmul.f32 %v2354, %v2482
        %v2515 = vmul.f32 %v2355, %v2483
        %v2516 = vmul.f32 %v2356, %v2484
        %v2517 = vmul.f32 %v2357, %v2485
        %v2518 = vmul.f32 %v2358, %v2486
        %v2519 = vmul.f32 %v2359, %v2487
        %v2520 = vmul.f32 %v2360, %v2488
        %v2521 = vmul.f32 %v2361, %v2489
        %v2522 = vmul.f32 %v2362, %v2490
        %v2523 = vmul.f32 %v2363, %v2491
        %v2524 = vmul.f32 %v2364, %v2492
        %v2525 = vmul.f32 %v2365, %v2493
        %v2526 = vmul.f32 %v2366, %v2494
        %v2527 = vmul.f32 %v2367, %v2495
        %v2528 = vmul.f32 %v2368, %v2496
        %v2529 = vmul.f32 %v2369, %v2497
        %v2530 = vmul.f32 %v2370, %v2498
        %v2531 = vmul.f32 %v2371, %v2499
        %v2532 = vmul.f32 %v2372, %v2500
        %v2533 = vmul.f32 %v2373, %v2501
        %v2534 = vmul.f32 %v2374, %v2502
        %v2535 = vmul.f32 %v2375, %v2503
        %v2536 = vmul.f32 %v2376, %v2504
        %v2537 = vmul.f32 %v2377, %v2505
        %v2538 = vmul.f32 %v2378, %v2506
        %v2539 = vmul.f32 %v2379, %v2507
        %v2540 = vmul.f32 %v2380, %v2508
        %v2541 = vmul.f32 %v2381, %v2509
        %v2542 = vmul.f32 %v2382, %v2510
        %v2543 = vmul.f32 %v2383, %v2511
        %v2544 = vpack.c.bf16 %v2513, %v2512
        %v2545 = vpack.c.bf16 %v2515, %v2514
        %v2546 = vpack.c.bf16 %v2517, %v2516
        %v2547 = vpack.c.bf16 %v2519, %v2518
        %v2548 = vpack.c.bf16 %v2521, %v2520
        %v2549 = vpack.c.bf16 %v2523, %v2522
        %v2550 = vpack.c.bf16 %v2525, %v2524
        %v2551 = vpack.c.bf16 %v2527, %v2526
        %v2552 = vpack.c.bf16 %v2529, %v2528
        %v2553 = vpack.c.bf16 %v2531, %v2530
        %v2554 = vpack.c.bf16 %v2533, %v2532
        %v2555 = vpack.c.bf16 %v2535, %v2534
        %v2556 = vpack.c.bf16 %v2537, %v2536
        %v2557 = vpack.c.bf16 %v2539, %v2538
        %v2558 = vpack.c.bf16 %v2541, %v2540
        %v2559 = vpack.c.bf16 %v2543, %v2542
        %v2576 = vunpack.c.l.b16 %v767
        %v2577 = vunpack.c.l.b16 %v768
        %v2578 = vunpack.c.l.b16 %v769
        %v2579 = vunpack.c.l.b16 %v770
        %v2580 = vunpack.c.l.b16 %v771
        %v2581 = vunpack.c.l.b16 %v772
        %v2582 = vunpack.c.l.b16 %v773
        %v2583 = vunpack.c.l.b16 %v774
        %v2584 = vunpack.c.l.b16 %v775
        %v2585 = vunpack.c.l.b16 %v776
        %v2586 = vunpack.c.l.b16 %v777
        %v2587 = vunpack.c.l.b16 %v778
        %v2588 = vunpack.c.l.b16 %v779
        %v2589 = vunpack.c.l.b16 %v780
        %v2590 = vunpack.c.l.b16 %v781
        %v2591 = vunpack.c.l.b16 %v782
        %v2592 = vpack.c.b16 %v2577, %v2576
        %v2593 = vpack.c.b16 %v2579, %v2578
        %v2594 = vpack.c.b16 %v2581, %v2580
        %v2595 = vpack.c.b16 %v2583, %v2582
        %v2596 = vpack.c.b16 %v2585, %v2584
        %v2597 = vpack.c.b16 %v2587, %v2586
        %v2598 = vpack.c.b16 %v2589, %v2588
        %v2599 = vpack.c.b16 %v2591, %v2590
        %2608 = vmatprep.subr.bf16.mxu0 0
        %2609 = vmatpush1.bf16.msra.mxu0 %v2592
        %2610 = vmatprep.subr.bf16.mxu0 0
        %2611 = vmatpush1.bf16.msra.mxu0 %v2593
        %2612 = vmatprep.subr.bf16.mxu0 0
        %2613 = vmatpush1.bf16.msra.mxu0 %v2594
        %2614 = vmatprep.subr.bf16.mxu0 0
        %2615 = vmatpush1.bf16.msra.mxu0 %v2595
        %2616 = vmatprep.subr.bf16.mxu0 0
        %2617 = vmatpush1.bf16.msra.mxu0 %v2596
        %2618 = vmatprep.subr.bf16.mxu0 0
        %2619 = vmatpush1.bf16.msra.mxu0 %v2597
        %2620 = vmatprep.subr.bf16.mxu0 0
        %2621 = vmatpush1.bf16.msra.mxu0 %v2598
        %2622 = vmatprep.subr.bf16.mxu0 0
        %2623 = vmatpush1.bf16.msra.mxu0 %v2599
        %2624 = vmatprep.subr.bf16.mxu0 0
        %2625 = vmatpush1.bf16.msra.mxu0 0
        %2626 = vmatprep.subr.bf16.mxu0 0
        %2627 = vmatpush1.bf16.msra.mxu0 0
        %2628 = vmatprep.subr.bf16.mxu0 0
        %2629 = vmatpush1.bf16.msra.mxu0 0
        %2630 = vmatprep.subr.bf16.mxu0 0
        %2631 = vmatpush1.bf16.msra.mxu0 0
        %2632 = vmatprep.subr.bf16.mxu0 0
        %2633 = vmatpush1.bf16.msra.mxu0 0
        %2634 = vmatprep.subr.bf16.mxu0 0
        %2635 = vmatpush1.bf16.msra.mxu0 0
        %2636 = vmatprep.subr.bf16.mxu0 0
        %2637 = vmatpush1.bf16.msra.mxu0 0
        %2638 = vmatprep.subr.bf16.mxu0 0
        %2639 = vmatpush1.bf16.msra.mxu0 0
        %2640 = vmatprep.mubr.bf16.mxu0 0
        %2641 = vmatmul.mubr.bf16.gmra.mrb[0].mxu0 %v2544
        %v2642 = vpop.f32.mrb[0].mxu0
        %v2643 = vadd.f32 0.0, %v2642
        %v2644 = vpop.f32.mrb[0].mxu0
        %v2645 = vpop.f32.mrb[0].mxu0
        %v2646 = vadd.f32 0.0, %v2645
        %v2647 = vpop.f32.mrb[0].mxu0
        %2648 = vmatprep.mubr.bf16.mxu0 0
        %2649 = vmatmul.mubr.bf16.gmra.mrb[0].mxu0 %v2545
        %v2650 = vpop.f32.mrb[0].mxu0
        %v2651 = vadd.f32 0.0, %v2650
        %v2652 = vpop.f32.mrb[0].mxu0
        %v2653 = vpop.f32.mrb[0].mxu0
        %v2654 = vadd.f32 0.0, %v2653
        %v2655 = vpop.f32.mrb[0].mxu0
        %2656 = vmatprep.mubr.bf16.mxu0 0
        %2657 = vmatmul.mubr.bf16.gmra.mrb[0].mxu0 %v2546
        %v2658 = vpop.f32.mrb[0].mxu0
        %v2659 = vadd.f32 0.0, %v2658
        %v2660 = vpop.f32.mrb[0].mxu0
        %v2661 = vpop.f32.mrb[0].mxu0
        %v2662 = vadd.f32 0.0, %v2661
        %v2663 = vpop.f32.mrb[0].mxu0
        %2664 = vmatprep.mubr.bf16.mxu0 0
        %2665 = vmatmul.mubr.bf16.gmra.mrb[0].mxu0 %v2547
        %v2666 = vpop.f32.mrb[0].mxu0
        %v2667 = vadd.f32 0.0, %v2666
        %v2668 = vpop.f32.mrb[0].mxu0
        %v2669 = vpop.f32.mrb[0].mxu0
        %v2670 = vadd.f32 0.0, %v2669
        %v2671 = vpop.f32.mrb[0].mxu0
        %2672 = vmatprep.mubr.bf16.mxu0 0
        %2673 = vmatmul.mubr.bf16.gmra.mrb[0].mxu0 %v2548
        %v2674 = vpop.f32.mrb[0].mxu0
        %v2675 = vadd.f32 0.0, %v2674
        %v2676 = vpop.f32.mrb[0].mxu0
        %v2677 = vpop.f32.mrb[0].mxu0
        %v2678 = vadd.f32 0.0, %v2677
        %v2679 = vpop.f32.mrb[0].mxu0
        %2680 = vmatprep.mubr.bf16.mxu0 0
        %2681 = vmatmul.mubr.bf16.gmra.mrb[0].mxu0 %v2549
        %v2682 = vpop.f32.mrb[0].mxu0
        %v2683 = vadd.f32 0.0, %v2682
        %v2684 = vpop.f32.mrb[0].mxu0
        %v2685 = vpop.f32.mrb[0].mxu0
        %v2686 = vadd.f32 0.0, %v2685
        %v2687 = vpop.f32.mrb[0].mxu0
        %2688 = vmatprep.mubr.bf16.mxu0 0
        %2689 = vmatmul.mubr.bf16.gmra.mrb[0].mxu0 %v2550
        %v2690 = vpop.f32.mrb[0].mxu0
        %v2691 = vadd.f32 0.0, %v2690
        %v2692 = vpop.f32.mrb[0].mxu0
        %v2693 = vpop.f32.mrb[0].mxu0
        %v2694 = vadd.f32 0.0, %v2693
        %v2695 = vpop.f32.mrb[0].mxu0
        %2696 = vmatprep.mubr.bf16.mxu0 0
        %2697 = vmatmul.mubr.bf16.gmra.mrb[0].mxu0 %v2551
        %v2698 = vpop.f32.mrb[0].mxu0
        %v2699 = vadd.f32 0.0, %v2698
        %v2700 = vpop.f32.mrb[0].mxu0
        %v2701 = vpop.f32.mrb[0].mxu0
        %v2702 = vadd.f32 0.0, %v2701
        %v2703 = vpop.f32.mrb[0].mxu0
        %2704 = vmatprep.mubr.bf16.mxu0 0
        %2705 = vmatmul.mubr.bf16.gmra.mrb[0].mxu0 %v2552
        %v2706 = vpop.f32.mrb[0].mxu0
        %v2707 = vadd.f32 0.0, %v2706
        %v2708 = vpop.f32.mrb[0].mxu0
        %v2709 = vpop.f32.mrb[0].mxu0
        %v2710 = vadd.f32 0.0, %v2709
        %v2711 = vpop.f32.mrb[0].mxu0
        %2712 = vmatprep.mubr.bf16.mxu0 0
        %2713 = vmatmul.mubr.bf16.gmra.mrb[0].mxu0 %v2553
        %v2714 = vpop.f32.mrb[0].mxu0
        %v2715 = vadd.f32 0.0, %v2714
        %v2716 = vpop.f32.mrb[0].mxu0
        %v2717 = vpop.f32.mrb[0].mxu0
        %v2718 = vadd.f32 0.0, %v2717
        %v2719 = vpop.f32.mrb[0].mxu0
        %2720 = vmatprep.mubr.bf16.mxu0 0
        %2721 = vmatmul.mubr.bf16.gmra.mrb[0].mxu0 %v2554
        %v2722 = vpop.f32.mrb[0].mxu0
        %v2723 = vadd.f32 0.0, %v2722
        %v2724 = vpop.f32.mrb[0].mxu0
        %v2725 = vpop.f32.mrb[0].mxu0
        %v2726 = vadd.f32 0.0, %v2725
        %v2727 = vpop.f32.mrb[0].mxu0
        %2728 = vmatprep.mubr.bf16.mxu0 0
        %2729 = vmatmul.mubr.bf16.gmra.mrb[0].mxu0 %v2555
        %v2730 = vpop.f32.mrb[0].mxu0
        %v2731 = vadd.f32 0.0, %v2730
        %v2732 = vpop.f32.mrb[0].mxu0
        %v2733 = vpop.f32.mrb[0].mxu0
        %v2734 = vadd.f32 0.0, %v2733
        %v2735 = vpop.f32.mrb[0].mxu0
        %2736 = vmatprep.mubr.bf16.mxu0 0
        %2737 = vmatmul.mubr.bf16.gmra.mrb[0].mxu0 %v2556
        %v2738 = vpop.f32.mrb[0].mxu0
        %v2739 = vadd.f32 0.0, %v2738
        %v2740 = vpop.f32.mrb[0].mxu0
        %v2741 = vpop.f32.mrb[0].mxu0
        %v2742 = vadd.f32 0.0, %v2741
        %v2743 = vpop.f32.mrb[0].mxu0
        %2744 = vmatprep.mubr.bf16.mxu0 0
        %2745 = vmatmul.mubr.bf16.gmra.mrb[0].mxu0 %v2557
        %v2746 = vpop.f32.mrb[0].mxu0
        %v2747 = vadd.f32 0.0, %v2746
        %v2748 = vpop.f32.mrb[0].mxu0
        %v2749 = vpop.f32.mrb[0].mxu0
        %v2750 = vadd.f32 0.0, %v2749
        %v2751 = vpop.f32.mrb[0].mxu0
        %2752 = vmatprep.mubr.bf16.mxu0 0
        %2753 = vmatmul.mubr.bf16.gmra.mrb[0].mxu0 %v2558
        %v2754 = vpop.f32.mrb[0].mxu0
        %v2755 = vadd.f32 0.0, %v2754
        %v2756 = vpop.f32.mrb[0].mxu0
        %v2757 = vpop.f32.mrb[0].mxu0
        %v2758 = vadd.f32 0.0, %v2757
        %v2759 = vpop.f32.mrb[0].mxu0
        %2760 = vmatprep.mubr.bf16.mxu0 0
        %2761 = vmatmul.mubr.bf16.gmra.mrb[0].mxu0 %v2559
        %v2762 = vpop.f32.mrb[0].mxu0
        %v2763 = vadd.f32 0.0, %v2762
        %v2764 = vpop.f32.mrb[0].mxu0
        %v2765 = vpop.f32.mrb[0].mxu0
        %v2766 = vadd.f32 0.0, %v2765
        %v2767 = vpop.f32.mrb[0].mxu0
        %2768 = vdwg.mxu0
        %v2769 = vpack.c.bf16 %v2646, %v2643
        %v2770 = vpack.c.bf16 %v2654, %v2651
        %v2771 = vpack.c.bf16 %v2662, %v2659
        %v2772 = vpack.c.bf16 %v2670, %v2667
        %v2773 = vpack.c.bf16 %v2678, %v2675
        %v2774 = vpack.c.bf16 %v2686, %v2683
        %v2775 = vpack.c.bf16 %v2694, %v2691
        %v2776 = vpack.c.bf16 %v2702, %v2699
        %v2777 = vpack.c.bf16 %v2710, %v2707
        %v2778 = vpack.c.bf16 %v2718, %v2715
        %v2779 = vpack.c.bf16 %v2726, %v2723
        %v2780 = vpack.c.bf16 %v2734, %v2731
        %v2781 = vpack.c.bf16 %v2742, %v2739
        %v2782 = vpack.c.bf16 %v2750, %v2747
        %v2783 = vpack.c.bf16 %v2758, %v2755
        %v2784 = vpack.c.bf16 %v2766, %v2763
        %v2785 = vld [vmem:[#allocation7] sm:$0xf]
        %v2786 = vld [vmem:[#allocation7 + $0x4] sm:$0xf]
        %v2787 = vld [vmem:[#allocation7 + $0x8] sm:$0xf]
        %v2788 = vld [vmem:[#allocation7 + $0xc] sm:$0xf]
        %v2789 = vld [vmem:[#allocation7 + $0x10] sm:$0xf]
        %v2790 = vld [vmem:[#allocation7 + $0x14] sm:$0xf]
        %v2791 = vld [vmem:[#allocation7 + $0x18] sm:$0xf]
        %v2792 = vld [vmem:[#allocation7 + $0x1c] sm:$0xf]
        %v2793 = vld [vmem:[#allocation7 + $0x20] sm:$0xf]
        %v2794 = vld [vmem:[#allocation7 + $0x24] sm:$0xf]
        %v2795 = vld [vmem:[#allocation7 + $0x28] sm:$0xf]
        %v2796 = vld [vmem:[#allocation7 + $0x2c] sm:$0xf]
        %v2797 = vld [vmem:[#allocation7 + $0x30] sm:$0xf]
        %v2798 = vld [vmem:[#allocation7 + $0x34] sm:$0xf]
        %v2799 = vld [vmem:[#allocation7 + $0x38] sm:$0xf]
        %v2800 = vld [vmem:[#allocation7 + $0x3c] sm:$0xf]
        %v2801 = vld [vmem:[%s7] sm:$0x1]
        %v2803 = vlaneseq
        %v2804 = vshrl.u32 %v2803, 7
        %v2805 = vsub.s32 0, %v2804
        %v2806 = vrot.slane %v2801, %v2805
        %v2824 = vunpack.c.l.b16 %v2785
        %v2825 = vunpack.c.l.b16 %v2786
        %v2826 = vunpack.c.l.b16 %v2787
        %v2827 = vunpack.c.l.b16 %v2788
        %v2828 = vunpack.c.l.b16 %v2789
        %v2829 = vunpack.c.l.b16 %v2790
        %v2830 = vunpack.c.l.b16 %v2791
        %v2831 = vunpack.c.l.b16 %v2792
        %v2832 = vunpack.c.l.b16 %v2793
        %v2833 = vunpack.c.l.b16 %v2794
        %v2834 = vunpack.c.l.b16 %v2795
        %v2835 = vunpack.c.l.b16 %v2796
        %v2836 = vunpack.c.l.b16 %v2797
        %v2837 = vunpack.c.l.b16 %v2798
        %v2838 = vunpack.c.l.b16 %v2799
        %v2839 = vunpack.c.l.b16 %v2800
        %v2840 = vpack.c.b16 %v2825, %v2824
        %v2841 = vpack.c.b16 %v2827, %v2826
        %v2842 = vpack.c.b16 %v2829, %v2828
        %v2843 = vpack.c.b16 %v2831, %v2830
        %v2844 = vpack.c.b16 %v2833, %v2832
        %v2845 = vpack.c.b16 %v2835, %v2834
        %v2846 = vpack.c.b16 %v2837, %v2836
        %v2847 = vpack.c.b16 %v2839, %v2838
        %2856 = vmatprep.subr.bf16.mxu0 0
        %2857 = vmatpush1.bf16.msra.mxu0 %v2840
        %2858 = vmatprep.subr.bf16.mxu0 0
        %2859 = vmatpush1.bf16.msra.mxu0 %v2841
        %2860 = vmatprep.subr.bf16.mxu0 0
        %2861 = vmatpush1.bf16.msra.mxu0 %v2842
        %2862 = vmatprep.subr.bf16.mxu0 0
        %2863 = vmatpush1.bf16.msra.mxu0 %v2843
        %2864 = vmatprep.subr.bf16.mxu0 0
        %2865 = vmatpush1.bf16.msra.mxu0 %v2844
        %2866 = vmatprep.subr.bf16.mxu0 0
        %2867 = vmatpush1.bf16.msra.mxu0 %v2845
        %2868 = vmatprep.subr.bf16.mxu0 0
        %2869 = vmatpush1.bf16.msra.mxu0 %v2846
        %2870 = vmatprep.subr.bf16.mxu0 0
        %2871 = vmatpush1.bf16.msra.mxu0 %v2847
        %2872 = vmatprep.subr.bf16.mxu0 0
        %2873 = vmatpush1.bf16.msra.mxu0 0
        %2874 = vmatprep.subr.bf16.mxu0 0
        %2875 = vmatpush1.bf16.msra.mxu0 0
        %2876 = vmatprep.subr.bf16.mxu0 0
        %2877 = vmatpush1.bf16.msra.mxu0 0
        %2878 = vmatprep.subr.bf16.mxu0 0
        %2879 = vmatpush1.bf16.msra.mxu0 0
        %2880 = vmatprep.subr.bf16.mxu0 0
        %2881 = vmatpush1.bf16.msra.mxu0 0
        %2882 = vmatprep.subr.bf16.mxu0 0
        %2883 = vmatpush1.bf16.msra.mxu0 0
        %2884 = vmatprep.subr.bf16.mxu0 0
        %2885 = vmatpush1.bf16.msra.mxu0 0
        %2886 = vmatprep.subr.bf16.mxu0 0
        %2887 = vmatpush1.bf16.msra.mxu0 0
        %2888 = vmatprep.mubr.bf16.mxu0 0
        %2889 = vmatmul.mubr.bf16.gmra.mrb[0].mxu0 %v2769
        %v2890 = vpop.f32.mrb[0].mxu0
        %v2891 = vadd.f32 %v2806, %v2890
        %v2892 = vpop.f32.mrb[0].mxu0
        %v2893 = vpop.f32.mrb[0].mxu0
        %v2894 = vadd.f32 %v2806, %v2893
        %v2895 = vpop.f32.mrb[0].mxu0
        %2896 = vmatprep.mubr.bf16.mxu0 0
        %2897 = vmatmul.mubr.bf16.gmra.mrb[0].mxu0 %v2770
        %v2898 = vpop.f32.mrb[0].mxu0
        %v2899 = vadd.f32 %v2806, %v2898
        %v2900 = vpop.f32.mrb[0].mxu0
        %v2901 = vpop.f32.mrb[0].mxu0
        %v2902 = vadd.f32 %v2806, %v2901
        %v2903 = vpop.f32.mrb[0].mxu0
        %2904 = vmatprep.mubr.bf16.mxu0 0
        %2905 = vmatmul.mubr.bf16.gmra.mrb[0].mxu0 %v2771
        %v2906 = vpop.f32.mrb[0].mxu0
        %v2907 = vadd.f32 %v2806, %v2906
        %v2908 = vpop.f32.mrb[0].mxu0
        %v2909 = vpop.f32.mrb[0].mxu0
        %v2910 = vadd.f32 %v2806, %v2909
        %v2911 = vpop.f32.mrb[0].mxu0
        %2912 = vmatprep.mubr.bf16.mxu0 0
        %2913 = vmatmul.mubr.bf16.gmra.mrb[0].mxu0 %v2772
        %v2914 = vpop.f32.mrb[0].mxu0
        %v2915 = vadd.f32 %v2806, %v2914
        %v2916 = vpop.f32.mrb[0].mxu0
        %v2917 = vpop.f32.mrb[0].mxu0
        %v2918 = vadd.f32 %v2806, %v2917
        %v2919 = vpop.f32.mrb[0].mxu0
        %2920 = vmatprep.mubr.bf16.mxu0 0
        %2921 = vmatmul.mubr.bf16.gmra.mrb[0].mxu0 %v2773
        %v2922 = vpop.f32.mrb[0].mxu0
        %v2923 = vadd.f32 %v2806, %v2922
        %v2924 = vpop.f32.mrb[0].mxu0
        %v2925 = vpop.f32.mrb[0].mxu0
        %v2926 = vadd.f32 %v2806, %v2925
        %v2927 = vpop.f32.mrb[0].mxu0
        %2928 = vmatprep.mubr.bf16.mxu0 0
        %2929 = vmatmul.mubr.bf16.gmra.mrb[0].mxu0 %v2774
        %v2930 = vpop.f32.mrb[0].mxu0
        %v2931 = vadd.f32 %v2806, %v2930
        %v2932 = vpop.f32.mrb[0].mxu0
        %v2933 = vpop.f32.mrb[0].mxu0
        %v2934 = vadd.f32 %v2806, %v2933
        %v2935 = vpop.f32.mrb[0].mxu0
        %2936 = vmatprep.mubr.bf16.mxu0 0
        %2937 = vmatmul.mubr.bf16.gmra.mrb[0].mxu0 %v2775
        %v2938 = vpop.f32.mrb[0].mxu0
        %v2939 = vadd.f32 %v2806, %v2938
        %v2940 = vpop.f32.mrb[0].mxu0
        %v2941 = vpop.f32.mrb[0].mxu0
        %v2942 = vadd.f32 %v2806, %v2941
        %v2943 = vpop.f32.mrb[0].mxu0
        %2944 = vmatprep.mubr.bf16.mxu0 0
        %2945 = vmatmul.mubr.bf16.gmra.mrb[0].mxu0 %v2776
        %v2946 = vpop.f32.mrb[0].mxu0
        %v2947 = vadd.f32 %v2806, %v2946
        %v2948 = vpop.f32.mrb[0].mxu0
        %v2949 = vpop.f32.mrb[0].mxu0
        %v2950 = vadd.f32 %v2806, %v2949
        %v2951 = vpop.f32.mrb[0].mxu0
        %2952 = vmatprep.mubr.bf16.mxu0 0
        %2953 = vmatmul.mubr.bf16.gmra.mrb[0].mxu0 %v2777
        %v2954 = vpop.f32.mrb[0].mxu0
        %v2955 = vadd.f32 %v2806, %v2954
        %v2956 = vpop.f32.mrb[0].mxu0
        %v2957 = vpop.f32.mrb[0].mxu0
        %v2958 = vadd.f32 %v2806, %v2957
        %v2959 = vpop.f32.mrb[0].mxu0
        %2960 = vmatprep.mubr.bf16.mxu0 0
        %2961 = vmatmul.mubr.bf16.gmra.mrb[0].mxu0 %v2778
        %v2962 = vpop.f32.mrb[0].mxu0
        %v2963 = vadd.f32 %v2806, %v2962
        %v2964 = vpop.f32.mrb[0].mxu0
        %v2965 = vpop.f32.mrb[0].mxu0
        %v2966 = vadd.f32 %v2806, %v2965
        %v2967 = vpop.f32.mrb[0].mxu0
        %2968 = vmatprep.mubr.bf16.mxu0 0
        %2969 = vmatmul.mubr.bf16.gmra.mrb[0].mxu0 %v2779
        %v2970 = vpop.f32.mrb[0].mxu0
        %v2971 = vadd.f32 %v2806, %v2970
        %v2972 = vpop.f32.mrb[0].mxu0
        %v2973 = vpop.f32.mrb[0].mxu0
        %v2974 = vadd.f32 %v2806, %v2973
        %v2975 = vpop.f32.mrb[0].mxu0
        %2976 = vmatprep.mubr.bf16.mxu0 0
        %2977 = vmatmul.mubr.bf16.gmra.mrb[0].mxu0 %v2780
        %v2978 = vpop.f32.mrb[0].mxu0
        %v2979 = vadd.f32 %v2806, %v2978
        %v2980 = vpop.f32.mrb[0].mxu0
        %v2981 = vpop.f32.mrb[0].mxu0
        %v2982 = vadd.f32 %v2806, %v2981
        %v2983 = vpop.f32.mrb[0].mxu0
        %2984 = vmatprep.mubr.bf16.mxu0 0
        %2985 = vmatmul.mubr.bf16.gmra.mrb[0].mxu0 %v2781
        %v2986 = vpop.f32.mrb[0].mxu0
        %v2987 = vadd.f32 %v2806, %v2986
        %v2988 = vpop.f32.mrb[0].mxu0
        %v2989 = vpop.f32.mrb[0].mxu0
        %v2990 = vadd.f32 %v2806, %v2989
        %v2991 = vpop.f32.mrb[0].mxu0
        %2992 = vmatprep.mubr.bf16.mxu0 0
        %2993 = vmatmul.mubr.bf16.gmra.mrb[0].mxu0 %v2782
        %v2994 = vpop.f32.mrb[0].mxu0
        %v2995 = vadd.f32 %v2806, %v2994
        %v2996 = vpop.f32.mrb[0].mxu0
        %v2997 = vpop.f32.mrb[0].mxu0
        %v2998 = vadd.f32 %v2806, %v2997
        %v2999 = vpop.f32.mrb[0].mxu0
        %3000 = vmatprep.mubr.bf16.mxu0 0
        %3001 = vmatmul.mubr.bf16.gmra.mrb[0].mxu0 %v2783
        %v3002 = vpop.f32.mrb[0].mxu0
        %v3003 = vadd.f32 %v2806, %v3002
        %v3004 = vpop.f32.mrb[0].mxu0
        %v3005 = vpop.f32.mrb[0].mxu0
        %v3006 = vadd.f32 %v2806, %v3005
        %v3007 = vpop.f32.mrb[0].mxu0
        %3008 = vmatprep.mubr.bf16.mxu0 0
        %3009 = vmatmul.mubr.bf16.gmra.mrb[0].mxu0 %v2784
        %v3010 = vpop.f32.mrb[0].mxu0
        %v3011 = vadd.f32 %v2806, %v3010
        %v3012 = vpop.f32.mrb[0].mxu0
        %v3013 = vpop.f32.mrb[0].mxu0
        %v3014 = vadd.f32 %v2806, %v3013
        %v3015 = vpop.f32.mrb[0].mxu0
        %3016 = vdwg.mxu0
        %v3017 = vpack.c.bf16 %v2894, %v2891
        %v3018 = vpack.c.bf16 %v2902, %v2899
        %v3019 = vpack.c.bf16 %v2910, %v2907
        %v3020 = vpack.c.bf16 %v2918, %v2915
        %v3021 = vpack.c.bf16 %v2926, %v2923
        %v3022 = vpack.c.bf16 %v2934, %v2931
        %v3023 = vpack.c.bf16 %v2942, %v2939
        %v3024 = vpack.c.bf16 %v2950, %v2947
        %v3025 = vpack.c.bf16 %v2958, %v2955
        %v3026 = vpack.c.bf16 %v2966, %v2963
        %v3027 = vpack.c.bf16 %v2974, %v2971
        %v3028 = vpack.c.bf16 %v2982, %v2979
        %v3029 = vpack.c.bf16 %v2990, %v2987
        %v3030 = vpack.c.bf16 %v2998, %v2995
        %v3031 = vpack.c.bf16 %v3006, %v3003
        %v3032 = vpack.c.bf16 %v3014, %v3011
        %v3033 = vpack.c.bf16 %v1876, %v1873
        %v3034 = vpack.c.bf16 %v1884, %v1881
        %v3035 = vpack.c.bf16 %v1892, %v1889
        %v3036 = vpack.c.bf16 %v1900, %v1897
        %v3037 = vpack.c.bf16 %v1908, %v1905
        %v3038 = vpack.c.bf16 %v1916, %v1913
        %v3039 = vpack.c.bf16 %v1924, %v1921
        %v3040 = vpack.c.bf16 %v1932, %v1929
        %v3041 = vpack.c.bf16 %v1940, %v1937
        %v3042 = vpack.c.bf16 %v1948, %v1945
        %v3043 = vpack.c.bf16 %v1956, %v1953
        %v3044 = vpack.c.bf16 %v1964, %v1961
        %v3045 = vpack.c.bf16 %v1972, %v1969
        %v3046 = vpack.c.bf16 %v1980, %v1977
        %v3047 = vpack.c.bf16 %v1988, %v1985
        %v3048 = vpack.c.bf16 %v1996, %v1993
        %v3049 = vld [vmem:[#allocation9] sm:$0xf]
        %v3050 = vld [vmem:[#allocation9 + $0x4] sm:$0xf]
        %v3051 = vld [vmem:[#allocation9 + $0x8] sm:$0xf]
        %v3052 = vld [vmem:[#allocation9 + $0xc] sm:$0xf]
        %v3053 = vld [vmem:[#allocation9 + $0x10] sm:$0xf]
        %v3054 = vld [vmem:[#allocation9 + $0x14] sm:$0xf]
        %v3055 = vld [vmem:[#allocation9 + $0x18] sm:$0xf]
        %v3056 = vld [vmem:[#allocation9 + $0x1c] sm:$0xf]
        %v3057 = vld [vmem:[#allocation9 + $0x20] sm:$0xf]
        %v3058 = vld [vmem:[#allocation9 + $0x24] sm:$0xf]
        %v3059 = vld [vmem:[#allocation9 + $0x28] sm:$0xf]
        %v3060 = vld [vmem:[#allocation9 + $0x2c] sm:$0xf]
        %v3061 = vld [vmem:[#allocation9 + $0x30] sm:$0xf]
        %v3062 = vld [vmem:[#allocation9 + $0x34] sm:$0xf]
        %v3063 = vld [vmem:[#allocation9 + $0x38] sm:$0xf]
        %v3064 = vld [vmem:[#allocation9 + $0x3c] sm:$0xf]
        %v3065 = vld [vmem:[#allocation9 + $0x40] sm:$0xf]
        %v3066 = vld [vmem:[#allocation9 + $0x44] sm:$0xf]
        %v3067 = vld [vmem:[#allocation9 + $0x48] sm:$0xf]
        %v3068 = vld [vmem:[#allocation9 + $0x4c] sm:$0xf]
        %v3069 = vld [vmem:[#allocation9 + $0x50] sm:$0xf]
        %v3070 = vld [vmem:[#allocation9 + $0x54] sm:$0xf]
        %v3071 = vld [vmem:[#allocation9 + $0x58] sm:$0xf]
        %v3072 = vld [vmem:[#allocation9 + $0x5c] sm:$0xf]
        %v3073 = vld [vmem:[#allocation9 + $0x60] sm:$0xf]
        %v3074 = vld [vmem:[#allocation9 + $0x64] sm:$0xf]
        %v3075 = vld [vmem:[#allocation9 + $0x68] sm:$0xf]
        %v3076 = vld [vmem:[#allocation9 + $0x6c] sm:$0xf]
        %v3077 = vld [vmem:[#allocation9 + $0x70] sm:$0xf]
        %v3078 = vld [vmem:[#allocation9 + $0x74] sm:$0xf]
        %v3079 = vld [vmem:[#allocation9 + $0x78] sm:$0xf]
        %v3080 = vld [vmem:[#allocation9 + $0x7c] sm:$0xf]
        %v3081 = vld [vmem:[%s9] sm:$0x1]
        %v3083 = vlaneseq
        %v3084 = vshrl.u32 %v3083, 7
        %v3085 = vsub.s32 0, %v3084
        %v3086 = vrot.slane %v3081, %v3085
        %v3120 = vunpack.c.l.b16 %v3049
        %v3121 = vunpack.c.l.b16 %v3050
        %v3122 = vunpack.c.l.b16 %v3051
        %v3123 = vunpack.c.l.b16 %v3052
        %v3124 = vunpack.c.l.b16 %v3053
        %v3125 = vunpack.c.l.b16 %v3054
        %v3126 = vunpack.c.l.b16 %v3055
        %v3127 = vunpack.c.l.b16 %v3056
        %v3128 = vunpack.c.l.b16 %v3057
        %v3129 = vunpack.c.l.b16 %v3058
        %v3130 = vunpack.c.l.b16 %v3059
        %v3131 = vunpack.c.l.b16 %v3060
        %v3132 = vunpack.c.l.b16 %v3061
        %v3133 = vunpack.c.l.b16 %v3062
        %v3134 = vunpack.c.l.b16 %v3063
        %v3135 = vunpack.c.l.b16 %v3064
        %v3136 = vunpack.c.l.b16 %v3065
        %v3137 = vunpack.c.l.b16 %v3066
        %v3138 = vunpack.c.l.b16 %v3067
        %v3139 = vunpack.c.l.b16 %v3068
        %v3140 = vunpack.c.l.b16 %v3069
        %v3141 = vunpack.c.l.b16 %v3070
        %v3142 = vunpack.c.l.b16 %v3071
        %v3143 = vunpack.c.l.b16 %v3072
        %v3144 = vunpack.c.l.b16 %v3073
        %v3145 = vunpack.c.l.b16 %v3074
        %v3146 = vunpack.c.l.b16 %v3075
        %v3147 = vunpack.c.l.b16 %v3076
        %v3148 = vunpack.c.l.b16 %v3077
        %v3149 = vunpack.c.l.b16 %v3078
        %v3150 = vunpack.c.l.b16 %v3079
        %v3151 = vunpack.c.l.b16 %v3080
        %v3152 = vpack.c.b16 %v3121, %v3120
        %v3153 = vpack.c.b16 %v3123, %v3122
        %v3154 = vpack.c.b16 %v3125, %v3124
        %v3155 = vpack.c.b16 %v3127, %v3126
        %v3156 = vpack.c.b16 %v3129, %v3128
        %v3157 = vpack.c.b16 %v3131, %v3130
        %v3158 = vpack.c.b16 %v3133, %v3132
        %v3159 = vpack.c.b16 %v3135, %v3134
        %v3160 = vpack.c.b16 %v3137, %v3136
        %v3161 = vpack.c.b16 %v3139, %v3138
        %v3162 = vpack.c.b16 %v3141, %v3140
        %v3163 = vpack.c.b16 %v3143, %v3142
        %v3164 = vpack.c.b16 %v3145, %v3144
        %v3165 = vpack.c.b16 %v3147, %v3146
        %v3166 = vpack.c.b16 %v3149, %v3148
        %v3167 = vpack.c.b16 %v3151, %v3150
        %3184 = vmatprep.subr.bf16.mxu0 0
        %3185 = vmatpush1.bf16.msra.mxu0 %v3152
        %3186 = vmatprep.subr.bf16.mxu0 0
        %3187 = vmatpush1.bf16.msra.mxu0 %v3153
        %3188 = vmatprep.subr.bf16.mxu0 0
        %3189 = vmatpush1.bf16.msra.mxu0 %v3154
        %3190 = vmatprep.subr.bf16.mxu0 0
        %3191 = vmatpush1.bf16.msra.mxu0 %v3155
        %3192 = vmatprep.subr.bf16.mxu0 0
        %3193 = vmatpush1.bf16.msra.mxu0 %v3156
        %3194 = vmatprep.subr.bf16.mxu0 0
        %3195 = vmatpush1.bf16.msra.mxu0 %v3157
        %3196 = vmatprep.subr.bf16.mxu0 0
        %3197 = vmatpush1.bf16.msra.mxu0 %v3158
        %3198 = vmatprep.subr.bf16.mxu0 0
        %3199 = vmatpush1.bf16.msra.mxu0 %v3159
        %3200 = vmatprep.subr.bf16.mxu0 0
        %3201 = vmatpush1.bf16.msra.mxu0 %v3160
        %3202 = vmatprep.subr.bf16.mxu0 0
        %3203 = vmatpush1.bf16.msra.mxu0 %v3161
        %3204 = vmatprep.subr.bf16.mxu0 0
        %3205 = vmatpush1.bf16.msra.mxu0 %v3162
        %3206 = vmatprep.subr.bf16.mxu0 0
        %3207 = vmatpush1.bf16.msra.mxu0 %v3163
        %3208 = vmatprep.subr.bf16.mxu0 0
        %3209 = vmatpush1.bf16.msra.mxu0 %v3164
        %3210 = vmatprep.subr.bf16.mxu0 0
        %3211 = vmatpush1.bf16.msra.mxu0 %v3165
        %3212 = vmatprep.subr.bf16.mxu0 0
        %3213 = vmatpush1.bf16.msra.mxu0 %v3166
        %3214 = vmatprep.subr.bf16.mxu0 0
        %3215 = vmatpush1.bf16.msra.mxu0 %v3167
        %3216 = vmatprep.mubr.bf16.mxu0 %v3017
        %3217 = vmatmul.mubr.bf16.gmra.mrb[0].mxu0 %v3033
        %v3218 = vpop.f32.mrb[0].mxu0
        %v3219 = vadd.f32 %v3086, %v3218
        %v3220 = vpop.f32.mrb[0].mxu0
        %v3221 = vpop.f32.mrb[0].mxu0
        %v3222 = vadd.f32 %v3086, %v3221
        %v3223 = vpop.f32.mrb[0].mxu0
        %3224 = vmatprep.mubr.bf16.mxu0 %v3018
        %3225 = vmatmul.mubr.bf16.gmra.mrb[0].mxu0 %v3034
        %v3226 = vpop.f32.mrb[0].mxu0
        %v3227 = vadd.f32 %v3086, %v3226
        %v3228 = vpop.f32.mrb[0].mxu0
        %v3229 = vpop.f32.mrb[0].mxu0
        %v3230 = vadd.f32 %v3086, %v3229
        %v3231 = vpop.f32.mrb[0].mxu0
        %3232 = vmatprep.mubr.bf16.mxu0 %v3019
        %3233 = vmatmul.mubr.bf16.gmra.mrb[0].mxu0 %v3035
        %v3234 = vpop.f32.mrb[0].mxu0
        %v3235 = vadd.f32 %v3086, %v3234
        %v3236 = vpop.f32.mrb[0].mxu0
        %v3237 = vpop.f32.mrb[0].mxu0
        %v3238 = vadd.f32 %v3086, %v3237
        %v3239 = vpop.f32.mrb[0].mxu0
        %3240 = vmatprep.mubr.bf16.mxu0 %v3020
        %3241 = vmatmul.mubr.bf16.gmra.mrb[0].mxu0 %v3036
        %v3242 = vpop.f32.mrb[0].mxu0
        %v3243 = vadd.f32 %v3086, %v3242
        %v3244 = vpop.f32.mrb[0].mxu0
        %v3245 = vpop.f32.mrb[0].mxu0
        %v3246 = vadd.f32 %v3086, %v3245
        %v3247 = vpop.f32.mrb[0].mxu0
        %3248 = vmatprep.mubr.bf16.mxu0 %v3021
        %3249 = vmatmul.mubr.bf16.gmra.mrb[0].mxu0 %v3037
        %v3250 = vpop.f32.mrb[0].mxu0
        %v3251 = vadd.f32 %v3086, %v3250
        %v3252 = vpop.f32.mrb[0].mxu0
        %v3253 = vpop.f32.mrb[0].mxu0
        %v3254 = vadd.f32 %v3086, %v3253
        %v3255 = vpop.f32.mrb[0].mxu0
        %3256 = vmatprep.mubr.bf16.mxu0 %v3022
        %3257 = vmatmul.mubr.bf16.gmra.mrb[0].mxu0 %v3038
        %v3258 = vpop.f32.mrb[0].mxu0
        %v3259 = vadd.f32 %v3086, %v3258
        %v3260 = vpop.f32.mrb[0].mxu0
        %v3261 = vpop.f32.mrb[0].mxu0
        %v3262 = vadd.f32 %v3086, %v3261
        %v3263 = vpop.f32.mrb[0].mxu0
        %3264 = vmatprep.mubr.bf16.mxu0 %v3023
        %3265 = vmatmul.mubr.bf16.gmra.mrb[0].mxu0 %v3039
        %v3266 = vpop.f32.mrb[0].mxu0
        %v3267 = vadd.f32 %v3086, %v3266
        %v3268 = vpop.f32.mrb[0].mxu0
        %v3269 = vpop.f32.mrb[0].mxu0
        %v3270 = vadd.f32 %v3086, %v3269
        %v3271 = vpop.f32.mrb[0].mxu0
        %3272 = vmatprep.mubr.bf16.mxu0 %v3024
        %3273 = vmatmul.mubr.bf16.gmra.mrb[0].mxu0 %v3040
        %v3274 = vpop.f32.mrb[0].mxu0
        %v3275 = vadd.f32 %v3086, %v3274
        %v3276 = vpop.f32.mrb[0].mxu0
        %v3277 = vpop.f32.mrb[0].mxu0
        %v3278 = vadd.f32 %v3086, %v3277
        %v3279 = vpop.f32.mrb[0].mxu0
        %3280 = vmatprep.mubr.bf16.mxu0 %v3025
        %3281 = vmatmul.mubr.bf16.gmra.mrb[0].mxu0 %v3041
        %v3282 = vpop.f32.mrb[0].mxu0
        %v3283 = vadd.f32 %v3086, %v3282
        %v3284 = vpop.f32.mrb[0].mxu0
        %v3285 = vpop.f32.mrb[0].mxu0
        %v3286 = vadd.f32 %v3086, %v3285
        %v3287 = vpop.f32.mrb[0].mxu0
        %3288 = vmatprep.mubr.bf16.mxu0 %v3026
        %3289 = vmatmul.mubr.bf16.gmra.mrb[0].mxu0 %v3042
        %v3290 = vpop.f32.mrb[0].mxu0
        %v3291 = vadd.f32 %v3086, %v3290
        %v3292 = vpop.f32.mrb[0].mxu0
        %v3293 = vpop.f32.mrb[0].mxu0
        %v3294 = vadd.f32 %v3086, %v3293
        %v3295 = vpop.f32.mrb[0].mxu0
        %3296 = vmatprep.mubr.bf16.mxu0 %v3027
        %3297 = vmatmul.mubr.bf16.gmra.mrb[0].mxu0 %v3043
        %v3298 = vpop.f32.mrb[0].mxu0
        %v3299 = vadd.f32 %v3086, %v3298
        %v3300 = vpop.f32.mrb[0].mxu0
        %v3301 = vpop.f32.mrb[0].mxu0
        %v3302 = vadd.f32 %v3086, %v3301
        %v3303 = vpop.f32.mrb[0].mxu0
        %3304 = vmatprep.mubr.bf16.mxu0 %v3028
        %3305 = vmatmul.mubr.bf16.gmra.mrb[0].mxu0 %v3044
        %v3306 = vpop.f32.mrb[0].mxu0
        %v3307 = vadd.f32 %v3086, %v3306
        %v3308 = vpop.f32.mrb[0].mxu0
        %v3309 = vpop.f32.mrb[0].mxu0
        %v3310 = vadd.f32 %v3086, %v3309
        %v3311 = vpop.f32.mrb[0].mxu0
        %3312 = vmatprep.mubr.bf16.mxu0 %v3029
        %3313 = vmatmul.mubr.bf16.gmra.mrb[0].mxu0 %v3045
        %v3314 = vpop.f32.mrb[0].mxu0
        %v3315 = vadd.f32 %v3086, %v3314
        %v3316 = vpop.f32.mrb[0].mxu0
        %v3317 = vpop.f32.mrb[0].mxu0
        %v3318 = vadd.f32 %v3086, %v3317
        %v3319 = vpop.f32.mrb[0].mxu0
        %3320 = vmatprep.mubr.bf16.mxu0 %v3030
        %3321 = vmatmul.mubr.bf16.gmra.mrb[0].mxu0 %v3046
        %v3322 = vpop.f32.mrb[0].mxu0
        %v3323 = vadd.f32 %v3086, %v3322
        %v3324 = vpop.f32.mrb[0].mxu0
        %v3325 = vpop.f32.mrb[0].mxu0
        %v3326 = vadd.f32 %v3086, %v3325
        %v3327 = vpop.f32.mrb[0].mxu0
        %3328 = vmatprep.mubr.bf16.mxu0 %v3031
        %3329 = vmatmul.mubr.bf16.gmra.mrb[0].mxu0 %v3047
        %v3330 = vpop.f32.mrb[0].mxu0
        %v3331 = vadd.f32 %v3086, %v3330
        %v3332 = vpop.f32.mrb[0].mxu0
        %v3333 = vpop.f32.mrb[0].mxu0
        %v3334 = vadd.f32 %v3086, %v3333
        %v3335 = vpop.f32.mrb[0].mxu0
        %3336 = vmatprep.mubr.bf16.mxu0 %v3032
        %3337 = vmatmul.mubr.bf16.gmra.mrb[0].mxu0 %v3048
        %v3338 = vpop.f32.mrb[0].mxu0
        %v3339 = vadd.f32 %v3086, %v3338
        %v3340 = vpop.f32.mrb[0].mxu0
        %v3341 = vpop.f32.mrb[0].mxu0
        %v3342 = vadd.f32 %v3086, %v3341
        %v3343 = vpop.f32.mrb[0].mxu0
        %3344 = vdwg.mxu0
        %v3345 = vtanh.pop %v3219
        %v3346 = vtanh.pop %v3222
        %v3347 = vtanh.pop %v3227
        %v3348 = vtanh.pop %v3230
        %v3349 = vtanh.pop %v3235
        %v3350 = vtanh.pop %v3238
        %v3351 = vtanh.pop %v3243
        %v3352 = vtanh.pop %v3246
        %v3353 = vtanh.pop %v3251
        %v3354 = vtanh.pop %v3254
        %v3355 = vtanh.pop %v3259
        %v3356 = vtanh.pop %v3262
        %v3357 = vtanh.pop %v3267
        %v3358 = vtanh.pop %v3270
        %v3359 = vtanh.pop %v3275
        %v3360 = vtanh.pop %v3278
        %v3361 = vtanh.pop %v3283
        %v3362 = vtanh.pop %v3286
        %v3363 = vtanh.pop %v3291
        %v3364 = vtanh.pop %v3294
        %v3365 = vtanh.pop %v3299
        %v3366 = vtanh.pop %v3302
        %v3367 = vtanh.pop %v3307
        %v3368 = vtanh.pop %v3310
        %v3369 = vtanh.pop %v3315
        %v3370 = vtanh.pop %v3318
        %v3371 = vtanh.pop %v3323
        %v3372 = vtanh.pop %v3326
        %v3373 = vtanh.pop %v3331
        %v3374 = vtanh.pop %v3334
        %v3375 = vtanh.pop %v3339
        %v3376 = vtanh.pop %v3342
        %v3377 = vpack.c.bf16 %v2037, %v2034
        %v3378 = vpack.c.bf16 %v2045, %v2042
        %v3379 = vpack.c.bf16 %v2053, %v2050
        %v3380 = vpack.c.bf16 %v2061, %v2058
        %v3381 = vpack.c.bf16 %v2069, %v2066
        %v3382 = vpack.c.bf16 %v2077, %v2074
        %v3383 = vpack.c.bf16 %v2085, %v2082
        %v3384 = vpack.c.bf16 %v2093, %v2090
        %v3385 = vpack.c.bf16 %v2101, %v2098
        %v3386 = vpack.c.bf16 %v2109, %v2106
        %v3387 = vpack.c.bf16 %v2117, %v2114
        %v3388 = vpack.c.bf16 %v2125, %v2122
        %v3389 = vpack.c.bf16 %v2133, %v2130
        %v3390 = vpack.c.bf16 %v2141, %v2138
        %v3391 = vpack.c.bf16 %v2149, %v2146
        %v3392 = vpack.c.bf16 %v2157, %v2154
        %v3393 = vld [vmem:[#allocation10] sm:$0xf]
        %v3394 = vld [vmem:[#allocation10 + $0x4] sm:$0xf]
        %v3395 = vld [vmem:[#allocation10 + $0x8] sm:$0xf]
        %v3396 = vld [vmem:[#allocation10 + $0xc] sm:$0xf]
        %v3397 = vld [vmem:[#allocation10 + $0x10] sm:$0xf]
        %v3398 = vld [vmem:[#allocation10 + $0x14] sm:$0xf]
        %v3399 = vld [vmem:[#allocation10 + $0x18] sm:$0xf]
        %v3400 = vld [vmem:[#allocation10 + $0x1c] sm:$0xf]
        %v3401 = vld [vmem:[#allocation10 + $0x20] sm:$0xf]
        %v3402 = vld [vmem:[#allocation10 + $0x24] sm:$0xf]
        %v3403 = vld [vmem:[#allocation10 + $0x28] sm:$0xf]
        %v3404 = vld [vmem:[#allocation10 + $0x2c] sm:$0xf]
        %v3405 = vld [vmem:[#allocation10 + $0x30] sm:$0xf]
        %v3406 = vld [vmem:[#allocation10 + $0x34] sm:$0xf]
        %v3407 = vld [vmem:[#allocation10 + $0x38] sm:$0xf]
        %v3408 = vld [vmem:[#allocation10 + $0x3c] sm:$0xf]
        %v3409 = vld [vmem:[#allocation10 + $0x40] sm:$0xf]
        %v3410 = vld [vmem:[#allocation10 + $0x44] sm:$0xf]
        %v3411 = vld [vmem:[#allocation10 + $0x48] sm:$0xf]
        %v3412 = vld [vmem:[#allocation10 + $0x4c] sm:$0xf]
        %v3413 = vld [vmem:[#allocation10 + $0x50] sm:$0xf]
        %v3414 = vld [vmem:[#allocation10 + $0x54] sm:$0xf]
        %v3415 = vld [vmem:[#allocation10 + $0x58] sm:$0xf]
        %v3416 = vld [vmem:[#allocation10 + $0x5c] sm:$0xf]
        %v3417 = vld [vmem:[#allocation10 + $0x60] sm:$0xf]
        %v3418 = vld [vmem:[#allocation10 + $0x64] sm:$0xf]
        %v3419 = vld [vmem:[#allocation10 + $0x68] sm:$0xf]
        %v3420 = vld [vmem:[#allocation10 + $0x6c] sm:$0xf]
        %v3421 = vld [vmem:[#allocation10 + $0x70] sm:$0xf]
        %v3422 = vld [vmem:[#allocation10 + $0x74] sm:$0xf]
        %v3423 = vld [vmem:[#allocation10 + $0x78] sm:$0xf]
        %v3424 = vld [vmem:[#allocation10 + $0x7c] sm:$0xf]
        %v3425 = vld [vmem:[%s11] sm:$0x1]
        %v3427 = vlaneseq
        %v3428 = vshrl.u32 %v3427, 7
        %v3429 = vsub.s32 0, %v3428
        %v3430 = vrot.slane %v3425, %v3429
        %v3464 = vunpack.c.l.b16 %v3393
        %v3465 = vunpack.c.l.b16 %v3394
        %v3466 = vunpack.c.l.b16 %v3395
        %v3467 = vunpack.c.l.b16 %v3396
        %v3468 = vunpack.c.l.b16 %v3397
        %v3469 = vunpack.c.l.b16 %v3398
        %v3470 = vunpack.c.l.b16 %v3399
        %v3471 = vunpack.c.l.b16 %v3400
        %v3472 = vunpack.c.l.b16 %v3401
        %v3473 = vunpack.c.l.b16 %v3402
        %v3474 = vunpack.c.l.b16 %v3403
        %v3475 = vunpack.c.l.b16 %v3404
        %v3476 = vunpack.c.l.b16 %v3405
        %v3477 = vunpack.c.l.b16 %v3406
        %v3478 = vunpack.c.l.b16 %v3407
        %v3479 = vunpack.c.l.b16 %v3408
        %v3480 = vunpack.c.l.b16 %v3409
        %v3481 = vunpack.c.l.b16 %v3410
        %v3482 = vunpack.c.l.b16 %v3411
        %v3483 = vunpack.c.l.b16 %v3412
        %v3484 = vunpack.c.l.b16 %v3413
        %v3485 = vunpack.c.l.b16 %v3414
        %v3486 = vunpack.c.l.b16 %v3415
        %v3487 = vunpack.c.l.b16 %v3416
        %v3488 = vunpack.c.l.b16 %v3417
        %v3489 = vunpack.c.l.b16 %v3418
        %v3490 = vunpack.c.l.b16 %v3419
        %v3491 = vunpack.c.l.b16 %v3420
        %v3492 = vunpack.c.l.b16 %v3421
        %v3493 = vunpack.c.l.b16 %v3422
        %v3494 = vunpack.c.l.b16 %v3423
        %v3495 = vunpack.c.l.b16 %v3424
        %v3496 = vpack.c.b16 %v3465, %v3464
        %v3497 = vpack.c.b16 %v3467, %v3466
        %v3498 = vpack.c.b16 %v3469, %v3468
        %v3499 = vpack.c.b16 %v3471, %v3470
        %v3500 = vpack.c.b16 %v3473, %v3472
        %v3501 = vpack.c.b16 %v3475, %v3474
        %v3502 = vpack.c.b16 %v3477, %v3476
        %v3503 = vpack.c.b16 %v3479, %v3478
        %v3504 = vpack.c.b16 %v3481, %v3480
        %v3505 = vpack.c.b16 %v3483, %v3482
        %v3506 = vpack.c.b16 %v3485, %v3484
        %v3507 = vpack.c.b16 %v3487, %v3486
        %v3508 = vpack.c.b16 %v3489, %v3488
        %v3509 = vpack.c.b16 %v3491, %v3490
        %v3510 = vpack.c.b16 %v3493, %v3492
        %v3511 = vpack.c.b16 %v3495, %v3494
        %3528 = vmatprep.subr.bf16.mxu0 0
        %3529 = vmatpush1.bf16.msra.mxu0 %v3496
        %3530 = vmatprep.subr.bf16.mxu0 0
        %3531 = vmatpush1.bf16.msra.mxu0 %v3497
        %3532 = vmatprep.subr.bf16.mxu0 0
        %3533 = vmatpush1.bf16.msra.mxu0 %v3498
        %3534 = vmatprep.subr.bf16.mxu0 0
        %3535 = vmatpush1.bf16.msra.mxu0 %v3499
        %3536 = vmatprep.subr.bf16.mxu0 0
        %3537 = vmatpush1.bf16.msra.mxu0 %v3500
        %3538 = vmatprep.subr.bf16.mxu0 0
        %3539 = vmatpush1.bf16.msra.mxu0 %v3501
        %3540 = vmatprep.subr.bf16.mxu0 0
        %3541 = vmatpush1.bf16.msra.mxu0 %v3502
        %3542 = vmatprep.subr.bf16.mxu0 0
        %3543 = vmatpush1.bf16.msra.mxu0 %v3503
        %3544 = vmatprep.subr.bf16.mxu0 0
        %3545 = vmatpush1.bf16.msra.mxu0 %v3504
        %3546 = vmatprep.subr.bf16.mxu0 0
        %3547 = vmatpush1.bf16.msra.mxu0 %v3505
        %3548 = vmatprep.subr.bf16.mxu0 0
        %3549 = vmatpush1.bf16.msra.mxu0 %v3506
        %3550 = vmatprep.subr.bf16.mxu0 0
        %3551 = vmatpush1.bf16.msra.mxu0 %v3507
        %3552 = vmatprep.subr.bf16.mxu0 0
        %3553 = vmatpush1.bf16.msra.mxu0 %v3508
        %3554 = vmatprep.subr.bf16.mxu0 0
        %3555 = vmatpush1.bf16.msra.mxu0 %v3509
        %3556 = vmatprep.subr.bf16.mxu0 0
        %3557 = vmatpush1.bf16.msra.mxu0 %v3510
        %3558 = vmatprep.subr.bf16.mxu0 0
        %3559 = vmatpush1.bf16.msra.mxu0 %v3511
        %3560 = vmatprep.mubr.bf16.mxu0 %v3017
        %3561 = vmatmul.mubr.bf16.gmra.mrb[0].mxu0 %v3377
        %v3562 = vpop.f32.mrb[0].mxu0
        %v3563 = vadd.f32 %v3430, %v3562
        %v3564 = vpop.f32.mrb[0].mxu0
        %v3565 = vpop.f32.mrb[0].mxu0
        %v3566 = vadd.f32 %v3430, %v3565
        %v3567 = vpop.f32.mrb[0].mxu0
        %3568 = vmatprep.mubr.bf16.mxu0 %v3018
        %3569 = vmatmul.mubr.bf16.gmra.mrb[0].mxu0 %v3378
        %v3570 = vpop.f32.mrb[0].mxu0
        %v3571 = vadd.f32 %v3430, %v3570
        %v3572 = vpop.f32.mrb[0].mxu0
        %v3573 = vpop.f32.mrb[0].mxu0
        %v3574 = vadd.f32 %v3430, %v3573
        %v3575 = vpop.f32.mrb[0].mxu0
        %3576 = vmatprep.mubr.bf16.mxu0 %v3019
        %3577 = vmatmul.mubr.bf16.gmra.mrb[0].mxu0 %v3379
        %v3578 = vpop.f32.mrb[0].mxu0
        %v3579 = vadd.f32 %v3430, %v3578
        %v3580 = vpop.f32.mrb[0].mxu0
        %v3581 = vpop.f32.mrb[0].mxu0
        %v3582 = vadd.f32 %v3430, %v3581
        %v3583 = vpop.f32.mrb[0].mxu0
        %3584 = vmatprep.mubr.bf16.mxu0 %v3020
        %3585 = vmatmul.mubr.bf16.gmra.mrb[0].mxu0 %v3380
        %v3586 = vpop.f32.mrb[0].mxu0
        %v3587 = vadd.f32 %v3430, %v3586
        %v3588 = vpop.f32.mrb[0].mxu0
        %v3589 = vpop.f32.mrb[0].mxu0
        %v3590 = vadd.f32 %v3430, %v3589
        %v3591 = vpop.f32.mrb[0].mxu0
        %3592 = vmatprep.mubr.bf16.mxu0 %v3021
        %3593 = vmatmul.mubr.bf16.gmra.mrb[0].mxu0 %v3381
        %v3594 = vpop.f32.mrb[0].mxu0
        %v3595 = vadd.f32 %v3430, %v3594
        %v3596 = vpop.f32.mrb[0].mxu0
        %v3597 = vpop.f32.mrb[0].mxu0
        %v3598 = vadd.f32 %v3430, %v3597
        %v3599 = vpop.f32.mrb[0].mxu0
        %3600 = vmatprep.mubr.bf16.mxu0 %v3022
        %3601 = vmatmul.mubr.bf16.gmra.mrb[0].mxu0 %v3382
        %v3602 = vpop.f32.mrb[0].mxu0
        %v3603 = vadd.f32 %v3430, %v3602
        %v3604 = vpop.f32.mrb[0].mxu0
        %v3605 = vpop.f32.mrb[0].mxu0
        %v3606 = vadd.f32 %v3430, %v3605
        %v3607 = vpop.f32.mrb[0].mxu0
        %3608 = vmatprep.mubr.bf16.mxu0 %v3023
        %3609 = vmatmul.mubr.bf16.gmra.mrb[0].mxu0 %v3383
        %v3610 = vpop.f32.mrb[0].mxu0
        %v3611 = vadd.f32 %v3430, %v3610
        %v3612 = vpop.f32.mrb[0].mxu0
        %v3613 = vpop.f32.mrb[0].mxu0
        %v3614 = vadd.f32 %v3430, %v3613
        %v3615 = vpop.f32.mrb[0].mxu0
        %3616 = vmatprep.mubr.bf16.mxu0 %v3024
        %3617 = vmatmul.mubr.bf16.gmra.mrb[0].mxu0 %v3384
        %v3618 = vpop.f32.mrb[0].mxu0
        %v3619 = vadd.f32 %v3430, %v3618
        %v3620 = vpop.f32.mrb[0].mxu0
        %v3621 = vpop.f32.mrb[0].mxu0
        %v3622 = vadd.f32 %v3430, %v3621
        %v3623 = vpop.f32.mrb[0].mxu0
        %3624 = vmatprep.mubr.bf16.mxu0 %v3025
        %3625 = vmatmul.mubr.bf16.gmra.mrb[0].mxu0 %v3385
        %v3626 = vpop.f32.mrb[0].mxu0
        %v3627 = vadd.f32 %v3430, %v3626
        %v3628 = vpop.f32.mrb[0].mxu0
        %v3629 = vpop.f32.mrb[0].mxu0
        %v3630 = vadd.f32 %v3430, %v3629
        %v3631 = vpop.f32.mrb[0].mxu0
        %3632 = vmatprep.mubr.bf16.mxu0 %v3026
        %3633 = vmatmul.mubr.bf16.gmra.mrb[0].mxu0 %v3386
        %v3634 = vpop.f32.mrb[0].mxu0
        %v3635 = vadd.f32 %v3430, %v3634
        %v3636 = vpop.f32.mrb[0].mxu0
        %v3637 = vpop.f32.mrb[0].mxu0
        %v3638 = vadd.f32 %v3430, %v3637
        %v3639 = vpop.f32.mrb[0].mxu0
        %3640 = vmatprep.mubr.bf16.mxu0 %v3027
        %3641 = vmatmul.mubr.bf16.gmra.mrb[0].mxu0 %v3387
        %v3642 = vpop.f32.mrb[0].mxu0
        %v3643 = vadd.f32 %v3430, %v3642
        %v3644 = vpop.f32.mrb[0].mxu0
        %v3645 = vpop.f32.mrb[0].mxu0
        %v3646 = vadd.f32 %v3430, %v3645
        %v3647 = vpop.f32.mrb[0].mxu0
        %3648 = vmatprep.mubr.bf16.mxu0 %v3028
        %3649 = vmatmul.mubr.bf16.gmra.mrb[0].mxu0 %v3388
        %v3650 = vpop.f32.mrb[0].mxu0
        %v3651 = vadd.f32 %v3430, %v3650
        %v3652 = vpop.f32.mrb[0].mxu0
        %v3653 = vpop.f32.mrb[0].mxu0
        %v3654 = vadd.f32 %v3430, %v3653
        %v3655 = vpop.f32.mrb[0].mxu0
        %3656 = vmatprep.mubr.bf16.mxu0 %v3029
        %3657 = vmatmul.mubr.bf16.gmra.mrb[0].mxu0 %v3389
        %v3658 = vpop.f32.mrb[0].mxu0
        %v3659 = vadd.f32 %v3430, %v3658
        %v3660 = vpop.f32.mrb[0].mxu0
        %v3661 = vpop.f32.mrb[0].mxu0
        %v3662 = vadd.f32 %v3430, %v3661
        %v3663 = vpop.f32.mrb[0].mxu0
        %3664 = vmatprep.mubr.bf16.mxu0 %v3030
        %3665 = vmatmul.mubr.bf16.gmra.mrb[0].mxu0 %v3390
        %v3666 = vpop.f32.mrb[0].mxu0
        %v3667 = vadd.f32 %v3430, %v3666
        %v3668 = vpop.f32.mrb[0].mxu0
        %v3669 = vpop.f32.mrb[0].mxu0
        %v3670 = vadd.f32 %v3430, %v3669
        %v3671 = vpop.f32.mrb[0].mxu0
        %3672 = vmatprep.mubr.bf16.mxu0 %v3031
        %3673 = vmatmul.mubr.bf16.gmra.mrb[0].mxu0 %v3391
        %v3674 = vpop.f32.mrb[0].mxu0
        %v3675 = vadd.f32 %v3430, %v3674
        %v3676 = vpop.f32.mrb[0].mxu0
        %v3677 = vpop.f32.mrb[0].mxu0
        %v3678 = vadd.f32 %v3430, %v3677
        %v3679 = vpop.f32.mrb[0].mxu0
        %3680 = vmatprep.mubr.bf16.mxu0 %v3032
        %3681 = vmatmul.mubr.bf16.gmra.mrb[0].mxu0 %v3392
        %v3682 = vpop.f32.mrb[0].mxu0
        %v3683 = vadd.f32 %v3430, %v3682
        %v3684 = vpop.f32.mrb[0].mxu0
        %v3685 = vpop.f32.mrb[0].mxu0
        %v3686 = vadd.f32 %v3430, %v3685
        %v3687 = vpop.f32.mrb[0].mxu0
        %3688 = vdwg.mxu0
        %v3689 = vtanh.pop %v3563
        %v3690 = vtanh.pop %v3566
        %v3691 = vtanh.pop %v3571
        %v3692 = vtanh.pop %v3574
        %v3693 = vtanh.pop %v3579
        %v3694 = vtanh.pop %v3582
        %v3695 = vtanh.pop %v3587
        %v3696 = vtanh.pop %v3590
        %v3697 = vtanh.pop %v3595
        %v3698 = vtanh.pop %v3598
        %v3699 = vtanh.pop %v3603
        %v3700 = vtanh.pop %v3606
        %v3701 = vtanh.pop %v3611
        %v3702 = vtanh.pop %v3614
        %v3703 = vtanh.pop %v3619
        %v3704 = vtanh.pop %v3622
        %v3705 = vtanh.pop %v3627
        %v3706 = vtanh.pop %v3630
        %v3707 = vtanh.pop %v3635
        %v3708 = vtanh.pop %v3638
        %v3709 = vtanh.pop %v3643
        %v3710 = vtanh.pop %v3646
        %v3711 = vtanh.pop %v3651
        %v3712 = vtanh.pop %v3654
        %v3713 = vtanh.pop %v3659
        %v3714 = vtanh.pop %v3662
        %v3715 = vtanh.pop %v3667
        %v3716 = vtanh.pop %v3670
        %v3717 = vtanh.pop %v3675
        %v3718 = vtanh.pop %v3678
        %v3719 = vtanh.pop %v3683
        %v3720 = vtanh.pop %v3686
        %v3721 = vpack.c.bf16 %v3346, %v3345
        %v3722 = vpack.c.bf16 %v3348, %v3347
        %v3723 = vpack.c.bf16 %v3350, %v3349
        %v3724 = vpack.c.bf16 %v3352, %v3351
        %v3725 = vpack.c.bf16 %v3354, %v3353
        %v3726 = vpack.c.bf16 %v3356, %v3355
        %v3727 = vpack.c.bf16 %v3358, %v3357
        %v3728 = vpack.c.bf16 %v3360, %v3359
        %v3729 = vpack.c.bf16 %v3362, %v3361
        %v3730 = vpack.c.bf16 %v3364, %v3363
        %v3731 = vpack.c.bf16 %v3366, %v3365
        %v3732 = vpack.c.bf16 %v3368, %v3367
        %v3733 = vpack.c.bf16 %v3370, %v3369
        %v3734 = vpack.c.bf16 %v3372, %v3371
        %v3735 = vpack.c.bf16 %v3374, %v3373
        %v3736 = vpack.c.bf16 %v3376, %v3375
        %v3737 = vld [vmem:[%s12] sm:$0xff]
        %v3738 = vld [vmem:[%s12 + $0x8] sm:$0xff]
        %v3739 = vld [vmem:[%s12 + $0x10] sm:$0xff]
        %v3740 = vld [vmem:[%s12 + $0x18] sm:$0xff]
        %v3741 = vld [vmem:[%s12 + $0x20] sm:$0xff]
        %v3742 = vld [vmem:[%s12 + $0x28] sm:$0xff]
        %v3743 = vld [vmem:[%s12 + $0x30] sm:$0xff]
        %v3744 = vld [vmem:[%s12 + $0x38] sm:$0xff]
        %v3745 = vld [vmem:[%s12 + $0x40] sm:$0xff]
        %v3746 = vld [vmem:[%s12 + $0x48] sm:$0xff]
        %v3747 = vld [vmem:[%s12 + $0x50] sm:$0xff]
        %v3748 = vld [vmem:[%s12 + $0x58] sm:$0xff]
        %v3749 = vld [vmem:[%s12 + $0x60] sm:$0xff]
        %v3750 = vld [vmem:[%s12 + $0x68] sm:$0xff]
        %v3751 = vld [vmem:[%s12 + $0x70] sm:$0xff]
        %v3752 = vld [vmem:[%s12 + $0x78] sm:$0xff]
        %v3753 = vld [vmem:[%s12 + $0x80] sm:$0xff]
        %v3754 = vld [vmem:[%s12 + $0x88] sm:$0xff]
        %v3755 = vld [vmem:[%s12 + $0x90] sm:$0xff]
        %v3756 = vld [vmem:[%s12 + $0x98] sm:$0xff]
        %v3757 = vld [vmem:[%s12 + $0xa0] sm:$0xff]
        %v3758 = vld [vmem:[%s12 + $0xa8] sm:$0xff]
        %v3759 = vld [vmem:[%s12 + $0xb0] sm:$0xff]
        %v3760 = vld [vmem:[%s12 + $0xb8] sm:$0xff]
        %v3761 = vld [vmem:[%s12 + $0xc0] sm:$0xff]
        %v3762 = vld [vmem:[%s12 + $0xc8] sm:$0xff]
        %v3763 = vld [vmem:[%s12 + $0xd0] sm:$0xff]
        %v3764 = vld [vmem:[%s12 + $0xd8] sm:$0xff]
        %v3765 = vld [vmem:[%s12 + $0xe0] sm:$0xff]
        %v3766 = vld [vmem:[%s12 + $0xe8] sm:$0xff]
        %v3767 = vld [vmem:[%s12 + $0xf0] sm:$0xff]
        %v3768 = vld [vmem:[%s12 + $0xf8] sm:$0xff]
        %v3769 = vld [vmem:[%s12 + $0x100] sm:$0xff]
        %v3770 = vld [vmem:[%s12 + $0x108] sm:$0xff]
        %v3771 = vld [vmem:[%s12 + $0x110] sm:$0xff]
        %v3772 = vld [vmem:[%s12 + $0x118] sm:$0xff]
        %v3773 = vld [vmem:[%s12 + $0x120] sm:$0xff]
        %v3774 = vld [vmem:[%s12 + $0x128] sm:$0xff]
        %v3775 = vld [vmem:[%s12 + $0x130] sm:$0xff]
        %v3776 = vld [vmem:[%s12 + $0x138] sm:$0xff]
        %v3777 = vld [vmem:[%s12 + $0x140] sm:$0xff]
        %v3778 = vld [vmem:[%s12 + $0x148] sm:$0xff]
        %v3779 = vld [vmem:[%s12 + $0x150] sm:$0xff]
        %v3780 = vld [vmem:[%s12 + $0x158] sm:$0xff]
        %v3781 = vld [vmem:[%s12 + $0x160] sm:$0xff]
        %v3782 = vld [vmem:[%s12 + $0x168] sm:$0xff]
        %v3783 = vld [vmem:[%s12 + $0x170] sm:$0xff]
        %v3784 = vld [vmem:[%s12 + $0x178] sm:$0xff]
        %v3785 = vld [vmem:[%s12 + $0x180] sm:$0xff]
        %v3786 = vld [vmem:[%s12 + $0x188] sm:$0xff]
        %v3787 = vld [vmem:[%s12 + $0x190] sm:$0xff]
        %v3788 = vld [vmem:[%s12 + $0x198] sm:$0xff]
        %v3789 = vld [vmem:[%s12 + $0x1a0] sm:$0xff]
        %v3790 = vld [vmem:[%s12 + $0x1a8] sm:$0xff]
        %v3791 = vld [vmem:[%s12 + $0x1b0] sm:$0xff]
        %v3792 = vld [vmem:[%s12 + $0x1b8] sm:$0xff]
        %v3793 = vld [vmem:[%s12 + $0x1c0] sm:$0xff]
        %v3794 = vld [vmem:[%s12 + $0x1c8] sm:$0xff]
        %v3795 = vld [vmem:[%s12 + $0x1d0] sm:$0xff]
        %v3796 = vld [vmem:[%s12 + $0x1d8] sm:$0xff]
        %v3797 = vld [vmem:[%s12 + $0x1e0] sm:$0xff]
        %v3798 = vld [vmem:[%s12 + $0x1e8] sm:$0xff]
        %v3799 = vld [vmem:[%s12 + $0x1f0] sm:$0xff]
        %v3800 = vld [vmem:[%s12 + $0x1f8] sm:$0xff]
        %v3865 = vunpack.c.l.b16 %v3737
        %v3866 = vunpack.c.h.b16 %v3737
        %v3867 = vunpack.c.l.b16 %v3738
        %v3868 = vunpack.c.h.b16 %v3738
        %v3869 = vunpack.c.l.b16 %v3739
        %v3870 = vunpack.c.h.b16 %v3739
        %v3871 = vunpack.c.l.b16 %v3740
        %v3872 = vunpack.c.h.b16 %v3740
        %v3873 = vunpack.c.l.b16 %v3741
        %v3874 = vunpack.c.h.b16 %v3741
        %v3875 = vunpack.c.l.b16 %v3742
        %v3876 = vunpack.c.h.b16 %v3742
        %v3877 = vunpack.c.l.b16 %v3743
        %v3878 = vunpack.c.h.b16 %v3743
        %v3879 = vunpack.c.l.b16 %v3744
        %v3880 = vunpack.c.h.b16 %v3744
        %v3881 = vunpack.c.l.b16 %v3745
        %v3882 = vunpack.c.h.b16 %v3745
        %v3883 = vunpack.c.l.b16 %v3746
        %v3884 = vunpack.c.h.b16 %v3746
        %v3885 = vunpack.c.l.b16 %v3747
        %v3886 = vunpack.c.h.b16 %v3747
        %v3887 = vunpack.c.l.b16 %v3748
        %v3888 = vunpack.c.h.b16 %v3748
        %v3889 = vunpack.c.l.b16 %v3749
        %v3890 = vunpack.c.h.b16 %v3749
        %v3891 = vunpack.c.l.b16 %v3750
        %v3892 = vunpack.c.h.b16 %v3750
        %v3893 = vunpack.c.l.b16 %v3751
        %v3894 = vunpack.c.h.b16 %v3751
        %v3895 = vunpack.c.l.b16 %v3752
        %v3896 = vunpack.c.h.b16 %v3752
        %v3897 = vunpack.c.l.b16 %v3753
        %v3898 = vunpack.c.h.b16 %v3753
        %v3899 = vunpack.c.l.b16 %v3754
        %v3900 = vunpack.c.h.b16 %v3754
        %v3901 = vunpack.c.l.b16 %v3755
        %v3902 = vunpack.c.h.b16 %v3755
        %v3903 = vunpack.c.l.b16 %v3756
        %v3904 = vunpack.c.h.b16 %v3756
        %v3905 = vunpack.c.l.b16 %v3757
        %v3906 = vunpack.c.h.b16 %v3757
        %v3907 = vunpack.c.l.b16 %v3758
        %v3908 = vunpack.c.h.b16 %v3758
        %v3909 = vunpack.c.l.b16 %v3759
        %v3910 = vunpack.c.h.b16 %v3759
        %v3911 = vunpack.c.l.b16 %v3760
        %v3912 = vunpack.c.h.b16 %v3760
        %v3913 = vunpack.c.l.b16 %v3761
        %v3914 = vunpack.c.h.b16 %v3761
        %v3915 = vunpack.c.l.b16 %v3762
        %v3916 = vunpack.c.h.b16 %v3762
        %v3917 = vunpack.c.l.b16 %v3763
        %v3918 = vunpack.c.h.b16 %v3763
        %v3919 = vunpack.c.l.b16 %v3764
        %v3920 = vunpack.c.h.b16 %v3764
        %v3921 = vunpack.c.l.b16 %v3765
        %v3922 = vunpack.c.h.b16 %v3765
        %v3923 = vunpack.c.l.b16 %v3766
        %v3924 = vunpack.c.h.b16 %v3766
        %v3925 = vunpack.c.l.b16 %v3767
        %v3926 = vunpack.c.h.b16 %v3767
        %v3927 = vunpack.c.l.b16 %v3768
        %v3928 = vunpack.c.h.b16 %v3768
        %v3929 = vunpack.c.l.b16 %v3769
        %v3930 = vunpack.c.h.b16 %v3769
        %v3931 = vunpack.c.l.b16 %v3770
        %v3932 = vunpack.c.h.b16 %v3770
        %v3933 = vunpack.c.l.b16 %v3771
        %v3934 = vunpack.c.h.b16 %v3771
        %v3935 = vunpack.c.l.b16 %v3772
        %v3936 = vunpack.c.h.b16 %v3772
        %v3937 = vunpack.c.l.b16 %v3773
        %v3938 = vunpack.c.h.b16 %v3773
        %v3939 = vunpack.c.l.b16 %v3774
        %v3940 = vunpack.c.h.b16 %v3774
        %v3941 = vunpack.c.l.b16 %v3775
        %v3942 = vunpack.c.h.b16 %v3775
        %v3943 = vunpack.c.l.b16 %v3776
        %v3944 = vunpack.c.h.b16 %v3776
        %v3945 = vunpack.c.l.b16 %v3777
        %v3946 = vunpack.c.h.b16 %v3777
        %v3947 = vunpack.c.l.b16 %v3778
        %v3948 = vunpack.c.h.b16 %v3778
        %v3949 = vunpack.c.l.b16 %v3779
        %v3950 = vunpack.c.h.b16 %v3779
        %v3951 = vunpack.c.l.b16 %v3780
        %v3952 = vunpack.c.h.b16 %v3780
        %v3953 = vunpack.c.l.b16 %v3781
        %v3954 = vunpack.c.h.b16 %v3781
        %v3955 = vunpack.c.l.b16 %v3782
        %v3956 = vunpack.c.h.b16 %v3782
        %v3957 = vunpack.c.l.b16 %v3783
        %v3958 = vunpack.c.h.b16 %v3783
        %v3959 = vunpack.c.l.b16 %v3784
        %v3960 = vunpack.c.h.b16 %v3784
        %v3961 = vunpack.c.l.b16 %v3785
        %v3962 = vunpack.c.h.b16 %v3785
        %v3963 = vunpack.c.l.b16 %v3786
        %v3964 = vunpack.c.h.b16 %v3786
        %v3965 = vunpack.c.l.b16 %v3787
        %v3966 = vunpack.c.h.b16 %v3787
        %v3967 = vunpack.c.l.b16 %v3788
        %v3968 = vunpack.c.h.b16 %v3788
        %v3969 = vunpack.c.l.b16 %v3789
        %v3970 = vunpack.c.h.b16 %v3789
        %v3971 = vunpack.c.l.b16 %v3790
        %v3972 = vunpack.c.h.b16 %v3790
        %v3973 = vunpack.c.l.b16 %v3791
        %v3974 = vunpack.c.h.b16 %v3791
        %v3975 = vunpack.c.l.b16 %v3792
        %v3976 = vunpack.c.h.b16 %v3792
        %v3977 = vunpack.c.l.b16 %v3793
        %v3978 = vunpack.c.h.b16 %v3793
        %v3979 = vunpack.c.l.b16 %v3794
        %v3980 = vunpack.c.h.b16 %v3794
        %v3981 = vunpack.c.l.b16 %v3795
        %v3982 = vunpack.c.h.b16 %v3795
        %v3983 = vunpack.c.l.b16 %v3796
        %v3984 = vunpack.c.h.b16 %v3796
        %v3985 = vunpack.c.l.b16 %v3797
        %v3986 = vunpack.c.h.b16 %v3797
        %v3987 = vunpack.c.l.b16 %v3798
        %v3988 = vunpack.c.h.b16 %v3798
        %v3989 = vunpack.c.l.b16 %v3799
        %v3990 = vunpack.c.h.b16 %v3799
        %v3991 = vunpack.c.l.b16 %v3800
        %v3992 = vunpack.c.h.b16 %v3800
        %v3993 = vpack.c.b16 %v3873, %v3865
        %v3994 = vpack.c.b16 %v3874, %v3866
        %v3995 = vpack.c.b16 %v3875, %v3867
        %v3996 = vpack.c.b16 %v3876, %v3868
        %v3997 = vpack.c.b16 %v3877, %v3869
        %v3998 = vpack.c.b16 %v3878, %v3870
        %v3999 = vpack.c.b16 %v3879, %v3871
        %v4000 = vpack.c.b16 %v3880, %v3872
        %v4001 = vpack.c.b16 %v3889, %v3881
        %v4002 = vpack.c.b16 %v3890, %v3882
        %v4003 = vpack.c.b16 %v3891, %v3883
        %v4004 = vpack.c.b16 %v3892, %v3884
        %v4005 = vpack.c.b16 %v3893, %v3885
        %v4006 = vpack.c.b16 %v3894, %v3886
        %v4007 = vpack.c.b16 %v3895, %v3887
        %v4008 = vpack.c.b16 %v3896, %v3888
        %v4009 = vpack.c.b16 %v3905, %v3897
        %v4010 = vpack.c.b16 %v3906, %v3898
        %v4011 = vpack.c.b16 %v3907, %v3899
        %v4012 = vpack.c.b16 %v3908, %v3900
        %v4013 = vpack.c.b16 %v3909, %v3901
        %v4014 = vpack.c.b16 %v3910, %v3902
        %v4015 = vpack.c.b16 %v3911, %v3903
        %v4016 = vpack.c.b16 %v3912, %v3904
        %v4017 = vpack.c.b16 %v3921, %v3913
        %v4018 = vpack.c.b16 %v3922, %v3914
        %v4019 = vpack.c.b16 %v3923, %v3915
        %v4020 = vpack.c.b16 %v3924, %v3916
        %v4021 = vpack.c.b16 %v3925, %v3917
        %v4022 = vpack.c.b16 %v3926, %v3918
        %v4023 = vpack.c.b16 %v3927, %v3919
        %v4024 = vpack.c.b16 %v3928, %v3920
        %v4025 = vpack.c.b16 %v3937, %v3929
        %v4026 = vpack.c.b16 %v3938, %v3930
        %v4027 = vpack.c.b16 %v3939, %v3931
        %v4028 = vpack.c.b16 %v3940, %v3932
        %v4029 = vpack.c.b16 %v3941, %v3933
        %v4030 = vpack.c.b16 %v3942, %v3934
        %v4031 = vpack.c.b16 %v3943, %v3935
        %v4032 = vpack.c.b16 %v3944, %v3936
        %v4033 = vpack.c.b16 %v3953, %v3945
        %v4034 = vpack.c.b16 %v3954, %v3946
        %v4035 = vpack.c.b16 %v3955, %v3947
        %v4036 = vpack.c.b16 %v3956, %v3948
        %v4037 = vpack.c.b16 %v3957, %v3949
        %v4038 = vpack.c.b16 %v3958, %v3950
        %v4039 = vpack.c.b16 %v3959, %v3951
        %v4040 = vpack.c.b16 %v3960, %v3952
        %v4041 = vpack.c.b16 %v3969, %v3961
        %v4042 = vpack.c.b16 %v3970, %v3962
        %v4043 = vpack.c.b16 %v3971, %v3963
        %v4044 = vpack.c.b16 %v3972, %v3964
        %v4045 = vpack.c.b16 %v3973, %v3965
        %v4046 = vpack.c.b16 %v3974, %v3966
        %v4047 = vpack.c.b16 %v3975, %v3967
        %v4048 = vpack.c.b16 %v3976, %v3968
        %v4049 = vpack.c.b16 %v3985, %v3977
        %v4050 = vpack.c.b16 %v3986, %v3978
        %v4051 = vpack.c.b16 %v3987, %v3979
        %v4052 = vpack.c.b16 %v3988, %v3980
        %v4053 = vpack.c.b16 %v3989, %v3981
        %v4054 = vpack.c.b16 %v3990, %v3982
        %v4055 = vpack.c.b16 %v3991, %v3983
        %v4056 = vpack.c.b16 %v3992, %v3984
        %4121 = vmatprep.subr.bf16.mxu0 %v3994
        %4122 = vmatpush1.bf16.msra.mxu0 %v3993
        %4123 = vmatprep.subr.bf16.mxu0 %v4002
        %4124 = vmatpush1.bf16.msra.mxu0 %v4001
        %4125 = vmatprep.subr.bf16.mxu0 %v4010
        %4126 = vmatpush1.bf16.msra.mxu0 %v4009
        %4127 = vmatprep.subr.bf16.mxu0 %v4018
        %4128 = vmatpush1.bf16.msra.mxu0 %v4017
        %4129 = vmatprep.subr.bf16.mxu0 %v4026
        %4130 = vmatpush1.bf16.msra.mxu0 %v4025
        %4131 = vmatprep.subr.bf16.mxu0 %v4034
        %4132 = vmatpush1.bf16.msra.mxu0 %v4033
        %4133 = vmatprep.subr.bf16.mxu0 %v4042
        %4134 = vmatpush1.bf16.msra.mxu0 %v4041
        %4135 = vmatprep.subr.bf16.mxu0 %v4050
        %4136 = vmatpush1.bf16.msra.mxu0 %v4049
        %4137 = vmatprep.subr.bf16.mxu0 0
        %4138 = vmatpush1.bf16.msra.mxu0 0
        %4139 = vmatprep.subr.bf16.mxu0 0
        %4140 = vmatpush1.bf16.msra.mxu0 0
        %4141 = vmatprep.subr.bf16.mxu0 0
        %4142 = vmatpush1.bf16.msra.mxu0 0
        %4143 = vmatprep.subr.bf16.mxu0 0
        %4144 = vmatpush1.bf16.msra.mxu0 0
        %4145 = vmatprep.subr.bf16.mxu0 0
        %4146 = vmatpush1.bf16.msra.mxu0 0
        %4147 = vmatprep.subr.bf16.mxu0 0
        %4148 = vmatpush1.bf16.msra.mxu0 0
        %4149 = vmatprep.subr.bf16.mxu0 0
        %4150 = vmatpush1.bf16.msra.mxu0 0
        %4151 = vmatprep.subr.bf16.mxu0 0
        %4152 = vmatpush1.bf16.msra.mxu0 0
        %4153 = vmatprep.mubr.bf16.mxu0 0
        %4154 = vmatmul.mubr.bf16.gmra.mrb[0].mxu0 %v3721
        %v4155 = vpop.f32.mrb[0].mxu0
        %v4156 = vadd.f32 0.0, %v4155
        %v4157 = vpop.f32.mrb[0].mxu0
        %v4158 = vadd.f32 0.0, %v4157
        %v4159 = vpop.f32.mrb[0].mxu0
        %v4160 = vadd.f32 0.0, %v4159
        %v4161 = vpop.f32.mrb[0].mxu0
        %v4162 = vadd.f32 0.0, %v4161
        %4163 = vmatprep.mubr.bf16.mxu0 0
        %4164 = vmatmul.mubr.bf16.gmra.mrb[0].mxu0 %v3722
        %v4165 = vpop.f32.mrb[0].mxu0
        %v4166 = vadd.f32 0.0, %v4165
        %v4167 = vpop.f32.mrb[0].mxu0
        %v4168 = vadd.f32 0.0, %v4167
        %v4169 = vpop.f32.mrb[0].mxu0
        %v4170 = vadd.f32 0.0, %v4169
        %v4171 = vpop.f32.mrb[0].mxu0
        %v4172 = vadd.f32 0.0, %v4171
        %4173 = vmatprep.mubr.bf16.mxu0 0
        %4174 = vmatmul.mubr.bf16.gmra.mrb[0].mxu0 %v3723
        %v4175 = vpop.f32.mrb[0].mxu0
        %v4176 = vadd.f32 0.0, %v4175
        %v4177 = vpop.f32.mrb[0].mxu0
        %v4178 = vadd.f32 0.0, %v4177
        %v4179 = vpop.f32.mrb[0].mxu0
        %v4180 = vadd.f32 0.0, %v4179
        %v4181 = vpop.f32.mrb[0].mxu0
        %v4182 = vadd.f32 0.0, %v4181
        %4183 = vmatprep.mubr.bf16.mxu0 0
        %4184 = vmatmul.mubr.bf16.gmra.mrb[0].mxu0 %v3724
        %v4185 = vpop.f32.mrb[0].mxu0
        %v4186 = vadd.f32 0.0, %v4185
        %v4187 = vpop.f32.mrb[0].mxu0
        %v4188 = vadd.f32 0.0, %v4187
        %v4189 = vpop.f32.mrb[0].mxu0
        %v4190 = vadd.f32 0.0, %v4189
        %v4191 = vpop.f32.mrb[0].mxu0
        %v4192 = vadd.f32 0.0, %v4191
        %4193 = vmatprep.mubr.bf16.mxu0 0
        %4194 = vmatmul.mubr.bf16.gmra.mrb[0].mxu0 %v3725
        %v4195 = vpop.f32.mrb[0].mxu0
        %v4196 = vadd.f32 0.0, %v4195
        %v4197 = vpop.f32.mrb[0].mxu0
        %v4198 = vadd.f32 0.0, %v4197
        %v4199 = vpop.f32.mrb[0].mxu0
        %v4200 = vadd.f32 0.0, %v4199
        %v4201 = vpop.f32.mrb[0].mxu0
        %v4202 = vadd.f32 0.0, %v4201
        %4203 = vmatprep.mubr.bf16.mxu0 0
        %4204 = vmatmul.mubr.bf16.gmra.mrb[0].mxu0 %v3726
        %v4205 = vpop.f32.mrb[0].mxu0
        %v4206 = vadd.f32 0.0, %v4205
        %v4207 = vpop.f32.mrb[0].mxu0
        %v4208 = vadd.f32 0.0, %v4207
        %v4209 = vpop.f32.mrb[0].mxu0
        %v4210 = vadd.f32 0.0, %v4209
        %v4211 = vpop.f32.mrb[0].mxu0
        %v4212 = vadd.f32 0.0, %v4211
        %4213 = vmatprep.mubr.bf16.mxu0 0
        %4214 = vmatmul.mubr.bf16.gmra.mrb[0].mxu0 %v3727
        %v4215 = vpop.f32.mrb[0].mxu0
        %v4216 = vadd.f32 0.0, %v4215
        %v4217 = vpop.f32.mrb[0].mxu0
        %v4218 = vadd.f32 0.0, %v4217
        %v4219 = vpop.f32.mrb[0].mxu0
        %v4220 = vadd.f32 0.0, %v4219
        %v4221 = vpop.f32.mrb[0].mxu0
        %v4222 = vadd.f32 0.0, %v4221
        %4223 = vmatprep.mubr.bf16.mxu0 0
        %4224 = vmatmul.mubr.bf16.gmra.mrb[0].mxu0 %v3728
        %v4225 = vpop.f32.mrb[0].mxu0
        %v4226 = vadd.f32 0.0, %v4225
        %v4227 = vpop.f32.mrb[0].mxu0
        %v4228 = vadd.f32 0.0, %v4227
        %v4229 = vpop.f32.mrb[0].mxu0
        %v4230 = vadd.f32 0.0, %v4229
        %v4231 = vpop.f32.mrb[0].mxu0
        %v4232 = vadd.f32 0.0, %v4231
        %4233 = vmatprep.mubr.bf16.mxu0 0
        %4234 = vmatmul.mubr.bf16.gmra.mrb[0].mxu0 %v3729
        %v4235 = vpop.f32.mrb[0].mxu0
        %v4236 = vadd.f32 0.0, %v4235
        %v4237 = vpop.f32.mrb[0].mxu0
        %v4238 = vadd.f32 0.0, %v4237
        %v4239 = vpop.f32.mrb[0].mxu0
        %v4240 = vadd.f32 0.0, %v4239
        %v4241 = vpop.f32.mrb[0].mxu0
        %v4242 = vadd.f32 0.0, %v4241
        %4243 = vmatprep.mubr.bf16.mxu0 0
        %4244 = vmatmul.mubr.bf16.gmra.mrb[0].mxu0 %v3730
        %v4245 = vpop.f32.mrb[0].mxu0
        %v4246 = vadd.f32 0.0, %v4245
        %v4247 = vpop.f32.mrb[0].mxu0
        %v4248 = vadd.f32 0.0, %v4247
        %v4249 = vpop.f32.mrb[0].mxu0
        %v4250 = vadd.f32 0.0, %v4249
        %v4251 = vpop.f32.mrb[0].mxu0
        %v4252 = vadd.f32 0.0, %v4251
        %4253 = vmatprep.mubr.bf16.mxu0 0
        %4254 = vmatmul.mubr.bf16.gmra.mrb[0].mxu0 %v3731
        %v4255 = vpop.f32.mrb[0].mxu0
        %v4256 = vadd.f32 0.0, %v4255
        %v4257 = vpop.f32.mrb[0].mxu0
        %v4258 = vadd.f32 0.0, %v4257
        %v4259 = vpop.f32.mrb[0].mxu0
        %v4260 = vadd.f32 0.0, %v4259
        %v4261 = vpop.f32.mrb[0].mxu0
        %v4262 = vadd.f32 0.0, %v4261
        %4263 = vmatprep.mubr.bf16.mxu0 0
        %4264 = vmatmul.mubr.bf16.gmra.mrb[0].mxu0 %v3732
        %v4265 = vpop.f32.mrb[0].mxu0
        %v4266 = vadd.f32 0.0, %v4265
        %v4267 = vpop.f32.mrb[0].mxu0
        %v4268 = vadd.f32 0.0, %v4267
        %v4269 = vpop.f32.mrb[0].mxu0
        %v4270 = vadd.f32 0.0, %v4269
        %v4271 = vpop.f32.mrb[0].mxu0
        %v4272 = vadd.f32 0.0, %v4271
        %4273 = vmatprep.mubr.bf16.mxu0 0
        %4274 = vmatmul.mubr.bf16.gmra.mrb[0].mxu0 %v3733
        %v4275 = vpop.f32.mrb[0].mxu0
        %v4276 = vadd.f32 0.0, %v4275
        %v4277 = vpop.f32.mrb[0].mxu0
        %v4278 = vadd.f32 0.0, %v4277
        %v4279 = vpop.f32.mrb[0].mxu0
        %v4280 = vadd.f32 0.0, %v4279
        %v4281 = vpop.f32.mrb[0].mxu0
        %v4282 = vadd.f32 0.0, %v4281
        %4283 = vmatprep.mubr.bf16.mxu0 0
        %4284 = vmatmul.mubr.bf16.gmra.mrb[0].mxu0 %v3734
        %v4285 = vpop.f32.mrb[0].mxu0
        %v4286 = vadd.f32 0.0, %v4285
        %v4287 = vpop.f32.mrb[0].mxu0
        %v4288 = vadd.f32 0.0, %v4287
        %v4289 = vpop.f32.mrb[0].mxu0
        %v4290 = vadd.f32 0.0, %v4289
        %v4291 = vpop.f32.mrb[0].mxu0
        %v4292 = vadd.f32 0.0, %v4291
        %4293 = vmatprep.mubr.bf16.mxu0 0
        %4294 = vmatmul.mubr.bf16.gmra.mrb[0].mxu0 %v3735
        %v4295 = vpop.f32.mrb[0].mxu0
        %v4296 = vadd.f32 0.0, %v4295
        %v4297 = vpop.f32.mrb[0].mxu0
        %v4298 = vadd.f32 0.0, %v4297
        %v4299 = vpop.f32.mrb[0].mxu0
        %v4300 = vadd.f32 0.0, %v4299
        %v4301 = vpop.f32.mrb[0].mxu0
        %v4302 = vadd.f32 0.0, %v4301
        %4303 = vmatprep.mubr.bf16.mxu0 0
        %4304 = vmatmul.mubr.bf16.gmra.mrb[0].mxu0 %v3736
        %v4305 = vpop.f32.mrb[0].mxu0
        %v4306 = vadd.f32 0.0, %v4305
        %v4307 = vpop.f32.mrb[0].mxu0
        %v4308 = vadd.f32 0.0, %v4307
        %v4309 = vpop.f32.mrb[0].mxu0
        %v4310 = vadd.f32 0.0, %v4309
        %v4311 = vpop.f32.mrb[0].mxu0
        %v4312 = vadd.f32 0.0, %v4311
        %4313 = vdwg.mxu0
        %4314 = vmatprep.subr.bf16.mxu0 %v3996
        %4315 = vmatpush1.bf16.msra.mxu0 %v3995
        %4316 = vmatprep.subr.bf16.mxu0 %v4004
        %4317 = vmatpush1.bf16.msra.mxu0 %v4003
        %4318 = vmatprep.subr.bf16.mxu0 %v4012
        %4319 = vmatpush1.bf16.msra.mxu0 %v4011
        %4320 = vmatprep.subr.bf16.mxu0 %v4020
        %4321 = vmatpush1.bf16.msra.mxu0 %v4019
        %4322 = vmatprep.subr.bf16.mxu0 %v4028
        %4323 = vmatpush1.bf16.msra.mxu0 %v4027
        %4324 = vmatprep.subr.bf16.mxu0 %v4036
        %4325 = vmatpush1.bf16.msra.mxu0 %v4035
        %4326 = vmatprep.subr.bf16.mxu0 %v4044
        %4327 = vmatpush1.bf16.msra.mxu0 %v4043
        %4328 = vmatprep.subr.bf16.mxu0 %v4052
        %4329 = vmatpush1.bf16.msra.mxu0 %v4051
        %4330 = vmatprep.subr.bf16.mxu0 0
        %4331 = vmatpush1.bf16.msra.mxu0 0
        %4332 = vmatprep.subr.bf16.mxu0 0
        %4333 = vmatpush1.bf16.msra.mxu0 0
        %4334 = vmatprep.subr.bf16.mxu0 0
        %4335 = vmatpush1.bf16.msra.mxu0 0
        %4336 = vmatprep.subr.bf16.mxu0 0
        %4337 = vmatpush1.bf16.msra.mxu0 0
        %4338 = vmatprep.subr.bf16.mxu0 0
        %4339 = vmatpush1.bf16.msra.mxu0 0
        %4340 = vmatprep.subr.bf16.mxu0 0
        %4341 = vmatpush1.bf16.msra.mxu0 0
        %4342 = vmatprep.subr.bf16.mxu0 0
        %4343 = vmatpush1.bf16.msra.mxu0 0
        %4344 = vmatprep.subr.bf16.mxu0 0
        %4345 = vmatpush1.bf16.msra.mxu0 0
        %4346 = vmatprep.mubr.bf16.mxu0 0
        %4347 = vmatmul.mubr.bf16.gmra.mrb[0].mxu0 %v3721
        %v4348 = vpop.f32.mrb[0].mxu0
        %v4349 = vadd.f32 0.0, %v4348
        %v4350 = vpop.f32.mrb[0].mxu0
        %v4351 = vadd.f32 0.0, %v4350
        %v4352 = vpop.f32.mrb[0].mxu0
        %v4353 = vadd.f32 0.0, %v4352
        %v4354 = vpop.f32.mrb[0].mxu0
        %v4355 = vadd.f32 0.0, %v4354
        %4356 = vmatprep.mubr.bf16.mxu0 0
        %4357 = vmatmul.mubr.bf16.gmra.mrb[0].mxu0 %v3722
        %v4358 = vpop.f32.mrb[0].mxu0
        %v4359 = vadd.f32 0.0, %v4358
        %v4360 = vpop.f32.mrb[0].mxu0
        %v4361 = vadd.f32 0.0, %v4360
        %v4362 = vpop.f32.mrb[0].mxu0
        %v4363 = vadd.f32 0.0, %v4362
        %v4364 = vpop.f32.mrb[0].mxu0
        %v4365 = vadd.f32 0.0, %v4364
        %4366 = vmatprep.mubr.bf16.mxu0 0
        %4367 = vmatmul.mubr.bf16.gmra.mrb[0].mxu0 %v3723
        %v4368 = vpop.f32.mrb[0].mxu0
        %v4369 = vadd.f32 0.0, %v4368
        %v4370 = vpop.f32.mrb[0].mxu0
        %v4371 = vadd.f32 0.0, %v4370
        %v4372 = vpop.f32.mrb[0].mxu0
        %v4373 = vadd.f32 0.0, %v4372
        %v4374 = vpop.f32.mrb[0].mxu0
        %v4375 = vadd.f32 0.0, %v4374
        %4376 = vmatprep.mubr.bf16.mxu0 0
        %4377 = vmatmul.mubr.bf16.gmra.mrb[0].mxu0 %v3724
        %v4378 = vpop.f32.mrb[0].mxu0
        %v4379 = vadd.f32 0.0, %v4378
        %v4380 = vpop.f32.mrb[0].mxu0
        %v4381 = vadd.f32 0.0, %v4380
        %v4382 = vpop.f32.mrb[0].mxu0
        %v4383 = vadd.f32 0.0, %v4382
        %v4384 = vpop.f32.mrb[0].mxu0
        %v4385 = vadd.f32 0.0, %v4384
        %4386 = vmatprep.mubr.bf16.mxu0 0
        %4387 = vmatmul.mubr.bf16.gmra.mrb[0].mxu0 %v3725
        %v4388 = vpop.f32.mrb[0].mxu0
        %v4389 = vadd.f32 0.0, %v4388
        %v4390 = vpop.f32.mrb[0].mxu0
        %v4391 = vadd.f32 0.0, %v4390
        %v4392 = vpop.f32.mrb[0].mxu0
        %v4393 = vadd.f32 0.0, %v4392
        %v4394 = vpop.f32.mrb[0].mxu0
        %v4395 = vadd.f32 0.0, %v4394
        %4396 = vmatprep.mubr.bf16.mxu0 0
        %4397 = vmatmul.mubr.bf16.gmra.mrb[0].mxu0 %v3726
        %v4398 = vpop.f32.mrb[0].mxu0
        %v4399 = vadd.f32 0.0, %v4398
        %v4400 = vpop.f32.mrb[0].mxu0
        %v4401 = vadd.f32 0.0, %v4400
        %v4402 = vpop.f32.mrb[0].mxu0
        %v4403 = vadd.f32 0.0, %v4402
        %v4404 = vpop.f32.mrb[0].mxu0
        %v4405 = vadd.f32 0.0, %v4404
        %4406 = vmatprep.mubr.bf16.mxu0 0
        %4407 = vmatmul.mubr.bf16.gmra.mrb[0].mxu0 %v3727
        %v4408 = vpop.f32.mrb[0].mxu0
        %v4409 = vadd.f32 0.0, %v4408
        %v4410 = vpop.f32.mrb[0].mxu0
        %v4411 = vadd.f32 0.0, %v4410
        %v4412 = vpop.f32.mrb[0].mxu0
        %v4413 = vadd.f32 0.0, %v4412
        %v4414 = vpop.f32.mrb[0].mxu0
        %v4415 = vadd.f32 0.0, %v4414
        %4416 = vmatprep.mubr.bf16.mxu0 0
        %4417 = vmatmul.mubr.bf16.gmra.mrb[0].mxu0 %v3728
        %v4418 = vpop.f32.mrb[0].mxu0
        %v4419 = vadd.f32 0.0, %v4418
        %v4420 = vpop.f32.mrb[0].mxu0
        %v4421 = vadd.f32 0.0, %v4420
        %v4422 = vpop.f32.mrb[0].mxu0
        %v4423 = vadd.f32 0.0, %v4422
        %v4424 = vpop.f32.mrb[0].mxu0
        %v4425 = vadd.f32 0.0, %v4424
        %4426 = vmatprep.mubr.bf16.mxu0 0
        %4427 = vmatmul.mubr.bf16.gmra.mrb[0].mxu0 %v3729
        %v4428 = vpop.f32.mrb[0].mxu0
        %v4429 = vadd.f32 0.0, %v4428
        %v4430 = vpop.f32.mrb[0].mxu0
        %v4431 = vadd.f32 0.0, %v4430
        %v4432 = vpop.f32.mrb[0].mxu0
        %v4433 = vadd.f32 0.0, %v4432
        %v4434 = vpop.f32.mrb[0].mxu0
        %v4435 = vadd.f32 0.0, %v4434
        %4436 = vmatprep.mubr.bf16.mxu0 0
        %4437 = vmatmul.mubr.bf16.gmra.mrb[0].mxu0 %v3730
        %v4438 = vpop.f32.mrb[0].mxu0
        %v4439 = vadd.f32 0.0, %v4438
        %v4440 = vpop.f32.mrb[0].mxu0
        %v4441 = vadd.f32 0.0, %v4440
        %v4442 = vpop.f32.mrb[0].mxu0
        %v4443 = vadd.f32 0.0, %v4442
        %v4444 = vpop.f32.mrb[0].mxu0
        %v4445 = vadd.f32 0.0, %v4444
        %4446 = vmatprep.mubr.bf16.mxu0 0
        %4447 = vmatmul.mubr.bf16.gmra.mrb[0].mxu0 %v3731
        %v4448 = vpop.f32.mrb[0].mxu0
        %v4449 = vadd.f32 0.0, %v4448
        %v4450 = vpop.f32.mrb[0].mxu0
        %v4451 = vadd.f32 0.0, %v4450
        %v4452 = vpop.f32.mrb[0].mxu0
        %v4453 = vadd.f32 0.0, %v4452
        %v4454 = vpop.f32.mrb[0].mxu0
        %v4455 = vadd.f32 0.0, %v4454
        %4456 = vmatprep.mubr.bf16.mxu0 0
        %4457 = vmatmul.mubr.bf16.gmra.mrb[0].mxu0 %v3732
        %v4458 = vpop.f32.mrb[0].mxu0
        %v4459 = vadd.f32 0.0, %v4458
        %v4460 = vpop.f32.mrb[0].mxu0
        %v4461 = vadd.f32 0.0, %v4460
        %v4462 = vpop.f32.mrb[0].mxu0
        %v4463 = vadd.f32 0.0, %v4462
        %v4464 = vpop.f32.mrb[0].mxu0
        %v4465 = vadd.f32 0.0, %v4464
        %4466 = vmatprep.mubr.bf16.mxu0 0
        %4467 = vmatmul.mubr.bf16.gmra.mrb[0].mxu0 %v3733
        %v4468 = vpop.f32.mrb[0].mxu0
        %v4469 = vadd.f32 0.0, %v4468
        %v4470 = vpop.f32.mrb[0].mxu0
        %v4471 = vadd.f32 0.0, %v4470
        %v4472 = vpop.f32.mrb[0].mxu0
        %v4473 = vadd.f32 0.0, %v4472
        %v4474 = vpop.f32.mrb[0].mxu0
        %v4475 = vadd.f32 0.0, %v4474
        %4476 = vmatprep.mubr.bf16.mxu0 0
        %4477 = vmatmul.mubr.bf16.gmra.mrb[0].mxu0 %v3734
        %v4478 = vpop.f32.mrb[0].mxu0
        %v4479 = vadd.f32 0.0, %v4478
        %v4480 = vpop.f32.mrb[0].mxu0
        %v4481 = vadd.f32 0.0, %v4480
        %v4482 = vpop.f32.mrb[0].mxu0
        %v4483 = vadd.f32 0.0, %v4482
        %v4484 = vpop.f32.mrb[0].mxu0
        %v4485 = vadd.f32 0.0, %v4484
        %4486 = vmatprep.mubr.bf16.mxu0 0
        %4487 = vmatmul.mubr.bf16.gmra.mrb[0].mxu0 %v3735
        %v4488 = vpop.f32.mrb[0].mxu0
        %v4489 = vadd.f32 0.0, %v4488
        %v4490 = vpop.f32.mrb[0].mxu0
        %v4491 = vadd.f32 0.0, %v4490
        %v4492 = vpop.f32.mrb[0].mxu0
        %v4493 = vadd.f32 0.0, %v4492
        %v4494 = vpop.f32.mrb[0].mxu0
        %v4495 = vadd.f32 0.0, %v4494
        %4496 = vmatprep.mubr.bf16.mxu0 0
        %4497 = vmatmul.mubr.bf16.gmra.mrb[0].mxu0 %v3736
        %v4498 = vpop.f32.mrb[0].mxu0
        %v4499 = vadd.f32 0.0, %v4498
        %v4500 = vpop.f32.mrb[0].mxu0
        %v4501 = vadd.f32 0.0, %v4500
        %v4502 = vpop.f32.mrb[0].mxu0
        %v4503 = vadd.f32 0.0, %v4502
        %v4504 = vpop.f32.mrb[0].mxu0
        %v4505 = vadd.f32 0.0, %v4504
        %4506 = vdwg.mxu0
        %4507 = vmatprep.subr.bf16.mxu0 %v3998
        %4508 = vmatpush1.bf16.msra.mxu0 %v3997
        %4509 = vmatprep.subr.bf16.mxu0 %v4006
        %4510 = vmatpush1.bf16.msra.mxu0 %v4005
        %4511 = vmatprep.subr.bf16.mxu0 %v4014
        %4512 = vmatpush1.bf16.msra.mxu0 %v4013
        %4513 = vmatprep.subr.bf16.mxu0 %v4022
        %4514 = vmatpush1.bf16.msra.mxu0 %v4021
        %4515 = vmatprep.subr.bf16.mxu0 %v4030
        %4516 = vmatpush1.bf16.msra.mxu0 %v4029
        %4517 = vmatprep.subr.bf16.mxu0 %v4038
        %4518 = vmatpush1.bf16.msra.mxu0 %v4037
        %4519 = vmatprep.subr.bf16.mxu0 %v4046
        %4520 = vmatpush1.bf16.msra.mxu0 %v4045
        %4521 = vmatprep.subr.bf16.mxu0 %v4054
        %4522 = vmatpush1.bf16.msra.mxu0 %v4053
        %4523 = vmatprep.subr.bf16.mxu0 0
        %4524 = vmatpush1.bf16.msra.mxu0 0
        %4525 = vmatprep.subr.bf16.mxu0 0
        %4526 = vmatpush1.bf16.msra.mxu0 0
        %4527 = vmatprep.subr.bf16.mxu0 0
        %4528 = vmatpush1.bf16.msra.mxu0 0
        %4529 = vmatprep.subr.bf16.mxu0 0
        %4530 = vmatpush1.bf16.msra.mxu0 0
        %4531 = vmatprep.subr.bf16.mxu0 0
        %4532 = vmatpush1.bf16.msra.mxu0 0
        %4533 = vmatprep.subr.bf16.mxu0 0
        %4534 = vmatpush1.bf16.msra.mxu0 0
        %4535 = vmatprep.subr.bf16.mxu0 0
        %4536 = vmatpush1.bf16.msra.mxu0 0
        %4537 = vmatprep.subr.bf16.mxu0 0
        %4538 = vmatpush1.bf16.msra.mxu0 0
        %4539 = vmatprep.mubr.bf16.mxu0 0
        %4540 = vmatmul.mubr.bf16.gmra.mrb[0].mxu0 %v3721
        %v4541 = vpop.f32.mrb[0].mxu0
        %v4542 = vadd.f32 0.0, %v4541
        %v4543 = vpop.f32.mrb[0].mxu0
        %v4544 = vadd.f32 0.0, %v4543
        %v4545 = vpop.f32.mrb[0].mxu0
        %v4546 = vadd.f32 0.0, %v4545
        %v4547 = vpop.f32.mrb[0].mxu0
        %v4548 = vadd.f32 0.0, %v4547
        %4549 = vmatprep.mubr.bf16.mxu0 0
        %4550 = vmatmul.mubr.bf16.gmra.mrb[0].mxu0 %v3722
        %v4551 = vpop.f32.mrb[0].mxu0
        %v4552 = vadd.f32 0.0, %v4551
        %v4553 = vpop.f32.mrb[0].mxu0
        %v4554 = vadd.f32 0.0, %v4553
        %v4555 = vpop.f32.mrb[0].mxu0
        %v4556 = vadd.f32 0.0, %v4555
        %v4557 = vpop.f32.mrb[0].mxu0
        %v4558 = vadd.f32 0.0, %v4557
        %4559 = vmatprep.mubr.bf16.mxu0 0
        %4560 = vmatmul.mubr.bf16.gmra.mrb[0].mxu0 %v3723
        %v4561 = vpop.f32.mrb[0].mxu0
        %v4562 = vadd.f32 0.0, %v4561
        %v4563 = vpop.f32.mrb[0].mxu0
        %v4564 = vadd.f32 0.0, %v4563
        %v4565 = vpop.f32.mrb[0].mxu0
        %v4566 = vadd.f32 0.0, %v4565
        %v4567 = vpop.f32.mrb[0].mxu0
        %v4568 = vadd.f32 0.0, %v4567
        %4569 = vmatprep.mubr.bf16.mxu0 0
        %4570 = vmatmul.mubr.bf16.gmra.mrb[0].mxu0 %v3724
        %v4571 = vpop.f32.mrb[0].mxu0
        %v4572 = vadd.f32 0.0, %v4571
        %v4573 = vpop.f32.mrb[0].mxu0
        %v4574 = vadd.f32 0.0, %v4573
        %v4575 = vpop.f32.mrb[0].mxu0
        %v4576 = vadd.f32 0.0, %v4575
        %v4577 = vpop.f32.mrb[0].mxu0
        %v4578 = vadd.f32 0.0, %v4577
        %4579 = vmatprep.mubr.bf16.mxu0 0
        %4580 = vmatmul.mubr.bf16.gmra.mrb[0].mxu0 %v3725
        %v4581 = vpop.f32.mrb[0].mxu0
        %v4582 = vadd.f32 0.0, %v4581
        %v4583 = vpop.f32.mrb[0].mxu0
        %v4584 = vadd.f32 0.0, %v4583
        %v4585 = vpop.f32.mrb[0].mxu0
        %v4586 = vadd.f32 0.0, %v4585
        %v4587 = vpop.f32.mrb[0].mxu0
        %v4588 = vadd.f32 0.0, %v4587
        %4589 = vmatprep.mubr.bf16.mxu0 0
        %4590 = vmatmul.mubr.bf16.gmra.mrb[0].mxu0 %v3726
        %v4591 = vpop.f32.mrb[0].mxu0
        %v4592 = vadd.f32 0.0, %v4591
        %v4593 = vpop.f32.mrb[0].mxu0
        %v4594 = vadd.f32 0.0, %v4593
        %v4595 = vpop.f32.mrb[0].mxu0
        %v4596 = vadd.f32 0.0, %v4595
        %v4597 = vpop.f32.mrb[0].mxu0
        %v4598 = vadd.f32 0.0, %v4597
        %4599 = vmatprep.mubr.bf16.mxu0 0
        %4600 = vmatmul.mubr.bf16.gmra.mrb[0].mxu0 %v3727
        %v4601 = vpop.f32.mrb[0].mxu0
        %v4602 = vadd.f32 0.0, %v4601
        %v4603 = vpop.f32.mrb[0].mxu0
        %v4604 = vadd.f32 0.0, %v4603
        %v4605 = vpop.f32.mrb[0].mxu0
        %v4606 = vadd.f32 0.0, %v4605
        %v4607 = vpop.f32.mrb[0].mxu0
        %v4608 = vadd.f32 0.0, %v4607
        %4609 = vmatprep.mubr.bf16.mxu0 0
        %4610 = vmatmul.mubr.bf16.gmra.mrb[0].mxu0 %v3728
        %v4611 = vpop.f32.mrb[0].mxu0
        %v4612 = vadd.f32 0.0, %v4611
        %v4613 = vpop.f32.mrb[0].mxu0
        %v4614 = vadd.f32 0.0, %v4613
        %v4615 = vpop.f32.mrb[0].mxu0
        %v4616 = vadd.f32 0.0, %v4615
        %v4617 = vpop.f32.mrb[0].mxu0
        %v4618 = vadd.f32 0.0, %v4617
        %4619 = vmatprep.mubr.bf16.mxu0 0
        %4620 = vmatmul.mubr.bf16.gmra.mrb[0].mxu0 %v3729
        %v4621 = vpop.f32.mrb[0].mxu0
        %v4622 = vadd.f32 0.0, %v4621
        %v4623 = vpop.f32.mrb[0].mxu0
        %v4624 = vadd.f32 0.0, %v4623
        %v4625 = vpop.f32.mrb[0].mxu0
        %v4626 = vadd.f32 0.0, %v4625
        %v4627 = vpop.f32.mrb[0].mxu0
        %v4628 = vadd.f32 0.0, %v4627
        %4629 = vmatprep.mubr.bf16.mxu0 0
        %4630 = vmatmul.mubr.bf16.gmra.mrb[0].mxu0 %v3730
        %v4631 = vpop.f32.mrb[0].mxu0
        %v4632 = vadd.f32 0.0, %v4631
        %v4633 = vpop.f32.mrb[0].mxu0
        %v4634 = vadd.f32 0.0, %v4633
        %v4635 = vpop.f32.mrb[0].mxu0
        %v4636 = vadd.f32 0.0, %v4635
        %v4637 = vpop.f32.mrb[0].mxu0
        %v4638 = vadd.f32 0.0, %v4637
        %4639 = vmatprep.mubr.bf16.mxu0 0
        %4640 = vmatmul.mubr.bf16.gmra.mrb[0].mxu0 %v3731
        %v4641 = vpop.f32.mrb[0].mxu0
        %v4642 = vadd.f32 0.0, %v4641
        %v4643 = vpop.f32.mrb[0].mxu0
        %v4644 = vadd.f32 0.0, %v4643
        %v4645 = vpop.f32.mrb[0].mxu0
        %v4646 = vadd.f32 0.0, %v4645
        %v4647 = vpop.f32.mrb[0].mxu0
        %v4648 = vadd.f32 0.0, %v4647
        %4649 = vmatprep.mubr.bf16.mxu0 0
        %4650 = vmatmul.mubr.bf16.gmra.mrb[0].mxu0 %v3732
        %v4651 = vpop.f32.mrb[0].mxu0
        %v4652 = vadd.f32 0.0, %v4651
        %v4653 = vpop.f32.mrb[0].mxu0
        %v4654 = vadd.f32 0.0, %v4653
        %v4655 = vpop.f32.mrb[0].mxu0
        %v4656 = vadd.f32 0.0, %v4655
        %v4657 = vpop.f32.mrb[0].mxu0
        %v4658 = vadd.f32 0.0, %v4657
        %4659 = vmatprep.mubr.bf16.mxu0 0
        %4660 = vmatmul.mubr.bf16.gmra.mrb[0].mxu0 %v3733
        %v4661 = vpop.f32.mrb[0].mxu0
        %v4662 = vadd.f32 0.0, %v4661
        %v4663 = vpop.f32.mrb[0].mxu0
        %v4664 = vadd.f32 0.0, %v4663
        %v4665 = vpop.f32.mrb[0].mxu0
        %v4666 = vadd.f32 0.0, %v4665
        %v4667 = vpop.f32.mrb[0].mxu0
        %v4668 = vadd.f32 0.0, %v4667
        %4669 = vmatprep.mubr.bf16.mxu0 0
        %4670 = vmatmul.mubr.bf16.gmra.mrb[0].mxu0 %v3734
        %v4671 = vpop.f32.mrb[0].mxu0
        %v4672 = vadd.f32 0.0, %v4671
        %v4673 = vpop.f32.mrb[0].mxu0
        %v4674 = vadd.f32 0.0, %v4673
        %v4675 = vpop.f32.mrb[0].mxu0
        %v4676 = vadd.f32 0.0, %v4675
        %v4677 = vpop.f32.mrb[0].mxu0
        %v4678 = vadd.f32 0.0, %v4677
        %4679 = vmatprep.mubr.bf16.mxu0 0
        %4680 = vmatmul.mubr.bf16.gmra.mrb[0].mxu0 %v3735
        %v4681 = vpop.f32.mrb[0].mxu0
        %v4682 = vadd.f32 0.0, %v4681
        %v4683 = vpop.f32.mrb[0].mxu0
        %v4684 = vadd.f32 0.0, %v4683
        %v4685 = vpop.f32.mrb[0].mxu0
        %v4686 = vadd.f32 0.0, %v4685
        %v4687 = vpop.f32.mrb[0].mxu0
        %v4688 = vadd.f32 0.0, %v4687
        %4689 = vmatprep.mubr.bf16.mxu0 0
        %4690 = vmatmul.mubr.bf16.gmra.mrb[0].mxu0 %v3736
        %v4691 = vpop.f32.mrb[0].mxu0
        %v4692 = vadd.f32 0.0, %v4691
        %v4693 = vpop.f32.mrb[0].mxu0
        %v4694 = vadd.f32 0.0, %v4693
        %v4695 = vpop.f32.mrb[0].mxu0
        %v4696 = vadd.f32 0.0, %v4695
        %v4697 = vpop.f32.mrb[0].mxu0
        %v4698 = vadd.f32 0.0, %v4697
        %4699 = vdwg.mxu0
        %4700 = vmatprep.subr.bf16.mxu0 %v4000
        %4701 = vmatpush1.bf16.msra.mxu0 %v3999
        %4702 = vmatprep.subr.bf16.mxu0 %v4008
        %4703 = vmatpush1.bf16.msra.mxu0 %v4007
        %4704 = vmatprep.subr.bf16.mxu0 %v4016
        %4705 = vmatpush1.bf16.msra.mxu0 %v4015
        %4706 = vmatprep.subr.bf16.mxu0 %v4024
        %4707 = vmatpush1.bf16.msra.mxu0 %v4023
        %4708 = vmatprep.subr.bf16.mxu0 %v4032
        %4709 = vmatpush1.bf16.msra.mxu0 %v4031
        %4710 = vmatprep.subr.bf16.mxu0 %v4040
        %4711 = vmatpush1.bf16.msra.mxu0 %v4039
        %4712 = vmatprep.subr.bf16.mxu0 %v4048
        %4713 = vmatpush1.bf16.msra.mxu0 %v4047
        %4714 = vmatprep.subr.bf16.mxu0 %v4056
        %4715 = vmatpush1.bf16.msra.mxu0 %v4055
        %4716 = vmatprep.subr.bf16.mxu0 0
        %4717 = vmatpush1.bf16.msra.mxu0 0
        %4718 = vmatprep.subr.bf16.mxu0 0
        %4719 = vmatpush1.bf16.msra.mxu0 0
        %4720 = vmatprep.subr.bf16.mxu0 0
        %4721 = vmatpush1.bf16.msra.mxu0 0
        %4722 = vmatprep.subr.bf16.mxu0 0
        %4723 = vmatpush1.bf16.msra.mxu0 0
        %4724 = vmatprep.subr.bf16.mxu0 0
        %4725 = vmatpush1.bf16.msra.mxu0 0
        %4726 = vmatprep.subr.bf16.mxu0 0
        %4727 = vmatpush1.bf16.msra.mxu0 0
        %4728 = vmatprep.subr.bf16.mxu0 0
        %4729 = vmatpush1.bf16.msra.mxu0 0
        %4730 = vmatprep.subr.bf16.mxu0 0
        %4731 = vmatpush1.bf16.msra.mxu0 0
        %4732 = vmatprep.mubr.bf16.mxu0 0
        %4733 = vmatmul.mubr.bf16.gmra.mrb[0].mxu0 %v3721
        %v4734 = vpop.f32.mrb[0].mxu0
        %v4735 = vadd.f32 0.0, %v4734
        %v4736 = vpop.f32.mrb[0].mxu0
        %v4737 = vadd.f32 0.0, %v4736
        %v4738 = vpop.f32.mrb[0].mxu0
        %v4739 = vadd.f32 0.0, %v4738
        %v4740 = vpop.f32.mrb[0].mxu0
        %v4741 = vadd.f32 0.0, %v4740
        %4742 = vmatprep.mubr.bf16.mxu0 0
        %4743 = vmatmul.mubr.bf16.gmra.mrb[0].mxu0 %v3722
        %v4744 = vpop.f32.mrb[0].mxu0
        %v4745 = vadd.f32 0.0, %v4744
        %v4746 = vpop.f32.mrb[0].mxu0
        %v4747 = vadd.f32 0.0, %v4746
        %v4748 = vpop.f32.mrb[0].mxu0
        %v4749 = vadd.f32 0.0, %v4748
        %v4750 = vpop.f32.mrb[0].mxu0
        %v4751 = vadd.f32 0.0, %v4750
        %4752 = vmatprep.mubr.bf16.mxu0 0
        %4753 = vmatmul.mubr.bf16.gmra.mrb[0].mxu0 %v3723
        %v4754 = vpop.f32.mrb[0].mxu0
        %v4755 = vadd.f32 0.0, %v4754
        %v4756 = vpop.f32.mrb[0].mxu0
        %v4757 = vadd.f32 0.0, %v4756
        %v4758 = vpop.f32.mrb[0].mxu0
        %v4759 = vadd.f32 0.0, %v4758
        %v4760 = vpop.f32.mrb[0].mxu0
        %v4761 = vadd.f32 0.0, %v4760
        %4762 = vmatprep.mubr.bf16.mxu0 0
        %4763 = vmatmul.mubr.bf16.gmra.mrb[0].mxu0 %v3724
        %v4764 = vpop.f32.mrb[0].mxu0
        %v4765 = vadd.f32 0.0, %v4764
        %v4766 = vpop.f32.mrb[0].mxu0
        %v4767 = vadd.f32 0.0, %v4766
        %v4768 = vpop.f32.mrb[0].mxu0
        %v4769 = vadd.f32 0.0, %v4768
        %v4770 = vpop.f32.mrb[0].mxu0
        %v4771 = vadd.f32 0.0, %v4770
        %4772 = vmatprep.mubr.bf16.mxu0 0
        %4773 = vmatmul.mubr.bf16.gmra.mrb[0].mxu0 %v3725
        %v4774 = vpop.f32.mrb[0].mxu0
        %v4775 = vadd.f32 0.0, %v4774
        %v4776 = vpop.f32.mrb[0].mxu0
        %v4777 = vadd.f32 0.0, %v4776
        %v4778 = vpop.f32.mrb[0].mxu0
        %v4779 = vadd.f32 0.0, %v4778
        %v4780 = vpop.f32.mrb[0].mxu0
        %v4781 = vadd.f32 0.0, %v4780
        %4782 = vmatprep.mubr.bf16.mxu0 0
        %4783 = vmatmul.mubr.bf16.gmra.mrb[0].mxu0 %v3726
        %v4784 = vpop.f32.mrb[0].mxu0
        %v4785 = vadd.f32 0.0, %v4784
        %v4786 = vpop.f32.mrb[0].mxu0
        %v4787 = vadd.f32 0.0, %v4786
        %v4788 = vpop.f32.mrb[0].mxu0
        %v4789 = vadd.f32 0.0, %v4788
        %v4790 = vpop.f32.mrb[0].mxu0
        %v4791 = vadd.f32 0.0, %v4790
        %4792 = vmatprep.mubr.bf16.mxu0 0
        %4793 = vmatmul.mubr.bf16.gmra.mrb[0].mxu0 %v3727
        %v4794 = vpop.f32.mrb[0].mxu0
        %v4795 = vadd.f32 0.0, %v4794
        %v4796 = vpop.f32.mrb[0].mxu0
        %v4797 = vadd.f32 0.0, %v4796
        %v4798 = vpop.f32.mrb[0].mxu0
        %v4799 = vadd.f32 0.0, %v4798
        %v4800 = vpop.f32.mrb[0].mxu0
        %v4801 = vadd.f32 0.0, %v4800
        %4802 = vmatprep.mubr.bf16.mxu0 0
        %4803 = vmatmul.mubr.bf16.gmra.mrb[0].mxu0 %v3728
        %v4804 = vpop.f32.mrb[0].mxu0
        %v4805 = vadd.f32 0.0, %v4804
        %v4806 = vpop.f32.mrb[0].mxu0
        %v4807 = vadd.f32 0.0, %v4806
        %v4808 = vpop.f32.mrb[0].mxu0
        %v4809 = vadd.f32 0.0, %v4808
        %v4810 = vpop.f32.mrb[0].mxu0
        %v4811 = vadd.f32 0.0, %v4810
        %4812 = vmatprep.mubr.bf16.mxu0 0
        %4813 = vmatmul.mubr.bf16.gmra.mrb[0].mxu0 %v3729
        %v4814 = vpop.f32.mrb[0].mxu0
        %v4815 = vadd.f32 0.0, %v4814
        %v4816 = vpop.f32.mrb[0].mxu0
        %v4817 = vadd.f32 0.0, %v4816
        %v4818 = vpop.f32.mrb[0].mxu0
        %v4819 = vadd.f32 0.0, %v4818
        %v4820 = vpop.f32.mrb[0].mxu0
        %v4821 = vadd.f32 0.0, %v4820
        %4822 = vmatprep.mubr.bf16.mxu0 0
        %4823 = vmatmul.mubr.bf16.gmra.mrb[0].mxu0 %v3730
        %v4824 = vpop.f32.mrb[0].mxu0
        %v4825 = vadd.f32 0.0, %v4824
        %v4826 = vpop.f32.mrb[0].mxu0
        %v4827 = vadd.f32 0.0, %v4826
        %v4828 = vpop.f32.mrb[0].mxu0
        %v4829 = vadd.f32 0.0, %v4828
        %v4830 = vpop.f32.mrb[0].mxu0
        %v4831 = vadd.f32 0.0, %v4830
        %4832 = vmatprep.mubr.bf16.mxu0 0
        %4833 = vmatmul.mubr.bf16.gmra.mrb[0].mxu0 %v3731
        %v4834 = vpop.f32.mrb[0].mxu0
        %v4835 = vadd.f32 0.0, %v4834
        %v4836 = vpop.f32.mrb[0].mxu0
        %v4837 = vadd.f32 0.0, %v4836
        %v4838 = vpop.f32.mrb[0].mxu0
        %v4839 = vadd.f32 0.0, %v4838
        %v4840 = vpop.f32.mrb[0].mxu0
        %v4841 = vadd.f32 0.0, %v4840
        %4842 = vmatprep.mubr.bf16.mxu0 0
        %4843 = vmatmul.mubr.bf16.gmra.mrb[0].mxu0 %v3732
        %v4844 = vpop.f32.mrb[0].mxu0
        %v4845 = vadd.f32 0.0, %v4844
        %v4846 = vpop.f32.mrb[0].mxu0
        %v4847 = vadd.f32 0.0, %v4846
        %v4848 = vpop.f32.mrb[0].mxu0
        %v4849 = vadd.f32 0.0, %v4848
        %v4850 = vpop.f32.mrb[0].mxu0
        %v4851 = vadd.f32 0.0, %v4850
        %4852 = vmatprep.mubr.bf16.mxu0 0
        %4853 = vmatmul.mubr.bf16.gmra.mrb[0].mxu0 %v3733
        %v4854 = vpop.f32.mrb[0].mxu0
        %v4855 = vadd.f32 0.0, %v4854
        %v4856 = vpop.f32.mrb[0].mxu0
        %v4857 = vadd.f32 0.0, %v4856
        %v4858 = vpop.f32.mrb[0].mxu0
        %v4859 = vadd.f32 0.0, %v4858
        %v4860 = vpop.f32.mrb[0].mxu0
        %v4861 = vadd.f32 0.0, %v4860
        %4862 = vmatprep.mubr.bf16.mxu0 0
        %4863 = vmatmul.mubr.bf16.gmra.mrb[0].mxu0 %v3734
        %v4864 = vpop.f32.mrb[0].mxu0
        %v4865 = vadd.f32 0.0, %v4864
        %v4866 = vpop.f32.mrb[0].mxu0
        %v4867 = vadd.f32 0.0, %v4866
        %v4868 = vpop.f32.mrb[0].mxu0
        %v4869 = vadd.f32 0.0, %v4868
        %v4870 = vpop.f32.mrb[0].mxu0
        %v4871 = vadd.f32 0.0, %v4870
        %4872 = vmatprep.mubr.bf16.mxu0 0
        %4873 = vmatmul.mubr.bf16.gmra.mrb[0].mxu0 %v3735
        %v4874 = vpop.f32.mrb[0].mxu0
        %v4875 = vadd.f32 0.0, %v4874
        %v4876 = vpop.f32.mrb[0].mxu0
        %v4877 = vadd.f32 0.0, %v4876
        %v4878 = vpop.f32.mrb[0].mxu0
        %v4879 = vadd.f32 0.0, %v4878
        %v4880 = vpop.f32.mrb[0].mxu0
        %v4881 = vadd.f32 0.0, %v4880
        %4882 = vmatprep.mubr.bf16.mxu0 0
        %4883 = vmatmul.mubr.bf16.gmra.mrb[0].mxu0 %v3736
        %v4884 = vpop.f32.mrb[0].mxu0
        %v4885 = vadd.f32 0.0, %v4884
        %v4886 = vpop.f32.mrb[0].mxu0
        %v4887 = vadd.f32 0.0, %v4886
        %v4888 = vpop.f32.mrb[0].mxu0
        %v4889 = vadd.f32 0.0, %v4888
        %v4890 = vpop.f32.mrb[0].mxu0
        %v4891 = vadd.f32 0.0, %v4890
        %4892 = vdwg.mxu0
        %v4893 = vpack.c.bf16 %v3690, %v3689
        %v4894 = vpack.c.bf16 %v3692, %v3691
        %v4895 = vpack.c.bf16 %v3694, %v3693
        %v4896 = vpack.c.bf16 %v3696, %v3695
        %v4897 = vpack.c.bf16 %v3698, %v3697
        %v4898 = vpack.c.bf16 %v3700, %v3699
        %v4899 = vpack.c.bf16 %v3702, %v3701
        %v4900 = vpack.c.bf16 %v3704, %v3703
        %v4901 = vpack.c.bf16 %v3706, %v3705
        %v4902 = vpack.c.bf16 %v3708, %v3707
        %v4903 = vpack.c.bf16 %v3710, %v3709
        %v4904 = vpack.c.bf16 %v3712, %v3711
        %v4905 = vpack.c.bf16 %v3714, %v3713
        %v4906 = vpack.c.bf16 %v3716, %v3715
        %v4907 = vpack.c.bf16 %v3718, %v3717
        %v4908 = vpack.c.bf16 %v3720, %v3719
        %v4909 = vld [vmem:[#allocation12] sm:$0xff]
        %v4910 = vld [vmem:[#allocation12 + $0x8] sm:$0xff]
        %v4911 = vld [vmem:[#allocation12 + $0x10] sm:$0xff]
        %v4912 = vld [vmem:[#allocation12 + $0x18] sm:$0xff]
        %v4913 = vld [vmem:[#allocation12 + $0x20] sm:$0xff]
        %v4914 = vld [vmem:[#allocation12 + $0x28] sm:$0xff]
        %v4915 = vld [vmem:[#allocation12 + $0x30] sm:$0xff]
        %v4916 = vld [vmem:[#allocation12 + $0x38] sm:$0xff]
        %v4917 = vld [vmem:[#allocation12 + $0x40] sm:$0xff]
        %v4918 = vld [vmem:[#allocation12 + $0x48] sm:$0xff]
        %v4919 = vld [vmem:[#allocation12 + $0x50] sm:$0xff]
        %v4920 = vld [vmem:[#allocation12 + $0x58] sm:$0xff]
        %v4921 = vld [vmem:[#allocation12 + $0x60] sm:$0xff]
        %v4922 = vld [vmem:[#allocation12 + $0x68] sm:$0xff]
        %v4923 = vld [vmem:[#allocation12 + $0x70] sm:$0xff]
        %v4924 = vld [vmem:[#allocation12 + $0x78] sm:$0xff]
        %v4925 = vld [vmem:[#allocation12 + $0x80] sm:$0xff]
        %v4926 = vld [vmem:[#allocation12 + $0x88] sm:$0xff]
        %v4927 = vld [vmem:[#allocation12 + $0x90] sm:$0xff]
        %v4928 = vld [vmem:[#allocation12 + $0x98] sm:$0xff]
        %v4929 = vld [vmem:[#allocation12 + $0xa0] sm:$0xff]
        %v4930 = vld [vmem:[#allocation12 + $0xa8] sm:$0xff]
        %v4931 = vld [vmem:[#allocation12 + $0xb0] sm:$0xff]
        %v4932 = vld [vmem:[#allocation12 + $0xb8] sm:$0xff]
        %v4933 = vld [vmem:[#allocation12 + $0xc0] sm:$0xff]
        %v4934 = vld [vmem:[#allocation12 + $0xc8] sm:$0xff]
        %v4935 = vld [vmem:[#allocation12 + $0xd0] sm:$0xff]
        %v4936 = vld [vmem:[#allocation12 + $0xd8] sm:$0xff]
        %v4937 = vld [vmem:[#allocation12 + $0xe0] sm:$0xff]
        %v4938 = vld [vmem:[#allocation12 + $0xe8] sm:$0xff]
        %v4939 = vld [vmem:[#allocation12 + $0xf0] sm:$0xff]
        %v4940 = vld [vmem:[#allocation12 + $0xf8] sm:$0xff]
        %v4941 = vld [vmem:[#allocation12 + $0x100] sm:$0xff]
        %v4942 = vld [vmem:[#allocation12 + $0x108] sm:$0xff]
        %v4943 = vld [vmem:[#allocation12 + $0x110] sm:$0xff]
        %v4944 = vld [vmem:[#allocation12 + $0x118] sm:$0xff]
        %v4945 = vld [vmem:[#allocation12 + $0x120] sm:$0xff]
        %v4946 = vld [vmem:[#allocation12 + $0x128] sm:$0xff]
        %v4947 = vld [vmem:[#allocation12 + $0x130] sm:$0xff]
        %v4948 = vld [vmem:[#allocation12 + $0x138] sm:$0xff]
        %v4949 = vld [vmem:[#allocation12 + $0x140] sm:$0xff]
        %v4950 = vld [vmem:[#allocation12 + $0x148] sm:$0xff]
        %v4951 = vld [vmem:[#allocation12 + $0x150] sm:$0xff]
        %v4952 = vld [vmem:[#allocation12 + $0x158] sm:$0xff]
        %v4953 = vld [vmem:[#allocation12 + $0x160] sm:$0xff]
        %v4954 = vld [vmem:[#allocation12 + $0x168] sm:$0xff]
        %v4955 = vld [vmem:[#allocation12 + $0x170] sm:$0xff]
        %v4956 = vld [vmem:[#allocation12 + $0x178] sm:$0xff]
        %v4957 = vld [vmem:[#allocation12 + $0x180] sm:$0xff]
        %v4958 = vld [vmem:[#allocation12 + $0x188] sm:$0xff]
        %v4959 = vld [vmem:[#allocation12 + $0x190] sm:$0xff]
        %v4960 = vld [vmem:[#allocation12 + $0x198] sm:$0xff]
        %v4961 = vld [vmem:[#allocation12 + $0x1a0] sm:$0xff]
        %v4962 = vld [vmem:[#allocation12 + $0x1a8] sm:$0xff]
        %v4963 = vld [vmem:[#allocation12 + $0x1b0] sm:$0xff]
        %v4964 = vld [vmem:[#allocation12 + $0x1b8] sm:$0xff]
        %v4965 = vld [vmem:[#allocation12 + $0x1c0] sm:$0xff]
        %v4966 = vld [vmem:[#allocation12 + $0x1c8] sm:$0xff]
        %v4967 = vld [vmem:[#allocation12 + $0x1d0] sm:$0xff]
        %v4968 = vld [vmem:[#allocation12 + $0x1d8] sm:$0xff]
        %v4969 = vld [vmem:[#allocation12 + $0x1e0] sm:$0xff]
        %v4970 = vld [vmem:[#allocation12 + $0x1e8] sm:$0xff]
        %v4971 = vld [vmem:[#allocation12 + $0x1f0] sm:$0xff]
        %v4972 = vld [vmem:[#allocation12 + $0x1f8] sm:$0xff]
        %v5037 = vunpack.c.l.b16 %v4909
        %v5038 = vunpack.c.h.b16 %v4909
        %v5039 = vunpack.c.l.b16 %v4910
        %v5040 = vunpack.c.h.b16 %v4910
        %v5041 = vunpack.c.l.b16 %v4911
        %v5042 = vunpack.c.h.b16 %v4911
        %v5043 = vunpack.c.l.b16 %v4912
        %v5044 = vunpack.c.h.b16 %v4912
        %v5045 = vunpack.c.l.b16 %v4913
        %v5046 = vunpack.c.h.b16 %v4913
        %v5047 = vunpack.c.l.b16 %v4914
        %v5048 = vunpack.c.h.b16 %v4914
        %v5049 = vunpack.c.l.b16 %v4915
        %v5050 = vunpack.c.h.b16 %v4915
        %v5051 = vunpack.c.l.b16 %v4916
        %v5052 = vunpack.c.h.b16 %v4916
        %v5053 = vunpack.c.l.b16 %v4917
        %v5054 = vunpack.c.h.b16 %v4917
        %v5055 = vunpack.c.l.b16 %v4918
        %v5056 = vunpack.c.h.b16 %v4918
        %v5057 = vunpack.c.l.b16 %v4919
        %v5058 = vunpack.c.h.b16 %v4919
        %v5059 = vunpack.c.l.b16 %v4920
        %v5060 = vunpack.c.h.b16 %v4920
        %v5061 = vunpack.c.l.b16 %v4921
        %v5062 = vunpack.c.h.b16 %v4921
        %v5063 = vunpack.c.l.b16 %v4922
        %v5064 = vunpack.c.h.b16 %v4922
        %v5065 = vunpack.c.l.b16 %v4923
        %v5066 = vunpack.c.h.b16 %v4923
        %v5067 = vunpack.c.l.b16 %v4924
        %v5068 = vunpack.c.h.b16 %v4924
        %v5069 = vunpack.c.l.b16 %v4925
        %v5070 = vunpack.c.h.b16 %v4925
        %v5071 = vunpack.c.l.b16 %v4926
        %v5072 = vunpack.c.h.b16 %v4926
        %v5073 = vunpack.c.l.b16 %v4927
        %v5074 = vunpack.c.h.b16 %v4927
        %v5075 = vunpack.c.l.b16 %v4928
        %v5076 = vunpack.c.h.b16 %v4928
        %v5077 = vunpack.c.l.b16 %v4929
        %v5078 = vunpack.c.h.b16 %v4929
        %v5079 = vunpack.c.l.b16 %v4930
        %v5080 = vunpack.c.h.b16 %v4930
        %v5081 = vunpack.c.l.b16 %v4931
        %v5082 = vunpack.c.h.b16 %v4931
        %v5083 = vunpack.c.l.b16 %v4932
        %v5084 = vunpack.c.h.b16 %v4932
        %v5085 = vunpack.c.l.b16 %v4933
        %v5086 = vunpack.c.h.b16 %v4933
        %v5087 = vunpack.c.l.b16 %v4934
        %v5088 = vunpack.c.h.b16 %v4934
        %v5089 = vunpack.c.l.b16 %v4935
        %v5090 = vunpack.c.h.b16 %v4935
        %v5091 = vunpack.c.l.b16 %v4936
        %v5092 = vunpack.c.h.b16 %v4936
        %v5093 = vunpack.c.l.b16 %v4937
        %v5094 = vunpack.c.h.b16 %v4937
        %v5095 = vunpack.c.l.b16 %v4938
        %v5096 = vunpack.c.h.b16 %v4938
        %v5097 = vunpack.c.l.b16 %v4939
        %v5098 = vunpack.c.h.b16 %v4939
        %v5099 = vunpack.c.l.b16 %v4940
        %v5100 = vunpack.c.h.b16 %v4940
        %v5101 = vunpack.c.l.b16 %v4941
        %v5102 = vunpack.c.h.b16 %v4941
        %v5103 = vunpack.c.l.b16 %v4942
        %v5104 = vunpack.c.h.b16 %v4942
        %v5105 = vunpack.c.l.b16 %v4943
        %v5106 = vunpack.c.h.b16 %v4943
        %v5107 = vunpack.c.l.b16 %v4944
        %v5108 = vunpack.c.h.b16 %v4944
        %v5109 = vunpack.c.l.b16 %v4945
        %v5110 = vunpack.c.h.b16 %v4945
        %v5111 = vunpack.c.l.b16 %v4946
        %v5112 = vunpack.c.h.b16 %v4946
        %v5113 = vunpack.c.l.b16 %v4947
        %v5114 = vunpack.c.h.b16 %v4947
        %v5115 = vunpack.c.l.b16 %v4948
        %v5116 = vunpack.c.h.b16 %v4948
        %v5117 = vunpack.c.l.b16 %v4949
        %v5118 = vunpack.c.h.b16 %v4949
        %v5119 = vunpack.c.l.b16 %v4950
        %v5120 = vunpack.c.h.b16 %v4950
        %v5121 = vunpack.c.l.b16 %v4951
        %v5122 = vunpack.c.h.b16 %v4951
        %v5123 = vunpack.c.l.b16 %v4952
        %v5124 = vunpack.c.h.b16 %v4952
        %v5125 = vunpack.c.l.b16 %v4953
        %v5126 = vunpack.c.h.b16 %v4953
        %v5127 = vunpack.c.l.b16 %v4954
        %v5128 = vunpack.c.h.b16 %v4954
        %v5129 = vunpack.c.l.b16 %v4955
        %v5130 = vunpack.c.h.b16 %v4955
        %v5131 = vunpack.c.l.b16 %v4956
        %v5132 = vunpack.c.h.b16 %v4956
        %v5133 = vunpack.c.l.b16 %v4957
        %v5134 = vunpack.c.h.b16 %v4957
        %v5135 = vunpack.c.l.b16 %v4958
        %v5136 = vunpack.c.h.b16 %v4958
        %v5137 = vunpack.c.l.b16 %v4959
        %v5138 = vunpack.c.h.b16 %v4959
        %v5139 = vunpack.c.l.b16 %v4960
        %v5140 = vunpack.c.h.b16 %v4960
        %v5141 = vunpack.c.l.b16 %v4961
        %v5142 = vunpack.c.h.b16 %v4961
        %v5143 = vunpack.c.l.b16 %v4962
        %v5144 = vunpack.c.h.b16 %v4962
        %v5145 = vunpack.c.l.b16 %v4963
        %v5146 = vunpack.c.h.b16 %v4963
        %v5147 = vunpack.c.l.b16 %v4964
        %v5148 = vunpack.c.h.b16 %v4964
        %v5149 = vunpack.c.l.b16 %v4965
        %v5150 = vunpack.c.h.b16 %v4965
        %v5151 = vunpack.c.l.b16 %v4966
        %v5152 = vunpack.c.h.b16 %v4966
        %v5153 = vunpack.c.l.b16 %v4967
        %v5154 = vunpack.c.h.b16 %v4967
        %v5155 = vunpack.c.l.b16 %v4968
        %v5156 = vunpack.c.h.b16 %v4968
        %v5157 = vunpack.c.l.b16 %v4969
        %v5158 = vunpack.c.h.b16 %v4969
        %v5159 = vunpack.c.l.b16 %v4970
        %v5160 = vunpack.c.h.b16 %v4970
        %v5161 = vunpack.c.l.b16 %v4971
        %v5162 = vunpack.c.h.b16 %v4971
        %v5163 = vunpack.c.l.b16 %v4972
        %v5164 = vunpack.c.h.b16 %v4972
        %v5165 = vpack.c.b16 %v5045, %v5037
        %v5166 = vpack.c.b16 %v5046, %v5038
        %v5167 = vpack.c.b16 %v5047, %v5039
        %v5168 = vpack.c.b16 %v5048, %v5040
        %v5169 = vpack.c.b16 %v5049, %v5041
        %v5170 = vpack.c.b16 %v5050, %v5042
        %v5171 = vpack.c.b16 %v5051, %v5043
        %v5172 = vpack.c.b16 %v5052, %v5044
        %v5173 = vpack.c.b16 %v5061, %v5053
        %v5174 = vpack.c.b16 %v5062, %v5054
        %v5175 = vpack.c.b16 %v5063, %v5055
        %v5176 = vpack.c.b16 %v5064, %v5056
        %v5177 = vpack.c.b16 %v5065, %v5057
        %v5178 = vpack.c.b16 %v5066, %v5058
        %v5179 = vpack.c.b16 %v5067, %v5059
        %v5180 = vpack.c.b16 %v5068, %v5060
        %v5181 = vpack.c.b16 %v5077, %v5069
        %v5182 = vpack.c.b16 %v5078, %v5070
        %v5183 = vpack.c.b16 %v5079, %v5071
        %v5184 = vpack.c.b16 %v5080, %v5072
        %v5185 = vpack.c.b16 %v5081, %v5073
        %v5186 = vpack.c.b16 %v5082, %v5074
        %v5187 = vpack.c.b16 %v5083, %v5075
        %v5188 = vpack.c.b16 %v5084, %v5076
        %v5189 = vpack.c.b16 %v5093, %v5085
        %v5190 = vpack.c.b16 %v5094, %v5086
        %v5191 = vpack.c.b16 %v5095, %v5087
        %v5192 = vpack.c.b16 %v5096, %v5088
        %v5193 = vpack.c.b16 %v5097, %v5089
        %v5194 = vpack.c.b16 %v5098, %v5090
        %v5195 = vpack.c.b16 %v5099, %v5091
        %v5196 = vpack.c.b16 %v5100, %v5092
        %v5197 = vpack.c.b16 %v5109, %v5101
        %v5198 = vpack.c.b16 %v5110, %v5102
        %v5199 = vpack.c.b16 %v5111, %v5103
        %v5200 = vpack.c.b16 %v5112, %v5104
        %v5201 = vpack.c.b16 %v5113, %v5105
        %v5202 = vpack.c.b16 %v5114, %v5106
        %v5203 = vpack.c.b16 %v5115, %v5107
        %v5204 = vpack.c.b16 %v5116, %v5108
        %v5205 = vpack.c.b16 %v5125, %v5117
        %v5206 = vpack.c.b16 %v5126, %v5118
        %v5207 = vpack.c.b16 %v5127, %v5119
        %v5208 = vpack.c.b16 %v5128, %v5120
        %v5209 = vpack.c.b16 %v5129, %v5121
        %v5210 = vpack.c.b16 %v5130, %v5122
        %v5211 = vpack.c.b16 %v5131, %v5123
        %v5212 = vpack.c.b16 %v5132, %v5124
        %v5213 = vpack.c.b16 %v5141, %v5133
        %v5214 = vpack.c.b16 %v5142, %v5134
        %v5215 = vpack.c.b16 %v5143, %v5135
        %v5216 = vpack.c.b16 %v5144, %v5136
        %v5217 = vpack.c.b16 %v5145, %v5137
        %v5218 = vpack.c.b16 %v5146, %v5138
        %v5219 = vpack.c.b16 %v5147, %v5139
        %v5220 = vpack.c.b16 %v5148, %v5140
        %v5221 = vpack.c.b16 %v5157, %v5149
        %v5222 = vpack.c.b16 %v5158, %v5150
        %v5223 = vpack.c.b16 %v5159, %v5151
        %v5224 = vpack.c.b16 %v5160, %v5152
        %v5225 = vpack.c.b16 %v5161, %v5153
        %v5226 = vpack.c.b16 %v5162, %v5154
        %v5227 = vpack.c.b16 %v5163, %v5155
        %v5228 = vpack.c.b16 %v5164, %v5156
        %5293 = vmatprep.subr.bf16.mxu0 %v5166
        %5294 = vmatpush1.bf16.msra.mxu0 %v5165
        %5295 = vmatprep.subr.bf16.mxu0 %v5174
        %5296 = vmatpush1.bf16.msra.mxu0 %v5173
        %5297 = vmatprep.subr.bf16.mxu0 %v5182
        %5298 = vmatpush1.bf16.msra.mxu0 %v5181
        %5299 = vmatprep.subr.bf16.mxu0 %v5190
        %5300 = vmatpush1.bf16.msra.mxu0 %v5189
        %5301 = vmatprep.subr.bf16.mxu0 %v5198
        %5302 = vmatpush1.bf16.msra.mxu0 %v5197
        %5303 = vmatprep.subr.bf16.mxu0 %v5206
        %5304 = vmatpush1.bf16.msra.mxu0 %v5205
        %5305 = vmatprep.subr.bf16.mxu0 %v5214
        %5306 = vmatpush1.bf16.msra.mxu0 %v5213
        %5307 = vmatprep.subr.bf16.mxu0 %v5222
        %5308 = vmatpush1.bf16.msra.mxu0 %v5221
        %5309 = vmatprep.subr.bf16.mxu0 0
        %5310 = vmatpush1.bf16.msra.mxu0 0
        %5311 = vmatprep.subr.bf16.mxu0 0
        %5312 = vmatpush1.bf16.msra.mxu0 0
        %5313 = vmatprep.subr.bf16.mxu0 0
        %5314 = vmatpush1.bf16.msra.mxu0 0
        %5315 = vmatprep.subr.bf16.mxu0 0
        %5316 = vmatpush1.bf16.msra.mxu0 0
        %5317 = vmatprep.subr.bf16.mxu0 0
        %5318 = vmatpush1.bf16.msra.mxu0 0
        %5319 = vmatprep.subr.bf16.mxu0 0
        %5320 = vmatpush1.bf16.msra.mxu0 0
        %5321 = vmatprep.subr.bf16.mxu0 0
        %5322 = vmatpush1.bf16.msra.mxu0 0
        %5323 = vmatprep.subr.bf16.mxu0 0
        %5324 = vmatpush1.bf16.msra.mxu0 0
        %5325 = vmatprep.mubr.bf16.mxu0 0
        %5326 = vmatmul.mubr.bf16.gmra.mrb[0].mxu0 %v4893
        %v5327 = vpop.f32.mrb[0].mxu0
        %v5328 = vadd.f32 0.0, %v5327
        %v5329 = vpop.f32.mrb[0].mxu0
        %v5330 = vadd.f32 0.0, %v5329
        %v5331 = vpop.f32.mrb[0].mxu0
        %v5332 = vadd.f32 0.0, %v5331
        %v5333 = vpop.f32.mrb[0].mxu0
        %v5334 = vadd.f32 0.0, %v5333
        %5335 = vmatprep.mubr.bf16.mxu0 0
        %5336 = vmatmul.mubr.bf16.gmra.mrb[0].mxu0 %v4894
        %v5337 = vpop.f32.mrb[0].mxu0
        %v5338 = vadd.f32 0.0, %v5337
        %v5339 = vpop.f32.mrb[0].mxu0
        %v5340 = vadd.f32 0.0, %v5339
        %v5341 = vpop.f32.mrb[0].mxu0
        %v5342 = vadd.f32 0.0, %v5341
        %v5343 = vpop.f32.mrb[0].mxu0
        %v5344 = vadd.f32 0.0, %v5343
        %5345 = vmatprep.mubr.bf16.mxu0 0
        %5346 = vmatmul.mubr.bf16.gmra.mrb[0].mxu0 %v4895
        %v5347 = vpop.f32.mrb[0].mxu0
        %v5348 = vadd.f32 0.0, %v5347
        %v5349 = vpop.f32.mrb[0].mxu0
        %v5350 = vadd.f32 0.0, %v5349
        %v5351 = vpop.f32.mrb[0].mxu0
        %v5352 = vadd.f32 0.0, %v5351
        %v5353 = vpop.f32.mrb[0].mxu0
        %v5354 = vadd.f32 0.0, %v5353
        %5355 = vmatprep.mubr.bf16.mxu0 0
        %5356 = vmatmul.mubr.bf16.gmra.mrb[0].mxu0 %v4896
        %v5357 = vpop.f32.mrb[0].mxu0
        %v5358 = vadd.f32 0.0, %v5357
        %v5359 = vpop.f32.mrb[0].mxu0
        %v5360 = vadd.f32 0.0, %v5359
        %v5361 = vpop.f32.mrb[0].mxu0
        %v5362 = vadd.f32 0.0, %v5361
        %v5363 = vpop.f32.mrb[0].mxu0
        %v5364 = vadd.f32 0.0, %v5363
        %5365 = vmatprep.mubr.bf16.mxu0 0
        %5366 = vmatmul.mubr.bf16.gmra.mrb[0].mxu0 %v4897
        %v5367 = vpop.f32.mrb[0].mxu0
        %v5368 = vadd.f32 0.0, %v5367
        %v5369 = vpop.f32.mrb[0].mxu0
        %v5370 = vadd.f32 0.0, %v5369
        %v5371 = vpop.f32.mrb[0].mxu0
        %v5372 = vadd.f32 0.0, %v5371
        %v5373 = vpop.f32.mrb[0].mxu0
        %v5374 = vadd.f32 0.0, %v5373
        %5375 = vmatprep.mubr.bf16.mxu0 0
        %5376 = vmatmul.mubr.bf16.gmra.mrb[0].mxu0 %v4898
        %v5377 = vpop.f32.mrb[0].mxu0
        %v5378 = vadd.f32 0.0, %v5377
        %v5379 = vpop.f32.mrb[0].mxu0
        %v5380 = vadd.f32 0.0, %v5379
        %v5381 = vpop.f32.mrb[0].mxu0
        %v5382 = vadd.f32 0.0, %v5381
        %v5383 = vpop.f32.mrb[0].mxu0
        %v5384 = vadd.f32 0.0, %v5383
        %5385 = vmatprep.mubr.bf16.mxu0 0
        %5386 = vmatmul.mubr.bf16.gmra.mrb[0].mxu0 %v4899
        %v5387 = vpop.f32.mrb[0].mxu0
        %v5388 = vadd.f32 0.0, %v5387
        %v5389 = vpop.f32.mrb[0].mxu0
        %v5390 = vadd.f32 0.0, %v5389
        %v5391 = vpop.f32.mrb[0].mxu0
        %v5392 = vadd.f32 0.0, %v5391
        %v5393 = vpop.f32.mrb[0].mxu0
        %v5394 = vadd.f32 0.0, %v5393
        %5395 = vmatprep.mubr.bf16.mxu0 0
        %5396 = vmatmul.mubr.bf16.gmra.mrb[0].mxu0 %v4900
        %v5397 = vpop.f32.mrb[0].mxu0
        %v5398 = vadd.f32 0.0, %v5397
        %v5399 = vpop.f32.mrb[0].mxu0
        %v5400 = vadd.f32 0.0, %v5399
        %v5401 = vpop.f32.mrb[0].mxu0
        %v5402 = vadd.f32 0.0, %v5401
        %v5403 = vpop.f32.mrb[0].mxu0
        %v5404 = vadd.f32 0.0, %v5403
        %5405 = vmatprep.mubr.bf16.mxu0 0
        %5406 = vmatmul.mubr.bf16.gmra.mrb[0].mxu0 %v4901
        %v5407 = vpop.f32.mrb[0].mxu0
        %v5408 = vadd.f32 0.0, %v5407
        %v5409 = vpop.f32.mrb[0].mxu0
        %v5410 = vadd.f32 0.0, %v5409
        %v5411 = vpop.f32.mrb[0].mxu0
        %v5412 = vadd.f32 0.0, %v5411
        %v5413 = vpop.f32.mrb[0].mxu0
        %v5414 = vadd.f32 0.0, %v5413
        %5415 = vmatprep.mubr.bf16.mxu0 0
        %5416 = vmatmul.mubr.bf16.gmra.mrb[0].mxu0 %v4902
        %v5417 = vpop.f32.mrb[0].mxu0
        %v5418 = vadd.f32 0.0, %v5417
        %v5419 = vpop.f32.mrb[0].mxu0
        %v5420 = vadd.f32 0.0, %v5419
        %v5421 = vpop.f32.mrb[0].mxu0
        %v5422 = vadd.f32 0.0, %v5421
        %v5423 = vpop.f32.mrb[0].mxu0
        %v5424 = vadd.f32 0.0, %v5423
        %5425 = vmatprep.mubr.bf16.mxu0 0
        %5426 = vmatmul.mubr.bf16.gmra.mrb[0].mxu0 %v4903
        %v5427 = vpop.f32.mrb[0].mxu0
        %v5428 = vadd.f32 0.0, %v5427
        %v5429 = vpop.f32.mrb[0].mxu0
        %v5430 = vadd.f32 0.0, %v5429
        %v5431 = vpop.f32.mrb[0].mxu0
        %v5432 = vadd.f32 0.0, %v5431
        %v5433 = vpop.f32.mrb[0].mxu0
        %v5434 = vadd.f32 0.0, %v5433
        %5435 = vmatprep.mubr.bf16.mxu0 0
        %5436 = vmatmul.mubr.bf16.gmra.mrb[0].mxu0 %v4904
        %v5437 = vpop.f32.mrb[0].mxu0
        %v5438 = vadd.f32 0.0, %v5437
        %v5439 = vpop.f32.mrb[0].mxu0
        %v5440 = vadd.f32 0.0, %v5439
        %v5441 = vpop.f32.mrb[0].mxu0
        %v5442 = vadd.f32 0.0, %v5441
        %v5443 = vpop.f32.mrb[0].mxu0
        %v5444 = vadd.f32 0.0, %v5443
        %5445 = vmatprep.mubr.bf16.mxu0 0
        %5446 = vmatmul.mubr.bf16.gmra.mrb[0].mxu0 %v4905
        %v5447 = vpop.f32.mrb[0].mxu0
        %v5448 = vadd.f32 0.0, %v5447
        %v5449 = vpop.f32.mrb[0].mxu0
        %v5450 = vadd.f32 0.0, %v5449
        %v5451 = vpop.f32.mrb[0].mxu0
        %v5452 = vadd.f32 0.0, %v5451
        %v5453 = vpop.f32.mrb[0].mxu0
        %v5454 = vadd.f32 0.0, %v5453
        %5455 = vmatprep.mubr.bf16.mxu0 0
        %5456 = vmatmul.mubr.bf16.gmra.mrb[0].mxu0 %v4906
        %v5457 = vpop.f32.mrb[0].mxu0
        %v5458 = vadd.f32 0.0, %v5457
        %v5459 = vpop.f32.mrb[0].mxu0
        %v5460 = vadd.f32 0.0, %v5459
        %v5461 = vpop.f32.mrb[0].mxu0
        %v5462 = vadd.f32 0.0, %v5461
        %v5463 = vpop.f32.mrb[0].mxu0
        %v5464 = vadd.f32 0.0, %v5463
        %5465 = vmatprep.mubr.bf16.mxu0 0
        %5466 = vmatmul.mubr.bf16.gmra.mrb[0].mxu0 %v4907
        %v5467 = vpop.f32.mrb[0].mxu0
        %v5468 = vadd.f32 0.0, %v5467
        %v5469 = vpop.f32.mrb[0].mxu0
        %v5470 = vadd.f32 0.0, %v5469
        %v5471 = vpop.f32.mrb[0].mxu0
        %v5472 = vadd.f32 0.0, %v5471
        %v5473 = vpop.f32.mrb[0].mxu0
        %v5474 = vadd.f32 0.0, %v5473
        %5475 = vmatprep.mubr.bf16.mxu0 0
        %5476 = vmatmul.mubr.bf16.gmra.mrb[0].mxu0 %v4908
        %v5477 = vpop.f32.mrb[0].mxu0
        %v5478 = vadd.f32 0.0, %v5477
        %v5479 = vpop.f32.mrb[0].mxu0
        %v5480 = vadd.f32 0.0, %v5479
        %v5481 = vpop.f32.mrb[0].mxu0
        %v5482 = vadd.f32 0.0, %v5481
        %v5483 = vpop.f32.mrb[0].mxu0
        %v5484 = vadd.f32 0.0, %v5483
        %5485 = vdwg.mxu0
        %5486 = vmatprep.subr.bf16.mxu0 %v5168
        %5487 = vmatpush1.bf16.msra.mxu0 %v5167
        %5488 = vmatprep.subr.bf16.mxu0 %v5176
        %5489 = vmatpush1.bf16.msra.mxu0 %v5175
        %5490 = vmatprep.subr.bf16.mxu0 %v5184
        %5491 = vmatpush1.bf16.msra.mxu0 %v5183
        %5492 = vmatprep.subr.bf16.mxu0 %v5192
        %5493 = vmatpush1.bf16.msra.mxu0 %v5191
        %5494 = vmatprep.subr.bf16.mxu0 %v5200
        %5495 = vmatpush1.bf16.msra.mxu0 %v5199
        %5496 = vmatprep.subr.bf16.mxu0 %v5208
        %5497 = vmatpush1.bf16.msra.mxu0 %v5207
        %5498 = vmatprep.subr.bf16.mxu0 %v5216
        %5499 = vmatpush1.bf16.msra.mxu0 %v5215
        %5500 = vmatprep.subr.bf16.mxu0 %v5224
        %5501 = vmatpush1.bf16.msra.mxu0 %v5223
        %5502 = vmatprep.subr.bf16.mxu0 0
        %5503 = vmatpush1.bf16.msra.mxu0 0
        %5504 = vmatprep.subr.bf16.mxu0 0
        %5505 = vmatpush1.bf16.msra.mxu0 0
        %5506 = vmatprep.subr.bf16.mxu0 0
        %5507 = vmatpush1.bf16.msra.mxu0 0
        %5508 = vmatprep.subr.bf16.mxu0 0
        %5509 = vmatpush1.bf16.msra.mxu0 0
        %5510 = vmatprep.subr.bf16.mxu0 0
        %5511 = vmatpush1.bf16.msra.mxu0 0
        %5512 = vmatprep.subr.bf16.mxu0 0
        %5513 = vmatpush1.bf16.msra.mxu0 0
        %5514 = vmatprep.subr.bf16.mxu0 0
        %5515 = vmatpush1.bf16.msra.mxu0 0
        %5516 = vmatprep.subr.bf16.mxu0 0
        %5517 = vmatpush1.bf16.msra.mxu0 0
        %5518 = vmatprep.mubr.bf16.mxu0 0
        %5519 = vmatmul.mubr.bf16.gmra.mrb[0].mxu0 %v4893
        %v5520 = vpop.f32.mrb[0].mxu0
        %v5521 = vadd.f32 0.0, %v5520
        %v5522 = vpop.f32.mrb[0].mxu0
        %v5523 = vadd.f32 0.0, %v5522
        %v5524 = vpop.f32.mrb[0].mxu0
        %v5525 = vadd.f32 0.0, %v5524
        %v5526 = vpop.f32.mrb[0].mxu0
        %v5527 = vadd.f32 0.0, %v5526
        %5528 = vmatprep.mubr.bf16.mxu0 0
        %5529 = vmatmul.mubr.bf16.gmra.mrb[0].mxu0 %v4894
        %v5530 = vpop.f32.mrb[0].mxu0
        %v5531 = vadd.f32 0.0, %v5530
        %v5532 = vpop.f32.mrb[0].mxu0
        %v5533 = vadd.f32 0.0, %v5532
        %v5534 = vpop.f32.mrb[0].mxu0
        %v5535 = vadd.f32 0.0, %v5534
        %v5536 = vpop.f32.mrb[0].mxu0
        %v5537 = vadd.f32 0.0, %v5536
        %5538 = vmatprep.mubr.bf16.mxu0 0
        %5539 = vmatmul.mubr.bf16.gmra.mrb[0].mxu0 %v4895
        %v5540 = vpop.f32.mrb[0].mxu0
        %v5541 = vadd.f32 0.0, %v5540
        %v5542 = vpop.f32.mrb[0].mxu0
        %v5543 = vadd.f32 0.0, %v5542
        %v5544 = vpop.f32.mrb[0].mxu0
        %v5545 = vadd.f32 0.0, %v5544
        %v5546 = vpop.f32.mrb[0].mxu0
        %v5547 = vadd.f32 0.0, %v5546
        %5548 = vmatprep.mubr.bf16.mxu0 0
        %5549 = vmatmul.mubr.bf16.gmra.mrb[0].mxu0 %v4896
        %v5550 = vpop.f32.mrb[0].mxu0
        %v5551 = vadd.f32 0.0, %v5550
        %v5552 = vpop.f32.mrb[0].mxu0
        %v5553 = vadd.f32 0.0, %v5552
        %v5554 = vpop.f32.mrb[0].mxu0
        %v5555 = vadd.f32 0.0, %v5554
        %v5556 = vpop.f32.mrb[0].mxu0
        %v5557 = vadd.f32 0.0, %v5556
        %5558 = vmatprep.mubr.bf16.mxu0 0
        %5559 = vmatmul.mubr.bf16.gmra.mrb[0].mxu0 %v4897
        %v5560 = vpop.f32.mrb[0].mxu0
        %v5561 = vadd.f32 0.0, %v5560
        %v5562 = vpop.f32.mrb[0].mxu0
        %v5563 = vadd.f32 0.0, %v5562
        %v5564 = vpop.f32.mrb[0].mxu0
        %v5565 = vadd.f32 0.0, %v5564
        %v5566 = vpop.f32.mrb[0].mxu0
        %v5567 = vadd.f32 0.0, %v5566
        %5568 = vmatprep.mubr.bf16.mxu0 0
        %5569 = vmatmul.mubr.bf16.gmra.mrb[0].mxu0 %v4898
        %v5570 = vpop.f32.mrb[0].mxu0
        %v5571 = vadd.f32 0.0, %v5570
        %v5572 = vpop.f32.mrb[0].mxu0
        %v5573 = vadd.f32 0.0, %v5572
        %v5574 = vpop.f32.mrb[0].mxu0
        %v5575 = vadd.f32 0.0, %v5574
        %v5576 = vpop.f32.mrb[0].mxu0
        %v5577 = vadd.f32 0.0, %v5576
        %5578 = vmatprep.mubr.bf16.mxu0 0
        %5579 = vmatmul.mubr.bf16.gmra.mrb[0].mxu0 %v4899
        %v5580 = vpop.f32.mrb[0].mxu0
        %v5581 = vadd.f32 0.0, %v5580
        %v5582 = vpop.f32.mrb[0].mxu0
        %v5583 = vadd.f32 0.0, %v5582
        %v5584 = vpop.f32.mrb[0].mxu0
        %v5585 = vadd.f32 0.0, %v5584
        %v5586 = vpop.f32.mrb[0].mxu0
        %v5587 = vadd.f32 0.0, %v5586
        %5588 = vmatprep.mubr.bf16.mxu0 0
        %5589 = vmatmul.mubr.bf16.gmra.mrb[0].mxu0 %v4900
        %v5590 = vpop.f32.mrb[0].mxu0
        %v5591 = vadd.f32 0.0, %v5590
        %v5592 = vpop.f32.mrb[0].mxu0
        %v5593 = vadd.f32 0.0, %v5592
        %v5594 = vpop.f32.mrb[0].mxu0
        %v5595 = vadd.f32 0.0, %v5594
        %v5596 = vpop.f32.mrb[0].mxu0
        %v5597 = vadd.f32 0.0, %v5596
        %5598 = vmatprep.mubr.bf16.mxu0 0
        %5599 = vmatmul.mubr.bf16.gmra.mrb[0].mxu0 %v4901
        %v5600 = vpop.f32.mrb[0].mxu0
        %v5601 = vadd.f32 0.0, %v5600
        %v5602 = vpop.f32.mrb[0].mxu0
        %v5603 = vadd.f32 0.0, %v5602
        %v5604 = vpop.f32.mrb[0].mxu0
        %v5605 = vadd.f32 0.0, %v5604
        %v5606 = vpop.f32.mrb[0].mxu0
        %v5607 = vadd.f32 0.0, %v5606
        %5608 = vmatprep.mubr.bf16.mxu0 0
        %5609 = vmatmul.mubr.bf16.gmra.mrb[0].mxu0 %v4902
        %v5610 = vpop.f32.mrb[0].mxu0
        %v5611 = vadd.f32 0.0, %v5610
        %v5612 = vpop.f32.mrb[0].mxu0
        %v5613 = vadd.f32 0.0, %v5612
        %v5614 = vpop.f32.mrb[0].mxu0
        %v5615 = vadd.f32 0.0, %v5614
        %v5616 = vpop.f32.mrb[0].mxu0
        %v5617 = vadd.f32 0.0, %v5616
        %5618 = vmatprep.mubr.bf16.mxu0 0
        %5619 = vmatmul.mubr.bf16.gmra.mrb[0].mxu0 %v4903
        %v5620 = vpop.f32.mrb[0].mxu0
        %v5621 = vadd.f32 0.0, %v5620
        %v5622 = vpop.f32.mrb[0].mxu0
        %v5623 = vadd.f32 0.0, %v5622
        %v5624 = vpop.f32.mrb[0].mxu0
        %v5625 = vadd.f32 0.0, %v5624
        %v5626 = vpop.f32.mrb[0].mxu0
        %v5627 = vadd.f32 0.0, %v5626
        %5628 = vmatprep.mubr.bf16.mxu0 0
        %5629 = vmatmul.mubr.bf16.gmra.mrb[0].mxu0 %v4904
        %v5630 = vpop.f32.mrb[0].mxu0
        %v5631 = vadd.f32 0.0, %v5630
        %v5632 = vpop.f32.mrb[0].mxu0
        %v5633 = vadd.f32 0.0, %v5632
        %v5634 = vpop.f32.mrb[0].mxu0
        %v5635 = vadd.f32 0.0, %v5634
        %v5636 = vpop.f32.mrb[0].mxu0
        %v5637 = vadd.f32 0.0, %v5636
        %5638 = vmatprep.mubr.bf16.mxu0 0
        %5639 = vmatmul.mubr.bf16.gmra.mrb[0].mxu0 %v4905
        %v5640 = vpop.f32.mrb[0].mxu0
        %v5641 = vadd.f32 0.0, %v5640
        %v5642 = vpop.f32.mrb[0].mxu0
        %v5643 = vadd.f32 0.0, %v5642
        %v5644 = vpop.f32.mrb[0].mxu0
        %v5645 = vadd.f32 0.0, %v5644
        %v5646 = vpop.f32.mrb[0].mxu0
        %v5647 = vadd.f32 0.0, %v5646
        %5648 = vmatprep.mubr.bf16.mxu0 0
        %5649 = vmatmul.mubr.bf16.gmra.mrb[0].mxu0 %v4906
        %v5650 = vpop.f32.mrb[0].mxu0
        %v5651 = vadd.f32 0.0, %v5650
        %v5652 = vpop.f32.mrb[0].mxu0
        %v5653 = vadd.f32 0.0, %v5652
        %v5654 = vpop.f32.mrb[0].mxu0
        %v5655 = vadd.f32 0.0, %v5654
        %v5656 = vpop.f32.mrb[0].mxu0
        %v5657 = vadd.f32 0.0, %v5656
        %5658 = vmatprep.mubr.bf16.mxu0 0
        %5659 = vmatmul.mubr.bf16.gmra.mrb[0].mxu0 %v4907
        %v5660 = vpop.f32.mrb[0].mxu0
        %v5661 = vadd.f32 0.0, %v5660
        %v5662 = vpop.f32.mrb[0].mxu0
        %v5663 = vadd.f32 0.0, %v5662
        %v5664 = vpop.f32.mrb[0].mxu0
        %v5665 = vadd.f32 0.0, %v5664
        %v5666 = vpop.f32.mrb[0].mxu0
        %v5667 = vadd.f32 0.0, %v5666
        %5668 = vmatprep.mubr.bf16.mxu0 0
        %5669 = vmatmul.mubr.bf16.gmra.mrb[0].mxu0 %v4908
        %v5670 = vpop.f32.mrb[0].mxu0
        %v5671 = vadd.f32 0.0, %v5670
        %v5672 = vpop.f32.mrb[0].mxu0
        %v5673 = vadd.f32 0.0, %v5672
        %v5674 = vpop.f32.mrb[0].mxu0
        %v5675 = vadd.f32 0.0, %v5674
        %v5676 = vpop.f32.mrb[0].mxu0
        %v5677 = vadd.f32 0.0, %v5676
        %5678 = vdwg.mxu0
        %5679 = vmatprep.subr.bf16.mxu0 %v5170
        %5680 = vmatpush1.bf16.msra.mxu0 %v5169
        %5681 = vmatprep.subr.bf16.mxu0 %v5178
        %5682 = vmatpush1.bf16.msra.mxu0 %v5177
        %5683 = vmatprep.subr.bf16.mxu0 %v5186
        %5684 = vmatpush1.bf16.msra.mxu0 %v5185
        %5685 = vmatprep.subr.bf16.mxu0 %v5194
        %5686 = vmatpush1.bf16.msra.mxu0 %v5193
        %5687 = vmatprep.subr.bf16.mxu0 %v5202
        %5688 = vmatpush1.bf16.msra.mxu0 %v5201
        %5689 = vmatprep.subr.bf16.mxu0 %v5210
        %5690 = vmatpush1.bf16.msra.mxu0 %v5209
        %5691 = vmatprep.subr.bf16.mxu0 %v5218
        %5692 = vmatpush1.bf16.msra.mxu0 %v5217
        %5693 = vmatprep.subr.bf16.mxu0 %v5226
        %5694 = vmatpush1.bf16.msra.mxu0 %v5225
        %5695 = vmatprep.subr.bf16.mxu0 0
        %5696 = vmatpush1.bf16.msra.mxu0 0
        %5697 = vmatprep.subr.bf16.mxu0 0
        %5698 = vmatpush1.bf16.msra.mxu0 0
        %5699 = vmatprep.subr.bf16.mxu0 0
        %5700 = vmatpush1.bf16.msra.mxu0 0
        %5701 = vmatprep.subr.bf16.mxu0 0
        %5702 = vmatpush1.bf16.msra.mxu0 0
        %5703 = vmatprep.subr.bf16.mxu0 0
        %5704 = vmatpush1.bf16.msra.mxu0 0
        %5705 = vmatprep.subr.bf16.mxu0 0
        %5706 = vmatpush1.bf16.msra.mxu0 0
        %5707 = vmatprep.subr.bf16.mxu0 0
        %5708 = vmatpush1.bf16.msra.mxu0 0
        %5709 = vmatprep.subr.bf16.mxu0 0
        %5710 = vmatpush1.bf16.msra.mxu0 0
        %5711 = vmatprep.mubr.bf16.mxu0 0
        %5712 = vmatmul.mubr.bf16.gmra.mrb[0].mxu0 %v4893
        %v5713 = vpop.f32.mrb[0].mxu0
        %v5714 = vadd.f32 0.0, %v5713
        %v5715 = vpop.f32.mrb[0].mxu0
        %v5716 = vadd.f32 0.0, %v5715
        %v5717 = vpop.f32.mrb[0].mxu0
        %v5718 = vadd.f32 0.0, %v5717
        %v5719 = vpop.f32.mrb[0].mxu0
        %v5720 = vadd.f32 0.0, %v5719
        %5721 = vmatprep.mubr.bf16.mxu0 0
        %5722 = vmatmul.mubr.bf16.gmra.mrb[0].mxu0 %v4894
        %v5723 = vpop.f32.mrb[0].mxu0
        %v5724 = vadd.f32 0.0, %v5723
        %v5725 = vpop.f32.mrb[0].mxu0
        %v5726 = vadd.f32 0.0, %v5725
        %v5727 = vpop.f32.mrb[0].mxu0
        %v5728 = vadd.f32 0.0, %v5727
        %v5729 = vpop.f32.mrb[0].mxu0
        %v5730 = vadd.f32 0.0, %v5729
        %5731 = vmatprep.mubr.bf16.mxu0 0
        %5732 = vmatmul.mubr.bf16.gmra.mrb[0].mxu0 %v4895
        %v5733 = vpop.f32.mrb[0].mxu0
        %v5734 = vadd.f32 0.0, %v5733
        %v5735 = vpop.f32.mrb[0].mxu0
        %v5736 = vadd.f32 0.0, %v5735
        %v5737 = vpop.f32.mrb[0].mxu0
        %v5738 = vadd.f32 0.0, %v5737
        %v5739 = vpop.f32.mrb[0].mxu0
        %v5740 = vadd.f32 0.0, %v5739
        %5741 = vmatprep.mubr.bf16.mxu0 0
        %5742 = vmatmul.mubr.bf16.gmra.mrb[0].mxu0 %v4896
        %v5743 = vpop.f32.mrb[0].mxu0
        %v5744 = vadd.f32 0.0, %v5743
        %v5745 = vpop.f32.mrb[0].mxu0
        %v5746 = vadd.f32 0.0, %v5745
        %v5747 = vpop.f32.mrb[0].mxu0
        %v5748 = vadd.f32 0.0, %v5747
        %v5749 = vpop.f32.mrb[0].mxu0
        %v5750 = vadd.f32 0.0, %v5749
        %5751 = vmatprep.mubr.bf16.mxu0 0
        %5752 = vmatmul.mubr.bf16.gmra.mrb[0].mxu0 %v4897
        %v5753 = vpop.f32.mrb[0].mxu0
        %v5754 = vadd.f32 0.0, %v5753
        %v5755 = vpop.f32.mrb[0].mxu0
        %v5756 = vadd.f32 0.0, %v5755
        %v5757 = vpop.f32.mrb[0].mxu0
        %v5758 = vadd.f32 0.0, %v5757
        %v5759 = vpop.f32.mrb[0].mxu0
        %v5760 = vadd.f32 0.0, %v5759
        %5761 = vmatprep.mubr.bf16.mxu0 0
        %5762 = vmatmul.mubr.bf16.gmra.mrb[0].mxu0 %v4898
        %v5763 = vpop.f32.mrb[0].mxu0
        %v5764 = vadd.f32 0.0, %v5763
        %v5765 = vpop.f32.mrb[0].mxu0
        %v5766 = vadd.f32 0.0, %v5765
        %v5767 = vpop.f32.mrb[0].mxu0
        %v5768 = vadd.f32 0.0, %v5767
        %v5769 = vpop.f32.mrb[0].mxu0
        %v5770 = vadd.f32 0.0, %v5769
        %5771 = vmatprep.mubr.bf16.mxu0 0
        %5772 = vmatmul.mubr.bf16.gmra.mrb[0].mxu0 %v4899
        %v5773 = vpop.f32.mrb[0].mxu0
        %v5774 = vadd.f32 0.0, %v5773
        %v5775 = vpop.f32.mrb[0].mxu0
        %v5776 = vadd.f32 0.0, %v5775
        %v5777 = vpop.f32.mrb[0].mxu0
        %v5778 = vadd.f32 0.0, %v5777
        %v5779 = vpop.f32.mrb[0].mxu0
        %v5780 = vadd.f32 0.0, %v5779
        %5781 = vmatprep.mubr.bf16.mxu0 0
        %5782 = vmatmul.mubr.bf16.gmra.mrb[0].mxu0 %v4900
        %v5783 = vpop.f32.mrb[0].mxu0
        %v5784 = vadd.f32 0.0, %v5783
        %v5785 = vpop.f32.mrb[0].mxu0
        %v5786 = vadd.f32 0.0, %v5785
        %v5787 = vpop.f32.mrb[0].mxu0
        %v5788 = vadd.f32 0.0, %v5787
        %v5789 = vpop.f32.mrb[0].mxu0
        %v5790 = vadd.f32 0.0, %v5789
        %5791 = vmatprep.mubr.bf16.mxu0 0
        %5792 = vmatmul.mubr.bf16.gmra.mrb[0].mxu0 %v4901
        %v5793 = vpop.f32.mrb[0].mxu0
        %v5794 = vadd.f32 0.0, %v5793
        %v5795 = vpop.f32.mrb[0].mxu0
        %v5796 = vadd.f32 0.0, %v5795
        %v5797 = vpop.f32.mrb[0].mxu0
        %v5798 = vadd.f32 0.0, %v5797
        %v5799 = vpop.f32.mrb[0].mxu0
        %v5800 = vadd.f32 0.0, %v5799
        %5801 = vmatprep.mubr.bf16.mxu0 0
        %5802 = vmatmul.mubr.bf16.gmra.mrb[0].mxu0 %v4902
        %v5803 = vpop.f32.mrb[0].mxu0
        %v5804 = vadd.f32 0.0, %v5803
        %v5805 = vpop.f32.mrb[0].mxu0
        %v5806 = vadd.f32 0.0, %v5805
        %v5807 = vpop.f32.mrb[0].mxu0
        %v5808 = vadd.f32 0.0, %v5807
        %v5809 = vpop.f32.mrb[0].mxu0
        %v5810 = vadd.f32 0.0, %v5809
        %5811 = vmatprep.mubr.bf16.mxu0 0
        %5812 = vmatmul.mubr.bf16.gmra.mrb[0].mxu0 %v4903
        %v5813 = vpop.f32.mrb[0].mxu0
        %v5814 = vadd.f32 0.0, %v5813
        %v5815 = vpop.f32.mrb[0].mxu0
        %v5816 = vadd.f32 0.0, %v5815
        %v5817 = vpop.f32.mrb[0].mxu0
        %v5818 = vadd.f32 0.0, %v5817
        %v5819 = vpop.f32.mrb[0].mxu0
        %v5820 = vadd.f32 0.0, %v5819
        %5821 = vmatprep.mubr.bf16.mxu0 0
        %5822 = vmatmul.mubr.bf16.gmra.mrb[0].mxu0 %v4904
        %v5823 = vpop.f32.mrb[0].mxu0
        %v5824 = vadd.f32 0.0, %v5823
        %v5825 = vpop.f32.mrb[0].mxu0
        %v5826 = vadd.f32 0.0, %v5825
        %v5827 = vpop.f32.mrb[0].mxu0
        %v5828 = vadd.f32 0.0, %v5827
        %v5829 = vpop.f32.mrb[0].mxu0
        %v5830 = vadd.f32 0.0, %v5829
        %5831 = vmatprep.mubr.bf16.mxu0 0
        %5832 = vmatmul.mubr.bf16.gmra.mrb[0].mxu0 %v4905
        %v5833 = vpop.f32.mrb[0].mxu0
        %v5834 = vadd.f32 0.0, %v5833
        %v5835 = vpop.f32.mrb[0].mxu0
        %v5836 = vadd.f32 0.0, %v5835
        %v5837 = vpop.f32.mrb[0].mxu0
        %v5838 = vadd.f32 0.0, %v5837
        %v5839 = vpop.f32.mrb[0].mxu0
        %v5840 = vadd.f32 0.0, %v5839
        %5841 = vmatprep.mubr.bf16.mxu0 0
        %5842 = vmatmul.mubr.bf16.gmra.mrb[0].mxu0 %v4906
        %v5843 = vpop.f32.mrb[0].mxu0
        %v5844 = vadd.f32 0.0, %v5843
        %v5845 = vpop.f32.mrb[0].mxu0
        %v5846 = vadd.f32 0.0, %v5845
        %v5847 = vpop.f32.mrb[0].mxu0
        %v5848 = vadd.f32 0.0, %v5847
        %v5849 = vpop.f32.mrb[0].mxu0
        %v5850 = vadd.f32 0.0, %v5849
        %5851 = vmatprep.mubr.bf16.mxu0 0
        %5852 = vmatmul.mubr.bf16.gmra.mrb[0].mxu0 %v4907
        %v5853 = vpop.f32.mrb[0].mxu0
        %v5854 = vadd.f32 0.0, %v5853
        %v5855 = vpop.f32.mrb[0].mxu0
        %v5856 = vadd.f32 0.0, %v5855
        %v5857 = vpop.f32.mrb[0].mxu0
        %v5858 = vadd.f32 0.0, %v5857
        %v5859 = vpop.f32.mrb[0].mxu0
        %v5860 = vadd.f32 0.0, %v5859
        %5861 = vmatprep.mubr.bf16.mxu0 0
        %5862 = vmatmul.mubr.bf16.gmra.mrb[0].mxu0 %v4908
        %v5863 = vpop.f32.mrb[0].mxu0
        %v5864 = vadd.f32 0.0, %v5863
        %v5865 = vpop.f32.mrb[0].mxu0
        %v5866 = vadd.f32 0.0, %v5865
        %v5867 = vpop.f32.mrb[0].mxu0
        %v5868 = vadd.f32 0.0, %v5867
        %v5869 = vpop.f32.mrb[0].mxu0
        %v5870 = vadd.f32 0.0, %v5869
        %5871 = vdwg.mxu0
        %5872 = vmatprep.subr.bf16.mxu0 %v5172
        %5873 = vmatpush1.bf16.msra.mxu0 %v5171
        %5874 = vmatprep.subr.bf16.mxu0 %v5180
        %5875 = vmatpush1.bf16.msra.mxu0 %v5179
        %5876 = vmatprep.subr.bf16.mxu0 %v5188
        %5877 = vmatpush1.bf16.msra.mxu0 %v5187
        %5878 = vmatprep.subr.bf16.mxu0 %v5196
        %5879 = vmatpush1.bf16.msra.mxu0 %v5195
        %5880 = vmatprep.subr.bf16.mxu0 %v5204
        %5881 = vmatpush1.bf16.msra.mxu0 %v5203
        %5882 = vmatprep.subr.bf16.mxu0 %v5212
        %5883 = vmatpush1.bf16.msra.mxu0 %v5211
        %5884 = vmatprep.subr.bf16.mxu0 %v5220
        %5885 = vmatpush1.bf16.msra.mxu0 %v5219
        %5886 = vmatprep.subr.bf16.mxu0 %v5228
        %5887 = vmatpush1.bf16.msra.mxu0 %v5227
        %5888 = vmatprep.subr.bf16.mxu0 0
        %5889 = vmatpush1.bf16.msra.mxu0 0
        %5890 = vmatprep.subr.bf16.mxu0 0
        %5891 = vmatpush1.bf16.msra.mxu0 0
        %5892 = vmatprep.subr.bf16.mxu0 0
        %5893 = vmatpush1.bf16.msra.mxu0 0
        %5894 = vmatprep.subr.bf16.mxu0 0
        %5895 = vmatpush1.bf16.msra.mxu0 0
        %5896 = vmatprep.subr.bf16.mxu0 0
        %5897 = vmatpush1.bf16.msra.mxu0 0
        %5898 = vmatprep.subr.bf16.mxu0 0
        %5899 = vmatpush1.bf16.msra.mxu0 0
        %5900 = vmatprep.subr.bf16.mxu0 0
        %5901 = vmatpush1.bf16.msra.mxu0 0
        %5902 = vmatprep.subr.bf16.mxu0 0
        %5903 = vmatpush1.bf16.msra.mxu0 0
        %5904 = vmatprep.mubr.bf16.mxu0 0
        %5905 = vmatmul.mubr.bf16.gmra.mrb[0].mxu0 %v4893
        %v5906 = vpop.f32.mrb[0].mxu0
        %v5907 = vadd.f32 0.0, %v5906
        %v5908 = vpop.f32.mrb[0].mxu0
        %v5909 = vadd.f32 0.0, %v5908
        %v5910 = vpop.f32.mrb[0].mxu0
        %v5911 = vadd.f32 0.0, %v5910
        %v5912 = vpop.f32.mrb[0].mxu0
        %v5913 = vadd.f32 0.0, %v5912
        %5914 = vmatprep.mubr.bf16.mxu0 0
        %5915 = vmatmul.mubr.bf16.gmra.mrb[0].mxu0 %v4894
        %v5916 = vpop.f32.mrb[0].mxu0
        %v5917 = vadd.f32 0.0, %v5916
        %v5918 = vpop.f32.mrb[0].mxu0
        %v5919 = vadd.f32 0.0, %v5918
        %v5920 = vpop.f32.mrb[0].mxu0
        %v5921 = vadd.f32 0.0, %v5920
        %v5922 = vpop.f32.mrb[0].mxu0
        %v5923 = vadd.f32 0.0, %v5922
        %5924 = vmatprep.mubr.bf16.mxu0 0
        %5925 = vmatmul.mubr.bf16.gmra.mrb[0].mxu0 %v4895
        %v5926 = vpop.f32.mrb[0].mxu0
        %v5927 = vadd.f32 0.0, %v5926
        %v5928 = vpop.f32.mrb[0].mxu0
        %v5929 = vadd.f32 0.0, %v5928
        %v5930 = vpop.f32.mrb[0].mxu0
        %v5931 = vadd.f32 0.0, %v5930
        %v5932 = vpop.f32.mrb[0].mxu0
        %v5933 = vadd.f32 0.0, %v5932
        %5934 = vmatprep.mubr.bf16.mxu0 0
        %5935 = vmatmul.mubr.bf16.gmra.mrb[0].mxu0 %v4896
        %v5936 = vpop.f32.mrb[0].mxu0
        %v5937 = vadd.f32 0.0, %v5936
        %v5938 = vpop.f32.mrb[0].mxu0
        %v5939 = vadd.f32 0.0, %v5938
        %v5940 = vpop.f32.mrb[0].mxu0
        %v5941 = vadd.f32 0.0, %v5940
        %v5942 = vpop.f32.mrb[0].mxu0
        %v5943 = vadd.f32 0.0, %v5942
        %5944 = vmatprep.mubr.bf16.mxu0 0
        %5945 = vmatmul.mubr.bf16.gmra.mrb[0].mxu0 %v4897
        %v5946 = vpop.f32.mrb[0].mxu0
        %v5947 = vadd.f32 0.0, %v5946
        %v5948 = vpop.f32.mrb[0].mxu0
        %v5949 = vadd.f32 0.0, %v5948
        %v5950 = vpop.f32.mrb[0].mxu0
        %v5951 = vadd.f32 0.0, %v5950
        %v5952 = vpop.f32.mrb[0].mxu0
        %v5953 = vadd.f32 0.0, %v5952
        %5954 = vmatprep.mubr.bf16.mxu0 0
        %5955 = vmatmul.mubr.bf16.gmra.mrb[0].mxu0 %v4898
        %v5956 = vpop.f32.mrb[0].mxu0
        %v5957 = vadd.f32 0.0, %v5956
        %v5958 = vpop.f32.mrb[0].mxu0
        %v5959 = vadd.f32 0.0, %v5958
        %v5960 = vpop.f32.mrb[0].mxu0
        %v5961 = vadd.f32 0.0, %v5960
        %v5962 = vpop.f32.mrb[0].mxu0
        %v5963 = vadd.f32 0.0, %v5962
        %5964 = vmatprep.mubr.bf16.mxu0 0
        %5965 = vmatmul.mubr.bf16.gmra.mrb[0].mxu0 %v4899
        %v5966 = vpop.f32.mrb[0].mxu0
        %v5967 = vadd.f32 0.0, %v5966
        %v5968 = vpop.f32.mrb[0].mxu0
        %v5969 = vadd.f32 0.0, %v5968
        %v5970 = vpop.f32.mrb[0].mxu0
        %v5971 = vadd.f32 0.0, %v5970
        %v5972 = vpop.f32.mrb[0].mxu0
        %v5973 = vadd.f32 0.0, %v5972
        %5974 = vmatprep.mubr.bf16.mxu0 0
        %5975 = vmatmul.mubr.bf16.gmra.mrb[0].mxu0 %v4900
        %v5976 = vpop.f32.mrb[0].mxu0
        %v5977 = vadd.f32 0.0, %v5976
        %v5978 = vpop.f32.mrb[0].mxu0
        %v5979 = vadd.f32 0.0, %v5978
        %v5980 = vpop.f32.mrb[0].mxu0
        %v5981 = vadd.f32 0.0, %v5980
        %v5982 = vpop.f32.mrb[0].mxu0
        %v5983 = vadd.f32 0.0, %v5982
        %5984 = vmatprep.mubr.bf16.mxu0 0
        %5985 = vmatmul.mubr.bf16.gmra.mrb[0].mxu0 %v4901
        %v5986 = vpop.f32.mrb[0].mxu0
        %v5987 = vadd.f32 0.0, %v5986
        %v5988 = vpop.f32.mrb[0].mxu0
        %v5989 = vadd.f32 0.0, %v5988
        %v5990 = vpop.f32.mrb[0].mxu0
        %v5991 = vadd.f32 0.0, %v5990
        %v5992 = vpop.f32.mrb[0].mxu0
        %v5993 = vadd.f32 0.0, %v5992
        %5994 = vmatprep.mubr.bf16.mxu0 0
        %5995 = vmatmul.mubr.bf16.gmra.mrb[0].mxu0 %v4902
        %v5996 = vpop.f32.mrb[0].mxu0
        %v5997 = vadd.f32 0.0, %v5996
        %v5998 = vpop.f32.mrb[0].mxu0
        %v5999 = vadd.f32 0.0, %v5998
        %v6000 = vpop.f32.mrb[0].mxu0
        %v6001 = vadd.f32 0.0, %v6000
        %v6002 = vpop.f32.mrb[0].mxu0
        %v6003 = vadd.f32 0.0, %v6002
        %6004 = vmatprep.mubr.bf16.mxu0 0
        %6005 = vmatmul.mubr.bf16.gmra.mrb[0].mxu0 %v4903
        %v6006 = vpop.f32.mrb[0].mxu0
        %v6007 = vadd.f32 0.0, %v6006
        %v6008 = vpop.f32.mrb[0].mxu0
        %v6009 = vadd.f32 0.0, %v6008
        %v6010 = vpop.f32.mrb[0].mxu0
        %v6011 = vadd.f32 0.0, %v6010
        %v6012 = vpop.f32.mrb[0].mxu0
        %v6013 = vadd.f32 0.0, %v6012
        %6014 = vmatprep.mubr.bf16.mxu0 0
        %6015 = vmatmul.mubr.bf16.gmra.mrb[0].mxu0 %v4904
        %v6016 = vpop.f32.mrb[0].mxu0
        %v6017 = vadd.f32 0.0, %v6016
        %v6018 = vpop.f32.mrb[0].mxu0
        %v6019 = vadd.f32 0.0, %v6018
        %v6020 = vpop.f32.mrb[0].mxu0
        %v6021 = vadd.f32 0.0, %v6020
        %v6022 = vpop.f32.mrb[0].mxu0
        %v6023 = vadd.f32 0.0, %v6022
        %6024 = vmatprep.mubr.bf16.mxu0 0
        %6025 = vmatmul.mubr.bf16.gmra.mrb[0].mxu0 %v4905
        %v6026 = vpop.f32.mrb[0].mxu0
        %v6027 = vadd.f32 0.0, %v6026
        %v6028 = vpop.f32.mrb[0].mxu0
        %v6029 = vadd.f32 0.0, %v6028
        %v6030 = vpop.f32.mrb[0].mxu0
        %v6031 = vadd.f32 0.0, %v6030
        %v6032 = vpop.f32.mrb[0].mxu0
        %v6033 = vadd.f32 0.0, %v6032
        %6034 = vmatprep.mubr.bf16.mxu0 0
        %6035 = vmatmul.mubr.bf16.gmra.mrb[0].mxu0 %v4906
        %v6036 = vpop.f32.mrb[0].mxu0
        %v6037 = vadd.f32 0.0, %v6036
        %v6038 = vpop.f32.mrb[0].mxu0
        %v6039 = vadd.f32 0.0, %v6038
        %v6040 = vpop.f32.mrb[0].mxu0
        %v6041 = vadd.f32 0.0, %v6040
        %v6042 = vpop.f32.mrb[0].mxu0
        %v6043 = vadd.f32 0.0, %v6042
        %6044 = vmatprep.mubr.bf16.mxu0 0
        %6045 = vmatmul.mubr.bf16.gmra.mrb[0].mxu0 %v4907
        %v6046 = vpop.f32.mrb[0].mxu0
        %v6047 = vadd.f32 0.0, %v6046
        %v6048 = vpop.f32.mrb[0].mxu0
        %v6049 = vadd.f32 0.0, %v6048
        %v6050 = vpop.f32.mrb[0].mxu0
        %v6051 = vadd.f32 0.0, %v6050
        %v6052 = vpop.f32.mrb[0].mxu0
        %v6053 = vadd.f32 0.0, %v6052
        %6054 = vmatprep.mubr.bf16.mxu0 0
        %6055 = vmatmul.mubr.bf16.gmra.mrb[0].mxu0 %v4908
        %v6056 = vpop.f32.mrb[0].mxu0
        %v6057 = vadd.f32 0.0, %v6056
        %v6058 = vpop.f32.mrb[0].mxu0
        %v6059 = vadd.f32 0.0, %v6058
        %v6060 = vpop.f32.mrb[0].mxu0
        %v6061 = vadd.f32 0.0, %v6060
        %v6062 = vpop.f32.mrb[0].mxu0
        %v6063 = vadd.f32 0.0, %v6062
        %6064 = vdwg.mxu0
        %v6065 = vmul.f32 %v4156, %v5328
        %v6066 = vmul.f32 %v4158, %v5330
        %v6067 = vmul.f32 %v4349, %v5521
        %v6068 = vmul.f32 %v4351, %v5523
        %v6069 = vmul.f32 %v4542, %v5714
        %v6070 = vmul.f32 %v4544, %v5716
        %v6071 = vmul.f32 %v4735, %v5907
        %v6072 = vmul.f32 %v4737, %v5909
        %v6073 = vmul.f32 %v4160, %v5332
        %v6074 = vmul.f32 %v4162, %v5334
        %v6075 = vmul.f32 %v4353, %v5525
        %v6076 = vmul.f32 %v4355, %v5527
        %v6077 = vmul.f32 %v4546, %v5718
        %v6078 = vmul.f32 %v4548, %v5720
        %v6079 = vmul.f32 %v4739, %v5911
        %v6080 = vmul.f32 %v4741, %v5913
        %v6081 = vmul.f32 %v4166, %v5338
        %v6082 = vmul.f32 %v4168, %v5340
        %v6083 = vmul.f32 %v4359, %v5531
        %v6084 = vmul.f32 %v4361, %v5533
        %v6085 = vmul.f32 %v4552, %v5724
        %v6086 = vmul.f32 %v4554, %v5726
        %v6087 = vmul.f32 %v4745, %v5917
        %v6088 = vmul.f32 %v4747, %v5919
        %v6089 = vmul.f32 %v4170, %v5342
        %v6090 = vmul.f32 %v4172, %v5344
        %v6091 = vmul.f32 %v4363, %v5535
        %v6092 = vmul.f32 %v4365, %v5537
        %v6093 = vmul.f32 %v4556, %v5728
        %v6094 = vmul.f32 %v4558, %v5730
        %v6095 = vmul.f32 %v4749, %v5921
        %v6096 = vmul.f32 %v4751, %v5923
        %v6097 = vmul.f32 %v4176, %v5348
        %v6098 = vmul.f32 %v4178, %v5350
        %v6099 = vmul.f32 %v4369, %v5541
        %v6100 = vmul.f32 %v4371, %v5543
        %v6101 = vmul.f32 %v4562, %v5734
        %v6102 = vmul.f32 %v4564, %v5736
        %v6103 = vmul.f32 %v4755, %v5927
        %v6104 = vmul.f32 %v4757, %v5929
        %v6105 = vmul.f32 %v4180, %v5352
        %v6106 = vmul.f32 %v4182, %v5354
        %v6107 = vmul.f32 %v4373, %v5545
        %v6108 = vmul.f32 %v4375, %v5547
        %v6109 = vmul.f32 %v4566, %v5738
        %v6110 = vmul.f32 %v4568, %v5740
        %v6111 = vmul.f32 %v4759, %v5931
        %v6112 = vmul.f32 %v4761, %v5933
        %v6113 = vmul.f32 %v4186, %v5358
        %v6114 = vmul.f32 %v4188, %v5360
        %v6115 = vmul.f32 %v4379, %v5551
        %v6116 = vmul.f32 %v4381, %v5553
        %v6117 = vmul.f32 %v4572, %v5744
        %v6118 = vmul.f32 %v4574, %v5746
        %v6119 = vmul.f32 %v4765, %v5937
        %v6120 = vmul.f32 %v4767, %v5939
        %v6121 = vmul.f32 %v4190, %v5362
        %v6122 = vmul.f32 %v4192, %v5364
        %v6123 = vmul.f32 %v4383, %v5555
        %v6124 = vmul.f32 %v4385, %v5557
        %v6125 = vmul.f32 %v4576, %v5748
        %v6126 = vmul.f32 %v4578, %v5750
        %v6127 = vmul.f32 %v4769, %v5941
        %v6128 = vmul.f32 %v4771, %v5943
        %v6129 = vmul.f32 %v4196, %v5368
        %v6130 = vmul.f32 %v4198, %v5370
        %v6131 = vmul.f32 %v4389, %v5561
        %v6132 = vmul.f32 %v4391, %v5563
        %v6133 = vmul.f32 %v4582, %v5754
        %v6134 = vmul.f32 %v4584, %v5756
        %v6135 = vmul.f32 %v4775, %v5947
        %v6136 = vmul.f32 %v4777, %v5949
        %v6137 = vmul.f32 %v4200, %v5372
        %v6138 = vmul.f32 %v4202, %v5374
        %v6139 = vmul.f32 %v4393, %v5565
        %v6140 = vmul.f32 %v4395, %v5567
        %v6141 = vmul.f32 %v4586, %v5758
        %v6142 = vmul.f32 %v4588, %v5760
        %v6143 = vmul.f32 %v4779, %v5951
        %v6144 = vmul.f32 %v4781, %v5953
        %v6145 = vmul.f32 %v4206, %v5378
        %v6146 = vmul.f32 %v4208, %v5380
        %v6147 = vmul.f32 %v4399, %v5571
        %v6148 = vmul.f32 %v4401, %v5573
        %v6149 = vmul.f32 %v4592, %v5764
        %v6150 = vmul.f32 %v4594, %v5766
        %v6151 = vmul.f32 %v4785, %v5957
        %v6152 = vmul.f32 %v4787, %v5959
        %v6153 = vmul.f32 %v4210, %v5382
        %v6154 = vmul.f32 %v4212, %v5384
        %v6155 = vmul.f32 %v4403, %v5575
        %v6156 = vmul.f32 %v4405, %v5577
        %v6157 = vmul.f32 %v4596, %v5768
        %v6158 = vmul.f32 %v4598, %v5770
        %v6159 = vmul.f32 %v4789, %v5961
        %v6160 = vmul.f32 %v4791, %v5963
        %v6161 = vmul.f32 %v4216, %v5388
        %v6162 = vmul.f32 %v4218, %v5390
        %v6163 = vmul.f32 %v4409, %v5581
        %v6164 = vmul.f32 %v4411, %v5583
        %v6165 = vmul.f32 %v4602, %v5774
        %v6166 = vmul.f32 %v4604, %v5776
        %v6167 = vmul.f32 %v4795, %v5967
        %v6168 = vmul.f32 %v4797, %v5969
        %v6169 = vmul.f32 %v4220, %v5392
        %v6170 = vmul.f32 %v4222, %v5394
        %v6171 = vmul.f32 %v4413, %v5585
        %v6172 = vmul.f32 %v4415, %v5587
        %v6173 = vmul.f32 %v4606, %v5778
        %v6174 = vmul.f32 %v4608, %v5780
        %v6175 = vmul.f32 %v4799, %v5971
        %v6176 = vmul.f32 %v4801, %v5973
        %v6177 = vmul.f32 %v4226, %v5398
        %v6178 = vmul.f32 %v4228, %v5400
        %v6179 = vmul.f32 %v4419, %v5591
        %v6180 = vmul.f32 %v4421, %v5593
        %v6181 = vmul.f32 %v4612, %v5784
        %v6182 = vmul.f32 %v4614, %v5786
        %v6183 = vmul.f32 %v4805, %v5977
        %v6184 = vmul.f32 %v4807, %v5979
        %v6185 = vmul.f32 %v4230, %v5402
        %v6186 = vmul.f32 %v4232, %v5404
        %v6187 = vmul.f32 %v4423, %v5595
        %v6188 = vmul.f32 %v4425, %v5597
        %v6189 = vmul.f32 %v4616, %v5788
        %v6190 = vmul.f32 %v4618, %v5790
        %v6191 = vmul.f32 %v4809, %v5981
        %v6192 = vmul.f32 %v4811, %v5983
        %v6193 = vmul.f32 %v4236, %v5408
        %v6194 = vmul.f32 %v4238, %v5410
        %v6195 = vmul.f32 %v4429, %v5601
        %v6196 = vmul.f32 %v4431, %v5603
        %v6197 = vmul.f32 %v4622, %v5794
        %v6198 = vmul.f32 %v4624, %v5796
        %v6199 = vmul.f32 %v4815, %v5987
        %v6200 = vmul.f32 %v4817, %v5989
        %v6201 = vmul.f32 %v4240, %v5412
        %v6202 = vmul.f32 %v4242, %v5414
        %v6203 = vmul.f32 %v4433, %v5605
        %v6204 = vmul.f32 %v4435, %v5607
        %v6205 = vmul.f32 %v4626, %v5798
        %v6206 = vmul.f32 %v4628, %v5800
        %v6207 = vmul.f32 %v4819, %v5991
        %v6208 = vmul.f32 %v4821, %v5993
        %v6209 = vmul.f32 %v4246, %v5418
        %v6210 = vmul.f32 %v4248, %v5420
        %v6211 = vmul.f32 %v4439, %v5611
        %v6212 = vmul.f32 %v4441, %v5613
        %v6213 = vmul.f32 %v4632, %v5804
        %v6214 = vmul.f32 %v4634, %v5806
        %v6215 = vmul.f32 %v4825, %v5997
        %v6216 = vmul.f32 %v4827, %v5999
        %v6217 = vmul.f32 %v4250, %v5422
        %v6218 = vmul.f32 %v4252, %v5424
        %v6219 = vmul.f32 %v4443, %v5615
        %v6220 = vmul.f32 %v4445, %v5617
        %v6221 = vmul.f32 %v4636, %v5808
        %v6222 = vmul.f32 %v4638, %v5810
        %v6223 = vmul.f32 %v4829, %v6001
        %v6224 = vmul.f32 %v4831, %v6003
        %v6225 = vmul.f32 %v4256, %v5428
        %v6226 = vmul.f32 %v4258, %v5430
        %v6227 = vmul.f32 %v4449, %v5621
        %v6228 = vmul.f32 %v4451, %v5623
        %v6229 = vmul.f32 %v4642, %v5814
        %v6230 = vmul.f32 %v4644, %v5816
        %v6231 = vmul.f32 %v4835, %v6007
        %v6232 = vmul.f32 %v4837, %v6009
        %v6233 = vmul.f32 %v4260, %v5432
        %v6234 = vmul.f32 %v4262, %v5434
        %v6235 = vmul.f32 %v4453, %v5625
        %v6236 = vmul.f32 %v4455, %v5627
        %v6237 = vmul.f32 %v4646, %v5818
        %v6238 = vmul.f32 %v4648, %v5820
        %v6239 = vmul.f32 %v4839, %v6011
        %v6240 = vmul.f32 %v4841, %v6013
        %v6241 = vmul.f32 %v4266, %v5438
        %v6242 = vmul.f32 %v4268, %v5440
        %v6243 = vmul.f32 %v4459, %v5631
        %v6244 = vmul.f32 %v4461, %v5633
        %v6245 = vmul.f32 %v4652, %v5824
        %v6246 = vmul.f32 %v4654, %v5826
        %v6247 = vmul.f32 %v4845, %v6017
        %v6248 = vmul.f32 %v4847, %v6019
        %v6249 = vmul.f32 %v4270, %v5442
        %v6250 = vmul.f32 %v4272, %v5444
        %v6251 = vmul.f32 %v4463, %v5635
        %v6252 = vmul.f32 %v4465, %v5637
        %v6253 = vmul.f32 %v4656, %v5828
        %v6254 = vmul.f32 %v4658, %v5830
        %v6255 = vmul.f32 %v4849, %v6021
        %v6256 = vmul.f32 %v4851, %v6023
        %v6257 = vmul.f32 %v4276, %v5448
        %v6258 = vmul.f32 %v4278, %v5450
        %v6259 = vmul.f32 %v4469, %v5641
        %v6260 = vmul.f32 %v4471, %v5643
        %v6261 = vmul.f32 %v4662, %v5834
        %v6262 = vmul.f32 %v4664, %v5836
        %v6263 = vmul.f32 %v4855, %v6027
        %v6264 = vmul.f32 %v4857, %v6029
        %v6265 = vmul.f32 %v4280, %v5452
        %v6266 = vmul.f32 %v4282, %v5454
        %v6267 = vmul.f32 %v4473, %v5645
        %v6268 = vmul.f32 %v4475, %v5647
        %v6269 = vmul.f32 %v4666, %v5838
        %v6270 = vmul.f32 %v4668, %v5840
        %v6271 = vmul.f32 %v4859, %v6031
        %v6272 = vmul.f32 %v4861, %v6033
        %v6273 = vmul.f32 %v4286, %v5458
        %v6274 = vmul.f32 %v4288, %v5460
        %v6275 = vmul.f32 %v4479, %v5651
        %v6276 = vmul.f32 %v4481, %v5653
        %v6277 = vmul.f32 %v4672, %v5844
        %v6278 = vmul.f32 %v4674, %v5846
        %v6279 = vmul.f32 %v4865, %v6037
        %v6280 = vmul.f32 %v4867, %v6039
        %v6281 = vmul.f32 %v4290, %v5462
        %v6282 = vmul.f32 %v4292, %v5464
        %v6283 = vmul.f32 %v4483, %v5655
        %v6284 = vmul.f32 %v4485, %v5657
        %v6285 = vmul.f32 %v4676, %v5848
        %v6286 = vmul.f32 %v4678, %v5850
        %v6287 = vmul.f32 %v4869, %v6041
        %v6288 = vmul.f32 %v4871, %v6043
        %v6289 = vmul.f32 %v4296, %v5468
        %v6290 = vmul.f32 %v4298, %v5470
        %v6291 = vmul.f32 %v4489, %v5661
        %v6292 = vmul.f32 %v4491, %v5663
        %v6293 = vmul.f32 %v4682, %v5854
        %v6294 = vmul.f32 %v4684, %v5856
        %v6295 = vmul.f32 %v4875, %v6047
        %v6296 = vmul.f32 %v4877, %v6049
        %v6297 = vmul.f32 %v4300, %v5472
        %v6298 = vmul.f32 %v4302, %v5474
        %v6299 = vmul.f32 %v4493, %v5665
        %v6300 = vmul.f32 %v4495, %v5667
        %v6301 = vmul.f32 %v4686, %v5858
        %v6302 = vmul.f32 %v4688, %v5860
        %v6303 = vmul.f32 %v4879, %v6051
        %v6304 = vmul.f32 %v4881, %v6053
        %v6305 = vmul.f32 %v4306, %v5478
        %v6306 = vmul.f32 %v4308, %v5480
        %v6307 = vmul.f32 %v4499, %v5671
        %v6308 = vmul.f32 %v4501, %v5673
        %v6309 = vmul.f32 %v4692, %v5864
        %v6310 = vmul.f32 %v4694, %v5866
        %v6311 = vmul.f32 %v4885, %v6057
        %v6312 = vmul.f32 %v4887, %v6059
        %v6313 = vmul.f32 %v4310, %v5482
        %v6314 = vmul.f32 %v4312, %v5484
        %v6315 = vmul.f32 %v4503, %v5675
        %v6316 = vmul.f32 %v4505, %v5677
        %v6317 = vmul.f32 %v4696, %v5868
        %v6318 = vmul.f32 %v4698, %v5870
        %v6319 = vmul.f32 %v4889, %v6061
        %v6320 = vmul.f32 %v4891, %v6063
        %v6321 = vpack.c.bf16 %v6073, %v6065
        %v6322 = vpack.c.bf16 %v6074, %v6066
        %v6323 = vpack.c.bf16 %v6075, %v6067
        %v6324 = vpack.c.bf16 %v6076, %v6068
        %v6325 = vpack.c.bf16 %v6077, %v6069
        %v6326 = vpack.c.bf16 %v6078, %v6070
        %v6327 = vpack.c.bf16 %v6079, %v6071
        %v6328 = vpack.c.bf16 %v6080, %v6072
        %v6329 = vpack.c.bf16 %v6089, %v6081
        %v6330 = vpack.c.bf16 %v6090, %v6082
        %v6331 = vpack.c.bf16 %v6091, %v6083
        %v6332 = vpack.c.bf16 %v6092, %v6084
        %v6333 = vpack.c.bf16 %v6093, %v6085
        %v6334 = vpack.c.bf16 %v6094, %v6086
        %v6335 = vpack.c.bf16 %v6095, %v6087
        %v6336 = vpack.c.bf16 %v6096, %v6088
        %v6337 = vpack.c.bf16 %v6105, %v6097
        %v6338 = vpack.c.bf16 %v6106, %v6098
        %v6339 = vpack.c.bf16 %v6107, %v6099
        %v6340 = vpack.c.bf16 %v6108, %v6100
        %v6341 = vpack.c.bf16 %v6109, %v6101
        %v6342 = vpack.c.bf16 %v6110, %v6102
        %v6343 = vpack.c.bf16 %v6111, %v6103
        %v6344 = vpack.c.bf16 %v6112, %v6104
        %v6345 = vpack.c.bf16 %v6121, %v6113
        %v6346 = vpack.c.bf16 %v6122, %v6114
        %v6347 = vpack.c.bf16 %v6123, %v6115
        %v6348 = vpack.c.bf16 %v6124, %v6116
        %v6349 = vpack.c.bf16 %v6125, %v6117
        %v6350 = vpack.c.bf16 %v6126, %v6118
        %v6351 = vpack.c.bf16 %v6127, %v6119
        %v6352 = vpack.c.bf16 %v6128, %v6120
        %v6353 = vpack.c.bf16 %v6137, %v6129
        %v6354 = vpack.c.bf16 %v6138, %v6130
        %v6355 = vpack.c.bf16 %v6139, %v6131
        %v6356 = vpack.c.bf16 %v6140, %v6132
        %v6357 = vpack.c.bf16 %v6141, %v6133
        %v6358 = vpack.c.bf16 %v6142, %v6134
        %v6359 = vpack.c.bf16 %v6143, %v6135
        %v6360 = vpack.c.bf16 %v6144, %v6136
        %v6361 = vpack.c.bf16 %v6153, %v6145
        %v6362 = vpack.c.bf16 %v6154, %v6146
        %v6363 = vpack.c.bf16 %v6155, %v6147
        %v6364 = vpack.c.bf16 %v6156, %v6148
        %v6365 = vpack.c.bf16 %v6157, %v6149
        %v6366 = vpack.c.bf16 %v6158, %v6150
        %v6367 = vpack.c.bf16 %v6159, %v6151
        %v6368 = vpack.c.bf16 %v6160, %v6152
        %v6369 = vpack.c.bf16 %v6169, %v6161
        %v6370 = vpack.c.bf16 %v6170, %v6162
        %v6371 = vpack.c.bf16 %v6171, %v6163
        %v6372 = vpack.c.bf16 %v6172, %v6164
        %v6373 = vpack.c.bf16 %v6173, %v6165
        %v6374 = vpack.c.bf16 %v6174, %v6166
        %v6375 = vpack.c.bf16 %v6175, %v6167
        %v6376 = vpack.c.bf16 %v6176, %v6168
        %v6377 = vpack.c.bf16 %v6185, %v6177
        %v6378 = vpack.c.bf16 %v6186, %v6178
        %v6379 = vpack.c.bf16 %v6187, %v6179
        %v6380 = vpack.c.bf16 %v6188, %v6180
        %v6381 = vpack.c.bf16 %v6189, %v6181
        %v6382 = vpack.c.bf16 %v6190, %v6182
        %v6383 = vpack.c.bf16 %v6191, %v6183
        %v6384 = vpack.c.bf16 %v6192, %v6184
        %v6385 = vpack.c.bf16 %v6201, %v6193
        %v6386 = vpack.c.bf16 %v6202, %v6194
        %v6387 = vpack.c.bf16 %v6203, %v6195
        %v6388 = vpack.c.bf16 %v6204, %v6196
        %v6389 = vpack.c.bf16 %v6205, %v6197
        %v6390 = vpack.c.bf16 %v6206, %v6198
        %v6391 = vpack.c.bf16 %v6207, %v6199
        %v6392 = vpack.c.bf16 %v6208, %v6200
        %v6393 = vpack.c.bf16 %v6217, %v6209
        %v6394 = vpack.c.bf16 %v6218, %v6210
        %v6395 = vpack.c.bf16 %v6219, %v6211
        %v6396 = vpack.c.bf16 %v6220, %v6212
        %v6397 = vpack.c.bf16 %v6221, %v6213
        %v6398 = vpack.c.bf16 %v6222, %v6214
        %v6399 = vpack.c.bf16 %v6223, %v6215
        %v6400 = vpack.c.bf16 %v6224, %v6216
        %v6401 = vpack.c.bf16 %v6233, %v6225
        %v6402 = vpack.c.bf16 %v6234, %v6226
        %v6403 = vpack.c.bf16 %v6235, %v6227
        %v6404 = vpack.c.bf16 %v6236, %v6228
        %v6405 = vpack.c.bf16 %v6237, %v6229
        %v6406 = vpack.c.bf16 %v6238, %v6230
        %v6407 = vpack.c.bf16 %v6239, %v6231
        %v6408 = vpack.c.bf16 %v6240, %v6232
        %v6409 = vpack.c.bf16 %v6249, %v6241
        %v6410 = vpack.c.bf16 %v6250, %v6242
        %v6411 = vpack.c.bf16 %v6251, %v6243
        %v6412 = vpack.c.bf16 %v6252, %v6244
        %v6413 = vpack.c.bf16 %v6253, %v6245
        %v6414 = vpack.c.bf16 %v6254, %v6246
        %v6415 = vpack.c.bf16 %v6255, %v6247
        %v6416 = vpack.c.bf16 %v6256, %v6248
        %v6417 = vpack.c.bf16 %v6265, %v6257
        %v6418 = vpack.c.bf16 %v6266, %v6258
        %v6419 = vpack.c.bf16 %v6267, %v6259
        %v6420 = vpack.c.bf16 %v6268, %v6260
        %v6421 = vpack.c.bf16 %v6269, %v6261
        %v6422 = vpack.c.bf16 %v6270, %v6262
        %v6423 = vpack.c.bf16 %v6271, %v6263
        %v6424 = vpack.c.bf16 %v6272, %v6264
        %v6425 = vpack.c.bf16 %v6281, %v6273
        %v6426 = vpack.c.bf16 %v6282, %v6274
        %v6427 = vpack.c.bf16 %v6283, %v6275
        %v6428 = vpack.c.bf16 %v6284, %v6276
        %v6429 = vpack.c.bf16 %v6285, %v6277
        %v6430 = vpack.c.bf16 %v6286, %v6278
        %v6431 = vpack.c.bf16 %v6287, %v6279
        %v6432 = vpack.c.bf16 %v6288, %v6280
        %v6433 = vpack.c.bf16 %v6297, %v6289
        %v6434 = vpack.c.bf16 %v6298, %v6290
        %v6435 = vpack.c.bf16 %v6299, %v6291
        %v6436 = vpack.c.bf16 %v6300, %v6292
        %v6437 = vpack.c.bf16 %v6301, %v6293
        %v6438 = vpack.c.bf16 %v6302, %v6294
        %v6439 = vpack.c.bf16 %v6303, %v6295
        %v6440 = vpack.c.bf16 %v6304, %v6296
        %v6441 = vpack.c.bf16 %v6313, %v6305
        %v6442 = vpack.c.bf16 %v6314, %v6306
        %v6443 = vpack.c.bf16 %v6315, %v6307
        %v6444 = vpack.c.bf16 %v6316, %v6308
        %v6445 = vpack.c.bf16 %v6317, %v6309
        %v6446 = vpack.c.bf16 %v6318, %v6310
        %v6447 = vpack.c.bf16 %v6319, %v6311
        %v6448 = vpack.c.bf16 %v6320, %v6312
        %v6449 = vld [vmem:[#allocation13] sm:$0xf]
        %v6450 = vld [vmem:[#allocation13 + $0x4] sm:$0xf]
        %v6451 = vld [vmem:[#allocation13 + $0x8] sm:$0xf]
        %v6452 = vld [vmem:[#allocation13 + $0xc] sm:$0xf]
        %v6453 = vld [vmem:[#allocation13 + $0x10] sm:$0xf]
        %v6454 = vld [vmem:[#allocation13 + $0x14] sm:$0xf]
        %v6455 = vld [vmem:[#allocation13 + $0x18] sm:$0xf]
        %v6456 = vld [vmem:[#allocation13 + $0x1c] sm:$0xf]
        %v6457 = vld [vmem:[#allocation13 + $0x20] sm:$0xf]
        %v6458 = vld [vmem:[#allocation13 + $0x24] sm:$0xf]
        %v6459 = vld [vmem:[#allocation13 + $0x28] sm:$0xf]
        %v6460 = vld [vmem:[#allocation13 + $0x2c] sm:$0xf]
        %v6461 = vld [vmem:[#allocation13 + $0x30] sm:$0xf]
        %v6462 = vld [vmem:[#allocation13 + $0x34] sm:$0xf]
        %v6463 = vld [vmem:[#allocation13 + $0x38] sm:$0xf]
        %v6464 = vld [vmem:[#allocation13 + $0x3c] sm:$0xf]
        %v6465 = vld [vmem:[#allocation13 + $0x40] sm:$0xf]
        %v6466 = vld [vmem:[#allocation13 + $0x44] sm:$0xf]
        %v6467 = vld [vmem:[#allocation13 + $0x48] sm:$0xf]
        %v6468 = vld [vmem:[#allocation13 + $0x4c] sm:$0xf]
        %v6469 = vld [vmem:[#allocation13 + $0x50] sm:$0xf]
        %v6470 = vld [vmem:[#allocation13 + $0x54] sm:$0xf]
        %v6471 = vld [vmem:[#allocation13 + $0x58] sm:$0xf]
        %v6472 = vld [vmem:[#allocation13 + $0x5c] sm:$0xf]
        %v6473 = vld [vmem:[#allocation13 + $0x60] sm:$0xf]
        %v6474 = vld [vmem:[#allocation13 + $0x64] sm:$0xf]
        %v6475 = vld [vmem:[#allocation13 + $0x68] sm:$0xf]
        %v6476 = vld [vmem:[#allocation13 + $0x6c] sm:$0xf]
        %v6477 = vld [vmem:[#allocation13 + $0x70] sm:$0xf]
        %v6478 = vld [vmem:[#allocation13 + $0x74] sm:$0xf]
        %v6479 = vld [vmem:[#allocation13 + $0x78] sm:$0xf]
        %v6480 = vld [vmem:[#allocation13 + $0x7c] sm:$0xf]
        %v6481 = vld [vmem:[#allocation13 + $0x80] sm:$0xf]
        %v6482 = vld [vmem:[#allocation13 + $0x84] sm:$0xf]
        %v6483 = vld [vmem:[#allocation13 + $0x88] sm:$0xf]
        %v6484 = vld [vmem:[#allocation13 + $0x8c] sm:$0xf]
        %v6485 = vld [vmem:[#allocation13 + $0x90] sm:$0xf]
        %v6486 = vld [vmem:[#allocation13 + $0x94] sm:$0xf]
        %v6487 = vld [vmem:[#allocation13 + $0x98] sm:$0xf]
        %v6488 = vld [vmem:[#allocation13 + $0x9c] sm:$0xf]
        %v6489 = vld [vmem:[#allocation13 + $0xa0] sm:$0xf]
        %v6490 = vld [vmem:[#allocation13 + $0xa4] sm:$0xf]
        %v6491 = vld [vmem:[#allocation13 + $0xa8] sm:$0xf]
        %v6492 = vld [vmem:[#allocation13 + $0xac] sm:$0xf]
        %v6493 = vld [vmem:[#allocation13 + $0xb0] sm:$0xf]
        %v6494 = vld [vmem:[#allocation13 + $0xb4] sm:$0xf]
        %v6495 = vld [vmem:[#allocation13 + $0xb8] sm:$0xf]
        %v6496 = vld [vmem:[#allocation13 + $0xbc] sm:$0xf]
        %v6497 = vld [vmem:[#allocation13 + $0xc0] sm:$0xf]
        %v6498 = vld [vmem:[#allocation13 + $0xc4] sm:$0xf]
        %v6499 = vld [vmem:[#allocation13 + $0xc8] sm:$0xf]
        %v6500 = vld [vmem:[#allocation13 + $0xcc] sm:$0xf]
        %v6501 = vld [vmem:[#allocation13 + $0xd0] sm:$0xf]
        %v6502 = vld [vmem:[#allocation13 + $0xd4] sm:$0xf]
        %v6503 = vld [vmem:[#allocation13 + $0xd8] sm:$0xf]
        %v6504 = vld [vmem:[#allocation13 + $0xdc] sm:$0xf]
        %v6505 = vld [vmem:[#allocation13 + $0xe0] sm:$0xf]
        %v6506 = vld [vmem:[#allocation13 + $0xe4] sm:$0xf]
        %v6507 = vld [vmem:[#allocation13 + $0xe8] sm:$0xf]
        %v6508 = vld [vmem:[#allocation13 + $0xec] sm:$0xf]
        %v6509 = vld [vmem:[#allocation13 + $0xf0] sm:$0xf]
        %v6510 = vld [vmem:[#allocation13 + $0xf4] sm:$0xf]
        %v6511 = vld [vmem:[#allocation13 + $0xf8] sm:$0xf]
        %v6512 = vld [vmem:[#allocation13 + $0xfc] sm:$0xf]
        %v6513 = vld [vmem:[#allocation13 + $0x100] sm:$0xf]
        %v6514 = vld [vmem:[#allocation13 + $0x104] sm:$0xf]
        %v6515 = vld [vmem:[#allocation13 + $0x108] sm:$0xf]
        %v6516 = vld [vmem:[#allocation13 + $0x10c] sm:$0xf]
        %v6517 = vld [vmem:[#allocation13 + $0x110] sm:$0xf]
        %v6518 = vld [vmem:[#allocation13 + $0x114] sm:$0xf]
        %v6519 = vld [vmem:[#allocation13 + $0x118] sm:$0xf]
        %v6520 = vld [vmem:[#allocation13 + $0x11c] sm:$0xf]
        %v6521 = vld [vmem:[#allocation13 + $0x120] sm:$0xf]
        %v6522 = vld [vmem:[#allocation13 + $0x124] sm:$0xf]
        %v6523 = vld [vmem:[#allocation13 + $0x128] sm:$0xf]
        %v6524 = vld [vmem:[#allocation13 + $0x12c] sm:$0xf]
        %v6525 = vld [vmem:[#allocation13 + $0x130] sm:$0xf]
        %v6526 = vld [vmem:[#allocation13 + $0x134] sm:$0xf]
        %v6527 = vld [vmem:[#allocation13 + $0x138] sm:$0xf]
        %v6528 = vld [vmem:[#allocation13 + $0x13c] sm:$0xf]
        %v6529 = vld [vmem:[#allocation13 + $0x140] sm:$0xf]
        %v6530 = vld [vmem:[#allocation13 + $0x144] sm:$0xf]
        %v6531 = vld [vmem:[#allocation13 + $0x148] sm:$0xf]
        %v6532 = vld [vmem:[#allocation13 + $0x14c] sm:$0xf]
        %v6533 = vld [vmem:[#allocation13 + $0x150] sm:$0xf]
        %v6534 = vld [vmem:[#allocation13 + $0x154] sm:$0xf]
        %v6535 = vld [vmem:[#allocation13 + $0x158] sm:$0xf]
        %v6536 = vld [vmem:[#allocation13 + $0x15c] sm:$0xf]
        %v6537 = vld [vmem:[#allocation13 + $0x160] sm:$0xf]
        %v6538 = vld [vmem:[#allocation13 + $0x164] sm:$0xf]
        %v6539 = vld [vmem:[#allocation13 + $0x168] sm:$0xf]
        %v6540 = vld [vmem:[#allocation13 + $0x16c] sm:$0xf]
        %v6541 = vld [vmem:[#allocation13 + $0x170] sm:$0xf]
        %v6542 = vld [vmem:[#allocation13 + $0x174] sm:$0xf]
        %v6543 = vld [vmem:[#allocation13 + $0x178] sm:$0xf]
        %v6544 = vld [vmem:[#allocation13 + $0x17c] sm:$0xf]
        %v6545 = vld [vmem:[#allocation13 + $0x180] sm:$0xf]
        %v6546 = vld [vmem:[#allocation13 + $0x184] sm:$0xf]
        %v6547 = vld [vmem:[#allocation13 + $0x188] sm:$0xf]
        %v6548 = vld [vmem:[#allocation13 + $0x18c] sm:$0xf]
        %v6549 = vld [vmem:[#allocation13 + $0x190] sm:$0xf]
        %v6550 = vld [vmem:[#allocation13 + $0x194] sm:$0xf]
        %v6551 = vld [vmem:[#allocation13 + $0x198] sm:$0xf]
        %v6552 = vld [vmem:[#allocation13 + $0x19c] sm:$0xf]
        %v6553 = vld [vmem:[#allocation13 + $0x1a0] sm:$0xf]
        %v6554 = vld [vmem:[#allocation13 + $0x1a4] sm:$0xf]
        %v6555 = vld [vmem:[#allocation13 + $0x1a8] sm:$0xf]
        %v6556 = vld [vmem:[#allocation13 + $0x1ac] sm:$0xf]
        %v6557 = vld [vmem:[#allocation13 + $0x1b0] sm:$0xf]
        %v6558 = vld [vmem:[#allocation13 + $0x1b4] sm:$0xf]
        %v6559 = vld [vmem:[#allocation13 + $0x1b8] sm:$0xf]
        %v6560 = vld [vmem:[#allocation13 + $0x1bc] sm:$0xf]
        %v6561 = vld [vmem:[#allocation13 + $0x1c0] sm:$0xf]
        %v6562 = vld [vmem:[#allocation13 + $0x1c4] sm:$0xf]
        %v6563 = vld [vmem:[#allocation13 + $0x1c8] sm:$0xf]
        %v6564 = vld [vmem:[#allocation13 + $0x1cc] sm:$0xf]
        %v6565 = vld [vmem:[#allocation13 + $0x1d0] sm:$0xf]
        %v6566 = vld [vmem:[#allocation13 + $0x1d4] sm:$0xf]
        %v6567 = vld [vmem:[#allocation13 + $0x1d8] sm:$0xf]
        %v6568 = vld [vmem:[#allocation13 + $0x1dc] sm:$0xf]
        %v6569 = vld [vmem:[#allocation13 + $0x1e0] sm:$0xf]
        %v6570 = vld [vmem:[#allocation13 + $0x1e4] sm:$0xf]
        %v6571 = vld [vmem:[#allocation13 + $0x1e8] sm:$0xf]
        %v6572 = vld [vmem:[#allocation13 + $0x1ec] sm:$0xf]
        %v6573 = vld [vmem:[#allocation13 + $0x1f0] sm:$0xf]
        %v6574 = vld [vmem:[#allocation13 + $0x1f4] sm:$0xf]
        %v6575 = vld [vmem:[#allocation13 + $0x1f8] sm:$0xf]
        %v6576 = vld [vmem:[#allocation13 + $0x1fc] sm:$0xf]
        %v6577 = vld [vmem:[%s15] sm:$0x1]
        %v6579 = vlaneseq
        %v6580 = vshrl.u32 %v6579, 7
        %v6581 = vsub.s32 0, %v6580
        %v6582 = vrot.slane %v6577, %v6581
        %v6712 = vunpack.c.l.b16 %v6449
        %v6713 = vunpack.c.l.b16 %v6450
        %v6714 = vunpack.c.l.b16 %v6451
        %v6715 = vunpack.c.l.b16 %v6452
        %v6716 = vunpack.c.l.b16 %v6453
        %v6717 = vunpack.c.l.b16 %v6454
        %v6718 = vunpack.c.l.b16 %v6455
        %v6719 = vunpack.c.l.b16 %v6456
        %v6720 = vunpack.c.l.b16 %v6457
        %v6721 = vunpack.c.l.b16 %v6458
        %v6722 = vunpack.c.l.b16 %v6459
        %v6723 = vunpack.c.l.b16 %v6460
        %v6724 = vunpack.c.l.b16 %v6461
        %v6725 = vunpack.c.l.b16 %v6462
        %v6726 = vunpack.c.l.b16 %v6463
        %v6727 = vunpack.c.l.b16 %v6464
        %v6728 = vunpack.c.l.b16 %v6465
        %v6729 = vunpack.c.l.b16 %v6466
        %v6730 = vunpack.c.l.b16 %v6467
        %v6731 = vunpack.c.l.b16 %v6468
        %v6732 = vunpack.c.l.b16 %v6469
        %v6733 = vunpack.c.l.b16 %v6470
        %v6734 = vunpack.c.l.b16 %v6471
        %v6735 = vunpack.c.l.b16 %v6472
        %v6736 = vunpack.c.l.b16 %v6473
        %v6737 = vunpack.c.l.b16 %v6474
        %v6738 = vunpack.c.l.b16 %v6475
        %v6739 = vunpack.c.l.b16 %v6476
        %v6740 = vunpack.c.l.b16 %v6477
        %v6741 = vunpack.c.l.b16 %v6478
        %v6742 = vunpack.c.l.b16 %v6479
        %v6743 = vunpack.c.l.b16 %v6480
        %v6744 = vunpack.c.l.b16 %v6481
        %v6745 = vunpack.c.l.b16 %v6482
        %v6746 = vunpack.c.l.b16 %v6483
        %v6747 = vunpack.c.l.b16 %v6484
        %v6748 = vunpack.c.l.b16 %v6485
        %v6749 = vunpack.c.l.b16 %v6486
        %v6750 = vunpack.c.l.b16 %v6487
        %v6751 = vunpack.c.l.b16 %v6488
        %v6752 = vunpack.c.l.b16 %v6489
        %v6753 = vunpack.c.l.b16 %v6490
        %v6754 = vunpack.c.l.b16 %v6491
        %v6755 = vunpack.c.l.b16 %v6492
        %v6756 = vunpack.c.l.b16 %v6493
        %v6757 = vunpack.c.l.b16 %v6494
        %v6758 = vunpack.c.l.b16 %v6495
        %v6759 = vunpack.c.l.b16 %v6496
        %v6760 = vunpack.c.l.b16 %v6497
        %v6761 = vunpack.c.l.b16 %v6498
        %v6762 = vunpack.c.l.b16 %v6499
        %v6763 = vunpack.c.l.b16 %v6500
        %v6764 = vunpack.c.l.b16 %v6501
        %v6765 = vunpack.c.l.b16 %v6502
        %v6766 = vunpack.c.l.b16 %v6503
        %v6767 = vunpack.c.l.b16 %v6504
        %v6768 = vunpack.c.l.b16 %v6505
        %v6769 = vunpack.c.l.b16 %v6506
        %v6770 = vunpack.c.l.b16 %v6507
        %v6771 = vunpack.c.l.b16 %v6508
        %v6772 = vunpack.c.l.b16 %v6509
        %v6773 = vunpack.c.l.b16 %v6510
        %v6774 = vunpack.c.l.b16 %v6511
        %v6775 = vunpack.c.l.b16 %v6512
        %v6776 = vunpack.c.l.b16 %v6513
        %v6777 = vunpack.c.l.b16 %v6514
        %v6778 = vunpack.c.l.b16 %v6515
        %v6779 = vunpack.c.l.b16 %v6516
        %v6780 = vunpack.c.l.b16 %v6517
        %v6781 = vunpack.c.l.b16 %v6518
        %v6782 = vunpack.c.l.b16 %v6519
        %v6783 = vunpack.c.l.b16 %v6520
        %v6784 = vunpack.c.l.b16 %v6521
        %v6785 = vunpack.c.l.b16 %v6522
        %v6786 = vunpack.c.l.b16 %v6523
        %v6787 = vunpack.c.l.b16 %v6524
        %v6788 = vunpack.c.l.b16 %v6525
        %v6789 = vunpack.c.l.b16 %v6526
        %v6790 = vunpack.c.l.b16 %v6527
        %v6791 = vunpack.c.l.b16 %v6528
        %v6792 = vunpack.c.l.b16 %v6529
        %v6793 = vunpack.c.l.b16 %v6530
        %v6794 = vunpack.c.l.b16 %v6531
        %v6795 = vunpack.c.l.b16 %v6532
        %v6796 = vunpack.c.l.b16 %v6533
        %v6797 = vunpack.c.l.b16 %v6534
        %v6798 = vunpack.c.l.b16 %v6535
        %v6799 = vunpack.c.l.b16 %v6536
        %v6800 = vunpack.c.l.b16 %v6537
        %v6801 = vunpack.c.l.b16 %v6538
        %v6802 = vunpack.c.l.b16 %v6539
        %v6803 = vunpack.c.l.b16 %v6540
        %v6804 = vunpack.c.l.b16 %v6541
        %v6805 = vunpack.c.l.b16 %v6542
        %v6806 = vunpack.c.l.b16 %v6543
        %v6807 = vunpack.c.l.b16 %v6544
        %v6808 = vunpack.c.l.b16 %v6545
        %v6809 = vunpack.c.l.b16 %v6546
        %v6810 = vunpack.c.l.b16 %v6547
        %v6811 = vunpack.c.l.b16 %v6548
        %v6812 = vunpack.c.l.b16 %v6549
        %v6813 = vunpack.c.l.b16 %v6550
        %v6814 = vunpack.c.l.b16 %v6551
        %v6815 = vunpack.c.l.b16 %v6552
        %v6816 = vunpack.c.l.b16 %v6553
        %v6817 = vunpack.c.l.b16 %v6554
        %v6818 = vunpack.c.l.b16 %v6555
        %v6819 = vunpack.c.l.b16 %v6556
        %v6820 = vunpack.c.l.b16 %v6557
        %v6821 = vunpack.c.l.b16 %v6558
        %v6822 = vunpack.c.l.b16 %v6559
        %v6823 = vunpack.c.l.b16 %v6560
        %v6824 = vunpack.c.l.b16 %v6561
        %v6825 = vunpack.c.l.b16 %v6562
        %v6826 = vunpack.c.l.b16 %v6563
        %v6827 = vunpack.c.l.b16 %v6564
        %v6828 = vunpack.c.l.b16 %v6565
        %v6829 = vunpack.c.l.b16 %v6566
        %v6830 = vunpack.c.l.b16 %v6567
        %v6831 = vunpack.c.l.b16 %v6568
        %v6832 = vunpack.c.l.b16 %v6569
        %v6833 = vunpack.c.l.b16 %v6570
        %v6834 = vunpack.c.l.b16 %v6571
        %v6835 = vunpack.c.l.b16 %v6572
        %v6836 = vunpack.c.l.b16 %v6573
        %v6837 = vunpack.c.l.b16 %v6574
        %v6838 = vunpack.c.l.b16 %v6575
        %v6839 = vunpack.c.l.b16 %v6576
        %v6840 = vpack.c.b16 %v6713, %v6712
        %v6841 = vpack.c.b16 %v6715, %v6714
        %v6842 = vpack.c.b16 %v6717, %v6716
        %v6843 = vpack.c.b16 %v6719, %v6718
        %v6844 = vpack.c.b16 %v6721, %v6720
        %v6845 = vpack.c.b16 %v6723, %v6722
        %v6846 = vpack.c.b16 %v6725, %v6724
        %v6847 = vpack.c.b16 %v6727, %v6726
        %v6848 = vpack.c.b16 %v6729, %v6728
        %v6849 = vpack.c.b16 %v6731, %v6730
        %v6850 = vpack.c.b16 %v6733, %v6732
        %v6851 = vpack.c.b16 %v6735, %v6734
        %v6852 = vpack.c.b16 %v6737, %v6736
        %v6853 = vpack.c.b16 %v6739, %v6738
        %v6854 = vpack.c.b16 %v6741, %v6740
        %v6855 = vpack.c.b16 %v6743, %v6742
        %v6856 = vpack.c.b16 %v6745, %v6744
        %v6857 = vpack.c.b16 %v6747, %v6746
        %v6858 = vpack.c.b16 %v6749, %v6748
        %v6859 = vpack.c.b16 %v6751, %v6750
        %v6860 = vpack.c.b16 %v6753, %v6752
        %v6861 = vpack.c.b16 %v6755, %v6754
        %v6862 = vpack.c.b16 %v6757, %v6756
        %v6863 = vpack.c.b16 %v6759, %v6758
        %v6864 = vpack.c.b16 %v6761, %v6760
        %v6865 = vpack.c.b16 %v6763, %v6762
        %v6866 = vpack.c.b16 %v6765, %v6764
        %v6867 = vpack.c.b16 %v6767, %v6766
        %v6868 = vpack.c.b16 %v6769, %v6768
        %v6869 = vpack.c.b16 %v6771, %v6770
        %v6870 = vpack.c.b16 %v6773, %v6772
        %v6871 = vpack.c.b16 %v6775, %v6774
        %v6872 = vpack.c.b16 %v6777, %v6776
        %v6873 = vpack.c.b16 %v6779, %v6778
        %v6874 = vpack.c.b16 %v6781, %v6780
        %v6875 = vpack.c.b16 %v6783, %v6782
        %v6876 = vpack.c.b16 %v6785, %v6784
        %v6877 = vpack.c.b16 %v6787, %v6786
        %v6878 = vpack.c.b16 %v6789, %v6788
        %v6879 = vpack.c.b16 %v6791, %v6790
        %v6880 = vpack.c.b16 %v6793, %v6792
        %v6881 = vpack.c.b16 %v6795, %v6794
        %v6882 = vpack.c.b16 %v6797, %v6796
        %v6883 = vpack.c.b16 %v6799, %v6798
        %v6884 = vpack.c.b16 %v6801, %v6800
        %v6885 = vpack.c.b16 %v6803, %v6802
        %v6886 = vpack.c.b16 %v6805, %v6804
        %v6887 = vpack.c.b16 %v6807, %v6806
        %v6888 = vpack.c.b16 %v6809, %v6808
        %v6889 = vpack.c.b16 %v6811, %v6810
        %v6890 = vpack.c.b16 %v6813, %v6812
        %v6891 = vpack.c.b16 %v6815, %v6814
        %v6892 = vpack.c.b16 %v6817, %v6816
        %v6893 = vpack.c.b16 %v6819, %v6818
        %v6894 = vpack.c.b16 %v6821, %v6820
        %v6895 = vpack.c.b16 %v6823, %v6822
        %v6896 = vpack.c.b16 %v6825, %v6824
        %v6897 = vpack.c.b16 %v6827, %v6826
        %v6898 = vpack.c.b16 %v6829, %v6828
        %v6899 = vpack.c.b16 %v6831, %v6830
        %v6900 = vpack.c.b16 %v6833, %v6832
        %v6901 = vpack.c.b16 %v6835, %v6834
        %v6902 = vpack.c.b16 %v6837, %v6836
        %v6903 = vpack.c.b16 %v6839, %v6838
        %6968 = vmatprep.subr.bf16.mxu0 0
        %6969 = vmatpush1.bf16.msra.mxu0 %v6840
        %6970 = vmatprep.subr.bf16.mxu0 0
        %6971 = vmatpush1.bf16.msra.mxu0 %v6841
        %6972 = vmatprep.subr.bf16.mxu0 0
        %6973 = vmatpush1.bf16.msra.mxu0 %v6842
        %6974 = vmatprep.subr.bf16.mxu0 0
        %6975 = vmatpush1.bf16.msra.mxu0 %v6843
        %6976 = vmatprep.subr.bf16.mxu0 0
        %6977 = vmatpush1.bf16.msra.mxu0 %v6844
        %6978 = vmatprep.subr.bf16.mxu0 0
        %6979 = vmatpush1.bf16.msra.mxu0 %v6845
        %6980 = vmatprep.subr.bf16.mxu0 0
        %6981 = vmatpush1.bf16.msra.mxu0 %v6846
        %6982 = vmatprep.subr.bf16.mxu0 0
        %6983 = vmatpush1.bf16.msra.mxu0 %v6847
        %6984 = vmatprep.subr.bf16.mxu0 0
        %6985 = vmatpush1.bf16.msra.mxu0 %v6848
        %6986 = vmatprep.subr.bf16.mxu0 0
        %6987 = vmatpush1.bf16.msra.mxu0 %v6849
        %6988 = vmatprep.subr.bf16.mxu0 0
        %6989 = vmatpush1.bf16.msra.mxu0 %v6850
        %6990 = vmatprep.subr.bf16.mxu0 0
        %6991 = vmatpush1.bf16.msra.mxu0 %v6851
        %6992 = vmatprep.subr.bf16.mxu0 0
        %6993 = vmatpush1.bf16.msra.mxu0 %v6852
        %6994 = vmatprep.subr.bf16.mxu0 0
        %6995 = vmatpush1.bf16.msra.mxu0 %v6853
        %6996 = vmatprep.subr.bf16.mxu0 0
        %6997 = vmatpush1.bf16.msra.mxu0 %v6854
        %6998 = vmatprep.subr.bf16.mxu0 0
        %6999 = vmatpush1.bf16.msra.mxu0 %v6855
        %7000 = vmatprep.mubr.bf16.mxu0 %v6322
        %7001 = vmatmul.mubr.bf16.gmra.mrb[0].mxu0 %v6321
        %v7002 = vpop.f32.mrb[0].mxu0
        %v7003 = vadd.f32 %v6582, %v7002
        %v7004 = vpop.f32.mrb[0].mxu0
        %v7005 = vpop.f32.mrb[0].mxu0
        %v7006 = vadd.f32 %v6582, %v7005
        %v7007 = vpop.f32.mrb[0].mxu0
        %7008 = vmatprep.mubr.bf16.mxu0 %v6330
        %7009 = vmatmul.mubr.bf16.gmra.mrb[0].mxu0 %v6329
        %v7010 = vpop.f32.mrb[0].mxu0
        %v7011 = vadd.f32 %v6582, %v7010
        %v7012 = vpop.f32.mrb[0].mxu0
        %v7013 = vpop.f32.mrb[0].mxu0
        %v7014 = vadd.f32 %v6582, %v7013
        %v7015 = vpop.f32.mrb[0].mxu0
        %7016 = vmatprep.mubr.bf16.mxu0 %v6338
        %7017 = vmatmul.mubr.bf16.gmra.mrb[0].mxu0 %v6337
        %v7018 = vpop.f32.mrb[0].mxu0
        %v7019 = vadd.f32 %v6582, %v7018
        %v7020 = vpop.f32.mrb[0].mxu0
        %v7021 = vpop.f32.mrb[0].mxu0
        %v7022 = vadd.f32 %v6582, %v7021
        %v7023 = vpop.f32.mrb[0].mxu0
        %7024 = vmatprep.mubr.bf16.mxu0 %v6346
        %7025 = vmatmul.mubr.bf16.gmra.mrb[0].mxu0 %v6345
        %v7026 = vpop.f32.mrb[0].mxu0
        %v7027 = vadd.f32 %v6582, %v7026
        %v7028 = vpop.f32.mrb[0].mxu0
        %v7029 = vpop.f32.mrb[0].mxu0
        %v7030 = vadd.f32 %v6582, %v7029
        %v7031 = vpop.f32.mrb[0].mxu0
        %7032 = vmatprep.mubr.bf16.mxu0 %v6354
        %7033 = vmatmul.mubr.bf16.gmra.mrb[0].mxu0 %v6353
        %v7034 = vpop.f32.mrb[0].mxu0
        %v7035 = vadd.f32 %v6582, %v7034
        %v7036 = vpop.f32.mrb[0].mxu0
        %v7037 = vpop.f32.mrb[0].mxu0
        %v7038 = vadd.f32 %v6582, %v7037
        %v7039 = vpop.f32.mrb[0].mxu0
        %7040 = vmatprep.mubr.bf16.mxu0 %v6362
        %7041 = vmatmul.mubr.bf16.gmra.mrb[0].mxu0 %v6361
        %v7042 = vpop.f32.mrb[0].mxu0
        %v7043 = vadd.f32 %v6582, %v7042
        %v7044 = vpop.f32.mrb[0].mxu0
        %v7045 = vpop.f32.mrb[0].mxu0
        %v7046 = vadd.f32 %v6582, %v7045
        %v7047 = vpop.f32.mrb[0].mxu0
        %7048 = vmatprep.mubr.bf16.mxu0 %v6370
        %7049 = vmatmul.mubr.bf16.gmra.mrb[0].mxu0 %v6369
        %v7050 = vpop.f32.mrb[0].mxu0
        %v7051 = vadd.f32 %v6582, %v7050
        %v7052 = vpop.f32.mrb[0].mxu0
        %v7053 = vpop.f32.mrb[0].mxu0
        %v7054 = vadd.f32 %v6582, %v7053
        %v7055 = vpop.f32.mrb[0].mxu0
        %7056 = vmatprep.mubr.bf16.mxu0 %v6378
        %7057 = vmatmul.mubr.bf16.gmra.mrb[0].mxu0 %v6377
        %v7058 = vpop.f32.mrb[0].mxu0
        %v7059 = vadd.f32 %v6582, %v7058
        %v7060 = vpop.f32.mrb[0].mxu0
        %v7061 = vpop.f32.mrb[0].mxu0
        %v7062 = vadd.f32 %v6582, %v7061
        %v7063 = vpop.f32.mrb[0].mxu0
        %7064 = vmatprep.mubr.bf16.mxu0 %v6386
        %7065 = vmatmul.mubr.bf16.gmra.mrb[0].mxu0 %v6385
        %v7066 = vpop.f32.mrb[0].mxu0
        %v7067 = vadd.f32 %v6582, %v7066
        %v7068 = vpop.f32.mrb[0].mxu0
        %v7069 = vpop.f32.mrb[0].mxu0
        %v7070 = vadd.f32 %v6582, %v7069
        %v7071 = vpop.f32.mrb[0].mxu0
        %7072 = vmatprep.mubr.bf16.mxu0 %v6394
        %7073 = vmatmul.mubr.bf16.gmra.mrb[0].mxu0 %v6393
        %v7074 = vpop.f32.mrb[0].mxu0
        %v7075 = vadd.f32 %v6582, %v7074
        %v7076 = vpop.f32.mrb[0].mxu0
        %v7077 = vpop.f32.mrb[0].mxu0
        %v7078 = vadd.f32 %v6582, %v7077
        %v7079 = vpop.f32.mrb[0].mxu0
        %7080 = vmatprep.mubr.bf16.mxu0 %v6402
        %7081 = vmatmul.mubr.bf16.gmra.mrb[0].mxu0 %v6401
        %v7082 = vpop.f32.mrb[0].mxu0
        %v7083 = vadd.f32 %v6582, %v7082
        %v7084 = vpop.f32.mrb[0].mxu0
        %v7085 = vpop.f32.mrb[0].mxu0
        %v7086 = vadd.f32 %v6582, %v7085
        %v7087 = vpop.f32.mrb[0].mxu0
        %7088 = vmatprep.mubr.bf16.mxu0 %v6410
        %7089 = vmatmul.mubr.bf16.gmra.mrb[0].mxu0 %v6409
        %v7090 = vpop.f32.mrb[0].mxu0
        %v7091 = vadd.f32 %v6582, %v7090
        %v7092 = vpop.f32.mrb[0].mxu0
        %v7093 = vpop.f32.mrb[0].mxu0
        %v7094 = vadd.f32 %v6582, %v7093
        %v7095 = vpop.f32.mrb[0].mxu0
        %7096 = vmatprep.mubr.bf16.mxu0 %v6418
        %7097 = vmatmul.mubr.bf16.gmra.mrb[0].mxu0 %v6417
        %v7098 = vpop.f32.mrb[0].mxu0
        %v7099 = vadd.f32 %v6582, %v7098
        %v7100 = vpop.f32.mrb[0].mxu0
        %v7101 = vpop.f32.mrb[0].mxu0
        %v7102 = vadd.f32 %v6582, %v7101
        %v7103 = vpop.f32.mrb[0].mxu0
        %7104 = vmatprep.mubr.bf16.mxu0 %v6426
        %7105 = vmatmul.mubr.bf16.gmra.mrb[0].mxu0 %v6425
        %v7106 = vpop.f32.mrb[0].mxu0
        %v7107 = vadd.f32 %v6582, %v7106
        %v7108 = vpop.f32.mrb[0].mxu0
        %v7109 = vpop.f32.mrb[0].mxu0
        %v7110 = vadd.f32 %v6582, %v7109
        %v7111 = vpop.f32.mrb[0].mxu0
        %7112 = vmatprep.mubr.bf16.mxu0 %v6434
        %7113 = vmatmul.mubr.bf16.gmra.mrb[0].mxu0 %v6433
        %v7114 = vpop.f32.mrb[0].mxu0
        %v7115 = vadd.f32 %v6582, %v7114
        %v7116 = vpop.f32.mrb[0].mxu0
        %v7117 = vpop.f32.mrb[0].mxu0
        %v7118 = vadd.f32 %v6582, %v7117
        %v7119 = vpop.f32.mrb[0].mxu0
        %7120 = vmatprep.mubr.bf16.mxu0 %v6442
        %7121 = vmatmul.mubr.bf16.gmra.mrb[0].mxu0 %v6441
        %v7122 = vpop.f32.mrb[0].mxu0
        %v7123 = vadd.f32 %v6582, %v7122
        %v7124 = vpop.f32.mrb[0].mxu0
        %v7125 = vpop.f32.mrb[0].mxu0
        %v7126 = vadd.f32 %v6582, %v7125
        %v7127 = vpop.f32.mrb[0].mxu0
        %7128 = vdwg.mxu0
        %7129 = vmatprep.subr.bf16.mxu0 0
        %7130 = vmatpush1.bf16.msra.mxu0 %v6856
        %7131 = vmatprep.subr.bf16.mxu0 0
        %7132 = vmatpush1.bf16.msra.mxu0 %v6857
        %7133 = vmatprep.subr.bf16.mxu0 0
        %7134 = vmatpush1.bf16.msra.mxu0 %v6858
        %7135 = vmatprep.subr.bf16.mxu0 0
        %7136 = vmatpush1.bf16.msra.mxu0 %v6859
        %7137 = vmatprep.subr.bf16.mxu0 0
        %7138 = vmatpush1.bf16.msra.mxu0 %v6860
        %7139 = vmatprep.subr.bf16.mxu0 0
        %7140 = vmatpush1.bf16.msra.mxu0 %v6861
        %7141 = vmatprep.subr.bf16.mxu0 0
        %7142 = vmatpush1.bf16.msra.mxu0 %v6862
        %7143 = vmatprep.subr.bf16.mxu0 0
        %7144 = vmatpush1.bf16.msra.mxu0 %v6863
        %7145 = vmatprep.subr.bf16.mxu0 0
        %7146 = vmatpush1.bf16.msra.mxu0 %v6864
        %7147 = vmatprep.subr.bf16.mxu0 0
        %7148 = vmatpush1.bf16.msra.mxu0 %v6865
        %7149 = vmatprep.subr.bf16.mxu0 0
        %7150 = vmatpush1.bf16.msra.mxu0 %v6866
        %7151 = vmatprep.subr.bf16.mxu0 0
        %7152 = vmatpush1.bf16.msra.mxu0 %v6867
        %7153 = vmatprep.subr.bf16.mxu0 0
        %7154 = vmatpush1.bf16.msra.mxu0 %v6868
        %7155 = vmatprep.subr.bf16.mxu0 0
        %7156 = vmatpush1.bf16.msra.mxu0 %v6869
        %7157 = vmatprep.subr.bf16.mxu0 0
        %7158 = vmatpush1.bf16.msra.mxu0 %v6870
        %7159 = vmatprep.subr.bf16.mxu0 0
        %7160 = vmatpush1.bf16.msra.mxu0 %v6871
        %7161 = vmatprep.mubr.bf16.mxu0 %v6324
        %7162 = vmatmul.mubr.bf16.gmra.mrb[0].mxu0 %v6323
        %v7163 = vpop.f32.mrb[0].mxu0
        %v7164 = vadd.f32 %v7003, %v7163
        %v7165 = vpop.f32.mrb[0].mxu0
        %v7166 = vpop.f32.mrb[0].mxu0
        %v7167 = vadd.f32 %v7006, %v7166
        %v7168 = vpop.f32.mrb[0].mxu0
        %7169 = vmatprep.mubr.bf16.mxu0 %v6332
        %7170 = vmatmul.mubr.bf16.gmra.mrb[0].mxu0 %v6331
        %v7171 = vpop.f32.mrb[0].mxu0
        %v7172 = vadd.f32 %v7011, %v7171
        %v7173 = vpop.f32.mrb[0].mxu0
        %v7174 = vpop.f32.mrb[0].mxu0
        %v7175 = vadd.f32 %v7014, %v7174
        %v7176 = vpop.f32.mrb[0].mxu0
        %7177 = vmatprep.mubr.bf16.mxu0 %v6340
        %7178 = vmatmul.mubr.bf16.gmra.mrb[0].mxu0 %v6339
        %v7179 = vpop.f32.mrb[0].mxu0
        %v7180 = vadd.f32 %v7019, %v7179
        %v7181 = vpop.f32.mrb[0].mxu0
        %v7182 = vpop.f32.mrb[0].mxu0
        %v7183 = vadd.f32 %v7022, %v7182
        %v7184 = vpop.f32.mrb[0].mxu0
        %7185 = vmatprep.mubr.bf16.mxu0 %v6348
        %7186 = vmatmul.mubr.bf16.gmra.mrb[0].mxu0 %v6347
        %v7187 = vpop.f32.mrb[0].mxu0
        %v7188 = vadd.f32 %v7027, %v7187
        %v7189 = vpop.f32.mrb[0].mxu0
        %v7190 = vpop.f32.mrb[0].mxu0
        %v7191 = vadd.f32 %v7030, %v7190
        %v7192 = vpop.f32.mrb[0].mxu0
        %7193 = vmatprep.mubr.bf16.mxu0 %v6356
        %7194 = vmatmul.mubr.bf16.gmra.mrb[0].mxu0 %v6355
        %v7195 = vpop.f32.mrb[0].mxu0
        %v7196 = vadd.f32 %v7035, %v7195
        %v7197 = vpop.f32.mrb[0].mxu0
        %v7198 = vpop.f32.mrb[0].mxu0
        %v7199 = vadd.f32 %v7038, %v7198
        %v7200 = vpop.f32.mrb[0].mxu0
        %7201 = vmatprep.mubr.bf16.mxu0 %v6364
        %7202 = vmatmul.mubr.bf16.gmra.mrb[0].mxu0 %v6363
        %v7203 = vpop.f32.mrb[0].mxu0
        %v7204 = vadd.f32 %v7043, %v7203
        %v7205 = vpop.f32.mrb[0].mxu0
        %v7206 = vpop.f32.mrb[0].mxu0
        %v7207 = vadd.f32 %v7046, %v7206
        %v7208 = vpop.f32.mrb[0].mxu0
        %7209 = vmatprep.mubr.bf16.mxu0 %v6372
        %7210 = vmatmul.mubr.bf16.gmra.mrb[0].mxu0 %v6371
        %v7211 = vpop.f32.mrb[0].mxu0
        %v7212 = vadd.f32 %v7051, %v7211
        %v7213 = vpop.f32.mrb[0].mxu0
        %v7214 = vpop.f32.mrb[0].mxu0
        %v7215 = vadd.f32 %v7054, %v7214
        %v7216 = vpop.f32.mrb[0].mxu0
        %7217 = vmatprep.mubr.bf16.mxu0 %v6380
        %7218 = vmatmul.mubr.bf16.gmra.mrb[0].mxu0 %v6379
        %v7219 = vpop.f32.mrb[0].mxu0
        %v7220 = vadd.f32 %v7059, %v7219
        %v7221 = vpop.f32.mrb[0].mxu0
        %v7222 = vpop.f32.mrb[0].mxu0
        %v7223 = vadd.f32 %v7062, %v7222
        %v7224 = vpop.f32.mrb[0].mxu0
        %7225 = vmatprep.mubr.bf16.mxu0 %v6388
        %7226 = vmatmul.mubr.bf16.gmra.mrb[0].mxu0 %v6387
        %v7227 = vpop.f32.mrb[0].mxu0
        %v7228 = vadd.f32 %v7067, %v7227
        %v7229 = vpop.f32.mrb[0].mxu0
        %v7230 = vpop.f32.mrb[0].mxu0
        %v7231 = vadd.f32 %v7070, %v7230
        %v7232 = vpop.f32.mrb[0].mxu0
        %7233 = vmatprep.mubr.bf16.mxu0 %v6396
        %7234 = vmatmul.mubr.bf16.gmra.mrb[0].mxu0 %v6395
        %v7235 = vpop.f32.mrb[0].mxu0
        %v7236 = vadd.f32 %v7075, %v7235
        %v7237 = vpop.f32.mrb[0].mxu0
        %v7238 = vpop.f32.mrb[0].mxu0
        %v7239 = vadd.f32 %v7078, %v7238
        %v7240 = vpop.f32.mrb[0].mxu0
        %7241 = vmatprep.mubr.bf16.mxu0 %v6404
        %7242 = vmatmul.mubr.bf16.gmra.mrb[0].mxu0 %v6403
        %v7243 = vpop.f32.mrb[0].mxu0
        %v7244 = vadd.f32 %v7083, %v7243
        %v7245 = vpop.f32.mrb[0].mxu0
        %v7246 = vpop.f32.mrb[0].mxu0
        %v7247 = vadd.f32 %v7086, %v7246
        %v7248 = vpop.f32.mrb[0].mxu0
        %7249 = vmatprep.mubr.bf16.mxu0 %v6412
        %7250 = vmatmul.mubr.bf16.gmra.mrb[0].mxu0 %v6411
        %v7251 = vpop.f32.mrb[0].mxu0
        %v7252 = vadd.f32 %v7091, %v7251
        %v7253 = vpop.f32.mrb[0].mxu0
        %v7254 = vpop.f32.mrb[0].mxu0
        %v7255 = vadd.f32 %v7094, %v7254
        %v7256 = vpop.f32.mrb[0].mxu0
        %7257 = vmatprep.mubr.bf16.mxu0 %v6420
        %7258 = vmatmul.mubr.bf16.gmra.mrb[0].mxu0 %v6419
        %v7259 = vpop.f32.mrb[0].mxu0
        %v7260 = vadd.f32 %v7099, %v7259
        %v7261 = vpop.f32.mrb[0].mxu0
        %v7262 = vpop.f32.mrb[0].mxu0
        %v7263 = vadd.f32 %v7102, %v7262
        %v7264 = vpop.f32.mrb[0].mxu0
        %7265 = vmatprep.mubr.bf16.mxu0 %v6428
        %7266 = vmatmul.mubr.bf16.gmra.mrb[0].mxu0 %v6427
        %v7267 = vpop.f32.mrb[0].mxu0
        %v7268 = vadd.f32 %v7107, %v7267
        %v7269 = vpop.f32.mrb[0].mxu0
        %v7270 = vpop.f32.mrb[0].mxu0
        %v7271 = vadd.f32 %v7110, %v7270
        %v7272 = vpop.f32.mrb[0].mxu0
        %7273 = vmatprep.mubr.bf16.mxu0 %v6436
        %7274 = vmatmul.mubr.bf16.gmra.mrb[0].mxu0 %v6435
        %v7275 = vpop.f32.mrb[0].mxu0
        %v7276 = vadd.f32 %v7115, %v7275
        %v7277 = vpop.f32.mrb[0].mxu0
        %v7278 = vpop.f32.mrb[0].mxu0
        %v7279 = vadd.f32 %v7118, %v7278
        %v7280 = vpop.f32.mrb[0].mxu0
        %7281 = vmatprep.mubr.bf16.mxu0 %v6444
        %7282 = vmatmul.mubr.bf16.gmra.mrb[0].mxu0 %v6443
        %v7283 = vpop.f32.mrb[0].mxu0
        %v7284 = vadd.f32 %v7123, %v7283
        %v7285 = vpop.f32.mrb[0].mxu0
        %v7286 = vpop.f32.mrb[0].mxu0
        %v7287 = vadd.f32 %v7126, %v7286
        %v7288 = vpop.f32.mrb[0].mxu0
        %7289 = vdwg.mxu0
        %7290 = vmatprep.subr.bf16.mxu0 0
        %7291 = vmatpush1.bf16.msra.mxu0 %v6872
        %7292 = vmatprep.subr.bf16.mxu0 0
        %7293 = vmatpush1.bf16.msra.mxu0 %v6873
        %7294 = vmatprep.subr.bf16.mxu0 0
        %7295 = vmatpush1.bf16.msra.mxu0 %v6874
        %7296 = vmatprep.subr.bf16.mxu0 0
        %7297 = vmatpush1.bf16.msra.mxu0 %v6875
        %7298 = vmatprep.subr.bf16.mxu0 0
        %7299 = vmatpush1.bf16.msra.mxu0 %v6876
        %7300 = vmatprep.subr.bf16.mxu0 0
        %7301 = vmatpush1.bf16.msra.mxu0 %v6877
        %7302 = vmatprep.subr.bf16.mxu0 0
        %7303 = vmatpush1.bf16.msra.mxu0 %v6878
        %7304 = vmatprep.subr.bf16.mxu0 0
        %7305 = vmatpush1.bf16.msra.mxu0 %v6879
        %7306 = vmatprep.subr.bf16.mxu0 0
        %7307 = vmatpush1.bf16.msra.mxu0 %v6880
        %7308 = vmatprep.subr.bf16.mxu0 0
        %7309 = vmatpush1.bf16.msra.mxu0 %v6881
        %7310 = vmatprep.subr.bf16.mxu0 0
        %7311 = vmatpush1.bf16.msra.mxu0 %v6882
        %7312 = vmatprep.subr.bf16.mxu0 0
        %7313 = vmatpush1.bf16.msra.mxu0 %v6883
        %7314 = vmatprep.subr.bf16.mxu0 0
        %7315 = vmatpush1.bf16.msra.mxu0 %v6884
        %7316 = vmatprep.subr.bf16.mxu0 0
        %7317 = vmatpush1.bf16.msra.mxu0 %v6885
        %7318 = vmatprep.subr.bf16.mxu0 0
        %7319 = vmatpush1.bf16.msra.mxu0 %v6886
        %7320 = vmatprep.subr.bf16.mxu0 0
        %7321 = vmatpush1.bf16.msra.mxu0 %v6887
        %7322 = vmatprep.mubr.bf16.mxu0 %v6326
        %7323 = vmatmul.mubr.bf16.gmra.mrb[0].mxu0 %v6325
        %v7324 = vpop.f32.mrb[0].mxu0
        %v7325 = vadd.f32 %v7164, %v7324
        %v7326 = vpop.f32.mrb[0].mxu0
        %v7327 = vpop.f32.mrb[0].mxu0
        %v7328 = vadd.f32 %v7167, %v7327
        %v7329 = vpop.f32.mrb[0].mxu0
        %7330 = vmatprep.mubr.bf16.mxu0 %v6334
        %7331 = vmatmul.mubr.bf16.gmra.mrb[0].mxu0 %v6333
        %v7332 = vpop.f32.mrb[0].mxu0
        %v7333 = vadd.f32 %v7172, %v7332
        %v7334 = vpop.f32.mrb[0].mxu0
        %v7335 = vpop.f32.mrb[0].mxu0
        %v7336 = vadd.f32 %v7175, %v7335
        %v7337 = vpop.f32.mrb[0].mxu0
        %7338 = vmatprep.mubr.bf16.mxu0 %v6342
        %7339 = vmatmul.mubr.bf16.gmra.mrb[0].mxu0 %v6341
        %v7340 = vpop.f32.mrb[0].mxu0
        %v7341 = vadd.f32 %v7180, %v7340
        %v7342 = vpop.f32.mrb[0].mxu0
        %v7343 = vpop.f32.mrb[0].mxu0
        %v7344 = vadd.f32 %v7183, %v7343
        %v7345 = vpop.f32.mrb[0].mxu0
        %7346 = vmatprep.mubr.bf16.mxu0 %v6350
        %7347 = vmatmul.mubr.bf16.gmra.mrb[0].mxu0 %v6349
        %v7348 = vpop.f32.mrb[0].mxu0
        %v7349 = vadd.f32 %v7188, %v7348
        %v7350 = vpop.f32.mrb[0].mxu0
        %v7351 = vpop.f32.mrb[0].mxu0
        %v7352 = vadd.f32 %v7191, %v7351
        %v7353 = vpop.f32.mrb[0].mxu0
        %7354 = vmatprep.mubr.bf16.mxu0 %v6358
        %7355 = vmatmul.mubr.bf16.gmra.mrb[0].mxu0 %v6357
        %v7356 = vpop.f32.mrb[0].mxu0
        %v7357 = vadd.f32 %v7196, %v7356
        %v7358 = vpop.f32.mrb[0].mxu0
        %v7359 = vpop.f32.mrb[0].mxu0
        %v7360 = vadd.f32 %v7199, %v7359
        %v7361 = vpop.f32.mrb[0].mxu0
        %7362 = vmatprep.mubr.bf16.mxu0 %v6366
        %7363 = vmatmul.mubr.bf16.gmra.mrb[0].mxu0 %v6365
        %v7364 = vpop.f32.mrb[0].mxu0
        %v7365 = vadd.f32 %v7204, %v7364
        %v7366 = vpop.f32.mrb[0].mxu0
        %v7367 = vpop.f32.mrb[0].mxu0
        %v7368 = vadd.f32 %v7207, %v7367
        %v7369 = vpop.f32.mrb[0].mxu0
        %7370 = vmatprep.mubr.bf16.mxu0 %v6374
        %7371 = vmatmul.mubr.bf16.gmra.mrb[0].mxu0 %v6373
        %v7372 = vpop.f32.mrb[0].mxu0
        %v7373 = vadd.f32 %v7212, %v7372
        %v7374 = vpop.f32.mrb[0].mxu0
        %v7375 = vpop.f32.mrb[0].mxu0
        %v7376 = vadd.f32 %v7215, %v7375
        %v7377 = vpop.f32.mrb[0].mxu0
        %7378 = vmatprep.mubr.bf16.mxu0 %v6382
        %7379 = vmatmul.mubr.bf16.gmra.mrb[0].mxu0 %v6381
        %v7380 = vpop.f32.mrb[0].mxu0
        %v7381 = vadd.f32 %v7220, %v7380
        %v7382 = vpop.f32.mrb[0].mxu0
        %v7383 = vpop.f32.mrb[0].mxu0
        %v7384 = vadd.f32 %v7223, %v7383
        %v7385 = vpop.f32.mrb[0].mxu0
        %7386 = vmatprep.mubr.bf16.mxu0 %v6390
        %7387 = vmatmul.mubr.bf16.gmra.mrb[0].mxu0 %v6389
        %v7388 = vpop.f32.mrb[0].mxu0
        %v7389 = vadd.f32 %v7228, %v7388
        %v7390 = vpop.f32.mrb[0].mxu0
        %v7391 = vpop.f32.mrb[0].mxu0
        %v7392 = vadd.f32 %v7231, %v7391
        %v7393 = vpop.f32.mrb[0].mxu0
        %7394 = vmatprep.mubr.bf16.mxu0 %v6398
        %7395 = vmatmul.mubr.bf16.gmra.mrb[0].mxu0 %v6397
        %v7396 = vpop.f32.mrb[0].mxu0
        %v7397 = vadd.f32 %v7236, %v7396
        %v7398 = vpop.f32.mrb[0].mxu0
        %v7399 = vpop.f32.mrb[0].mxu0
        %v7400 = vadd.f32 %v7239, %v7399
        %v7401 = vpop.f32.mrb[0].mxu0
        %7402 = vmatprep.mubr.bf16.mxu0 %v6406
        %7403 = vmatmul.mubr.bf16.gmra.mrb[0].mxu0 %v6405
        %v7404 = vpop.f32.mrb[0].mxu0
        %v7405 = vadd.f32 %v7244, %v7404
        %v7406 = vpop.f32.mrb[0].mxu0
        %v7407 = vpop.f32.mrb[0].mxu0
        %v7408 = vadd.f32 %v7247, %v7407
        %v7409 = vpop.f32.mrb[0].mxu0
        %7410 = vmatprep.mubr.bf16.mxu0 %v6414
        %7411 = vmatmul.mubr.bf16.gmra.mrb[0].mxu0 %v6413
        %v7412 = vpop.f32.mrb[0].mxu0
        %v7413 = vadd.f32 %v7252, %v7412
        %v7414 = vpop.f32.mrb[0].mxu0
        %v7415 = vpop.f32.mrb[0].mxu0
        %v7416 = vadd.f32 %v7255, %v7415
        %v7417 = vpop.f32.mrb[0].mxu0
        %7418 = vmatprep.mubr.bf16.mxu0 %v6422
        %7419 = vmatmul.mubr.bf16.gmra.mrb[0].mxu0 %v6421
        %v7420 = vpop.f32.mrb[0].mxu0
        %v7421 = vadd.f32 %v7260, %v7420
        %v7422 = vpop.f32.mrb[0].mxu0
        %v7423 = vpop.f32.mrb[0].mxu0
        %v7424 = vadd.f32 %v7263, %v7423
        %v7425 = vpop.f32.mrb[0].mxu0
        %7426 = vmatprep.mubr.bf16.mxu0 %v6430
        %7427 = vmatmul.mubr.bf16.gmra.mrb[0].mxu0 %v6429
        %v7428 = vpop.f32.mrb[0].mxu0
        %v7429 = vadd.f32 %v7268, %v7428
        %v7430 = vpop.f32.mrb[0].mxu0
        %v7431 = vpop.f32.mrb[0].mxu0
        %v7432 = vadd.f32 %v7271, %v7431
        %v7433 = vpop.f32.mrb[0].mxu0
        %7434 = vmatprep.mubr.bf16.mxu0 %v6438
        %7435 = vmatmul.mubr.bf16.gmra.mrb[0].mxu0 %v6437
        %v7436 = vpop.f32.mrb[0].mxu0
        %v7437 = vadd.f32 %v7276, %v7436
        %v7438 = vpop.f32.mrb[0].mxu0
        %v7439 = vpop.f32.mrb[0].mxu0
        %v7440 = vadd.f32 %v7279, %v7439
        %v7441 = vpop.f32.mrb[0].mxu0
        %7442 = vmatprep.mubr.bf16.mxu0 %v6446
        %7443 = vmatmul.mubr.bf16.gmra.mrb[0].mxu0 %v6445
        %v7444 = vpop.f32.mrb[0].mxu0
        %v7445 = vadd.f32 %v7284, %v7444
        %v7446 = vpop.f32.mrb[0].mxu0
        %v7447 = vpop.f32.mrb[0].mxu0
        %v7448 = vadd.f32 %v7287, %v7447
        %v7449 = vpop.f32.mrb[0].mxu0
        %7450 = vdwg.mxu0
        %7451 = vmatprep.subr.bf16.mxu0 0
        %7452 = vmatpush1.bf16.msra.mxu0 %v6888
        %7453 = vmatprep.subr.bf16.mxu0 0
        %7454 = vmatpush1.bf16.msra.mxu0 %v6889
        %7455 = vmatprep.subr.bf16.mxu0 0
        %7456 = vmatpush1.bf16.msra.mxu0 %v6890
        %7457 = vmatprep.subr.bf16.mxu0 0
        %7458 = vmatpush1.bf16.msra.mxu0 %v6891
        %7459 = vmatprep.subr.bf16.mxu0 0
        %7460 = vmatpush1.bf16.msra.mxu0 %v6892
        %7461 = vmatprep.subr.bf16.mxu0 0
        %7462 = vmatpush1.bf16.msra.mxu0 %v6893
        %7463 = vmatprep.subr.bf16.mxu0 0
        %7464 = vmatpush1.bf16.msra.mxu0 %v6894
        %7465 = vmatprep.subr.bf16.mxu0 0
        %7466 = vmatpush1.bf16.msra.mxu0 %v6895
        %7467 = vmatprep.subr.bf16.mxu0 0
        %7468 = vmatpush1.bf16.msra.mxu0 %v6896
        %7469 = vmatprep.subr.bf16.mxu0 0
        %7470 = vmatpush1.bf16.msra.mxu0 %v6897
        %7471 = vmatprep.subr.bf16.mxu0 0
        %7472 = vmatpush1.bf16.msra.mxu0 %v6898
        %7473 = vmatprep.subr.bf16.mxu0 0
        %7474 = vmatpush1.bf16.msra.mxu0 %v6899
        %7475 = vmatprep.subr.bf16.mxu0 0
        %7476 = vmatpush1.bf16.msra.mxu0 %v6900
        %7477 = vmatprep.subr.bf16.mxu0 0
        %7478 = vmatpush1.bf16.msra.mxu0 %v6901
        %7479 = vmatprep.subr.bf16.mxu0 0
        %7480 = vmatpush1.bf16.msra.mxu0 %v6902
        %7481 = vmatprep.subr.bf16.mxu0 0
        %7482 = vmatpush1.bf16.msra.mxu0 %v6903
        %7483 = vmatprep.mubr.bf16.mxu0 %v6328
        %7484 = vmatmul.mubr.bf16.gmra.mrb[0].mxu0 %v6327
        %v7485 = vpop.f32.mrb[0].mxu0
        %v7486 = vadd.f32 %v7325, %v7485
        %v7487 = vpop.f32.mrb[0].mxu0
        %v7488 = vpop.f32.mrb[0].mxu0
        %v7489 = vadd.f32 %v7328, %v7488
        %v7490 = vpop.f32.mrb[0].mxu0
        %7491 = vmatprep.mubr.bf16.mxu0 %v6336
        %7492 = vmatmul.mubr.bf16.gmra.mrb[0].mxu0 %v6335
        %v7493 = vpop.f32.mrb[0].mxu0
        %v7494 = vadd.f32 %v7333, %v7493
        %v7495 = vpop.f32.mrb[0].mxu0
        %v7496 = vpop.f32.mrb[0].mxu0
        %v7497 = vadd.f32 %v7336, %v7496
        %v7498 = vpop.f32.mrb[0].mxu0
        %7499 = vmatprep.mubr.bf16.mxu0 %v6344
        %7500 = vmatmul.mubr.bf16.gmra.mrb[0].mxu0 %v6343
        %v7501 = vpop.f32.mrb[0].mxu0
        %v7502 = vadd.f32 %v7341, %v7501
        %v7503 = vpop.f32.mrb[0].mxu0
        %v7504 = vpop.f32.mrb[0].mxu0
        %v7505 = vadd.f32 %v7344, %v7504
        %v7506 = vpop.f32.mrb[0].mxu0
        %7507 = vmatprep.mubr.bf16.mxu0 %v6352
        %7508 = vmatmul.mubr.bf16.gmra.mrb[0].mxu0 %v6351
        %v7509 = vpop.f32.mrb[0].mxu0
        %v7510 = vadd.f32 %v7349, %v7509
        %v7511 = vpop.f32.mrb[0].mxu0
        %v7512 = vpop.f32.mrb[0].mxu0
        %v7513 = vadd.f32 %v7352, %v7512
        %v7514 = vpop.f32.mrb[0].mxu0
        %7515 = vmatprep.mubr.bf16.mxu0 %v6360
        %7516 = vmatmul.mubr.bf16.gmra.mrb[0].mxu0 %v6359
        %v7517 = vpop.f32.mrb[0].mxu0
        %v7518 = vadd.f32 %v7357, %v7517
        %v7519 = vpop.f32.mrb[0].mxu0
        %v7520 = vpop.f32.mrb[0].mxu0
        %v7521 = vadd.f32 %v7360, %v7520
        %v7522 = vpop.f32.mrb[0].mxu0
        %7523 = vmatprep.mubr.bf16.mxu0 %v6368
        %7524 = vmatmul.mubr.bf16.gmra.mrb[0].mxu0 %v6367
        %v7525 = vpop.f32.mrb[0].mxu0
        %v7526 = vadd.f32 %v7365, %v7525
        %v7527 = vpop.f32.mrb[0].mxu0
        %v7528 = vpop.f32.mrb[0].mxu0
        %v7529 = vadd.f32 %v7368, %v7528
        %v7530 = vpop.f32.mrb[0].mxu0
        %7531 = vmatprep.mubr.bf16.mxu0 %v6376
        %7532 = vmatmul.mubr.bf16.gmra.mrb[0].mxu0 %v6375
        %v7533 = vpop.f32.mrb[0].mxu0
        %v7534 = vadd.f32 %v7373, %v7533
        %v7535 = vpop.f32.mrb[0].mxu0
        %v7536 = vpop.f32.mrb[0].mxu0
        %v7537 = vadd.f32 %v7376, %v7536
        %v7538 = vpop.f32.mrb[0].mxu0
        %7539 = vmatprep.mubr.bf16.mxu0 %v6384
        %7540 = vmatmul.mubr.bf16.gmra.mrb[0].mxu0 %v6383
        %v7541 = vpop.f32.mrb[0].mxu0
        %v7542 = vadd.f32 %v7381, %v7541
        %v7543 = vpop.f32.mrb[0].mxu0
        %v7544 = vpop.f32.mrb[0].mxu0
        %v7545 = vadd.f32 %v7384, %v7544
        %v7546 = vpop.f32.mrb[0].mxu0
        %7547 = vmatprep.mubr.bf16.mxu0 %v6392
        %7548 = vmatmul.mubr.bf16.gmra.mrb[0].mxu0 %v6391
        %v7549 = vpop.f32.mrb[0].mxu0
        %v7550 = vadd.f32 %v7389, %v7549
        %v7551 = vpop.f32.mrb[0].mxu0
        %v7552 = vpop.f32.mrb[0].mxu0
        %v7553 = vadd.f32 %v7392, %v7552
        %v7554 = vpop.f32.mrb[0].mxu0
        %7555 = vmatprep.mubr.bf16.mxu0 %v6400
        %7556 = vmatmul.mubr.bf16.gmra.mrb[0].mxu0 %v6399
        %v7557 = vpop.f32.mrb[0].mxu0
        %v7558 = vadd.f32 %v7397, %v7557
        %v7559 = vpop.f32.mrb[0].mxu0
        %v7560 = vpop.f32.mrb[0].mxu0
        %v7561 = vadd.f32 %v7400, %v7560
        %v7562 = vpop.f32.mrb[0].mxu0
        %7563 = vmatprep.mubr.bf16.mxu0 %v6408
        %7564 = vmatmul.mubr.bf16.gmra.mrb[0].mxu0 %v6407
        %v7565 = vpop.f32.mrb[0].mxu0
        %v7566 = vadd.f32 %v7405, %v7565
        %v7567 = vpop.f32.mrb[0].mxu0
        %v7568 = vpop.f32.mrb[0].mxu0
        %v7569 = vadd.f32 %v7408, %v7568
        %v7570 = vpop.f32.mrb[0].mxu0
        %7571 = vmatprep.mubr.bf16.mxu0 %v6416
        %7572 = vmatmul.mubr.bf16.gmra.mrb[0].mxu0 %v6415
        %v7573 = vpop.f32.mrb[0].mxu0
        %v7574 = vadd.f32 %v7413, %v7573
        %v7575 = vpop.f32.mrb[0].mxu0
        %v7576 = vpop.f32.mrb[0].mxu0
        %v7577 = vadd.f32 %v7416, %v7576
        %v7578 = vpop.f32.mrb[0].mxu0
        %7579 = vmatprep.mubr.bf16.mxu0 %v6424
        %7580 = vmatmul.mubr.bf16.gmra.mrb[0].mxu0 %v6423
        %v7581 = vpop.f32.mrb[0].mxu0
        %v7582 = vadd.f32 %v7421, %v7581
        %v7583 = vpop.f32.mrb[0].mxu0
        %v7584 = vpop.f32.mrb[0].mxu0
        %v7585 = vadd.f32 %v7424, %v7584
        %v7586 = vpop.f32.mrb[0].mxu0
        %7587 = vmatprep.mubr.bf16.mxu0 %v6432
        %7588 = vmatmul.mubr.bf16.gmra.mrb[0].mxu0 %v6431
        %v7589 = vpop.f32.mrb[0].mxu0
        %v7590 = vadd.f32 %v7429, %v7589
        %v7591 = vpop.f32.mrb[0].mxu0
        %v7592 = vpop.f32.mrb[0].mxu0
        %v7593 = vadd.f32 %v7432, %v7592
        %v7594 = vpop.f32.mrb[0].mxu0
        %7595 = vmatprep.mubr.bf16.mxu0 %v6440
        %7596 = vmatmul.mubr.bf16.gmra.mrb[0].mxu0 %v6439
        %v7597 = vpop.f32.mrb[0].mxu0
        %v7598 = vadd.f32 %v7437, %v7597
        %v7599 = vpop.f32.mrb[0].mxu0
        %v7600 = vpop.f32.mrb[0].mxu0
        %v7601 = vadd.f32 %v7440, %v7600
        %v7602 = vpop.f32.mrb[0].mxu0
        %7603 = vmatprep.mubr.bf16.mxu0 %v6448
        %7604 = vmatmul.mubr.bf16.gmra.mrb[0].mxu0 %v6447
        %v7605 = vpop.f32.mrb[0].mxu0
        %v7606 = vadd.f32 %v7445, %v7605
        %v7607 = vpop.f32.mrb[0].mxu0
        %v7608 = vpop.f32.mrb[0].mxu0
        %v7609 = vadd.f32 %v7448, %v7608
        %v7610 = vpop.f32.mrb[0].mxu0
        %7611 = vdwg.mxu0
        %7612 = vst [vmem:[%s667] sm:$0xff] %v7486
        %7613 = vst [vmem:[%s667 + $0x8] sm:$0xff] %v7489
        %7614 = vst [vmem:[%s667 + $0x10] sm:$0xff] %v7494
        %7615 = vst [vmem:[%s667 + $0x18] sm:$0xff] %v7497
        %7616 = vst [vmem:[%s667 + $0x20] sm:$0xff] %v7502
        %7617 = vst [vmem:[%s667 + $0x28] sm:$0xff] %v7505
        %7618 = vst [vmem:[%s667 + $0x30] sm:$0xff] %v7510
        %7619 = vst [vmem:[%s667 + $0x38] sm:$0xff] %v7513
        %7620 = vst [vmem:[%s667 + $0x40] sm:$0xff] %v7518
        %7621 = vst [vmem:[%s667 + $0x48] sm:$0xff] %v7521
        %7622 = vst [vmem:[%s667 + $0x50] sm:$0xff] %v7526
        %7623 = vst [vmem:[%s667 + $0x58] sm:$0xff] %v7529
        %7624 = vst [vmem:[%s667 + $0x60] sm:$0xff] %v7534
        %7625 = vst [vmem:[%s667 + $0x68] sm:$0xff] %v7537
        %7626 = vst [vmem:[%s667 + $0x70] sm:$0xff] %v7542
        %7627 = vst [vmem:[%s667 + $0x78] sm:$0xff] %v7545
        %7628 = vst [vmem:[%s667 + $0x80] sm:$0xff] %v7550
        %7629 = vst [vmem:[%s667 + $0x88] sm:$0xff] %v7553
        %7630 = vst [vmem:[%s667 + $0x90] sm:$0xff] %v7558
        %7631 = vst [vmem:[%s667 + $0x98] sm:$0xff] %v7561
        %7632 = vst [vmem:[%s667 + $0xa0] sm:$0xff] %v7566
        %7633 = vst [vmem:[%s667 + $0xa8] sm:$0xff] %v7569
        %7634 = vst [vmem:[%s667 + $0xb0] sm:$0xff] %v7574
        %7635 = vst [vmem:[%s667 + $0xb8] sm:$0xff] %v7577
        %7636 = vst [vmem:[%s667 + $0xc0] sm:$0xff] %v7582
        %7637 = vst [vmem:[%s667 + $0xc8] sm:$0xff] %v7585
        %7638 = vst [vmem:[%s667 + $0xd0] sm:$0xff] %v7590
        %7639 = vst [vmem:[%s667 + $0xd8] sm:$0xff] %v7593
        %7640 = vst [vmem:[%s667 + $0xe0] sm:$0xff] %v7598
        %7641 = vst [vmem:[%s667 + $0xe8] sm:$0xff] %v7601
        %7642 = vst [vmem:[%s667 + $0xf0] sm:$0xff] %v7606
        %7643 = vst [vmem:[%s667 + $0xf8] sm:$0xff] %v7609
        %s7644 = sand.u32 %s396, 1
        %s7645 = scalar_lea.sflag [#allocation6], %s7644
        %s7646 = sand.u32 %s396, 1
        %s7647 = smul.addr %s7646, 256
        %s7648 = scalar_lea.vmem [#allocation15], %s7647
        // Predicated region
        $region105: #{tpu_custom_call.1} parent=79 // pred_check
          %p7649 = pneg %p406
        $region106: #{tpu_custom_call.1} parent=79 // pred_check_branch
          %7651 = sbr.rel (%p7649) target = $region108
        $region107: #{tpu_custom_call.1} parent=79 // pred_region
          %s7652 = smul.u32 32, %s42
          %s7654 = ssub.s32 4096, 4096
          %7655 = vsyncadd %s7645, %s7654
          %s7656 = smul.addr %s7652, 128
          %s7657 = scalar_lea.hbm %s16, %s7656
          %s7658 = sshll.u32 %s7648, 4
          %s7659 = int_to_ptr.vmem [resolvable:$true] %s7658
          %7664 = dma.vmem_to_hbm [thread:$0]  %s7659, 4096, %s7657, %s7645, 128, 128, 8
        $region108: #{tpu_custom_call.1} parent=79 // pred_fallthru
          _
      $region80: #{tpu_custom_call.1} parent=5 // pred_fallthru
        _
      %p7665 = scmp.le.s32.totalorder 2, %s37
      // Predicated region
      $region109: #{tpu_custom_call.1} parent=5 // pred_check
        %p7666 = pneg %p7665
      $region110: #{tpu_custom_call.1} parent=5 // pred_check_branch
        %7668 = sbr.rel (%p7666) target = $region112
      $region111: #{tpu_custom_call.1} parent=5 // pred_region
        %s7669 = ssub.s32 %s37, 2
        // Predicated region
        $region113: #{tpu_custom_call.1} parent=111 // pred_check
          %p7670 = pneg %p412
        $region114: #{tpu_custom_call.1} parent=111 // pred_check_branch
          %7672 = sbr.rel (%p7670) target = $region116
        $region115: #{tpu_custom_call.1} parent=111 // pred_region
          %s7673 = sand.u32 %s397, 1
          %s7674 = scalar_lea.sflag [#allocation6], %s7673
          %s7675 = sand.u32 %s397, 1
          %s7676 = smul.addr %s7675, 256
          %s7677 = scalar_lea.vmem [#allocation15], %s7676
          %7678 = dma.done %s7674, 4096
        $region116: #{tpu_custom_call.1} parent=111 // pred_fallthru
          _
      $region112: #{tpu_custom_call.1} parent=5 // pred_fallthru
        _
    $region6: #{tpu_custom_call.1} parent=1 // loop_footer
      %s41 = sadd.s32 1, %s37
    $region7: #{tpu_custom_call.1} parent=1 // loop_footer_branch
      %36 = sbr.rel target = $region3
    $region8: #{tpu_custom_call.1} parent=1 // loop_exit
      _
    %7679 = vsyncpa [#allocation5], 1
    %s7680 = scalar_lea.sflag [#allocation5], 1
    %7681 = vsyncpa %s7680, 1
    %7682 = vsyncpa [#allocation8], 1
    %7683 = vsyncpa [#allocation11], 1
    %7684 = vsyncpa [#allocation14], 1
    %7685 = vsyncpa [#allocation6], 1
    %s7686 = scalar_lea.sflag [#allocation6], 1
    %7687 = vsyncpa %s7686, 1

</llo_original>
